<compile_context>
chip_gen: v7x
topology: tpu7x:2x2x1
jax: 0.10.0
libtpu: 0.0.40
codegen_flags: <defaults>
</compile_context>

<pallas_src>
import collections

import numpy as np

import jax
import jax.numpy as jnp
from jax.experimental import pallas as pl
from jax.experimental.pallas import tpu as pltpu

Genotype = collections.namedtuple("Genotype", "normal normal_concat reduce reduce_concat")

# Stand-in for -inf in max-pool so masked lanes never win (post-BN activations
# are orders of magnitude smaller than 1e30).
_NEG = -1e30


# ---------------------------------------------------------------------------
# pltpu.roll rotation-convention probe (one-time, cached per axis).
#   +1 : pltpu.roll(x, s, axis) == np.roll(x, s, axis)   (out[i] = in[i-s])
#   -1 : opposite convention
#   None : pltpu.roll unusable -> jnp.roll (slice+concat) fallback
# ---------------------------------------------------------------------------
_ROLL_SIGN_CACHE = {}


def _probe_roll_sign(axis):
    if axis in _ROLL_SIGN_CACHE:
        return _ROLL_SIGN_CACHE[axis]
    sign = None
    try:
        def k(x_ref, o_ref):
            o_ref[...] = pltpu.roll(x_ref[...], 1, axis=axis)

        x = np.arange(8 * 128, dtype=np.float32).reshape(8, 128)
        out = pl.pallas_call(
            k, out_shape=jax.ShapeDtypeStruct((8, 128), jnp.float32))(jnp.asarray(x))
        out = np.asarray(jax.block_until_ready(out))
        if np.array_equal(out, np.roll(x, 1, axis=axis)):
            sign = 1
        elif np.array_equal(out, np.roll(x, -1, axis=axis)):
            sign = -1
    except Exception:
        sign = None
    _ROLL_SIGN_CACHE[axis] = sign
    return sign


def _make_roll(axis):
    """Returns roll(x, shift) with np.roll semantics along `axis` (XLU rotate)."""
    sign = _probe_roll_sign(axis)
    if sign is None:
        # TODO(synk): pltpu.roll unavailable/ambiguous on this jax build;
        # jnp.roll (slice + concatenate) fallback is exact but slower.
        return lambda x, shift: jnp.roll(x, shift, axis=axis)

    def roll(x, shift):
        return pltpu.roll(x, (sign * shift) % x.shape[axis], axis=axis)

    return roll


# ---------------------------------------------------------------------------
# Host-side construction of packed / folded parameter matrices
# ---------------------------------------------------------------------------
def _block_diag_1x1(w, scale, W):
    """1x1 conv (Cin->Cout) with folded BN scale as a block-diagonal matrix."""
    Cin, Cout = w.shape
    wf = (w * scale[None, :]).astype(np.float32)
    m = np.zeros((W * Cin, W * Cout), np.float32)
    for wi in range(W):
        m[wi * Cin:(wi + 1) * Cin, wi * Cout:(wi + 1) * Cout] = wf
    return m


def _sep_unit_matrices(wdw, pw, scale, W):
    """Depthwise 3x3 + pointwise 1x1 + BN scale folded into 3 banded (W*C, W*C)
    matrices, one per vertical tap offset dh = kh - 1 in {-1, 0, +1}."""
    C = pw.shape[0]
    L = W * C
    pws = (pw * scale[None, :]).astype(np.float32)          # (C, Cout)
    m = np.zeros((3, L, L), np.float32)
    for kh in range(3):
        for kw in range(3):
            dw = kw - 1
            a = wdw[kh, kw][:, None] * pws                   # (C, Cout)
            for wo in range(W):                               # output W position
                wi = wo + dw                                  # input W position
                if 0 <= wi < W:
                    m[kh, wi * C:(wi + 1) * C, wo * C:(wo + 1) * C] += a
    return m


def _sep_unit_stacked(wdw, pw, scale, W):
    """Stack the three banded tap matrices along K in the taps-LHS order
    [center (dh=0), up (dh=-1), down (dh=+1)] -> one (3*W*C, W*C) matrix."""
    m = _sep_unit_matrices(wdw, pw, scale, W)
    return np.concatenate([m[1], m[0], m[2]], axis=0)


def _row_valid_masks(H, B):
    """(B*H, 1) masks: rm_up = 0 on rows with h%H==0 (no row above in-image),
    rm_dn = 0 on rows with h%H==H-1 (no row below in-image)."""
    rm_up = np.ones((B * H, 1), np.float32)
    rm_dn = np.ones((B * H, 1), np.float32)
    rm_up[0::H, 0] = 0.0
    rm_dn[H - 1::H, 0] = 0.0
    return rm_up, rm_dn


def _lane_valid_masks(W, C):
    """(1, W*C) masks: lm_lt = 0 where w==0 (no left neighbour),
    lm_rt = 0 where w==W-1 (no right neighbour)."""
    lm_lt = np.ones((1, W * C), np.float32)
    lm_rt = np.ones((1, W * C), np.float32)
    lm_lt[0, :C] = 0.0
    lm_rt[0, (W - 1) * C:] = 0.0
    return lm_lt, lm_rt


# ---------------------------------------------------------------------------
# The fused cell kernel (one pallas_call; B images per grid step)
# ---------------------------------------------------------------------------
def _build_cell_kernel(op_names, indices, concat, C, roll_rows, roll_lanes):
    steps = len(op_names) // 2

    def kernel(*refs):
        o_ref = refs[-1]
        (s0_ref, s1_ref, w0_ref, b0_ref, w1_ref, b1_ref,
         rmu_ref, rmd_ref, lml_ref, lmr_ref) = refs[:10]
        op_refs = refs[10:-1]

        def dotf(a, w_ref):
            # weights stored in bf16; convert + accumulate in f32
            return jnp.dot(a, w_ref[...].astype(jnp.float32),
                           preferred_element_type=jnp.float32)

        rm_up = rmu_ref[...]            # (B*H, 1)
        rm_dn = rmd_ref[...]            # (B*H, 1)
        lm_lt = lml_ref[...]            # (1, W*C)
        lm_rt = lmr_ref[...]            # (1, W*C)

        def shift_up(x, fill):          # out[h] = x[h-1] within an image
            return jnp.where(rm_up > 0.5, roll_rows(x, 1), fill)

        def shift_dn(x, fill):          # out[h] = x[h+1] within an image
            return jnp.where(rm_dn > 0.5, roll_rows(x, -1), fill)

        def sep_taps(xr):
            # LHS of the fused K = 3*W*C sep-conv matmul: [center, up, down] taps.
            return jnp.concatenate([xr, shift_up(xr, 0.0), shift_dn(xr, 0.0)],
                                   axis=1)

        def sep_unit(taps, m_ref, b_ref):
            # (ReLU already applied) depthwise 3x3 + pointwise 1x1 + BN folded
            # into one (3*W*C, W*C) matrix; bias is the folded BN shift.
            return dotf(taps, m_ref) + b_ref[...]

        def max_pool_3x3(x):
            lt = jnp.where(lm_lt > 0.5, roll_lanes(x, C), _NEG)
            rt = jnp.where(lm_rt > 0.5, roll_lanes(x, -C), _NEG)
            xw = jnp.maximum(x, jnp.maximum(lt, rt))
            up = shift_up(xw, _NEG)
            dn = shift_dn(xw, _NEG)
            return jnp.maximum(xw, jnp.maximum(up, dn))

        def preprocess(x_ref, w_ref, b_ref):
            # ReLU -> 1x1 conv (block-diagonal over W) -> BN (scale folded)
            return dotf(jnp.maximum(x_ref[...], 0.0), w_ref) + b_ref[...]

        states = [preprocess(s0_ref, w0_ref, b0_ref),
                  preprocess(s1_ref, w1_ref, b1_ref)]

        relu_cache = {}
        taps_cache = {}

        def state_relu(idx):
            if idx not in relu_cache:
                relu_cache[idx] = jnp.maximum(states[idx], 0.0)
            return relu_cache[idx]

        def state_taps(idx):
            if idx not in taps_cache:
                taps_cache[idx] = sep_taps(state_relu(idx))
            return taps_cache[idx]

        pi = 0

        def apply_op(j, idx):
            nonlocal pi
            name = op_names[j]
            if name == "sep_conv_3x3":
                m1, bb1, m2, bb2 = op_refs[pi:pi + 4]
                pi += 4
                y = sep_unit(state_taps(idx), m1, bb1)
                return sep_unit(sep_taps(jnp.maximum(y, 0.0)), m2, bb2)
            if name == "max_pool_3x3":
                return max_pool_3x3(states[idx])
            if name == "skip_connect":
                return states[idx]
            raise ValueError(name)

        for i in range(steps):
            h1 = apply_op(2 * i, indices[2 * i])
            h2 = apply_op(2 * i + 1, indices[2 * i + 1])
            states.append(h1 + h2)

        # Block-contiguous concat (lane = k*(W*C) + w*C + c): one lane-dense
        # 512-lane unmasked store.  The channel interleave to NHWC and the
        # residual add are done in the XLA wrapper (cheap reshape/transpose).
        o_ref[...] = jnp.concatenate([states[si] for si in concat], axis=1)

    return kernel


# ---------------------------------------------------------------------------
# The Cell (parameters + wrapper around the fused pallas_call)
# ---------------------------------------------------------------------------
class PallasCell:
    def __init__(self, key, genotype, layer_no, C_prev_prev, C_prev, C,
                 reduction, reduction_prev):
        # TODO(synk): reduction / reduction_prev branches omitted in this synthetic instance
        assert not reduction and not reduction_prev
        self.layer = layer_no
        self.reduction = reduction
        self.C = C
        self.C_prev_prev = C_prev_prev
        self.C_prev = C_prev

        op_names, indices = zip(*genotype.normal)
        concat = genotype.normal_concat
        assert len(op_names) == len(indices)
        self._steps = len(op_names) // 2
        self._concat = list(concat)
        self.multiplier = len(concat)
        self._op_names = op_names
        self._indices = indices
        self._strides = [2 if reduction and idx < 2 else 1 for idx in indices]
        assert all(s == 1 for s in self._strides)  # TODO(synk): stride-2 ops not implemented

        keys = jax.random.split(key, 2 + len(op_names))
        self.raw_pre0 = self._init_preprocess(keys[0], C_prev_prev, C)
        self.raw_pre1 = self._init_preprocess(keys[1], C_prev, C)
        self.raw_ops = []
        for j, name in enumerate(op_names):
            self.raw_ops.append(self._init_sep_conv(keys[2 + j], C)
                                if name == "sep_conv_3x3" else None)

        self._packed_key = None
        self._flat_params = None
        self._kernel = None
        self._single_buf_consts = None   # None = untried, True/False = resolved

    # -- raw per-channel parameters (also used by the pure-JAX reference) ----
    @staticmethod
    def _bn_affine(key, C, eps=1e-5):
        k1, k2, k3 = jax.random.split(key, 3)
        gamma = 1.0 + 0.1 * jax.random.normal(k1, (C,), jnp.float32)
        beta = 0.1 * jax.random.normal(k2, (C,), jnp.float32)
        running_mean = 0.1 * jax.random.normal(k3, (C,), jnp.float32)
        running_var = jnp.ones((C,), jnp.float32)
        scale = gamma / jnp.sqrt(running_var + eps)
        bias = beta - running_mean * scale
        return scale, bias

    def _init_preprocess(self, key, Cin, Cout):
        kw, kb = jax.random.split(key)
        w = 0.15 * jax.random.normal(kw, (Cin, Cout), jnp.float32)
        scale, bias = self._bn_affine(kb, Cout)
        return dict(w=w, scale=scale, bias=bias)

    def _init_sep_conv(self, key, C):
        ks = jax.random.split(key, 6)
        s1, b1 = self._bn_affine(ks[2], C)
        s2, b2 = self._bn_affine(ks[5], C)
        return dict(
            dw1=0.3 * jax.random.normal(ks[0], (3, 3, C), jnp.float32),
            pw1=0.3 * jax.random.normal(ks[1], (C, C), jnp.float32),
            scale1=s1, bias1=b1,
            dw2=0.3 * jax.random.normal(ks[3], (3, 3, C), jnp.float32),
            pw2=0.3 * jax.random.normal(ks[4], (C, C), jnp.float32),
            scale2=s2, bias2=b2,
        )

    # -- packed, kernel-ready parameters (specialized to H, W, B) -------------
    def _build_packed(self, H, W, B):
        C = self.C
        f = lambda a: np.asarray(a, np.float32)
        wdt = jnp.bfloat16   # matmul weights in bf16: halves constant HBM traffic

        w0 = _block_diag_1x1(f(self.raw_pre0["w"]), f(self.raw_pre0["scale"]), W)
        b0 = np.tile(f(self.raw_pre0["bias"]), W)[None, :]
        w1 = _block_diag_1x1(f(self.raw_pre1["w"]), f(self.raw_pre1["scale"]), W)
        b1 = np.tile(f(self.raw_pre1["bias"]), W)[None, :]
        rm_up, rm_dn = _row_valid_masks(H, B)
        lm_lt, lm_rt = _lane_valid_masks(W, C)

        flat = [jnp.asarray(w0, wdt), jnp.asarray(b0),
                jnp.asarray(w1, wdt), jnp.asarray(b1),
                jnp.asarray(rm_up), jnp.asarray(rm_dn),
                jnp.asarray(lm_lt), jnp.asarray(lm_rt)]
        for name, raw in zip(self._op_names, self.raw_ops):
            if name == "sep_conv_3x3":
                m1 = _sep_unit_stacked(f(raw["dw1"]), f(raw["pw1"]), f(raw["scale1"]), W)
                m2 = _sep_unit_stacked(f(raw["dw2"]), f(raw["pw2"]), f(raw["scale2"]), W)
                flat += [jnp.asarray(m1, wdt),
                         jnp.asarray(np.tile(f(raw["bias1"]), W)[None, :]),
                         jnp.asarray(m2, wdt),
                         jnp.asarray(np.tile(f(raw["bias2"]), W)[None, :])]
        self._flat_params = flat

        roll_rows = _make_roll(0)    # sublane (H) rolls
        roll_lanes = _make_roll(1)   # lane (W*C) rolls
        self._kernel = _build_cell_kernel(self._op_names, self._indices,
                                          self._concat, C, roll_rows, roll_lanes)

    # -- pallas_call wrapper ---------------------------------------------------
    def _pallas_forward(self, s0p, s1p, N, H, W, Cpp, Cp, Ct, B, G,
                        single_buffer_consts):
        def const_spec(a):
            nd = a.ndim
            idx = lambda g, _nd=nd: (0,) * _nd
            if single_buffer_consts:
                # Constant blocks never change index; single buffering halves
                # their VMEM footprint (matters most on v7x's 64 MiB/TC VMEM).
                return pl.BlockSpec(a.shape, idx, pipeline_mode=pl.Buffered(1))
            return pl.BlockSpec(a.shape, idx)

        in_specs = [pl.BlockSpec((B * H, W * Cpp), lambda g: (g, 0)),
                    pl.BlockSpec((B * H, W * Cp), lambda g: (g, 0))]
        in_specs += [const_spec(a) for a in self._flat_params]

        return pl.pallas_call(
            self._kernel,
            out_shape=jax.ShapeDtypeStruct((N * H, W * Ct), jnp.float32),
            grid=(G,),                       # B images per step; 2-way split on v7x
            in_specs=in_specs,
            out_specs=pl.BlockSpec((B * H, W * Ct), lambda g: (g, 0)),
            compiler_params=pltpu.CompilerParams(
                dimension_semantics=("parallel",),
                # <= 48 MiB so the same tiling fits v7x's 64 MiB/TC VMEM while
                # still lifting v5e above its 16 MiB default scoped limit.
                vmem_limit_bytes=48 * 1024 * 1024),
        )(s0p, s1p, *self._flat_params)

    def _run(self, s0p, s1p, N, H, W, Cpp, Cp, Ct, B, G):
        if self._single_buf_consts is not False:
            try:
                out = self._pallas_forward(s0p, s1p, N, H, W, Cpp, Cp, Ct, B, G,
                                           single_buffer_consts=True)
                out = jax.block_until_ready(out)
                self._single_buf_consts = True
                return out
            except Exception:
                # TODO(synk): pl.Buffered(1) rejected on this jax build; fall back
                # to default double-buffered constant BlockSpecs.
                self._single_buf_consts = False
        return self._pallas_forward(s0p, s1p, N, H, W, Cpp, Cp, Ct, B, G,
                                    single_buffer_consts=False)

    # -- forward --------------------------------------------------------------
    def __call__(self, s0, s1, drop_prob=0.0):
        # Eval-mode forward: drop_path is a no-op (reference applies it only when
        # self.training and drop_prob > 0).
        # TODO(synk): training-mode drop_path not implemented.
        del drop_prob
        N, H, W, Cpp = s0.shape
        _, _, _, Cp = s1.shape
        C = self.C
        Ct = self.multiplier * C
        assert Cpp == self.C_prev_prev and Cp == self.C_prev
        assert (H % 8 == 0 and (W * C) % 128 == 0 and (W * Cpp) % 128 == 0
                and (W * Cp) % 128 == 0), \
            "TODO(synk): pad H / W*C to TPU tile multiples for general shapes"
        add_residual = (self.layer != 0) and (not self.reduction)
        if add_residual:
            assert Cp == Ct  # residual add requires matching channels

        # Batch B images per grid step so matmul M = B*H reaches ~128 and the
        # per-step overhead amortizes; per-image row masks keep rolls in-image.
        B = max(1, min(N, pl.cdiv(128, H)))
        G = pl.cdiv(N, B)

        if self._packed_key != (H, W, B):
            self._build_packed(H, W, B)
            self._packed_key = (H, W, B)

        s0p = s0.reshape(N * H, W * Cpp)   # rows = N*H, lanes = W*C (lane-dense)
        s1p = s1.reshape(N * H, W * Cp)

        out_packed = self._run(s0p, s1p, N, H, W, Cpp, Cp, Ct, B, G)

        # Channel interleave (k*C + c) + residual add in the XLA wrapper: touches
        # only ~64-128 KiB, vs. the removed in-kernel scatter matmuls.
        out = out_packed.reshape(N, H, self.multiplier, W, C)
        out = out.transpose(0, 1, 3, 2, 4).reshape(N, H, W, Ct)
        if add_residual:
            out = out + s1
        return out


# ---------------------------------------------------------------------------
# Pure-JAX (non-Pallas) reference of the same eval-mode forward
# ---------------------------------------------------------------------------
def ref_cell_forward(cell, s0, s1):
    hp = jax.lax.Precision.HIGHEST

    def prep(p, x):
        y = jnp.einsum("nhwi,io->nhwo", jnp.maximum(x, 0.0), p["w"], precision=hp)
        return y * p["scale"] + p["bias"]

    def sep_unit(x, dw, pw, sc, bi):
        n, h, w, c = x.shape
        xr = jnp.maximum(x, 0.0)
        xp = jnp.pad(xr, ((0, 0), (1, 1), (1, 1), (0, 0)))
        d = jnp.zeros_like(x)
        for kh in range(3):
            for kw in range(3):
                d = d + xp[:, kh:kh + h, kw:kw + w, :] * dw[kh, kw]
        y = jnp.einsum("nhwc,co->nhwo", d, pw, precision=hp)
        return y * sc + bi

    def sep_conv(p, x):
        y = sep_unit(x, p["dw1"], p["pw1"], p["scale1"], p["bias1"])
        return sep_unit(y, p["dw2"], p["pw2"], p["scale2"], p["bias2"])

    def max_pool(x):
        n, h, w, c = x.shape
        xp = jnp.pad(x, ((0, 0), (1, 1), (1, 1), (0, 0)), constant_values=-jnp.inf)
        o = jnp.full_like(x, -jnp.inf)
        for kh in range(3):
            for kw in range(3):
                o = jnp.maximum(o, xp[:, kh:kh + h, kw:kw + w, :])
        return o

    res1 = s1
    states = [prep(cell.raw_pre0, s0), prep(cell.raw_pre1, s1)]
    for i in range(cell._steps):
        hs = []
        for j in (2 * i, 2 * i + 1):
            name = cell._op_names[j]
            x = states[cell._indices[j]]
            if name == "sep_conv_3x3":
                hs.append(sep_conv(cell.raw_ops[j], x))
            elif name == "max_pool_3x3":
                hs.append(max_pool(x))
            else:
                hs.append(x)
        states.append(hs[0] + hs[1])
    out = jnp.concatenate([states[i] for i in cell._concat], axis=-1)
    if cell.layer != 0 and not cell.reduction:
        out = out + res1
    return out


# ---------------------------------------------------------------------------
if __name__ == "__main__":
    key = jax.random.PRNGKey(0)
    C = 8
    C_prev_prev = C_prev = 4 * C          # residual add requires C_prev == multiplier * C
    N, H, W = 2, 16, 16                   # W * C = 128 -> fully dense lane axis

    genotype = Genotype(
        normal=[("sep_conv_3x3", 0), ("max_pool_3x3", 1),
                ("sep_conv_3x3", 0), ("skip_connect", 1),
                ("skip_connect", 0), ("sep_conv_3x3", 1),
                ("max_pool_3x3", 0), ("skip_connect", 2)],
        normal_concat=[2, 3, 4, 5],
        reduce=[], reduce_concat=[])

    kparams, k0, k1 = jax.random.split(key, 3)
    cell = PallasCell(kparams, genotype, layer_no=1,
                      C_prev_prev=C_prev_prev, C_prev=C_prev, C=C,
                      reduction=False, reduction_prev=False)

    s0 = jax.random.normal(k0, (N, H, W, C_prev_prev), jnp.float32)
    s1 = jax.random.normal(k1, (N, H, W, C_prev), jnp.float32)

    out = cell(s0, s1, drop_prob=0.2)
    out = jax.block_until_ready(out)

    assert out.shape == (N, H, W, cell.multiplier * C)
    assert bool(jnp.all(jnp.isfinite(out)))

    # correctness check against the pure-JAX reference of the same forward
    ref = jax.block_until_ready(ref_cell_forward(cell, s0, s1))
    err = float(jnp.max(jnp.abs(out - ref)))
    assert bool(jnp.allclose(out, ref, rtol=3e-2, atol=3e-2)), err

    print("KERNEL_OK")
</pallas_src>

<mosaic_0001>
module attributes {stable_mosaic.version = 11 : i64} {
  func.func @k(%arg0: memref<8x128xf32, #tpu.memory_space<vmem>>, %arg1: memref<8x128xf32, #tpu.memory_space<vmem>>) attributes {dimension_semantics = [], scalar_prefetch = 0 : i64, scratch_operands = 0 : i64, tpu.core_type = #tpu.core_type<tc>} {
    %c0 = arith.constant 0 : index
    %c0_0 = arith.constant 0 : index
    %0 = vector.load %arg0[%c0, %c0_0] : memref<8x128xf32, #tpu.memory_space<vmem>>, vector<8x128xf32>
    %c1_i32 = arith.constant 1 : i32
    %1 = tpu.dynamic_rotate %0 by %c1_i32 dim 0 : vector<8x128xf32>, i32 -> vector<8x128xf32>
    %c0_1 = arith.constant 0 : index
    %c0_2 = arith.constant 0 : index
    %2 = vector.load %arg1[%c0_1, %c0_2] : memref<8x128xf32, #tpu.memory_space<vmem>>, vector<8x128xf32>
    tpu.vector_store %arg1[%c0_1, %c0_2], %1 {strides = array<i32>} : memref<8x128xf32, #tpu.memory_space<vmem>>, vector<8x128xf32>,
    return
  }
}

module attributes {stable_mosaic.version = 11 : i64} {
  func.func @k(%arg0: memref<8x128xf32, #tpu.memory_space<vmem>>, %arg1: memref<8x128xf32, #tpu.memory_space<vmem>>) attributes {dimension_semantics = [], scalar_prefetch = 0 : i64, scratch_operands = 0 : i64, tpu.core_type = #tpu.core_type<tc>} {
    %c0 = arith.constant 0 : index
    %c0_0 = arith.constant 0 : index
    %0 = vector.load %arg0[%c0, %c0_0] : memref<8x128xf32, #tpu.memory_space<vmem>>, vector<8x128xf32>
    %c1_i32 = arith.constant 1 : i32
    %1 = tpu.dynamic_rotate %0 by %c1_i32 dim 1 : vector<8x128xf32>, i32 -> vector<8x128xf32>
    %c0_1 = arith.constant 0 : index
    %c0_2 = arith.constant 0 : index
    %2 = vector.load %arg1[%c0_1, %c0_2] : memref<8x128xf32, #tpu.memory_space<vmem>>, vector<8x128xf32>
    tpu.vector_store %arg1[%c0_1, %c0_2], %1 {strides = array<i32>} : memref<8x128xf32, #tpu.memory_space<vmem>>, vector<8x128xf32>,
    return
  }
}

module attributes {stable_mosaic.version = 11 : i64} {
  func.func @kernel(%arg0: i32, %arg1: memref<32x512xf32, #tpu.memory_space<vmem>>, %arg2: memref<32x512xf32, #tpu.memory_space<vmem>>, %arg3: memref<512x128xbf16, #tpu.memory_space<vmem>>, %arg4: memref<1x128xf32, #tpu.memory_space<vmem>>, %arg5: memref<512x128xbf16, #tpu.memory_space<vmem>>, %arg6: memref<1x128xf32, #tpu.memory_space<vmem>>, %arg7: memref<32x1xf32, #tpu.memory_space<vmem>>, %arg8: memref<32x1xf32, #tpu.memory_space<vmem>>, %arg9: memref<1x128xf32, #tpu.memory_space<vmem>>, %arg10: memref<1x128xf32, #tpu.memory_space<vmem>>, %arg11: memref<384x128xbf16, #tpu.memory_space<vmem>>, %arg12: memref<1x128xf32, #tpu.memory_space<vmem>>, %arg13: memref<384x128xbf16, #tpu.memory_space<vmem>>, %arg14: memref<1x128xf32, #tpu.memory_space<vmem>>, %arg15: memref<384x128xbf16, #tpu.memory_space<vmem>>, %arg16: memref<1x128xf32, #tpu.memory_space<vmem>>, %arg17: memref<384x128xbf16, #tpu.memory_space<vmem>>, %arg18: memref<1x128xf32, #tpu.memory_space<vmem>>, %arg19: memref<384x128xbf16, #tpu.memory_space<vmem>>, %arg20: memref<1x128xf32, #tpu.memory_space<vmem>>, %arg21: memref<384x128xbf16, #tpu.memory_space<vmem>>, %arg22: memref<1x128xf32, #tpu.memory_space<vmem>>, %arg23: memref<32x512xf32, #tpu.memory_space<vmem>>) attributes {dimension_semantics = [#tpu.dimension_semantics<parallel>], iteration_bounds = array<i64: 1>, scalar_prefetch = 0 : i64, scratch_operands = 0 : i64, tpu.core_type = #tpu.core_type<tc>, window_params = [{transform_indices = @transform_0, window_bounds = array<i64: 32, 512>}, {transform_indices = @transform_1, window_bounds = array<i64: 32, 512>}, {pipeline_mode = #tpu.pipeline_mode<synchronous>, transform_indices = @transform_2, window_bounds = array<i64: 512, 128>}, {pipeline_mode = #tpu.pipeline_mode<synchronous>, transform_indices = @transform_3, window_bounds = array<i64: 1, 128>}, {pipeline_mode = #tpu.pipeline_mode<synchronous>, transform_indices = @transform_4, window_bounds = array<i64: 512, 128>}, {pipeline_mode = #tpu.pipeline_mode<synchronous>, transform_indices = @transform_5, window_bounds = array<i64: 1, 128>}, {pipeline_mode = #tpu.pipeline_mode<synchronous>, transform_indices = @transform_6, window_bounds = array<i64: 32, 1>}, {pipeline_mode = #tpu.pipeline_mode<synchronous>, transform_indices = @transform_7, window_bounds = array<i64: 32, 1>}, {pipeline_mode = #tpu.pipeline_mode<synchronous>, transform_indices = @transform_8, window_bounds = array<i64: 1, 128>}, {pipeline_mode = #tpu.pipeline_mode<synchronous>, transform_indices = @transform_9, window_bounds = array<i64: 1, 128>}, {pipeline_mode = #tpu.pipeline_mode<synchronous>, transform_indices = @transform_10, window_bounds = array<i64: 384, 128>}, {pipeline_mode = #tpu.pipeline_mode<synchronous>, transform_indices = @transform_11, window_bounds = array<i64: 1, 128>}, {pipeline_mode = #tpu.pipeline_mode<synchronous>, transform_indices = @transform_12, window_bounds = array<i64: 384, 128>}, {pipeline_mode = #tpu.pipeline_mode<synchronous>, transform_indices = @transform_13, window_bounds = array<i64: 1, 128>}, {pipeline_mode = #tpu.pipeline_mode<synchronous>, transform_indices = @transform_14, window_bounds = array<i64: 384, 128>}, {pipeline_mode = #tpu.pipeline_mode<synchronous>, transform_indices = @transform_15, window_bounds = array<i64: 1, 128>}, {pipeline_mode = #tpu.pipeline_mode<synchronous>, transform_indices = @transform_16, window_bounds = array<i64: 384, 128>}, {pipeline_mode = #tpu.pipeline_mode<synchronous>, transform_indices = @transform_17, window_bounds = array<i64: 1, 128>}, {pipeline_mode = #tpu.pipeline_mode<synchronous>, transform_indices = @transform_18, window_bounds = array<i64: 384, 128>}, {pipeline_mode = #tpu.pipeline_mode<synchronous>, transform_indices = @transform_19, window_bounds = array<i64: 1, 128>}, {pipeline_mode = #tpu.pipeline_mode<synchronous>, transform_indices = @transform_20, window_bounds = array<i64: 384, 128>}, {pipeline_mode = #tpu.pipeline_mode<synchronous>, transform_indices = @transform_21, window_bounds = array<i64: 1, 128>}, {transform_indices = @transform_22, window_bounds = array<i64: 32, 512>}]} {
    %c0 = arith.constant 0 : index
    %c0_0 = arith.constant 0 : index
    %0 = vector.load %arg7[%c0, %c0_0] : memref<32x1xf32, #tpu.memory_space<vmem>>, vector<32x1xf32>
    %c0_1 = arith.constant 0 : index
    %c0_2 = arith.constant 0 : index
    %1 = vector.load %arg8[%c0_1, %c0_2] : memref<32x1xf32, #tpu.memory_space<vmem>>, vector<32x1xf32>
    %c0_3 = arith.constant 0 : index
    %c0_4 = arith.constant 0 : index
    %2 = vector.load %arg9[%c0_3, %c0_4] : memref<1x128xf32, #tpu.memory_space<vmem>>, vector<1x128xf32>
    %c0_5 = arith.constant 0 : index
    %c0_6 = arith.constant 0 : index
    %3 = vector.load %arg10[%c0_5, %c0_6] : memref<1x128xf32, #tpu.memory_space<vmem>>, vector<1x128xf32>
    %c0_7 = arith.constant 0 : index
    %c0_8 = arith.constant 0 : index
    %4 = vector.load %arg1[%c0_7, %c0_8] : memref<32x512xf32, #tpu.memory_space<vmem>>, vector<32x512xf32>
    %cst = arith.constant 0.000000e+00 : f32
    %5 = vector.broadcast %cst : f32 to vector<32x512xf32>
    %6 = arith.maximumf %4, %5 : vector<32x512xf32>
    %c0_9 = arith.constant 0 : index
    %c0_10 = arith.constant 0 : index
    %7 = vector.load %arg3[%c0_9, %c0_10] : memref<512x128xbf16, #tpu.memory_space<vmem>>, vector<512x128xbf16>
    %8 = arith.extf %7 : vector<512x128xbf16> to vector<512x128xf32>
    %cst_11 = arith.constant dense<0.000000e+00> : vector<32x128xf32>
    %9 = tpu.matmul %6, %8, %cst_11 {dimension_numbers = #tpu.dot_dimension_numbers<[1], [0], [0], [1], [0, 0, 1, 1], [], []>} : vector<32x512xf32>, vector<512x128xf32>, vector<32x128xf32> -> vector<32x128xf32>
    %c0_12 = arith.constant 0 : index
    %c0_13 = arith.constant 0 : index
    %10 = vector.load %arg4[%c0_12, %c0_13] : memref<1x128xf32, #tpu.memory_space<vmem>>, vector<1x128xf32>
    %11 = vector.broadcast %10 : vector<1x128xf32> to vector<32x128xf32>
    %12 = arith.addf %9, %11 : vector<32x128xf32>
    %c0_14 = arith.constant 0 : index
    %c0_15 = arith.constant 0 : index
    %13 = vector.load %arg2[%c0_14, %c0_15] : memref<32x512xf32, #tpu.memory_space<vmem>>, vector<32x512xf32>
    %cst_16 = arith.constant 0.000000e+00 : f32
    %14 = vector.broadcast %cst_16 : f32 to vector<32x512xf32>
    %15 = arith.maximumf %13, %14 : vector<32x512xf32>
    %c0_17 = arith.constant 0 : index
    %c0_18 = arith.constant 0 : index
    %16 = vector.load %arg5[%c0_17, %c0_18] : memref<512x128xbf16, #tpu.memory_space<vmem>>, vector<512x128xbf16>
    %17 = arith.extf %16 : vector<512x128xbf16> to vector<512x128xf32>
    %cst_19 = arith.constant dense<0.000000e+00> : vector<32x128xf32>
    %18 = tpu.matmul %15, %17, %cst_19 {dimension_numbers = #tpu.dot_dimension_numbers<[1], [0], [0], [1], [0, 0, 1, 1], [], []>} : vector<32x512xf32>, vector<512x128xf32>, vector<32x128xf32> -> vector<32x128xf32>
    %c0_20 = arith.constant 0 : index
    %c0_21 = arith.constant 0 : index
    %19 = vector.load %arg6[%c0_20, %c0_21] : memref<1x128xf32, #tpu.memory_space<vmem>>, vector<1x128xf32>
    %20 = vector.broadcast %19 : vector<1x128xf32> to vector<32x128xf32>
    %21 = arith.addf %18, %20 : vector<32x128xf32>
    %cst_22 = arith.constant 0.000000e+00 : f32
    %22 = vector.broadcast %cst_22 : f32 to vector<32x128xf32>
    %23 = arith.maximumf %12, %22 : vector<32x128xf32>
    %cst_23 = arith.constant 5.000000e-01 : f32
    %24 = vector.broadcast %cst_23 : f32 to vector<32x1xf32>
    %25 = arith.cmpf ogt, %0, %24 : vector<32x1xf32>
    %26 = vector.extract_strided_slice %23 {offsets = [31, 0], sizes = [1, 128], strides = [1, 1]} : vector<32x128xf32> to vector<1x128xf32>
    %27 = vector.extract_strided_slice %23 {offsets = [0, 0], sizes = [31, 128], strides = [1, 1]} : vector<32x128xf32> to vector<31x128xf32>
    %28 = tpu.concatenate %26, %27 in 0 : vector<1x128xf32>, vector<31x128xf32> -> vector<32x128xf32>
    %cst_24 = arith.constant 0.000000e+00 : f32
    %29 = vector.shape_cast %25 : vector<32x1xi1> to vector<32x1xi1>
    %30 = vector.broadcast %29 : vector<32x1xi1> to vector<32x128xi1>
    %31 = vector.broadcast %cst_24 : f32 to vector<32x128xf32>
    %32 = arith.select %30, %28, %31 : vector<32x128xi1>, vector<32x128xf32>
    %cst_25 = arith.constant 5.000000e-01 : f32
    %33 = vector.broadcast %cst_25 : f32 to vector<32x1xf32>
    %34 = arith.cmpf ogt, %1, %33 : vector<32x1xf32>
    %35 = vector.extract_strided_slice %23 {offsets = [1, 0], sizes = [31, 128], strides = [1, 1]} : vector<32x128xf32> to vector<31x128xf32>
    %36 = vector.extract_strided_slice %23 {offsets = [0, 0], sizes = [1, 128], strides = [1, 1]} : vector<32x128xf32> to vector<1x128xf32>
    %37 = tpu.concatenate %35, %36 in 0 : vector<31x128xf32>, vector<1x128xf32> -> vector<32x128xf32>
    %cst_26 = arith.constant 0.000000e+00 : f32
    %38 = vector.shape_cast %34 : vector<32x1xi1> to vector<32x1xi1>
    %39 = vector.broadcast %38 : vector<32x1xi1> to vector<32x128xi1>
    %40 = vector.broadcast %cst_26 : f32 to vector<32x128xf32>
    %41 = arith.select %39, %37, %40 : vector<32x128xi1>, vector<32x128xf32>
    %42 = tpu.concatenate %23, %32, %41 in 1 : vector<32x128xf32>, vector<32x128xf32>, vector<32x128xf32> -> vector<32x384xf32>
    %c0_27 = arith.constant 0 : index
    %c0_28 = arith.constant 0 : index
    %43 = vector.load %arg11[%c0_27, %c0_28] : memref<384x128xbf16, #tpu.memory_space<vmem>>, vector<384x128xbf16>
    %44 = arith.extf %43 : vector<384x128xbf16> to vector<384x128xf32>
    %cst_29 = arith.constant dense<0.000000e+00> : vector<32x128xf32>
    %45 = tpu.matmul %42, %44, %cst_29 {dimension_numbers = #tpu.dot_dimension_numbers<[1], [0], [0], [1], [0, 0, 1, 1], [], []>} : vector<32x384xf32>, vector<384x128xf32>, vector<32x128xf32> -> vector<32x128xf32>
    %c0_30 = arith.constant 0 : index
    %c0_31 = arith.constant 0 : index
    %46 = vector.load %arg12[%c0_30, %c0_31] : memref<1x128xf32, #tpu.memory_space<vmem>>, vector<1x128xf32>
    %47 = vector.broadcast %46 : vector<1x128xf32> to vector<32x128xf32>
    %48 = arith.addf %45, %47 : vector<32x128xf32>
    %cst_32 = arith.constant 0.000000e+00 : f32
    %49 = vector.broadcast %cst_32 : f32 to vector<32x128xf32>
    %50 = arith.maximumf %48, %49 : vector<32x128xf32>
    %cst_33 = arith.constant 5.000000e-01 : f32
    %51 = vector.broadcast %cst_33 : f32 to vector<32x1xf32>
    %52 = arith.cmpf ogt, %0, %51 : vector<32x1xf32>
    %53 = vector.extract_strided_slice %50 {offsets = [31, 0], sizes = [1, 128], strides = [1, 1]} : vector<32x128xf32> to vector<1x128xf32>
    %54 = vector.extract_strided_slice %50 {offsets = [0, 0], sizes = [31, 128], strides = [1, 1]} : vector<32x128xf32> to vector<31x128xf32>
    %55 = tpu.concatenate %53, %54 in 0 : vector<1x128xf32>, vector<31x128xf32> -> vector<32x128xf32>
    %cst_34 = arith.constant 0.000000e+00 : f32
    %56 = vector.shape_cast %52 : vector<32x1xi1> to vector<32x1xi1>
    %57 = vector.broadcast %56 : vector<32x1xi1> to vector<32x128xi1>
    %58 = vector.broadcast %cst_34 : f32 to vector<32x128xf32>
    %59 = arith.select %57, %55, %58 : vector<32x128xi1>, vector<32x128xf32>
    %cst_35 = arith.constant 5.000000e-01 : f32
    %60 = vector.broadcast %cst_35 : f32 to vector<32x1xf32>
    %61 = arith.cmpf ogt, %1, %60 : vector<32x1xf32>
    %62 = vector.extract_strided_slice %50 {offsets = [1, 0], sizes = [31, 128], strides = [1, 1]} : vector<32x128xf32> to vector<31x128xf32>
    %63 = vector.extract_strided_slice %50 {offsets = [0, 0], sizes = [1, 128], strides = [1, 1]} : vector<32x128xf32> to vector<1x128xf32>
    %64 = tpu.concatenate %62, %63 in 0 : vector<31x128xf32>, vector<1x128xf32> -> vector<32x128xf32>
    %cst_36 = arith.constant 0.000000e+00 : f32
    %65 = vector.shape_cast %61 : vector<32x1xi1> to vector<32x1xi1>
    %66 = vector.broadcast %65 : vector<32x1xi1> to vector<32x128xi1>
    %67 = vector.broadcast %cst_36 : f32 to vector<32x128xf32>
    %68 = arith.select %66, %64, %67 : vector<32x128xi1>, vector<32x128xf32>
    %69 = tpu.concatenate %50, %59, %68 in 1 : vector<32x128xf32>, vector<32x128xf32>, vector<32x128xf32> -> vector<32x384xf32>
    %c0_37 = arith.constant 0 : index
    %c0_38 = arith.constant 0 : index
    %70 = vector.load %arg13[%c0_37, %c0_38] : memref<384x128xbf16, #tpu.memory_space<vmem>>, vector<384x128xbf16>
    %71 = arith.extf %70 : vector<384x128xbf16> to vector<384x128xf32>
    %cst_39 = arith.constant dense<0.000000e+00> : vector<32x128xf32>
    %72 = tpu.matmul %69, %71, %cst_39 {dimension_numbers = #tpu.dot_dimension_numbers<[1], [0], [0], [1], [0, 0, 1, 1], [], []>} : vector<32x384xf32>, vector<384x128xf32>, vector<32x128xf32> -> vector<32x128xf32>
    %c0_40 = arith.constant 0 : index
    %c0_41 = arith.constant 0 : index
    %73 = vector.load %arg14[%c0_40, %c0_41] : memref<1x128xf32, #tpu.memory_space<vmem>>, vector<1x128xf32>
    %74 = vector.broadcast %73 : vector<1x128xf32> to vector<32x128xf32>
    %75 = arith.addf %72, %74 : vector<32x128xf32>
    %cst_42 = arith.constant 5.000000e-01 : f32
    %76 = vector.broadcast %cst_42 : f32 to vector<1x128xf32>
    %77 = arith.cmpf ogt, %2, %76 : vector<1x128xf32>
    %78 = vector.extract_strided_slice %21 {offsets = [0, 120], sizes = [32, 8], strides = [1, 1]} : vector<32x128xf32> to vector<32x8xf32>
    %79 = vector.extract_strided_slice %21 {offsets = [0, 0], sizes = [32, 120], strides = [1, 1]} : vector<32x128xf32> to vector<32x120xf32>
    %80 = tpu.concatenate %78, %79 in 1 : vector<32x8xf32>, vector<32x120xf32> -> vector<32x128xf32>
    %cst_43 = arith.constant -1.000000e+30 : f32
    %81 = vector.shape_cast %77 : vector<1x128xi1> to vector<1x128xi1>
    %82 = vector.broadcast %81 : vector<1x128xi1> to vector<32x128xi1>
    %83 = vector.broadcast %cst_43 : f32 to vector<32x128xf32>
    %84 = arith.select %82, %80, %83 : vector<32x128xi1>, vector<32x128xf32>
    %cst_44 = arith.constant 5.000000e-01 : f32
    %85 = vector.broadcast %cst_44 : f32 to vector<1x128xf32>
    %86 = arith.cmpf ogt, %3, %85 : vector<1x128xf32>
    %87 = vector.extract_strided_slice %21 {offsets = [0, 8], sizes = [32, 120], strides = [1, 1]} : vector<32x128xf32> to vector<32x120xf32>
    %88 = vector.extract_strided_slice %21 {offsets = [0, 0], sizes = [32, 8], strides = [1, 1]} : vector<32x128xf32> to vector<32x8xf32>
    %89 = tpu.concatenate %87, %88 in 1 : vector<32x120xf32>, vector<32x8xf32> -> vector<32x128xf32>
    %cst_45 = arith.constant -1.000000e+30 : f32
    %90 = vector.shape_cast %86 : vector<1x128xi1> to vector<1x128xi1>
    %91 = vector.broadcast %90 : vector<1x128xi1> to vector<32x128xi1>
    %92 = vector.broadcast %cst_45 : f32 to vector<32x128xf32>
    %93 = arith.select %91, %89, %92 : vector<32x128xi1>, vector<32x128xf32>
    %94 = arith.maximumf %84, %93 : vector<32x128xf32>
    %95 = arith.maximumf %21, %94 : vector<32x128xf32>
    %cst_46 = arith.constant 5.000000e-01 : f32
    %96 = vector.broadcast %cst_46 : f32 to vector<32x1xf32>
    %97 = arith.cmpf ogt, %0, %96 : vector<32x1xf32>
    %98 = vector.extract_strided_slice %95 {offsets = [31, 0], sizes = [1, 128], strides = [1, 1]} : vector<32x128xf32> to vector<1x128xf32>
    %99 = vector.extract_strided_slice %95 {offsets = [0, 0], sizes = [31, 128], strides = [1, 1]} : vector<32x128xf32> to vector<31x128xf32>
    %100 = tpu.concatenate %98, %99 in 0 : vector<1x128xf32>, vector<31x128xf32> -> vector<32x128xf32>
    %cst_47 = arith.constant -1.000000e+30 : f32
    %101 = vector.shape_cast %97 : vector<32x1xi1> to vector<32x1xi1>
    %102 = vector.broadcast %101 : vector<32x1xi1> to vector<32x128xi1>
    %103 = vector.broadcast %cst_47 : f32 to vector<32x128xf32>
    %104 = arith.select %102, %100, %103 : vector<32x128xi1>, vector<32x128xf32>
    %cst_48 = arith.constant 5.000000e-01 : f32
    %105 = vector.broadcast %cst_48 : f32 to vector<32x1xf32>
    %106 = arith.cmpf ogt, %1, %105 : vector<32x1xf32>
    %107 = vector.extract_strided_slice %95 {offsets = [1, 0], sizes = [31, 128], strides = [1, 1]} : vector<32x128xf32> to vector<31x128xf32>
    %108 = vector.extract_strided_slice %95 {offsets = [0, 0], sizes = [1, 128], strides = [1, 1]} : vector<32x128xf32> to vector<1x128xf32>
    %109 = tpu.concatenate %107, %108 in 0 : vector<31x128xf32>, vector<1x128xf32> -> vector<32x128xf32>
    %cst_49 = arith.constant -1.000000e+30 : f32
    %110 = vector.shape_cast %106 : vector<32x1xi1> to vector<32x1xi1>
    %111 = vector.broadcast %110 : vector<32x1xi1> to vector<32x128xi1>
    %112 = vector.broadcast %cst_49 : f32 to vector<32x128xf32>
    %113 = arith.select %111, %109, %112 : vector<32x128xi1>, vector<32x128xf32>
    %114 = arith.maximumf %104, %113 : vector<32x128xf32>
    %115 = arith.maximumf %95, %114 : vector<32x128xf32>
    %116 = arith.addf %75, %115 : vector<32x128xf32>
    %c0_50 = arith.constant 0 : index
    %c0_51 = arith.constant 0 : index
    %117 = vector.load %arg15[%c0_50, %c0_51] : memref<384x128xbf16, #tpu.memory_space<vmem>>, vector<384x128xbf16>
    %118 = arith.extf %117 : vector<384x128xbf16> to vector<384x128xf32>
    %cst_52 = arith.constant dense<0.000000e+00> : vector<32x128xf32>
    %119 = tpu.matmul %42, %118, %cst_52 {dimension_numbers = #tpu.dot_dimension_numbers<[1], [0], [0], [1], [0, 0, 1, 1], [], []>} : vector<32x384xf32>, vector<384x128xf32>, vector<32x128xf32> -> vector<32x128xf32>
    %c0_53 = arith.constant 0 : index
    %c0_54 = arith.constant 0 : index
    %120 = vector.load %arg16[%c0_53, %c0_54] : memref<1x128xf32, #tpu.memory_space<vmem>>, vector<1x128xf32>
    %121 = vector.broadcast %120 : vector<1x128xf32> to vector<32x128xf32>
    %122 = arith.addf %119, %121 : vector<32x128xf32>
    %cst_55 = arith.constant 0.000000e+00 : f32
    %123 = vector.broadcast %cst_55 : f32 to vector<32x128xf32>
    %124 = arith.maximumf %122, %123 : vector<32x128xf32>
    %cst_56 = arith.constant 5.000000e-01 : f32
    %125 = vector.broadcast %cst_56 : f32 to vector<32x1xf32>
    %126 = arith.cmpf ogt, %0, %125 : vector<32x1xf32>
    %127 = vector.extract_strided_slice %124 {offsets = [31, 0], sizes = [1, 128], strides = [1, 1]} : vector<32x128xf32> to vector<1x128xf32>
    %128 = vector.extract_strided_slice %124 {offsets = [0, 0], sizes = [31, 128], strides = [1, 1]} : vector<32x128xf32> to vector<31x128xf32>
    %129 = tpu.concatenate %127, %128 in 0 : vector<1x128xf32>, vector<31x128xf32> -> vector<32x128xf32>
    %cst_57 = arith.constant 0.000000e+00 : f32
    %130 = vector.shape_cast %126 : vector<32x1xi1> to vector<32x1xi1>
    %131 = vector.broadcast %130 : vector<32x1xi1> to vector<32x128xi1>
    %132 = vector.broadcast %cst_57 : f32 to vector<32x128xf32>
    %133 = arith.select %131, %129, %132 : vector<32x128xi1>, vector<32x128xf32>
    %cst_58 = arith.constant 5.000000e-01 : f32
    %134 = vector.broadcast %cst_58 : f32 to vector<32x1xf32>
    %135 = arith.cmpf ogt, %1, %134 : vector<32x1xf32>
    %136 = vector.extract_strided_slice %124 {offsets = [1, 0], sizes = [31, 128], strides = [1, 1]} : vector<32x128xf32> to vector<31x128xf32>
    %137 = vector.extract_strided_slice %124 {offsets = [0, 0], sizes = [1, 128], strides = [1, 1]} : vector<32x128xf32> to vector<1x128xf32>
    %138 = tpu.concatenate %136, %137 in 0 : vector<31x128xf32>, vector<1x128xf32> -> vector<32x128xf32>
    %cst_59 = arith.constant 0.000000e+00 : f32
    %139 = vector.shape_cast %135 : vector<32x1xi1> to vector<32x1xi1>
    %140 = vector.broadcast %139 : vector<32x1xi1> to vector<32x128xi1>
    %141 = vector.broadcast %cst_59 : f32 to vector<32x128xf32>
    %142 = arith.select %140, %138, %141 : vector<32x128xi1>, vector<32x128xf32>
    %143 = tpu.concatenate %124, %133, %142 in 1 : vector<32x128xf32>, vector<32x128xf32>, vector<32x128xf32> -> vector<32x384xf32>
    %c0_60 = arith.constant 0 : index
    %c0_61 = arith.constant 0 : index
    %144 = vector.load %arg17[%c0_60, %c0_61] : memref<384x128xbf16, #tpu.memory_space<vmem>>, vector<384x128xbf16>
    %145 = arith.extf %144 : vector<384x128xbf16> to vector<384x128xf32>
    %cst_62 = arith.constant dense<0.000000e+00> : vector<32x128xf32>
    %146 = tpu.matmul %143, %145, %cst_62 {dimension_numbers = #tpu.dot_dimension_numbers<[1], [0], [0], [1], [0, 0, 1, 1], [], []>} : vector<32x384xf32>, vector<384x128xf32>, vector<32x128xf32> -> vector<32x128xf32>
    %c0_63 = arith.constant 0 : index
    %c0_64 = arith.constant 0 : index
    %147 = vector.load %arg18[%c0_63, %c0_64] : memref<1x128xf32, #tpu.memory_space<vmem>>, vector<1x128xf32>
    %148 = vector.broadcast %147 : vector<1x128xf32> to vector<32x128xf32>
    %149 = arith.addf %146, %148 : vector<32x128xf32>
    %150 = arith.addf %149, %21 : vector<32x128xf32>
    %cst_65 = arith.constant 0.000000e+00 : f32
    %151 = vector.broadcast %cst_65 : f32 to vector<32x128xf32>
    %152 = arith.maximumf %21, %151 : vector<32x128xf32>
    %cst_66 = arith.constant 5.000000e-01 : f32
    %153 = vector.broadcast %cst_66 : f32 to vector<32x1xf32>
    %154 = arith.cmpf ogt, %0, %153 : vector<32x1xf32>
    %155 = vector.extract_strided_slice %152 {offsets = [31, 0], sizes = [1, 128], strides = [1, 1]} : vector<32x128xf32> to vector<1x128xf32>
    %156 = vector.extract_strided_slice %152 {offsets = [0, 0], sizes = [31, 128], strides = [1, 1]} : vector<32x128xf32> to vector<31x128xf32>
    %157 = tpu.concatenate %155, %156 in 0 : vector<1x128xf32>, vector<31x128xf32> -> vector<32x128xf32>
    %cst_67 = arith.constant 0.000000e+00 : f32
    %158 = vector.shape_cast %154 : vector<32x1xi1> to vector<32x1xi1>
    %159 = vector.broadcast %158 : vector<32x1xi1> to vector<32x128xi1>
    %160 = vector.broadcast %cst_67 : f32 to vector<32x128xf32>
    %161 = arith.select %159, %157, %160 : vector<32x128xi1>, vector<32x128xf32>
    %cst_68 = arith.constant 5.000000e-01 : f32
    %162 = vector.broadcast %cst_68 : f32 to vector<32x1xf32>
    %163 = arith.cmpf ogt, %1, %162 : vector<32x1xf32>
    %164 = vector.extract_strided_slice %152 {offsets = [1, 0], sizes = [31, 128], strides = [1, 1]} : vector<32x128xf32> to vector<31x128xf32>
    %165 = vector.extract_strided_slice %152 {offsets = [0, 0], sizes = [1, 128], strides = [1, 1]} : vector<32x128xf32> to vector<1x128xf32>
    %166 = tpu.concatenate %164, %165 in 0 : vector<31x128xf32>, vector<1x128xf32> -> vector<32x128xf32>
    %cst_69 = arith.constant 0.000000e+00 : f32
    %167 = vector.shape_cast %163 : vector<32x1xi1> to vector<32x1xi1>
    %168 = vector.broadcast %167 : vector<32x1xi1> to vector<32x128xi1>
    %169 = vector.broadcast %cst_69 : f32 to vector<32x128xf32>
    %170 = arith.select %168, %166, %169 : vector<32x128xi1>, vector<32x128xf32>
    %171 = tpu.concatenate %152, %161, %170 in 1 : vector<32x128xf32>, vector<32x128xf32>, vector<32x128xf32> -> vector<32x384xf32>
    %c0_70 = arith.constant 0 : index
    %c0_71 = arith.constant 0 : index
    %172 = vector.load %arg19[%c0_70, %c0_71] : memref<384x128xbf16, #tpu.memory_space<vmem>>, vector<384x128xbf16>
    %173 = arith.extf %172 : vector<384x128xbf16> to vector<384x128xf32>
    %cst_72 = arith.constant dense<0.000000e+00> : vector<32x128xf32>
    %174 = tpu.matmul %171, %173, %cst_72 {dimension_numbers = #tpu.dot_dimension_numbers<[1], [0], [0], [1], [0, 0, 1, 1], [], []>} : vector<32x384xf32>, vector<384x128xf32>, vector<32x128xf32> -> vector<32x128xf32>
    %c0_73 = arith.constant 0 : index
    %c0_74 = arith.constant 0 : index
    %175 = vector.load %arg20[%c0_73, %c0_74] : memref<1x128xf32, #tpu.memory_space<vmem>>, vector<1x128xf32>
    %176 = vector.broadcast %175 : vector<1x128xf32> to vector<32x128xf32>
    %177 = arith.addf %174, %176 : vector<32x128xf32>
    %cst_75 = arith.constant 0.000000e+00 : f32
    %178 = vector.broadcast %cst_75 : f32 to vector<32x128xf32>
    %179 = arith.maximumf %177, %178 : vector<32x128xf32>
    %cst_76 = arith.constant 5.000000e-01 : f32
    %180 = vector.broadcast %cst_76 : f32 to vector<32x1xf32>
    %181 = arith.cmpf ogt, %0, %180 : vector<32x1xf32>
    %182 = vector.extract_strided_slice %179 {offsets = [31, 0], sizes = [1, 128], strides = [1, 1]} : vector<32x128xf32> to vector<1x128xf32>
    %183 = vector.extract_strided_slice %179 {offsets = [0, 0], sizes = [31, 128], strides = [1, 1]} : vector<32x128xf32> to vector<31x128xf32>
    %184 = tpu.concatenate %182, %183 in 0 : vector<1x128xf32>, vector<31x128xf32> -> vector<32x128xf32>
    %cst_77 = arith.constant 0.000000e+00 : f32
    %185 = vector.shape_cast %181 : vector<32x1xi1> to vector<32x1xi1>
    %186 = vector.broadcast %185 : vector<32x1xi1> to vector<32x128xi1>
    %187 = vector.broadcast %cst_77 : f32 to vector<32x128xf32>
    %188 = arith.select %186, %184, %187 : vector<32x128xi1>, vector<32x128xf32>
    %cst_78 = arith.constant 5.000000e-01 : f32
    %189 = vector.broadcast %cst_78 : f32 to vector<32x1xf32>
    %190 = arith.cmpf ogt, %1, %189 : vector<32x1xf32>
    %191 = vector.extract_strided_slice %179 {offsets = [1, 0], sizes = [31, 128], strides = [1, 1]} : vector<32x128xf32> to vector<31x128xf32>
    %192 = vector.extract_strided_slice %179 {offsets = [0, 0], sizes = [1, 128], strides = [1, 1]} : vector<32x128xf32> to vector<1x128xf32>
    %193 = tpu.concatenate %191, %192 in 0 : vector<31x128xf32>, vector<1x128xf32> -> vector<32x128xf32>
    %cst_79 = arith.constant 0.000000e+00 : f32
    %194 = vector.shape_cast %190 : vector<32x1xi1> to vector<32x1xi1>
    %195 = vector.broadcast %194 : vector<32x1xi1> to vector<32x128xi1>
    %196 = vector.broadcast %cst_79 : f32 to vector<32x128xf32>
    %197 = arith.select %195, %193, %196 : vector<32x128xi1>, vector<32x128xf32>
    %198 = tpu.concatenate %179, %188, %197 in 1 : vector<32x128xf32>, vector<32x128xf32>, vector<32x128xf32> -> vector<32x384xf32>
    %c0_80 = arith.constant 0 : index
    %c0_81 = arith.constant 0 : index
    %199 = vector.load %arg21[%c0_80, %c0_81] : memref<384x128xbf16, #tpu.memory_space<vmem>>, vector<384x128xbf16>
    %200 = arith.extf %199 : vector<384x128xbf16> to vector<384x128xf32>
    %cst_82 = arith.constant dense<0.000000e+00> : vector<32x128xf32>
    %201 = tpu.matmul %198, %200, %cst_82 {dimension_numbers = #tpu.dot_dimension_numbers<[1], [0], [0], [1], [0, 0, 1, 1], [], []>} : vector<32x384xf32>, vector<384x128xf32>, vector<32x128xf32> -> vector<32x128xf32>
    %c0_83 = arith.constant 0 : index
    %c0_84 = arith.constant 0 : index
    %202 = vector.load %arg22[%c0_83, %c0_84] : memref<1x128xf32, #tpu.memory_space<vmem>>, vector<1x128xf32>
    %203 = vector.broadcast %202 : vector<1x128xf32> to vector<32x128xf32>
    %204 = arith.addf %201, %203 : vector<32x128xf32>
    %205 = arith.addf %12, %204 : vector<32x128xf32>
    %cst_85 = arith.constant 5.000000e-01 : f32
    %206 = vector.broadcast %cst_85 : f32 to vector<1x128xf32>
    %207 = arith.cmpf ogt, %2, %206 : vector<1x128xf32>
    %208 = vector.extract_strided_slice %12 {offsets = [0, 120], sizes = [32, 8], strides = [1, 1]} : vector<32x128xf32> to vector<32x8xf32>
    %209 = vector.extract_strided_slice %12 {offsets = [0, 0], sizes = [32, 120], strides = [1, 1]} : vector<32x128xf32> to vector<32x120xf32>
    %210 = tpu.concatenate %208, %209 in 1 : vector<32x8xf32>, vector<32x120xf32> -> vector<32x128xf32>
    %cst_86 = arith.constant -1.000000e+30 : f32
    %211 = vector.shape_cast %207 : vector<1x128xi1> to vector<1x128xi1>
    %212 = vector.broadcast %211 : vector<1x128xi1> to vector<32x128xi1>
    %213 = vector.broadcast %cst_86 : f32 to vector<32x128xf32>
    %214 = arith.select %212, %210, %213 : vector<32x128xi1>, vector<32x128xf32>
    %cst_87 = arith.constant 5.000000e-01 : f32
    %215 = vector.broadcast %cst_87 : f32 to vector<1x128xf32>
    %216 = arith.cmpf ogt, %3, %215 : vector<1x128xf32>
    %217 = vector.extract_strided_slice %12 {offsets = [0, 8], sizes = [32, 120], strides = [1, 1]} : vector<32x128xf32> to vector<32x120xf32>
    %218 = vector.extract_strided_slice %12 {offsets = [0, 0], sizes = [32, 8], strides = [1, 1]} : vector<32x128xf32> to vector<32x8xf32>
    %219 = tpu.concatenate %217, %218 in 1 : vector<32x120xf32>, vector<32x8xf32> -> vector<32x128xf32>
    %cst_88 = arith.constant -1.000000e+30 : f32
    %220 = vector.shape_cast %216 : vector<1x128xi1> to vector<1x128xi1>
    %221 = vector.broadcast %220 : vector<1x128xi1> to vector<32x128xi1>
    %222 = vector.broadcast %cst_88 : f32 to vector<32x128xf32>
    %223 = arith.select %221, %219, %222 : vector<32x128xi1>, vector<32x128xf32>
    %224 = arith.maximumf %214, %223 : vector<32x128xf32>
    %225 = arith.maximumf %12, %224 : vector<32x128xf32>
    %cst_89 = arith.constant 5.000000e-01 : f32
    %226 = vector.broadcast %cst_89 : f32 to vector<32x1xf32>
    %227 = arith.cmpf ogt, %0, %226 : vector<32x1xf32>
    %228 = vector.extract_strided_slice %225 {offsets = [31, 0], sizes = [1, 128], strides = [1, 1]} : vector<32x128xf32> to vector<1x128xf32>
    %229 = vector.extract_strided_slice %225 {offsets = [0, 0], sizes = [31, 128], strides = [1, 1]} : vector<32x128xf32> to vector<31x128xf32>
    %230 = tpu.concatenate %228, %229 in 0 : vector<1x128xf32>, vector<31x128xf32> -> vector<32x128xf32>
    %cst_90 = arith.constant -1.000000e+30 : f32
    %231 = vector.shape_cast %227 : vector<32x1xi1> to vector<32x1xi1>
    %232 = vector.broadcast %231 : vector<32x1xi1> to vector<32x128xi1>
    %233 = vector.broadcast %cst_90 : f32 to vector<32x128xf32>
    %234 = arith.select %232, %230, %233 : vector<32x128xi1>, vector<32x128xf32>
    %cst_91 = arith.constant 5.000000e-01 : f32
    %235 = vector.broadcast %cst_91 : f32 to vector<32x1xf32>
    %236 = arith.cmpf ogt, %1, %235 : vector<32x1xf32>
    %237 = vector.extract_strided_slice %225 {offsets = [1, 0], sizes = [31, 128], strides = [1, 1]} : vector<32x128xf32> to vector<31x128xf32>
    %238 = vector.extract_strided_slice %225 {offsets = [0, 0], sizes = [1, 128], strides = [1, 1]} : vector<32x128xf32> to vector<1x128xf32>
    %239 = tpu.concatenate %237, %238 in 0 : vector<31x128xf32>, vector<1x128xf32> -> vector<32x128xf32>
    %cst_92 = arith.constant -1.000000e+30 : f32
    %240 = vector.shape_cast %236 : vector<32x1xi1> to vector<32x1xi1>
    %241 = vector.broadcast %240 : vector<32x1xi1> to vector<32x128xi1>
    %242 = vector.broadcast %cst_92 : f32 to vector<32x128xf32>
    %243 = arith.select %241, %239, %242 : vector<32x128xi1>, vector<32x128xf32>
    %244 = arith.maximumf %234, %243 : vector<32x128xf32>
    %245 = arith.maximumf %225, %244 : vector<32x128xf32>
    %246 = arith.addf %245, %116 : vector<32x128xf32>
    %247 = tpu.concatenate %116, %150, %205, %246 in 1 : vector<32x128xf32>, vector<32x128xf32>, vector<32x128xf32>, vector<32x128xf32> -> vector<32x512xf32>
    %c0_93 = arith.constant 0 : index
    %c0_94 = arith.constant 0 : index
    %248 = vector.load %arg23[%c0_93, %c0_94] : memref<32x512xf32, #tpu.memory_space<vmem>>, vector<32x512xf32>
    tpu.vector_store %arg23[%c0_93, %c0_94], %247 {strides = array<i32>} : memref<32x512xf32, #tpu.memory_space<vmem>>, vector<32x512xf32>,
    return
  }
  func.func @transform_0(%arg0: i32) -> (i32, i32) {
    %c0_i32 = arith.constant 0 : i32
    %c0_i32_0 = arith.constant 0 : i32
    return %arg0, %c0_i32 : i32, i32
  }
  func.func @transform_1(%arg0: i32) -> (i32, i32) {
    %c0_i32 = arith.constant 0 : i32
    %c0_i32_0 = arith.constant 0 : i32
    return %arg0, %c0_i32 : i32, i32
  }
  func.func @transform_2(%arg0: i32) -> (i32, i32) {
    %c0_i32 = arith.constant 0 : i32
    %c0_i32_0 = arith.constant 0 : i32
    %c0_i32_1 = arith.constant 0 : i32
    return %c0_i32, %c0_i32_0 : i32, i32
  }
  func.func @transform_3(%arg0: i32) -> (i32, i32) {
    %c0_i32 = arith.constant 0 : i32
    %c0_i32_0 = arith.constant 0 : i32
    %c0_i32_1 = arith.constant 0 : i32
    return %c0_i32, %c0_i32_0 : i32, i32
  }
  func.func @transform_4(%arg0: i32) -> (i32, i32) {
    %c0_i32 = arith.constant 0 : i32
    %c0_i32_0 = arith.constant 0 : i32
    %c0_i32_1 = arith.constant 0 : i32
    return %c0_i32, %c0_i32_0 : i32, i32
  }
  func.func @transform_5(%arg0: i32) -> (i32, i32) {
    %c0_i32 = arith.constant 0 : i32
    %c0_i32_0 = arith.constant 0 : i32
    %c0_i32_1 = arith.constant 0 : i32
    return %c0_i32, %c0_i32_0 : i32, i32
  }
  func.func @transform_6(%arg0: i32) -> (i32, i32) {
    %c0_i32 = arith.constant 0 : i32
    %c0_i32_0 = arith.constant 0 : i32
    %c0_i32_1 = arith.constant 0 : i32
    return %c0_i32, %c0_i32_0 : i32, i32
  }
  func.func @transform_7(%arg0: i32) -> (i32, i32) {
    %c0_i32 = arith.constant 0 : i32
    %c0_i32_0 = arith.constant 0 : i32
    %c0_i32_1 = arith.constant 0 : i32
    return %c0_i32, %c0_i32_0 : i32, i32
  }
  func.func @transform_8(%arg0: i32) -> (i32, i32) {
    %c0_i32 = arith.constant 0 : i32
    %c0_i32_0 = arith.constant 0 : i32
    %c0_i32_1 = arith.constant 0 : i32
    return %c0_i32, %c0_i32_0 : i32, i32
  }
  func.func @transform_9(%arg0: i32) -> (i32, i32) {
    %c0_i32 = arith.constant 0 : i32
    %c0_i32_0 = arith.constant 0 : i32
    %c0_i32_1 = arith.constant 0 : i32
    return %c0_i32, %c0_i32_0 : i32, i32
  }
  func.func @transform_10(%arg0: i32) -> (i32, i32) {
    %c0_i32 = arith.constant 0 : i32
    %c0_i32_0 = arith.constant 0 : i32
    %c0_i32_1 = arith.constant 0 : i32
    return %c0_i32, %c0_i32_0 : i32, i32
  }
  func.func @transform_11(%arg0: i32) -> (i32, i32) {
    %c0_i32 = arith.constant 0 : i32
    %c0_i32_0 = arith.constant 0 : i32
    %c0_i32_1 = arith.constant 0 : i32
    return %c0_i32, %c0_i32_0 : i32, i32
  }
  func.func @transform_12(%arg0: i32) -> (i32, i32) {
    %c0_i32 = arith.constant 0 : i32
    %c0_i32_0 = arith.constant 0 : i32
    %c0_i32_1 = arith.constant 0 : i32
    return %c0_i32, %c0_i32_0 : i32, i32
  }
  func.func @transform_13(%arg0: i32) -> (i32, i32) {
    %c0_i32 = arith.constant 0 : i32
    %c0_i32_0 = arith.constant 0 : i32
    %c0_i32_1 = arith.constant 0 : i32
    return %c0_i32, %c0_i32_0 : i32, i32
  }
  func.func @transform_14(%arg0: i32) -> (i32, i32) {
    %c0_i32 = arith.constant 0 : i32
    %c0_i32_0 = arith.constant 0 : i32
    %c0_i32_1 = arith.constant 0 : i32
    return %c0_i32, %c0_i32_0 : i32, i32
  }
  func.func @transform_15(%arg0: i32) -> (i32, i32) {
    %c0_i32 = arith.constant 0 : i32
    %c0_i32_0 = arith.constant 0 : i32
    %c0_i32_1 = arith.constant 0 : i32
    return %c0_i32, %c0_i32_0 : i32, i32
  }
  func.func @transform_16(%arg0: i32) -> (i32, i32) {
    %c0_i32 = arith.constant 0 : i32
    %c0_i32_0 = arith.constant 0 : i32
    %c0_i32_1 = arith.constant 0 : i32
    return %c0_i32, %c0_i32_0 : i32, i32
  }
  func.func @transform_17(%arg0: i32) -> (i32, i32) {
    %c0_i32 = arith.constant 0 : i32
    %c0_i32_0 = arith.constant 0 : i32
    %c0_i32_1 = arith.constant 0 : i32
    return %c0_i32, %c0_i32_0 : i32, i32
  }
  func.func @transform_18(%arg0: i32) -> (i32, i32) {
    %c0_i32 = arith.constant 0 : i32
    %c0_i32_0 = arith.constant 0 : i32
    %c0_i32_1 = arith.constant 0 : i32
    return %c0_i32, %c0_i32_0 : i32, i32
  }
  func.func @transform_19(%arg0: i32) -> (i32, i32) {
    %c0_i32 = arith.constant 0 : i32
    %c0_i32_0 = arith.constant 0 : i32
    %c0_i32_1 = arith.constant 0 : i32
    return %c0_i32, %c0_i32_0 : i32, i32
  }
  func.func @transform_20(%arg0: i32) -> (i32, i32) {
    %c0_i32 = arith.constant 0 : i32
    %c0_i32_0 = arith.constant 0 : i32
    %c0_i32_1 = arith.constant 0 : i32
    return %c0_i32, %c0_i32_0 : i32, i32
  }
  func.func @transform_21(%arg0: i32) -> (i32, i32) {
    %c0_i32 = arith.constant 0 : i32
    %c0_i32_0 = arith.constant 0 : i32
    %c0_i32_1 = arith.constant 0 : i32
    return %c0_i32, %c0_i32_0 : i32, i32
  }
  func.func @transform_22(%arg0: i32) -> (i32, i32) {
    %c0_i32 = arith.constant 0 : i32
    %c0_i32_0 = arith.constant 0 : i32
    return %arg0, %c0_i32 : i32, i32
  }
}

module attributes {stable_mosaic.version = 11 : i64} {
  func.func @kernel(%arg0: i32, %arg1: memref<32x512xf32, #tpu.memory_space<vmem>>, %arg2: memref<32x512xf32, #tpu.memory_space<vmem>>, %arg3: memref<512x128xbf16, #tpu.memory_space<vmem>>, %arg4: memref<1x128xf32, #tpu.memory_space<vmem>>, %arg5: memref<512x128xbf16, #tpu.memory_space<vmem>>, %arg6: memref<1x128xf32, #tpu.memory_space<vmem>>, %arg7: memref<32x1xf32, #tpu.memory_space<vmem>>, %arg8: memref<32x1xf32, #tpu.memory_space<vmem>>, %arg9: memref<1x128xf32, #tpu.memory_space<vmem>>, %arg10: memref<1x128xf32, #tpu.memory_space<vmem>>, %arg11: memref<384x128xbf16, #tpu.memory_space<vmem>>, %arg12: memref<1x128xf32, #tpu.memory_space<vmem>>, %arg13: memref<384x128xbf16, #tpu.memory_space<vmem>>, %arg14: memref<1x128xf32, #tpu.memory_space<vmem>>, %arg15: memref<384x128xbf16, #tpu.memory_space<vmem>>, %arg16: memref<1x128xf32, #tpu.memory_space<vmem>>, %arg17: memref<384x128xbf16, #tpu.memory_space<vmem>>, %arg18: memref<1x128xf32, #tpu.memory_space<vmem>>, %arg19: memref<384x128xbf16, #tpu.memory_space<vmem>>, %arg20: memref<1x128xf32, #tpu.memory_space<vmem>>, %arg21: memref<384x128xbf16, #tpu.memory_space<vmem>>, %arg22: memref<1x128xf32, #tpu.memory_space<vmem>>, %arg23: memref<32x512xf32, #tpu.memory_space<vmem>>) attributes {dimension_semantics = [#tpu.dimension_semantics<parallel>], iteration_bounds = array<i64: 1>, scalar_prefetch = 0 : i64, scratch_operands = 0 : i64, tpu.core_type = #tpu.core_type<tc>, window_params = [{transform_indices = @transform_0, window_bounds = array<i64: 32, 512>}, {transform_indices = @transform_1, window_bounds = array<i64: 32, 512>}, {pipeline_mode = #tpu.pipeline_mode<synchronous>, transform_indices = @transform_2, window_bounds = array<i64: 512, 128>}, {pipeline_mode = #tpu.pipeline_mode<synchronous>, transform_indices = @transform_3, window_bounds = array<i64: 1, 128>}, {pipeline_mode = #tpu.pipeline_mode<synchronous>, transform_indices = @transform_4, window_bounds = array<i64: 512, 128>}, {pipeline_mode = #tpu.pipeline_mode<synchronous>, transform_indices = @transform_5, window_bounds = array<i64: 1, 128>}, {pipeline_mode = #tpu.pipeline_mode<synchronous>, transform_indices = @transform_6, window_bounds = array<i64: 32, 1>}, {pipeline_mode = #tpu.pipeline_mode<synchronous>, transform_indices = @transform_7, window_bounds = array<i64: 32, 1>}, {pipeline_mode = #tpu.pipeline_mode<synchronous>, transform_indices = @transform_8, window_bounds = array<i64: 1, 128>}, {pipeline_mode = #tpu.pipeline_mode<synchronous>, transform_indices = @transform_9, window_bounds = array<i64: 1, 128>}, {pipeline_mode = #tpu.pipeline_mode<synchronous>, transform_indices = @transform_10, window_bounds = array<i64: 384, 128>}, {pipeline_mode = #tpu.pipeline_mode<synchronous>, transform_indices = @transform_11, window_bounds = array<i64: 1, 128>}, {pipeline_mode = #tpu.pipeline_mode<synchronous>, transform_indices = @transform_12, window_bounds = array<i64: 384, 128>}, {pipeline_mode = #tpu.pipeline_mode<synchronous>, transform_indices = @transform_13, window_bounds = array<i64: 1, 128>}, {pipeline_mode = #tpu.pipeline_mode<synchronous>, transform_indices = @transform_14, window_bounds = array<i64: 384, 128>}, {pipeline_mode = #tpu.pipeline_mode<synchronous>, transform_indices = @transform_15, window_bounds = array<i64: 1, 128>}, {pipeline_mode = #tpu.pipeline_mode<synchronous>, transform_indices = @transform_16, window_bounds = array<i64: 384, 128>}, {pipeline_mode = #tpu.pipeline_mode<synchronous>, transform_indices = @transform_17, window_bounds = array<i64: 1, 128>}, {pipeline_mode = #tpu.pipeline_mode<synchronous>, transform_indices = @transform_18, window_bounds = array<i64: 384, 128>}, {pipeline_mode = #tpu.pipeline_mode<synchronous>, transform_indices = @transform_19, window_bounds = array<i64: 1, 128>}, {pipeline_mode = #tpu.pipeline_mode<synchronous>, transform_indices = @transform_20, window_bounds = array<i64: 384, 128>}, {pipeline_mode = #tpu.pipeline_mode<synchronous>, transform_indices = @transform_21, window_bounds = array<i64: 1, 128>}, {transform_indices = @transform_22, window_bounds = array<i64: 32, 512>}]} {
    %c0 = arith.constant 0 : index
    %c0_0 = arith.constant 0 : index
    %0 = vector.load %arg7[%c0, %c0_0] : memref<32x1xf32, #tpu.memory_space<vmem>>, vector<32x1xf32>
    %c0_1 = arith.constant 0 : index
    %c0_2 = arith.constant 0 : index
    %1 = vector.load %arg8[%c0_1, %c0_2] : memref<32x1xf32, #tpu.memory_space<vmem>>, vector<32x1xf32>
    %c0_3 = arith.constant 0 : index
    %c0_4 = arith.constant 0 : index
    %2 = vector.load %arg9[%c0_3, %c0_4] : memref<1x128xf32, #tpu.memory_space<vmem>>, vector<1x128xf32>
    %c0_5 = arith.constant 0 : index
    %c0_6 = arith.constant 0 : index
    %3 = vector.load %arg10[%c0_5, %c0_6] : memref<1x128xf32, #tpu.memory_space<vmem>>, vector<1x128xf32>
    %c0_7 = arith.constant 0 : index
    %c0_8 = arith.constant 0 : index
    %4 = vector.load %arg1[%c0_7, %c0_8] : memref<32x512xf32, #tpu.memory_space<vmem>>, vector<32x512xf32>
    %cst = arith.constant 0.000000e+00 : f32
    %5 = vector.broadcast %cst : f32 to vector<32x512xf32>
    %6 = arith.maximumf %4, %5 : vector<32x512xf32>
    %c0_9 = arith.constant 0 : index
    %c0_10 = arith.constant 0 : index
    %7 = vector.load %arg3[%c0_9, %c0_10] : memref<512x128xbf16, #tpu.memory_space<vmem>>, vector<512x128xbf16>
    %8 = arith.extf %7 : vector<512x128xbf16> to vector<512x128xf32>
    %cst_11 = arith.constant dense<0.000000e+00> : vector<32x128xf32>
    %9 = tpu.matmul %6, %8, %cst_11 {dimension_numbers = #tpu.dot_dimension_numbers<[1], [0], [0], [1], [0, 0, 1, 1], [], []>} : vector<32x512xf32>, vector<512x128xf32>, vector<32x128xf32> -> vector<32x128xf32>
    %c0_12 = arith.constant 0 : index
    %c0_13 = arith.constant 0 : index
    %10 = vector.load %arg4[%c0_12, %c0_13] : memref<1x128xf32, #tpu.memory_space<vmem>>, vector<1x128xf32>
    %11 = vector.broadcast %10 : vector<1x128xf32> to vector<32x128xf32>
    %12 = arith.addf %9, %11 : vector<32x128xf32>
    %c0_14 = arith.constant 0 : index
    %c0_15 = arith.constant 0 : index
    %13 = vector.load %arg2[%c0_14, %c0_15] : memref<32x512xf32, #tpu.memory_space<vmem>>, vector<32x512xf32>
    %cst_16 = arith.constant 0.000000e+00 : f32
    %14 = vector.broadcast %cst_16 : f32 to vector<32x512xf32>
    %15 = arith.maximumf %13, %14 : vector<32x512xf32>
    %c0_17 = arith.constant 0 : index
    %c0_18 = arith.constant 0 : index
    %16 = vector.load %arg5[%c0_17, %c0_18] : memref<512x128xbf16, #tpu.memory_space<vmem>>, vector<512x128xbf16>
    %17 = arith.extf %16 : vector<512x128xbf16> to vector<512x128xf32>
    %cst_19 = arith.constant dense<0.000000e+00> : vector<32x128xf32>
    %18 = tpu.matmul %15, %17, %cst_19 {dimension_numbers = #tpu.dot_dimension_numbers<[1], [0], [0], [1], [0, 0, 1, 1], [], []>} : vector<32x512xf32>, vector<512x128xf32>, vector<32x128xf32> -> vector<32x128xf32>
    %c0_20 = arith.constant 0 : index
    %c0_21 = arith.constant 0 : index
    %19 = vector.load %arg6[%c0_20, %c0_21] : memref<1x128xf32, #tpu.memory_space<vmem>>, vector<1x128xf32>
    %20 = vector.broadcast %19 : vector<1x128xf32> to vector<32x128xf32>
    %21 = arith.addf %18, %20 : vector<32x128xf32>
    %cst_22 = arith.constant 0.000000e+00 : f32
    %22 = vector.broadcast %cst_22 : f32 to vector<32x128xf32>
    %23 = arith.maximumf %12, %22 : vector<32x128xf32>
    %cst_23 = arith.constant 5.000000e-01 : f32
    %24 = vector.broadcast %cst_23 : f32 to vector<32x1xf32>
    %25 = arith.cmpf ogt, %0, %24 : vector<32x1xf32>
    %26 = vector.extract_strided_slice %23 {offsets = [31, 0], sizes = [1, 128], strides = [1, 1]} : vector<32x128xf32> to vector<1x128xf32>
    %27 = vector.extract_strided_slice %23 {offsets = [0, 0], sizes = [31, 128], strides = [1, 1]} : vector<32x128xf32> to vector<31x128xf32>
    %28 = tpu.concatenate %26, %27 in 0 : vector<1x128xf32>, vector<31x128xf32> -> vector<32x128xf32>
    %cst_24 = arith.constant 0.000000e+00 : f32
    %29 = vector.shape_cast %25 : vector<32x1xi1> to vector<32x1xi1>
    %30 = vector.broadcast %29 : vector<32x1xi1> to vector<32x128xi1>
    %31 = vector.broadcast %cst_24 : f32 to vector<32x128xf32>
    %32 = arith.select %30, %28, %31 : vector<32x128xi1>, vector<32x128xf32>
    %cst_25 = arith.constant 5.000000e-01 : f32
    %33 = vector.broadcast %cst_25 : f32 to vector<32x1xf32>
    %34 = arith.cmpf ogt, %1, %33 : vector<32x1xf32>
    %35 = vector.extract_strided_slice %23 {offsets = [1, 0], sizes = [31, 128], strides = [1, 1]} : vector<32x128xf32> to vector<31x128xf32>
    %36 = vector.extract_strided_slice %23 {offsets = [0, 0], sizes = [1, 128], strides = [1, 1]} : vector<32x128xf32> to vector<1x128xf32>
    %37 = tpu.concatenate %35, %36 in 0 : vector<31x128xf32>, vector<1x128xf32> -> vector<32x128xf32>
    %cst_26 = arith.constant 0.000000e+00 : f32
    %38 = vector.shape_cast %34 : vector<32x1xi1> to vector<32x1xi1>
    %39 = vector.broadcast %38 : vector<32x1xi1> to vector<32x128xi1>
    %40 = vector.broadcast %cst_26 : f32 to vector<32x128xf32>
    %41 = arith.select %39, %37, %40 : vector<32x128xi1>, vector<32x128xf32>
    %42 = tpu.concatenate %23, %32, %41 in 1 : vector<32x128xf32>, vector<32x128xf32>, vector<32x128xf32> -> vector<32x384xf32>
    %c0_27 = arith.constant 0 : index
    %c0_28 = arith.constant 0 : index
    %43 = vector.load %arg11[%c0_27, %c0_28] : memref<384x128xbf16, #tpu.memory_space<vmem>>, vector<384x128xbf16>
    %44 = arith.extf %43 : vector<384x128xbf16> to vector<384x128xf32>
    %cst_29 = arith.constant dense<0.000000e+00> : vector<32x128xf32>
    %45 = tpu.matmul %42, %44, %cst_29 {dimension_numbers = #tpu.dot_dimension_numbers<[1], [0], [0], [1], [0, 0, 1, 1], [], []>} : vector<32x384xf32>, vector<384x128xf32>, vector<32x128xf32> -> vector<32x128xf32>
    %c0_30 = arith.constant 0 : index
    %c0_31 = arith.constant 0 : index
    %46 = vector.load %arg12[%c0_30, %c0_31] : memref<1x128xf32, #tpu.memory_space<vmem>>, vector<1x128xf32>
    %47 = vector.broadcast %46 : vector<1x128xf32> to vector<32x128xf32>
    %48 = arith.addf %45, %47 : vector<32x128xf32>
    %cst_32 = arith.constant 0.000000e+00 : f32
    %49 = vector.broadcast %cst_32 : f32 to vector<32x128xf32>
    %50 = arith.maximumf %48, %49 : vector<32x128xf32>
    %cst_33 = arith.constant 5.000000e-01 : f32
    %51 = vector.broadcast %cst_33 : f32 to vector<32x1xf32>
    %52 = arith.cmpf ogt, %0, %51 : vector<32x1xf32>
    %53 = vector.extract_strided_slice %50 {offsets = [31, 0], sizes = [1, 128], strides = [1, 1]} : vector<32x128xf32> to vector<1x128xf32>
    %54 = vector.extract_strided_slice %50 {offsets = [0, 0], sizes = [31, 128], strides = [1, 1]} : vector<32x128xf32> to vector<31x128xf32>
    %55 = tpu.concatenate %53, %54 in 0 : vector<1x128xf32>, vector<31x128xf32> -> vector<32x128xf32>
    %cst_34 = arith.constant 0.000000e+00 : f32
    %56 = vector.shape_cast %52 : vector<32x1xi1> to vector<32x1xi1>
    %57 = vector.broadcast %56 : vector<32x1xi1> to vector<32x128xi1>
    %58 = vector.broadcast %cst_34 : f32 to vector<32x128xf32>
    %59 = arith.select %57, %55, %58 : vector<32x128xi1>, vector<32x128xf32>
    %cst_35 = arith.constant 5.000000e-01 : f32
    %60 = vector.broadcast %cst_35 : f32 to vector<32x1xf32>
    %61 = arith.cmpf ogt, %1, %60 : vector<32x1xf32>
    %62 = vector.extract_strided_slice %50 {offsets = [1, 0], sizes = [31, 128], strides = [1, 1]} : vector<32x128xf32> to vector<31x128xf32>
    %63 = vector.extract_strided_slice %50 {offsets = [0, 0], sizes = [1, 128], strides = [1, 1]} : vector<32x128xf32> to vector<1x128xf32>
    %64 = tpu.concatenate %62, %63 in 0 : vector<31x128xf32>, vector<1x128xf32> -> vector<32x128xf32>
    %cst_36 = arith.constant 0.000000e+00 : f32
    %65 = vector.shape_cast %61 : vector<32x1xi1> to vector<32x1xi1>
    %66 = vector.broadcast %65 : vector<32x1xi1> to vector<32x128xi1>
    %67 = vector.broadcast %cst_36 : f32 to vector<32x128xf32>
    %68 = arith.select %66, %64, %67 : vector<32x128xi1>, vector<32x128xf32>
    %69 = tpu.concatenate %50, %59, %68 in 1 : vector<32x128xf32>, vector<32x128xf32>, vector<32x128xf32> -> vector<32x384xf32>
    %c0_37 = arith.constant 0 : index
    %c0_38 = arith.constant 0 : index
    %70 = vector.load %arg13[%c0_37, %c0_38] : memref<384x128xbf16, #tpu.memory_space<vmem>>, vector<384x128xbf16>
    %71 = arith.extf %70 : vector<384x128xbf16> to vector<384x128xf32>
    %cst_39 = arith.constant dense<0.000000e+00> : vector<32x128xf32>
    %72 = tpu.matmul %69, %71, %cst_39 {dimension_numbers = #tpu.dot_dimension_numbers<[1], [0], [0], [1], [0, 0, 1, 1], [], []>} : vector<32x384xf32>, vector<384x128xf32>, vector<32x128xf32> -> vector<32x128xf32>
    %c0_40 = arith.constant 0 : index
    %c0_41 = arith.constant 0 : index
    %73 = vector.load %arg14[%c0_40, %c0_41] : memref<1x128xf32, #tpu.memory_space<vmem>>, vector<1x128xf32>
    %74 = vector.broadcast %73 : vector<1x128xf32> to vector<32x128xf32>
    %75 = arith.addf %72, %74 : vector<32x128xf32>
    %cst_42 = arith.constant 5.000000e-01 : f32
    %76 = vector.broadcast %cst_42 : f32 to vector<1x128xf32>
    %77 = arith.cmpf ogt, %2, %76 : vector<1x128xf32>
    %78 = vector.extract_strided_slice %21 {offsets = [0, 120], sizes = [32, 8], strides = [1, 1]} : vector<32x128xf32> to vector<32x8xf32>
    %79 = vector.extract_strided_slice %21 {offsets = [0, 0], sizes = [32, 120], strides = [1, 1]} : vector<32x128xf32> to vector<32x120xf32>
    %80 = tpu.concatenate %78, %79 in 1 : vector<32x8xf32>, vector<32x120xf32> -> vector<32x128xf32>
    %cst_43 = arith.constant -1.000000e+30 : f32
    %81 = vector.shape_cast %77 : vector<1x128xi1> to vector<1x128xi1>
    %82 = vector.broadcast %81 : vector<1x128xi1> to vector<32x128xi1>
    %83 = vector.broadcast %cst_43 : f32 to vector<32x128xf32>
    %84 = arith.select %82, %80, %83 : vector<32x128xi1>, vector<32x128xf32>
    %cst_44 = arith.constant 5.000000e-01 : f32
    %85 = vector.broadcast %cst_44 : f32 to vector<1x128xf32>
    %86 = arith.cmpf ogt, %3, %85 : vector<1x128xf32>
    %87 = vector.extract_strided_slice %21 {offsets = [0, 8], sizes = [32, 120], strides = [1, 1]} : vector<32x128xf32> to vector<32x120xf32>
    %88 = vector.extract_strided_slice %21 {offsets = [0, 0], sizes = [32, 8], strides = [1, 1]} : vector<32x128xf32> to vector<32x8xf32>
    %89 = tpu.concatenate %87, %88 in 1 : vector<32x120xf32>, vector<32x8xf32> -> vector<32x128xf32>
    %cst_45 = arith.constant -1.000000e+30 : f32
    %90 = vector.shape_cast %86 : vector<1x128xi1> to vector<1x128xi1>
    %91 = vector.broadcast %90 : vector<1x128xi1> to vector<32x128xi1>
    %92 = vector.broadcast %cst_45 : f32 to vector<32x128xf32>
    %93 = arith.select %91, %89, %92 : vector<32x128xi1>, vector<32x128xf32>
    %94 = arith.maximumf %84, %93 : vector<32x128xf32>
    %95 = arith.maximumf %21, %94 : vector<32x128xf32>
    %cst_46 = arith.constant 5.000000e-01 : f32
    %96 = vector.broadcast %cst_46 : f32 to vector<32x1xf32>
    %97 = arith.cmpf ogt, %0, %96 : vector<32x1xf32>
    %98 = vector.extract_strided_slice %95 {offsets = [31, 0], sizes = [1, 128], strides = [1, 1]} : vector<32x128xf32> to vector<1x128xf32>
    %99 = vector.extract_strided_slice %95 {offsets = [0, 0], sizes = [31, 128], strides = [1, 1]} : vector<32x128xf32> to vector<31x128xf32>
    %100 = tpu.concatenate %98, %99 in 0 : vector<1x128xf32>, vector<31x128xf32> -> vector<32x128xf32>
    %cst_47 = arith.constant -1.000000e+30 : f32
    %101 = vector.shape_cast %97 : vector<32x1xi1> to vector<32x1xi1>
    %102 = vector.broadcast %101 : vector<32x1xi1> to vector<32x128xi1>
    %103 = vector.broadcast %cst_47 : f32 to vector<32x128xf32>
    %104 = arith.select %102, %100, %103 : vector<32x128xi1>, vector<32x128xf32>
    %cst_48 = arith.constant 5.000000e-01 : f32
    %105 = vector.broadcast %cst_48 : f32 to vector<32x1xf32>
    %106 = arith.cmpf ogt, %1, %105 : vector<32x1xf32>
    %107 = vector.extract_strided_slice %95 {offsets = [1, 0], sizes = [31, 128], strides = [1, 1]} : vector<32x128xf32> to vector<31x128xf32>
    %108 = vector.extract_strided_slice %95 {offsets = [0, 0], sizes = [1, 128], strides = [1, 1]} : vector<32x128xf32> to vector<1x128xf32>
    %109 = tpu.concatenate %107, %108 in 0 : vector<31x128xf32>, vector<1x128xf32> -> vector<32x128xf32>
    %cst_49 = arith.constant -1.000000e+30 : f32
    %110 = vector.shape_cast %106 : vector<32x1xi1> to vector<32x1xi1>
    %111 = vector.broadcast %110 : vector<32x1xi1> to vector<32x128xi1>
    %112 = vector.broadcast %cst_49 : f32 to vector<32x128xf32>
    %113 = arith.select %111, %109, %112 : vector<32x128xi1>, vector<32x128xf32>
    %114 = arith.maximumf %104, %113 : vector<32x128xf32>
    %115 = arith.maximumf %95, %114 : vector<32x128xf32>
    %116 = arith.addf %75, %115 : vector<32x128xf32>
    %c0_50 = arith.constant 0 : index
    %c0_51 = arith.constant 0 : index
    %117 = vector.load %arg15[%c0_50, %c0_51] : memref<384x128xbf16, #tpu.memory_space<vmem>>, vector<384x128xbf16>
    %118 = arith.extf %117 : vector<384x128xbf16> to vector<384x128xf32>
    %cst_52 = arith.constant dense<0.000000e+00> : vector<32x128xf32>
    %119 = tpu.matmul %42, %118, %cst_52 {dimension_numbers = #tpu.dot_dimension_numbers<[1], [0], [0], [1], [0, 0, 1, 1], [], []>} : vector<32x384xf32>, vector<384x128xf32>, vector<32x128xf32> -> vector<32x128xf32>
    %c0_53 = arith.constant 0 : index
    %c0_54 = arith.constant 0 : index
    %120 = vector.load %arg16[%c0_53, %c0_54] : memref<1x128xf32, #tpu.memory_space<vmem>>, vector<1x128xf32>
    %121 = vector.broadcast %120 : vector<1x128xf32> to vector<32x128xf32>
    %122 = arith.addf %119, %121 : vector<32x128xf32>
    %cst_55 = arith.constant 0.000000e+00 : f32
    %123 = vector.broadcast %cst_55 : f32 to vector<32x128xf32>
    %124 = arith.maximumf %122, %123 : vector<32x128xf32>
    %cst_56 = arith.constant 5.000000e-01 : f32
    %125 = vector.broadcast %cst_56 : f32 to vector<32x1xf32>
    %126 = arith.cmpf ogt, %0, %125 : vector<32x1xf32>
    %127 = vector.extract_strided_slice %124 {offsets = [31, 0], sizes = [1, 128], strides = [1, 1]} : vector<32x128xf32> to vector<1x128xf32>
    %128 = vector.extract_strided_slice %124 {offsets = [0, 0], sizes = [31, 128], strides = [1, 1]} : vector<32x128xf32> to vector<31x128xf32>
    %129 = tpu.concatenate %127, %128 in 0 : vector<1x128xf32>, vector<31x128xf32> -> vector<32x128xf32>
    %cst_57 = arith.constant 0.000000e+00 : f32
    %130 = vector.shape_cast %126 : vector<32x1xi1> to vector<32x1xi1>
    %131 = vector.broadcast %130 : vector<32x1xi1> to vector<32x128xi1>
    %132 = vector.broadcast %cst_57 : f32 to vector<32x128xf32>
    %133 = arith.select %131, %129, %132 : vector<32x128xi1>, vector<32x128xf32>
    %cst_58 = arith.constant 5.000000e-01 : f32
    %134 = vector.broadcast %cst_58 : f32 to vector<32x1xf32>
    %135 = arith.cmpf ogt, %1, %134 : vector<32x1xf32>
    %136 = vector.extract_strided_slice %124 {offsets = [1, 0], sizes = [31, 128], strides = [1, 1]} : vector<32x128xf32> to vector<31x128xf32>
    %137 = vector.extract_strided_slice %124 {offsets = [0, 0], sizes = [1, 128], strides = [1, 1]} : vector<32x128xf32> to vector<1x128xf32>
    %138 = tpu.concatenate %136, %137 in 0 : vector<31x128xf32>, vector<1x128xf32> -> vector<32x128xf32>
    %cst_59 = arith.constant 0.000000e+00 : f32
    %139 = vector.shape_cast %135 : vector<32x1xi1> to vector<32x1xi1>
    %140 = vector.broadcast %139 : vector<32x1xi1> to vector<32x128xi1>
    %141 = vector.broadcast %cst_59 : f32 to vector<32x128xf32>
    %142 = arith.select %140, %138, %141 : vector<32x128xi1>, vector<32x128xf32>
    %143 = tpu.concatenate %124, %133, %142 in 1 : vector<32x128xf32>, vector<32x128xf32>, vector<32x128xf32> -> vector<32x384xf32>
    %c0_60 = arith.constant 0 : index
    %c0_61 = arith.constant 0 : index
    %144 = vector.load %arg17[%c0_60, %c0_61] : memref<384x128xbf16, #tpu.memory_space<vmem>>, vector<384x128xbf16>
    %145 = arith.extf %144 : vector<384x128xbf16> to vector<384x128xf32>
    %cst_62 = arith.constant dense<0.000000e+00> : vector<32x128xf32>
    %146 = tpu.matmul %143, %145, %cst_62 {dimension_numbers = #tpu.dot_dimension_numbers<[1], [0], [0], [1], [0, 0, 1, 1], [], []>} : vector<32x384xf32>, vector<384x128xf32>, vector<32x128xf32> -> vector<32x128xf32>
    %c0_63 = arith.constant 0 : index
    %c0_64 = arith.constant 0 : index
    %147 = vector.load %arg18[%c0_63, %c0_64] : memref<1x128xf32, #tpu.memory_space<vmem>>, vector<1x128xf32>
    %148 = vector.broadcast %147 : vector<1x128xf32> to vector<32x128xf32>
    %149 = arith.addf %146, %148 : vector<32x128xf32>
    %150 = arith.addf %149, %21 : vector<32x128xf32>
    %cst_65 = arith.constant 0.000000e+00 : f32
    %151 = vector.broadcast %cst_65 : f32 to vector<32x128xf32>
    %152 = arith.maximumf %21, %151 : vector<32x128xf32>
    %cst_66 = arith.constant 5.000000e-01 : f32
    %153 = vector.broadcast %cst_66 : f32 to vector<32x1xf32>
    %154 = arith.cmpf ogt, %0, %153 : vector<32x1xf32>
    %155 = vector.extract_strided_slice %152 {offsets = [31, 0], sizes = [1, 128], strides = [1, 1]} : vector<32x128xf32> to vector<1x128xf32>
    %156 = vector.extract_strided_slice %152 {offsets = [0, 0], sizes = [31, 128], strides = [1, 1]} : vector<32x128xf32> to vector<31x128xf32>
    %157 = tpu.concatenate %155, %156 in 0 : vector<1x128xf32>, vector<31x128xf32> -> vector<32x128xf32>
    %cst_67 = arith.constant 0.000000e+00 : f32
    %158 = vector.shape_cast %154 : vector<32x1xi1> to vector<32x1xi1>
    %159 = vector.broadcast %158 : vector<32x1xi1> to vector<32x128xi1>
    %160 = vector.broadcast %cst_67 : f32 to vector<32x128xf32>
    %161 = arith.select %159, %157, %160 : vector<32x128xi1>, vector<32x128xf32>
    %cst_68 = arith.constant 5.000000e-01 : f32
    %162 = vector.broadcast %cst_68 : f32 to vector<32x1xf32>
    %163 = arith.cmpf ogt, %1, %162 : vector<32x1xf32>
    %164 = vector.extract_strided_slice %152 {offsets = [1, 0], sizes = [31, 128], strides = [1, 1]} : vector<32x128xf32> to vector<31x128xf32>
    %165 = vector.extract_strided_slice %152 {offsets = [0, 0], sizes = [1, 128], strides = [1, 1]} : vector<32x128xf32> to vector<1x128xf32>
    %166 = tpu.concatenate %164, %165 in 0 : vector<31x128xf32>, vector<1x128xf32> -> vector<32x128xf32>
    %cst_69 = arith.constant 0.000000e+00 : f32
    %167 = vector.shape_cast %163 : vector<32x1xi1> to vector<32x1xi1>
    %168 = vector.broadcast %167 : vector<32x1xi1> to vector<32x128xi1>
    %169 = vector.broadcast %cst_69 : f32 to vector<32x128xf32>
    %170 = arith.select %168, %166, %169 : vector<32x128xi1>, vector<32x128xf32>
    %171 = tpu.concatenate %152, %161, %170 in 1 : vector<32x128xf32>, vector<32x128xf32>, vector<32x128xf32> -> vector<32x384xf32>
    %c0_70 = arith.constant 0 : index
    %c0_71 = arith.constant 0 : index
    %172 = vector.load %arg19[%c0_70, %c0_71] : memref<384x128xbf16, #tpu.memory_space<vmem>>, vector<384x128xbf16>
    %173 = arith.extf %172 : vector<384x128xbf16> to vector<384x128xf32>
    %cst_72 = arith.constant dense<0.000000e+00> : vector<32x128xf32>
    %174 = tpu.matmul %171, %173, %cst_72 {dimension_numbers = #tpu.dot_dimension_numbers<[1], [0], [0], [1], [0, 0, 1, 1], [], []>} : vector<32x384xf32>, vector<384x128xf32>, vector<32x128xf32> -> vector<32x128xf32>
    %c0_73 = arith.constant 0 : index
    %c0_74 = arith.constant 0 : index
    %175 = vector.load %arg20[%c0_73, %c0_74] : memref<1x128xf32, #tpu.memory_space<vmem>>, vector<1x128xf32>
    %176 = vector.broadcast %175 : vector<1x128xf32> to vector<32x128xf32>
    %177 = arith.addf %174, %176 : vector<32x128xf32>
    %cst_75 = arith.constant 0.000000e+00 : f32
    %178 = vector.broadcast %cst_75 : f32 to vector<32x128xf32>
    %179 = arith.maximumf %177, %178 : vector<32x128xf32>
    %cst_76 = arith.constant 5.000000e-01 : f32
    %180 = vector.broadcast %cst_76 : f32 to vector<32x1xf32>
    %181 = arith.cmpf ogt, %0, %180 : vector<32x1xf32>
    %182 = vector.extract_strided_slice %179 {offsets = [31, 0], sizes = [1, 128], strides = [1, 1]} : vector<32x128xf32> to vector<1x128xf32>
    %183 = vector.extract_strided_slice %179 {offsets = [0, 0], sizes = [31, 128], strides = [1, 1]} : vector<32x128xf32> to vector<31x128xf32>
    %184 = tpu.concatenate %182, %183 in 0 : vector<1x128xf32>, vector<31x128xf32> -> vector<32x128xf32>
    %cst_77 = arith.constant 0.000000e+00 : f32
    %185 = vector.shape_cast %181 : vector<32x1xi1> to vector<32x1xi1>
    %186 = vector.broadcast %185 : vector<32x1xi1> to vector<32x128xi1>
    %187 = vector.broadcast %cst_77 : f32 to vector<32x128xf32>
    %188 = arith.select %186, %184, %187 : vector<32x128xi1>, vector<32x128xf32>
    %cst_78 = arith.constant 5.000000e-01 : f32
    %189 = vector.broadcast %cst_78 : f32 to vector<32x1xf32>
    %190 = arith.cmpf ogt, %1, %189 : vector<32x1xf32>
    %191 = vector.extract_strided_slice %179 {offsets = [1, 0], sizes = [31, 128], strides = [1, 1]} : vector<32x128xf32> to vector<31x128xf32>
    %192 = vector.extract_strided_slice %179 {offsets = [0, 0], sizes = [1, 128], strides = [1, 1]} : vector<32x128xf32> to vector<1x128xf32>
    %193 = tpu.concatenate %191, %192 in 0 : vector<31x128xf32>, vector<1x128xf32> -> vector<32x128xf32>
    %cst_79 = arith.constant 0.000000e+00 : f32
    %194 = vector.shape_cast %190 : vector<32x1xi1> to vector<32x1xi1>
    %195 = vector.broadcast %194 : vector<32x1xi1> to vector<32x128xi1>
    %196 = vector.broadcast %cst_79 : f32 to vector<32x128xf32>
    %197 = arith.select %195, %193, %196 : vector<32x128xi1>, vector<32x128xf32>
    %198 = tpu.concatenate %179, %188, %197 in 1 : vector<32x128xf32>, vector<32x128xf32>, vector<32x128xf32> -> vector<32x384xf32>
    %c0_80 = arith.constant 0 : index
    %c0_81 = arith.constant 0 : index
    %199 = vector.load %arg21[%c0_80, %c0_81] : memref<384x128xbf16, #tpu.memory_space<vmem>>, vector<384x128xbf16>
    %200 = arith.extf %199 : vector<384x128xbf16> to vector<384x128xf32>
    %cst_82 = arith.constant dense<0.000000e+00> : vector<32x128xf32>
    %201 = tpu.matmul %198, %200, %cst_82 {dimension_numbers = #tpu.dot_dimension_numbers<[1], [0], [0], [1], [0, 0, 1, 1], [], []>} : vector<32x384xf32>, vector<384x128xf32>, vector<32x128xf32> -> vector<32x128xf32>
    %c0_83 = arith.constant 0 : index
    %c0_84 = arith.constant 0 : index
    %202 = vector.load %arg22[%c0_83, %c0_84] : memref<1x128xf32, #tpu.memory_space<vmem>>, vector<1x128xf32>
    %203 = vector.broadcast %202 : vector<1x128xf32> to vector<32x128xf32>
    %204 = arith.addf %201, %203 : vector<32x128xf32>
    %205 = arith.addf %12, %204 : vector<32x128xf32>
    %cst_85 = arith.constant 5.000000e-01 : f32
    %206 = vector.broadcast %cst_85 : f32 to vector<1x128xf32>
    %207 = arith.cmpf ogt, %2, %206 : vector<1x128xf32>
    %208 = vector.extract_strided_slice %12 {offsets = [0, 120], sizes = [32, 8], strides = [1, 1]} : vector<32x128xf32> to vector<32x8xf32>
    %209 = vector.extract_strided_slice %12 {offsets = [0, 0], sizes = [32, 120], strides = [1, 1]} : vector<32x128xf32> to vector<32x120xf32>
    %210 = tpu.concatenate %208, %209 in 1 : vector<32x8xf32>, vector<32x120xf32> -> vector<32x128xf32>
    %cst_86 = arith.constant -1.000000e+30 : f32
    %211 = vector.shape_cast %207 : vector<1x128xi1> to vector<1x128xi1>
    %212 = vector.broadcast %211 : vector<1x128xi1> to vector<32x128xi1>
    %213 = vector.broadcast %cst_86 : f32 to vector<32x128xf32>
    %214 = arith.select %212, %210, %213 : vector<32x128xi1>, vector<32x128xf32>
    %cst_87 = arith.constant 5.000000e-01 : f32
    %215 = vector.broadcast %cst_87 : f32 to vector<1x128xf32>
    %216 = arith.cmpf ogt, %3, %215 : vector<1x128xf32>
    %217 = vector.extract_strided_slice %12 {offsets = [0, 8], sizes = [32, 120], strides = [1, 1]} : vector<32x128xf32> to vector<32x120xf32>
    %218 = vector.extract_strided_slice %12 {offsets = [0, 0], sizes = [32, 8], strides = [1, 1]} : vector<32x128xf32> to vector<32x8xf32>
    %219 = tpu.concatenate %217, %218 in 1 : vector<32x120xf32>, vector<32x8xf32> -> vector<32x128xf32>
    %cst_88 = arith.constant -1.000000e+30 : f32
    %220 = vector.shape_cast %216 : vector<1x128xi1> to vector<1x128xi1>
    %221 = vector.broadcast %220 : vector<1x128xi1> to vector<32x128xi1>
    %222 = vector.broadcast %cst_88 : f32 to vector<32x128xf32>
    %223 = arith.select %221, %219, %222 : vector<32x128xi1>, vector<32x128xf32>
    %224 = arith.maximumf %214, %223 : vector<32x128xf32>
    %225 = arith.maximumf %12, %224 : vector<32x128xf32>
    %cst_89 = arith.constant 5.000000e-01 : f32
    %226 = vector.broadcast %cst_89 : f32 to vector<32x1xf32>
    %227 = arith.cmpf ogt, %0, %226 : vector<32x1xf32>
    %228 = vector.extract_strided_slice %225 {offsets = [31, 0], sizes = [1, 128], strides = [1, 1]} : vector<32x128xf32> to vector<1x128xf32>
    %229 = vector.extract_strided_slice %225 {offsets = [0, 0], sizes = [31, 128], strides = [1, 1]} : vector<32x128xf32> to vector<31x128xf32>
    %230 = tpu.concatenate %228, %229 in 0 : vector<1x128xf32>, vector<31x128xf32> -> vector<32x128xf32>
    %cst_90 = arith.constant -1.000000e+30 : f32
    %231 = vector.shape_cast %227 : vector<32x1xi1> to vector<32x1xi1>
    %232 = vector.broadcast %231 : vector<32x1xi1> to vector<32x128xi1>
    %233 = vector.broadcast %cst_90 : f32 to vector<32x128xf32>
    %234 = arith.select %232, %230, %233 : vector<32x128xi1>, vector<32x128xf32>
    %cst_91 = arith.constant 5.000000e-01 : f32
    %235 = vector.broadcast %cst_91 : f32 to vector<32x1xf32>
    %236 = arith.cmpf ogt, %1, %235 : vector<32x1xf32>
    %237 = vector.extract_strided_slice %225 {offsets = [1, 0], sizes = [31, 128], strides = [1, 1]} : vector<32x128xf32> to vector<31x128xf32>
    %238 = vector.extract_strided_slice %225 {offsets = [0, 0], sizes = [1, 128], strides = [1, 1]} : vector<32x128xf32> to vector<1x128xf32>
    %239 = tpu.concatenate %237, %238 in 0 : vector<31x128xf32>, vector<1x128xf32> -> vector<32x128xf32>
    %cst_92 = arith.constant -1.000000e+30 : f32
    %240 = vector.shape_cast %236 : vector<32x1xi1> to vector<32x1xi1>
    %241 = vector.broadcast %240 : vector<32x1xi1> to vector<32x128xi1>
    %242 = vector.broadcast %cst_92 : f32 to vector<32x128xf32>
    %243 = arith.select %241, %239, %242 : vector<32x128xi1>, vector<32x128xf32>
    %244 = arith.maximumf %234, %243 : vector<32x128xf32>
    %245 = arith.maximumf %225, %244 : vector<32x128xf32>
    %246 = arith.addf %245, %116 : vector<32x128xf32>
    %247 = tpu.concatenate %116, %150, %205, %246 in 1 : vector<32x128xf32>, vector<32x128xf32>, vector<32x128xf32>, vector<32x128xf32> -> vector<32x512xf32>
    %c0_93 = arith.constant 0 : index
    %c0_94 = arith.constant 0 : index
    %248 = vector.load %arg23[%c0_93, %c0_94] : memref<32x512xf32, #tpu.memory_space<vmem>>, vector<32x512xf32>
    tpu.vector_store %arg23[%c0_93, %c0_94], %247 {strides = array<i32>} : memref<32x512xf32, #tpu.memory_space<vmem>>, vector<32x512xf32>,
    return
  }
  func.func @transform_0(%arg0: i32) -> (i32, i32) {
    %c0_i32 = arith.constant 0 : i32
    %c0_i32_0 = arith.constant 0 : i32
    return %arg0, %c0_i32 : i32, i32
  }
  func.func @transform_1(%arg0: i32) -> (i32, i32) {
    %c0_i32 = arith.constant 0 : i32
    %c0_i32_0 = arith.constant 0 : i32
    return %arg0, %c0_i32 : i32, i32
  }
  func.func @transform_2(%arg0: i32) -> (i32, i32) {
    %c0_i32 = arith.constant 0 : i32
    %c0_i32_0 = arith.constant 0 : i32
    %c0_i32_1 = arith.constant 0 : i32
    return %c0_i32, %c0_i32_0 : i32, i32
  }
  func.func @transform_3(%arg0: i32) -> (i32, i32) {
    %c0_i32 = arith.constant 0 : i32
    %c0_i32_0 = arith.constant 0 : i32
    %c0_i32_1 = arith.constant 0 : i32
    return %c0_i32, %c0_i32_0 : i32, i32
  }
  func.func @transform_4(%arg0: i32) -> (i32, i32) {
    %c0_i32 = arith.constant 0 : i32
    %c0_i32_0 = arith.constant 0 : i32
    %c0_i32_1 = arith.constant 0 : i32
    return %c0_i32, %c0_i32_0 : i32, i32
  }
  func.func @transform_5(%arg0: i32) -> (i32, i32) {
    %c0_i32 = arith.constant 0 : i32
    %c0_i32_0 = arith.constant 0 : i32
    %c0_i32_1 = arith.constant 0 : i32
    return %c0_i32, %c0_i32_0 : i32, i32
  }
  func.func @transform_6(%arg0: i32) -> (i32, i32) {
    %c0_i32 = arith.constant 0 : i32
    %c0_i32_0 = arith.constant 0 : i32
    %c0_i32_1 = arith.constant 0 : i32
    return %c0_i32, %c0_i32_0 : i32, i32
  }
  func.func @transform_7(%arg0: i32) -> (i32, i32) {
    %c0_i32 = arith.constant 0 : i32
    %c0_i32_0 = arith.constant 0 : i32
    %c0_i32_1 = arith.constant 0 : i32
    return %c0_i32, %c0_i32_0 : i32, i32
  }
  func.func @transform_8(%arg0: i32) -> (i32, i32) {
    %c0_i32 = arith.constant 0 : i32
    %c0_i32_0 = arith.constant 0 : i32
    %c0_i32_1 = arith.constant 0 : i32
    return %c0_i32, %c0_i32_0 : i32, i32
  }
  func.func @transform_9(%arg0: i32) -> (i32, i32) {
    %c0_i32 = arith.constant 0 : i32
    %c0_i32_0 = arith.constant 0 : i32
    %c0_i32_1 = arith.constant 0 : i32
    return %c0_i32, %c0_i32_0 : i32, i32
  }
  func.func @transform_10(%arg0: i32) -> (i32, i32) {
    %c0_i32 = arith.constant 0 : i32
    %c0_i32_0 = arith.constant 0 : i32
    %c0_i32_1 = arith.constant 0 : i32
    return %c0_i32, %c0_i32_0 : i32, i32
  }
  func.func @transform_11(%arg0: i32) -> (i32, i32) {
    %c0_i32 = arith.constant 0 : i32
    %c0_i32_0 = arith.constant 0 : i32
    %c0_i32_1 = arith.constant 0 : i32
    return %c0_i32, %c0_i32_0 : i32, i32
  }
  func.func @transform_12(%arg0: i32) -> (i32, i32) {
    %c0_i32 = arith.constant 0 : i32
    %c0_i32_0 = arith.constant 0 : i32
    %c0_i32_1 = arith.constant 0 : i32
    return %c0_i32, %c0_i32_0 : i32, i32
  }
  func.func @transform_13(%arg0: i32) -> (i32, i32) {
    %c0_i32 = arith.constant 0 : i32
    %c0_i32_0 = arith.constant 0 : i32
    %c0_i32_1 = arith.constant 0 : i32
    return %c0_i32, %c0_i32_0 : i32, i32
  }
  func.func @transform_14(%arg0: i32) -> (i32, i32) {
    %c0_i32 = arith.constant 0 : i32
    %c0_i32_0 = arith.constant 0 : i32
    %c0_i32_1 = arith.constant 0 : i32
    return %c0_i32, %c0_i32_0 : i32, i32
  }
  func.func @transform_15(%arg0: i32) -> (i32, i32) {
    %c0_i32 = arith.constant 0 : i32
    %c0_i32_0 = arith.constant 0 : i32
    %c0_i32_1 = arith.constant 0 : i32
    return %c0_i32, %c0_i32_0 : i32, i32
  }
  func.func @transform_16(%arg0: i32) -> (i32, i32) {
    %c0_i32 = arith.constant 0 : i32
    %c0_i32_0 = arith.constant 0 : i32
    %c0_i32_1 = arith.constant 0 : i32
    return %c0_i32, %c0_i32_0 : i32, i32
  }
  func.func @transform_17(%arg0: i32) -> (i32, i32) {
    %c0_i32 = arith.constant 0 : i32
    %c0_i32_0 = arith.constant 0 : i32
    %c0_i32_1 = arith.constant 0 : i32
    return %c0_i32, %c0_i32_0 : i32, i32
  }
  func.func @transform_18(%arg0: i32) -> (i32, i32) {
    %c0_i32 = arith.constant 0 : i32
    %c0_i32_0 = arith.constant 0 : i32
    %c0_i32_1 = arith.constant 0 : i32
    return %c0_i32, %c0_i32_0 : i32, i32
  }
  func.func @transform_19(%arg0: i32) -> (i32, i32) {
    %c0_i32 = arith.constant 0 : i32
    %c0_i32_0 = arith.constant 0 : i32
    %c0_i32_1 = arith.constant 0 : i32
    return %c0_i32, %c0_i32_0 : i32, i32
  }
  func.func @transform_20(%arg0: i32) -> (i32, i32) {
    %c0_i32 = arith.constant 0 : i32
    %c0_i32_0 = arith.constant 0 : i32
    %c0_i32_1 = arith.constant 0 : i32
    return %c0_i32, %c0_i32_0 : i32, i32
  }
  func.func @transform_21(%arg0: i32) -> (i32, i32) {
    %c0_i32 = arith.constant 0 : i32
    %c0_i32_0 = arith.constant 0 : i32
    %c0_i32_1 = arith.constant 0 : i32
    return %c0_i32, %c0_i32_0 : i32, i32
  }
  func.func @transform_22(%arg0: i32) -> (i32, i32) {
    %c0_i32 = arith.constant 0 : i32
    %c0_i32_0 = arith.constant 0 : i32
    return %arg0, %c0_i32 : i32, i32
  }
}

</mosaic_0001>

<llo_original>
// kernel: tpu_custom_call.1
$region0: #{tpu_custom_call.1}
  #allocation0 [shape = 'u32[]', space=smem, size = 0x4, offset = 0x4, fixed_abs, tag = 'smem constant byte address 0x4 - core index']
  #allocation1 [shape = 'u32[144,128]{1,0:T(1,128)}', space=vmem, size = 0x12000, scoped, tag = 'internal scratch']
  %s0 = inlined_call_operand.hbm [shape: f32[8,128], index: 0, kind: input, shape index: {}]
  %s1 = inlined_call_operand.hbm [shape: f32[8,128], index: 1, kind: output, shape index: {}]
  %s2 = sld [smem:[#allocation0]]
  $region18: #{tpu_custom_call.1} parent=0
    _
  %s4 = ssub.s32 1, %s2
  %s5 = scalar_select 0, %s4, %s2
  $region1: #{tpu_custom_call.1} parent=0
    #allocation2 [shape = 'u8[4096]{0}', space=vmem, size = 0x1000, scoped, tag = 'input window, operand 0, single buffered']
    #allocation3 [shape = 's32[1]{0}', space=sflag, size = 0x4, scoped, tag = 'scoped memory for tpu_custom_call.1']
    #allocation4 [shape = 's32[1]{0}', space=sflag, size = 0x4, scoped, tag = 'scoped memory for tpu_custom_call.1']
    #allocation5 [shape = 'u8[4096]{0}', space=vmem, size = 0x1000, scoped, tag = 'output window, operand 0, single buffered']
    %6 = vsyncpa [#allocation3], 0
    %7 = vsyncpa [#allocation4], 0
    // Predicated region
    $region2: #{tpu_custom_call.1} parent=1 // pred_check
      _
    $region3: #{tpu_custom_call.1} parent=1 // pred_check_branch
      %9 = sbr.rel (0) target = $region5
    $region4: #{tpu_custom_call.1} parent=1 // pred_region
      %s11 = ssub.s32 128, 128
      %12 = vsyncadd [#allocation3], %s11
      %s14 = sshll.u32 [#allocation2], 4
      %s15 = int_to_ptr.vmem [resolvable:$true] %s14
      %17 = dma.hbm_to_vmem [thread:$0]  %s0, 128, %s15, [#allocation3]
    $region5: #{tpu_custom_call.1} parent=1 // pred_fallthru
      _
    // Predicated region
    $region6: #{tpu_custom_call.1} parent=1 // pred_check
      _
    $region7: #{tpu_custom_call.1} parent=1 // pred_check_branch
      %19 = sbr.rel (0) target = $region9
    $region8: #{tpu_custom_call.1} parent=1 // pred_region
      %20 = dma.done [#allocation3], 128
    $region9: #{tpu_custom_call.1} parent=1 // pred_fallthru
      _
    %v21 = vld [vmem:[#allocation2] sm:$0xff]
    %v22 = vrot.slane %v21, 7
    %23 = vst [vmem:[#allocation5] sm:$0xff] %v22
    // Predicated region
    $region10: #{tpu_custom_call.1} parent=1 // pred_check
      _
    $region11: #{tpu_custom_call.1} parent=1 // pred_check_branch
      %25 = sbr.rel (0) target = $region13
    $region12: #{tpu_custom_call.1} parent=1 // pred_region
      %s27 = ssub.s32 128, 128
      %28 = vsyncadd [#allocation4], %s27
      %s30 = sshll.u32 [#allocation5], 4
      %s31 = int_to_ptr.vmem [resolvable:$true] %s30
      %33 = dma.vmem_to_hbm [thread:$0]  %s31, 128, %s1, [#allocation4]
    $region13: #{tpu_custom_call.1} parent=1 // pred_fallthru
      _
    // Predicated region
    $region14: #{tpu_custom_call.1} parent=1 // pred_check
      _
    $region15: #{tpu_custom_call.1} parent=1 // pred_check_branch
      %35 = sbr.rel (0) target = $region17
    $region16: #{tpu_custom_call.1} parent=1 // pred_region
      %36 = dma.done [#allocation4], 128
    $region17: #{tpu_custom_call.1} parent=1 // pred_fallthru
      _
    %37 = vsyncpa [#allocation3], 1
    %38 = vsyncpa [#allocation4], 1

// kernel: tpu_custom_call.1
$region0: #{tpu_custom_call.1}
  #allocation0 [shape = 'u32[]', space=smem, size = 0x4, offset = 0x4, fixed_abs, tag = 'smem constant byte address 0x4 - core index']
  #allocation1 [shape = 'u32[144,128]{1,0:T(1,128)}', space=vmem, size = 0x12000, scoped, tag = 'internal scratch']
  %s0 = inlined_call_operand.hbm [shape: f32[8,128], index: 0, kind: input, shape index: {}]
  %s1 = inlined_call_operand.hbm [shape: f32[8,128], index: 1, kind: output, shape index: {}]
  %s2 = sld [smem:[#allocation0]]
  $region18: #{tpu_custom_call.1} parent=0
    _
  %s4 = ssub.s32 1, %s2
  %s5 = scalar_select 0, %s4, %s2
  $region1: #{tpu_custom_call.1} parent=0
    #allocation2 [shape = 'u8[4096]{0}', space=vmem, size = 0x1000, scoped, tag = 'input window, operand 0, single buffered']
    #allocation3 [shape = 's32[1]{0}', space=sflag, size = 0x4, scoped, tag = 'scoped memory for tpu_custom_call.1']
    #allocation4 [shape = 's32[1]{0}', space=sflag, size = 0x4, scoped, tag = 'scoped memory for tpu_custom_call.1']
    #allocation5 [shape = 'u8[4096]{0}', space=vmem, size = 0x1000, scoped, tag = 'output window, operand 0, single buffered']
    %6 = vsyncpa [#allocation3], 0
    %7 = vsyncpa [#allocation4], 0
    // Predicated region
    $region2: #{tpu_custom_call.1} parent=1 // pred_check
      _
    $region3: #{tpu_custom_call.1} parent=1 // pred_check_branch
      %9 = sbr.rel (0) target = $region5
    $region4: #{tpu_custom_call.1} parent=1 // pred_region
      %s11 = ssub.s32 128, 128
      %12 = vsyncadd [#allocation3], %s11
      %s14 = sshll.u32 [#allocation2], 4
      %s15 = int_to_ptr.vmem [resolvable:$true] %s14
      %17 = dma.hbm_to_vmem [thread:$0]  %s0, 128, %s15, [#allocation3]
    $region5: #{tpu_custom_call.1} parent=1 // pred_fallthru
      _
    // Predicated region
    $region6: #{tpu_custom_call.1} parent=1 // pred_check
      _
    $region7: #{tpu_custom_call.1} parent=1 // pred_check_branch
      %19 = sbr.rel (0) target = $region9
    $region8: #{tpu_custom_call.1} parent=1 // pred_region
      %20 = dma.done [#allocation3], 128
    $region9: #{tpu_custom_call.1} parent=1 // pred_fallthru
      _
    %v21 = vld [vmem:[#allocation2] sm:$0xff]
    %22 = vrot.lane.b32.xlu0 %v21, 1
    %v23 = vpop.permute.xlu0 %22
    %24 = vst [vmem:[#allocation5] sm:$0xff] %v23
    // Predicated region
    $region10: #{tpu_custom_call.1} parent=1 // pred_check
      _
    $region11: #{tpu_custom_call.1} parent=1 // pred_check_branch
      %26 = sbr.rel (0) target = $region13
    $region12: #{tpu_custom_call.1} parent=1 // pred_region
      %s28 = ssub.s32 128, 128
      %29 = vsyncadd [#allocation4], %s28
      %s31 = sshll.u32 [#allocation5], 4
      %s32 = int_to_ptr.vmem [resolvable:$true] %s31
      %34 = dma.vmem_to_hbm [thread:$0]  %s32, 128, %s1, [#allocation4]
    $region13: #{tpu_custom_call.1} parent=1 // pred_fallthru
      _
    // Predicated region
    $region14: #{tpu_custom_call.1} parent=1 // pred_check
      _
    $region15: #{tpu_custom_call.1} parent=1 // pred_check_branch
      %36 = sbr.rel (0) target = $region17
    $region16: #{tpu_custom_call.1} parent=1 // pred_region
      %37 = dma.done [#allocation4], 128
    $region17: #{tpu_custom_call.1} parent=1 // pred_fallthru
      _
    %38 = vsyncpa [#allocation3], 1
    %39 = vsyncpa [#allocation4], 1

// kernel: tpu_custom_call.1
$region0: #{tpu_custom_call.1}
  #allocation0 [shape = 'u32[]', space=smem, size = 0x4, offset = 0x4, fixed_abs, tag = 'smem constant byte address 0x4 - core index']
  #allocation1 [shape = 'u32[144,128]{1,0:T(1,128)}', space=vmem, size = 0x12000, scoped, tag = 'internal scratch']
  %s0 = inlined_call_operand.hbm [shape: f32[32,512], index: 0, kind: input, shape index: {}]
  %s1 = inlined_call_operand.hbm [shape: f32[32,512], index: 1, kind: input, shape index: {}]
  %s2 = inlined_call_operand.hbm [shape: bf16[512,128], index: 2, kind: input, shape index: {}]
  %s3 = inlined_call_operand.vmem [shape: f32[1,128], index: 3, kind: input, shape index: {}]
  %s4 = inlined_call_operand.hbm [shape: bf16[512,128], index: 4, kind: input, shape index: {}]
  %s5 = inlined_call_operand.vmem [shape: f32[1,128], index: 5, kind: input, shape index: {}]
  %s6 = inlined_call_operand.vmem [shape: f32[32,1], index: 6, kind: input, shape index: {}]
  %s7 = inlined_call_operand.vmem [shape: f32[32,1], index: 7, kind: input, shape index: {}]
  %s8 = inlined_call_operand.vmem [shape: f32[1,128], index: 8, kind: input, shape index: {}]
  %s9 = inlined_call_operand.vmem [shape: f32[1,128], index: 9, kind: input, shape index: {}]
  %s10 = inlined_call_operand.hbm [shape: bf16[384,128], index: 10, kind: input, shape index: {}]
  %s11 = inlined_call_operand.vmem [shape: f32[1,128], index: 11, kind: input, shape index: {}]
  %s12 = inlined_call_operand.hbm [shape: bf16[384,128], index: 12, kind: input, shape index: {}]
  %s13 = inlined_call_operand.vmem [shape: f32[1,128], index: 13, kind: input, shape index: {}]
  %s14 = inlined_call_operand.hbm [shape: bf16[384,128], index: 14, kind: input, shape index: {}]
  %s15 = inlined_call_operand.vmem [shape: f32[1,128], index: 15, kind: input, shape index: {}]
  %s16 = inlined_call_operand.hbm [shape: bf16[384,128], index: 16, kind: input, shape index: {}]
  %s17 = inlined_call_operand.vmem [shape: f32[1,128], index: 17, kind: input, shape index: {}]
  %s18 = inlined_call_operand.hbm [shape: bf16[384,128], index: 18, kind: input, shape index: {}]
  %s19 = inlined_call_operand.vmem [shape: f32[1,128], index: 19, kind: input, shape index: {}]
  %s20 = inlined_call_operand.hbm [shape: bf16[384,128], index: 20, kind: input, shape index: {}]
  %s21 = inlined_call_operand.vmem [shape: f32[1,128], index: 21, kind: input, shape index: {}]
  %s22 = inlined_call_operand.hbm [shape: f32[32,512], index: 22, kind: output, shape index: {}]
  %s23 = sld [smem:[#allocation0]]
  $region138: #{tpu_custom_call.1} parent=0
    _
  %s25 = ssub.s32 1, %s23
  %s26 = scalar_select 0, %s25, %s23
  $region1: #{tpu_custom_call.1} parent=0
    #allocation2 [shape = 'u8[65536]{0}', space=vmem, size = 0x10000, scoped, tag = 'input window, operand 0, single buffered']
    #allocation3 [shape = 's32[1]{0}', space=sflag, size = 0x4, scoped, tag = 'scoped memory for tpu_custom_call.1']
    #allocation4 [shape = 's32[1]{0}', space=sflag, size = 0x4, scoped, tag = 'scoped memory for tpu_custom_call.1']
    #allocation5 [shape = 'u8[65536]{0}', space=vmem, size = 0x10000, scoped, tag = 'input window, operand 1, single buffered']
    #allocation6 [shape = 's32[1]{0}', space=sflag, size = 0x4, scoped, tag = 'scoped memory for tpu_custom_call.1']
    #allocation7 [shape = 'u8[131072]{0}', space=vmem, size = 0x20000, scoped, tag = 'input window, operand 2, single buffered']
    #allocation8 [shape = 'u8[131072]{0}', space=vmem, size = 0x20000, scoped, tag = 'input window, operand 4, single buffered']
    #allocation9 [shape = 's32[1]{0}', space=sflag, size = 0x4, scoped, tag = 'scoped memory for tpu_custom_call.1']
    #allocation10 [shape = 'u8[98304]{0}', space=vmem, size = 0x18000, scoped, tag = 'input window, operand 10, single buffered']
    #allocation11 [shape = 'u8[98304]{0}', space=vmem, size = 0x18000, scoped, tag = 'input window, operand 12, single buffered']
    #allocation12 [shape = 's32[1]{0}', space=sflag, size = 0x4, scoped, tag = 'scoped memory for tpu_custom_call.1']
    #allocation13 [shape = 'u8[98304]{0}', space=vmem, size = 0x18000, scoped, tag = 'input window, operand 14, single buffered']
    #allocation14 [shape = 'u8[98304]{0}', space=vmem, size = 0x18000, scoped, tag = 'input window, operand 16, single buffered']
    #allocation15 [shape = 's32[1]{0}', space=sflag, size = 0x4, scoped, tag = 'scoped memory for tpu_custom_call.1']
    #allocation16 [shape = 'u8[98304]{0}', space=vmem, size = 0x18000, scoped, tag = 'input window, operand 18, single buffered']
    #allocation17 [shape = 'u8[98304]{0}', space=vmem, size = 0x18000, scoped, tag = 'input window, operand 20, single buffered']
    #allocation18 [shape = 's32[1]{0}', space=sflag, size = 0x4, scoped, tag = 'scoped memory for tpu_custom_call.1']
    #allocation19 [shape = 'u8[65536]{0}', space=vmem, size = 0x10000, scoped, tag = 'output window, operand 0, single buffered']
    %27 = vsyncpa [#allocation3], 0
    %28 = vsyncpa [#allocation6], 0
    %29 = vsyncpa [#allocation9], 0
    %30 = vsyncpa [#allocation12], 0
    %31 = vsyncpa [#allocation15], 0
    %32 = vsyncpa [#allocation18], 0
    %33 = vsyncpa [#allocation4], 0
    // Predicated region
    $region2: #{tpu_custom_call.1} parent=1 // pred_check
      _
    $region3: #{tpu_custom_call.1} parent=1 // pred_check_branch
      %35 = sbr.rel (0) target = $region5
    $region4: #{tpu_custom_call.1} parent=1 // pred_region
      %s37 = ssub.s32 2048, 2048
      %38 = vsyncadd [#allocation3], %s37
      %s39 = sshll.u32 [#allocation2], 4
      %s40 = int_to_ptr.vmem [resolvable:$true] %s39
      %45 = dma.hbm_to_vmem [thread:$0]  %s0, 2048, %s40, [#allocation3], 512, 512, 32
    $region5: #{tpu_custom_call.1} parent=1 // pred_fallthru
      _
    // Predicated region
    $region6: #{tpu_custom_call.1} parent=1 // pred_check
      _
    $region7: #{tpu_custom_call.1} parent=1 // pred_check_branch
      %47 = sbr.rel (0) target = $region9
    $region8: #{tpu_custom_call.1} parent=1 // pred_region
      %s49 = ssub.s32 2048, 2048
      %50 = vsyncadd [#allocation6], %s49
      %s51 = sshll.u32 [#allocation5], 4
      %s52 = int_to_ptr.vmem [resolvable:$true] %s51
      %57 = dma.hbm_to_vmem [thread:$0]  %s1, 2048, %s52, [#allocation6], 512, 512, 32
    $region9: #{tpu_custom_call.1} parent=1 // pred_fallthru
      _
    // Predicated region
    $region10: #{tpu_custom_call.1} parent=1 // pred_check
      _
    $region11: #{tpu_custom_call.1} parent=1 // pred_check_branch
      %59 = sbr.rel (0) target = $region13
    $region12: #{tpu_custom_call.1} parent=1 // pred_region
      %s61 = ssub.s32 4096, 4096
      %62 = vsyncadd [#allocation6], %s61
      %s63 = sshll.u32 [#allocation7], 4
      %s64 = int_to_ptr.vmem [resolvable:$true] %s63
      %69 = dma.hbm_to_vmem [thread:$0]  %s2, 4096, %s64, [#allocation6], 64, 64, 4
    $region13: #{tpu_custom_call.1} parent=1 // pred_fallthru
      _
    // Predicated region
    $region14: #{tpu_custom_call.1} parent=1 // pred_check
      _
    $region15: #{tpu_custom_call.1} parent=1 // pred_check_branch
      %71 = sbr.rel (0) target = $region17
    $region16: #{tpu_custom_call.1} parent=1 // pred_region
      _
    $region17: #{tpu_custom_call.1} parent=1 // pred_fallthru
      _
    // Predicated region
    $region18: #{tpu_custom_call.1} parent=1 // pred_check
      _
    $region19: #{tpu_custom_call.1} parent=1 // pred_check_branch
      %73 = sbr.rel (0) target = $region21
    $region20: #{tpu_custom_call.1} parent=1 // pred_region
      %s75 = ssub.s32 4096, 4096
      %76 = vsyncadd [#allocation9], %s75
      %s77 = sshll.u32 [#allocation8], 4
      %s78 = int_to_ptr.vmem [resolvable:$true] %s77
      %83 = dma.hbm_to_vmem [thread:$0]  %s4, 4096, %s78, [#allocation9], 64, 64, 4
    $region21: #{tpu_custom_call.1} parent=1 // pred_fallthru
      _
    // Predicated region
    $region22: #{tpu_custom_call.1} parent=1 // pred_check
      _
    $region23: #{tpu_custom_call.1} parent=1 // pred_check_branch
      %85 = sbr.rel (0) target = $region25
    $region24: #{tpu_custom_call.1} parent=1 // pred_region
      _
    $region25: #{tpu_custom_call.1} parent=1 // pred_fallthru
      _
    // Predicated region
    $region26: #{tpu_custom_call.1} parent=1 // pred_check
      _
    $region27: #{tpu_custom_call.1} parent=1 // pred_check_branch
      %87 = sbr.rel (0) target = $region29
    $region28: #{tpu_custom_call.1} parent=1 // pred_region
      _
    $region29: #{tpu_custom_call.1} parent=1 // pred_fallthru
      _
    // Predicated region
    $region30: #{tpu_custom_call.1} parent=1 // pred_check
      _
    $region31: #{tpu_custom_call.1} parent=1 // pred_check_branch
      %89 = sbr.rel (0) target = $region33
    $region32: #{tpu_custom_call.1} parent=1 // pred_region
      _
    $region33: #{tpu_custom_call.1} parent=1 // pred_fallthru
      _
    // Predicated region
    $region34: #{tpu_custom_call.1} parent=1 // pred_check
      _
    $region35: #{tpu_custom_call.1} parent=1 // pred_check_branch
      %91 = sbr.rel (0) target = $region37
    $region36: #{tpu_custom_call.1} parent=1 // pred_region
      _
    $region37: #{tpu_custom_call.1} parent=1 // pred_fallthru
      _
    // Predicated region
    $region38: #{tpu_custom_call.1} parent=1 // pred_check
      _
    $region39: #{tpu_custom_call.1} parent=1 // pred_check_branch
      %93 = sbr.rel (0) target = $region41
    $region40: #{tpu_custom_call.1} parent=1 // pred_region
      _
    $region41: #{tpu_custom_call.1} parent=1 // pred_fallthru
      _
    // Predicated region
    $region42: #{tpu_custom_call.1} parent=1 // pred_check
      _
    $region43: #{tpu_custom_call.1} parent=1 // pred_check_branch
      %95 = sbr.rel (0) target = $region45
    $region44: #{tpu_custom_call.1} parent=1 // pred_region
      %s97 = ssub.s32 3072, 3072
      %98 = vsyncadd [#allocation9], %s97
      %s99 = sshll.u32 [#allocation10], 4
      %s100 = int_to_ptr.vmem [resolvable:$true] %s99
      %105 = dma.hbm_to_vmem [thread:$0]  %s10, 3072, %s100, [#allocation9], 64, 64, 4
    $region45: #{tpu_custom_call.1} parent=1 // pred_fallthru
      _
    // Predicated region
    $region46: #{tpu_custom_call.1} parent=1 // pred_check
      _
    $region47: #{tpu_custom_call.1} parent=1 // pred_check_branch
      %107 = sbr.rel (0) target = $region49
    $region48: #{tpu_custom_call.1} parent=1 // pred_region
      _
    $region49: #{tpu_custom_call.1} parent=1 // pred_fallthru
      _
    // Predicated region
    $region50: #{tpu_custom_call.1} parent=1 // pred_check
      _
    $region51: #{tpu_custom_call.1} parent=1 // pred_check_branch
      %109 = sbr.rel (0) target = $region53
    $region52: #{tpu_custom_call.1} parent=1 // pred_region
      %s111 = ssub.s32 3072, 3072
      %112 = vsyncadd [#allocation12], %s111
      %s113 = sshll.u32 [#allocation11], 4
      %s114 = int_to_ptr.vmem [resolvable:$true] %s113
      %119 = dma.hbm_to_vmem [thread:$0]  %s12, 3072, %s114, [#allocation12], 64, 64, 4
    $region53: #{tpu_custom_call.1} parent=1 // pred_fallthru
      _
    // Predicated region
    $region54: #{tpu_custom_call.1} parent=1 // pred_check
      _
    $region55: #{tpu_custom_call.1} parent=1 // pred_check_branch
      %121 = sbr.rel (0) target = $region57
    $region56: #{tpu_custom_call.1} parent=1 // pred_region
      _
    $region57: #{tpu_custom_call.1} parent=1 // pred_fallthru
      _
    // Predicated region
    $region58: #{tpu_custom_call.1} parent=1 // pred_check
      _
    $region59: #{tpu_custom_call.1} parent=1 // pred_check_branch
      %123 = sbr.rel (0) target = $region61
    $region60: #{tpu_custom_call.1} parent=1 // pred_region
      %s125 = ssub.s32 3072, 3072
      %126 = vsyncadd [#allocation12], %s125
      %s127 = sshll.u32 [#allocation13], 4
      %s128 = int_to_ptr.vmem [resolvable:$true] %s127
      %133 = dma.hbm_to_vmem [thread:$0]  %s14, 3072, %s128, [#allocation12], 64, 64, 4
    $region61: #{tpu_custom_call.1} parent=1 // pred_fallthru
      _
    // Predicated region
    $region62: #{tpu_custom_call.1} parent=1 // pred_check
      _
    $region63: #{tpu_custom_call.1} parent=1 // pred_check_branch
      %135 = sbr.rel (0) target = $region65
    $region64: #{tpu_custom_call.1} parent=1 // pred_region
      _
    $region65: #{tpu_custom_call.1} parent=1 // pred_fallthru
      _
    // Predicated region
    $region66: #{tpu_custom_call.1} parent=1 // pred_check
      _
    $region67: #{tpu_custom_call.1} parent=1 // pred_check_branch
      %137 = sbr.rel (0) target = $region69
    $region68: #{tpu_custom_call.1} parent=1 // pred_region
      %s139 = ssub.s32 3072, 3072
      %140 = vsyncadd [#allocation15], %s139
      %s141 = sshll.u32 [#allocation14], 4
      %s142 = int_to_ptr.vmem [resolvable:$true] %s141
      %147 = dma.hbm_to_vmem [thread:$0]  %s16, 3072, %s142, [#allocation15], 64, 64, 4
    $region69: #{tpu_custom_call.1} parent=1 // pred_fallthru
      _
    // Predicated region
    $region70: #{tpu_custom_call.1} parent=1 // pred_check
      _
    $region71: #{tpu_custom_call.1} parent=1 // pred_check_branch
      %149 = sbr.rel (0) target = $region73
    $region72: #{tpu_custom_call.1} parent=1 // pred_region
      _
    $region73: #{tpu_custom_call.1} parent=1 // pred_fallthru
      _
    // Predicated region
    $region74: #{tpu_custom_call.1} parent=1 // pred_check
      _
    $region75: #{tpu_custom_call.1} parent=1 // pred_check_branch
      %151 = sbr.rel (0) target = $region77
    $region76: #{tpu_custom_call.1} parent=1 // pred_region
      %s153 = ssub.s32 3072, 3072
      %154 = vsyncadd [#allocation15], %s153
      %s155 = sshll.u32 [#allocation16], 4
      %s156 = int_to_ptr.vmem [resolvable:$true] %s155
      %161 = dma.hbm_to_vmem [thread:$0]  %s18, 3072, %s156, [#allocation15], 64, 64, 4
    $region77: #{tpu_custom_call.1} parent=1 // pred_fallthru
      _
    // Predicated region
    $region78: #{tpu_custom_call.1} parent=1 // pred_check
      _
    $region79: #{tpu_custom_call.1} parent=1 // pred_check_branch
      %163 = sbr.rel (0) target = $region81
    $region80: #{tpu_custom_call.1} parent=1 // pred_region
      _
    $region81: #{tpu_custom_call.1} parent=1 // pred_fallthru
      _
    // Predicated region
    $region82: #{tpu_custom_call.1} parent=1 // pred_check
      _
    $region83: #{tpu_custom_call.1} parent=1 // pred_check_branch
      %165 = sbr.rel (0) target = $region85
    $region84: #{tpu_custom_call.1} parent=1 // pred_region
      %s167 = ssub.s32 3072, 3072
      %168 = vsyncadd [#allocation18], %s167
      %s169 = sshll.u32 [#allocation17], 4
      %s170 = int_to_ptr.vmem [resolvable:$true] %s169
      %175 = dma.hbm_to_vmem [thread:$0]  %s20, 3072, %s170, [#allocation18], 64, 64, 4
    $region85: #{tpu_custom_call.1} parent=1 // pred_fallthru
      _
    // Predicated region
    $region86: #{tpu_custom_call.1} parent=1 // pred_check
      _
    $region87: #{tpu_custom_call.1} parent=1 // pred_check_branch
      %177 = sbr.rel (0) target = $region89
    $region88: #{tpu_custom_call.1} parent=1 // pred_region
      _
    $region89: #{tpu_custom_call.1} parent=1 // pred_fallthru
      _
    // Predicated region
    $region90: #{tpu_custom_call.1} parent=1 // pred_check
      _
    $region91: #{tpu_custom_call.1} parent=1 // pred_check_branch
      %179 = sbr.rel (0) target = $region93
    $region92: #{tpu_custom_call.1} parent=1 // pred_region
      %180 = dma.done [#allocation3], 2048
    $region93: #{tpu_custom_call.1} parent=1 // pred_fallthru
      _
    // Predicated region
    $region94: #{tpu_custom_call.1} parent=1 // pred_check
      _
    $region95: #{tpu_custom_call.1} parent=1 // pred_check_branch
      %182 = sbr.rel (0) target = $region97
    $region96: #{tpu_custom_call.1} parent=1 // pred_region
      %183 = dma.done [#allocation6], 2048
    $region97: #{tpu_custom_call.1} parent=1 // pred_fallthru
      _
    // Predicated region
    $region98: #{tpu_custom_call.1} parent=1 // pred_check
      _
    $region99: #{tpu_custom_call.1} parent=1 // pred_check_branch
      %185 = sbr.rel (0) target = $region101
    $region100: #{tpu_custom_call.1} parent=1 // pred_region
      %186 = dma.done [#allocation6], 4096
    $region101: #{tpu_custom_call.1} parent=1 // pred_fallthru
      _
    // Predicated region
    $region102: #{tpu_custom_call.1} parent=1 // pred_check
      _
    $region103: #{tpu_custom_call.1} parent=1 // pred_check_branch
      %188 = sbr.rel (0) target = $region105
    $region104: #{tpu_custom_call.1} parent=1 // pred_region
      %189 = dma.done [#allocation9], 4096
    $region105: #{tpu_custom_call.1} parent=1 // pred_fallthru
      _
    // Predicated region
    $region106: #{tpu_custom_call.1} parent=1 // pred_check
      _
    $region107: #{tpu_custom_call.1} parent=1 // pred_check_branch
      %191 = sbr.rel (0) target = $region109
    $region108: #{tpu_custom_call.1} parent=1 // pred_region
      %192 = dma.done [#allocation9], 3072
    $region109: #{tpu_custom_call.1} parent=1 // pred_fallthru
      _
    // Predicated region
    $region110: #{tpu_custom_call.1} parent=1 // pred_check
      _
    $region111: #{tpu_custom_call.1} parent=1 // pred_check_branch
      %194 = sbr.rel (0) target = $region113
    $region112: #{tpu_custom_call.1} parent=1 // pred_region
      %195 = dma.done [#allocation12], 3072
    $region113: #{tpu_custom_call.1} parent=1 // pred_fallthru
      _
    // Predicated region
    $region114: #{tpu_custom_call.1} parent=1 // pred_check
      _
    $region115: #{tpu_custom_call.1} parent=1 // pred_check_branch
      %197 = sbr.rel (0) target = $region117
    $region116: #{tpu_custom_call.1} parent=1 // pred_region
      %198 = dma.done [#allocation12], 3072
    $region117: #{tpu_custom_call.1} parent=1 // pred_fallthru
      _
    // Predicated region
    $region118: #{tpu_custom_call.1} parent=1 // pred_check
      _
    $region119: #{tpu_custom_call.1} parent=1 // pred_check_branch
      %200 = sbr.rel (0) target = $region121
    $region120: #{tpu_custom_call.1} parent=1 // pred_region
      %201 = dma.done [#allocation15], 3072
    $region121: #{tpu_custom_call.1} parent=1 // pred_fallthru
      _
    // Predicated region
    $region122: #{tpu_custom_call.1} parent=1 // pred_check
      _
    $region123: #{tpu_custom_call.1} parent=1 // pred_check_branch
      %203 = sbr.rel (0) target = $region125
    $region124: #{tpu_custom_call.1} parent=1 // pred_region
      %204 = dma.done [#allocation15], 3072
    $region125: #{tpu_custom_call.1} parent=1 // pred_fallthru
      _
    // Predicated region
    $region126: #{tpu_custom_call.1} parent=1 // pred_check
      _
    $region127: #{tpu_custom_call.1} parent=1 // pred_check_branch
      %206 = sbr.rel (0) target = $region129
    $region128: #{tpu_custom_call.1} parent=1 // pred_region
      %207 = dma.done [#allocation18], 3072
    $region129: #{tpu_custom_call.1} parent=1 // pred_fallthru
      _
    %v208 = vld [vmem:[%s6] sm:$0xff]
    %v209 = vld [vmem:[%s6 + $0x8] sm:$0xff]
    %v210 = vld [vmem:[%s6 + $0x10] sm:$0xff]
    %v211 = vld [vmem:[%s6 + $0x18] sm:$0xff]
    %v212 = vld [vmem:[%s7] sm:$0xff]
    %v213 = vld [vmem:[%s7 + $0x8] sm:$0xff]
    %v214 = vld [vmem:[%s7 + $0x10] sm:$0xff]
    %v215 = vld [vmem:[%s7 + $0x18] sm:$0xff]
    %v216 = vld [vmem:[%s8] sm:$0x1]
    %v217 = vld [vmem:[%s9] sm:$0x1]
    %v218 = vld [vmem:[#allocation2] sm:$0xff]
    %v219 = vld [vmem:[#allocation2 + $0x8] sm:$0xff]
    %v220 = vld [vmem:[#allocation2 + $0x10] sm:$0xff]
    %v221 = vld [vmem:[#allocation2 + $0x18] sm:$0xff]
    %v222 = vld [vmem:[#allocation2 + $0x20] sm:$0xff]
    %v223 = vld [vmem:[#allocation2 + $0x28] sm:$0xff]
    %v224 = vld [vmem:[#allocation2 + $0x30] sm:$0xff]
    %v225 = vld [vmem:[#allocation2 + $0x38] sm:$0xff]
    %v226 = vld [vmem:[#allocation2 + $0x40] sm:$0xff]
    %v227 = vld [vmem:[#allocation2 + $0x48] sm:$0xff]
    %v228 = vld [vmem:[#allocation2 + $0x50] sm:$0xff]
    %v229 = vld [vmem:[#allocation2 + $0x58] sm:$0xff]
    %v230 = vld [vmem:[#allocation2 + $0x60] sm:$0xff]
    %v231 = vld [vmem:[#allocation2 + $0x68] sm:$0xff]
    %v232 = vld [vmem:[#allocation2 + $0x70] sm:$0xff]
    %v233 = vld [vmem:[#allocation2 + $0x78] sm:$0xff]
    %v234 = vmax.f32 %v218, 0.0
    %v235 = vmax.f32 %v219, 0.0
    %v236 = vmax.f32 %v220, 0.0
    %v237 = vmax.f32 %v221, 0.0
    %v238 = vmax.f32 %v222, 0.0
    %v239 = vmax.f32 %v223, 0.0
    %v240 = vmax.f32 %v224, 0.0
    %v241 = vmax.f32 %v225, 0.0
    %v242 = vmax.f32 %v226, 0.0
    %v243 = vmax.f32 %v227, 0.0
    %v244 = vmax.f32 %v228, 0.0
    %v245 = vmax.f32 %v229, 0.0
    %v246 = vmax.f32 %v230, 0.0
    %v247 = vmax.f32 %v231, 0.0
    %v248 = vmax.f32 %v232, 0.0
    %v249 = vmax.f32 %v233, 0.0
    %v250 = vld [vmem:[#allocation7] sm:$0xf]
    %v251 = vld [vmem:[#allocation7 + $0x4] sm:$0xf]
    %v252 = vld [vmem:[#allocation7 + $0x8] sm:$0xf]
    %v253 = vld [vmem:[#allocation7 + $0xc] sm:$0xf]
    %v254 = vld [vmem:[#allocation7 + $0x10] sm:$0xf]
    %v255 = vld [vmem:[#allocation7 + $0x14] sm:$0xf]
    %v256 = vld [vmem:[#allocation7 + $0x18] sm:$0xf]
    %v257 = vld [vmem:[#allocation7 + $0x1c] sm:$0xf]
    %v258 = vld [vmem:[#allocation7 + $0x20] sm:$0xf]
    %v259 = vld [vmem:[#allocation7 + $0x24] sm:$0xf]
    %v260 = vld [vmem:[#allocation7 + $0x28] sm:$0xf]
    %v261 = vld [vmem:[#allocation7 + $0x2c] sm:$0xf]
    %v262 = vld [vmem:[#allocation7 + $0x30] sm:$0xf]
    %v263 = vld [vmem:[#allocation7 + $0x34] sm:$0xf]
    %v264 = vld [vmem:[#allocation7 + $0x38] sm:$0xf]
    %v265 = vld [vmem:[#allocation7 + $0x3c] sm:$0xf]
    %v266 = vld [vmem:[#allocation7 + $0x40] sm:$0xf]
    %v267 = vld [vmem:[#allocation7 + $0x44] sm:$0xf]
    %v268 = vld [vmem:[#allocation7 + $0x48] sm:$0xf]
    %v269 = vld [vmem:[#allocation7 + $0x4c] sm:$0xf]
    %v270 = vld [vmem:[#allocation7 + $0x50] sm:$0xf]
    %v271 = vld [vmem:[#allocation7 + $0x54] sm:$0xf]
    %v272 = vld [vmem:[#allocation7 + $0x58] sm:$0xf]
    %v273 = vld [vmem:[#allocation7 + $0x5c] sm:$0xf]
    %v274 = vld [vmem:[#allocation7 + $0x60] sm:$0xf]
    %v275 = vld [vmem:[#allocation7 + $0x64] sm:$0xf]
    %v276 = vld [vmem:[#allocation7 + $0x68] sm:$0xf]
    %v277 = vld [vmem:[#allocation7 + $0x6c] sm:$0xf]
    %v278 = vld [vmem:[#allocation7 + $0x70] sm:$0xf]
    %v279 = vld [vmem:[#allocation7 + $0x74] sm:$0xf]
    %v280 = vld [vmem:[#allocation7 + $0x78] sm:$0xf]
    %v281 = vld [vmem:[#allocation7 + $0x7c] sm:$0xf]
    %v282 = vld [vmem:[#allocation7 + $0x80] sm:$0xf]
    %v283 = vld [vmem:[#allocation7 + $0x84] sm:$0xf]
    %v284 = vld [vmem:[#allocation7 + $0x88] sm:$0xf]
    %v285 = vld [vmem:[#allocation7 + $0x8c] sm:$0xf]
    %v286 = vld [vmem:[#allocation7 + $0x90] sm:$0xf]
    %v287 = vld [vmem:[#allocation7 + $0x94] sm:$0xf]
    %v288 = vld [vmem:[#allocation7 + $0x98] sm:$0xf]
    %v289 = vld [vmem:[#allocation7 + $0x9c] sm:$0xf]
    %v290 = vld [vmem:[#allocation7 + $0xa0] sm:$0xf]
    %v291 = vld [vmem:[#allocation7 + $0xa4] sm:$0xf]
    %v292 = vld [vmem:[#allocation7 + $0xa8] sm:$0xf]
    %v293 = vld [vmem:[#allocation7 + $0xac] sm:$0xf]
    %v294 = vld [vmem:[#allocation7 + $0xb0] sm:$0xf]
    %v295 = vld [vmem:[#allocation7 + $0xb4] sm:$0xf]
    %v296 = vld [vmem:[#allocation7 + $0xb8] sm:$0xf]
    %v297 = vld [vmem:[#allocation7 + $0xbc] sm:$0xf]
    %v298 = vld [vmem:[#allocation7 + $0xc0] sm:$0xf]
    %v299 = vld [vmem:[#allocation7 + $0xc4] sm:$0xf]
    %v300 = vld [vmem:[#allocation7 + $0xc8] sm:$0xf]
    %v301 = vld [vmem:[#allocation7 + $0xcc] sm:$0xf]
    %v302 = vld [vmem:[#allocation7 + $0xd0] sm:$0xf]
    %v303 = vld [vmem:[#allocation7 + $0xd4] sm:$0xf]
    %v304 = vld [vmem:[#allocation7 + $0xd8] sm:$0xf]
    %v305 = vld [vmem:[#allocation7 + $0xdc] sm:$0xf]
    %v306 = vld [vmem:[#allocation7 + $0xe0] sm:$0xf]
    %v307 = vld [vmem:[#allocation7 + $0xe4] sm:$0xf]
    %v308 = vld [vmem:[#allocation7 + $0xe8] sm:$0xf]
    %v309 = vld [vmem:[#allocation7 + $0xec] sm:$0xf]
    %v310 = vld [vmem:[#allocation7 + $0xf0] sm:$0xf]
    %v311 = vld [vmem:[#allocation7 + $0xf4] sm:$0xf]
    %v312 = vld [vmem:[#allocation7 + $0xf8] sm:$0xf]
    %v313 = vld [vmem:[#allocation7 + $0xfc] sm:$0xf]
    %v314 = vunpack.c.l.bf16 %v250
    %v315 = vunpack.c.l.bf16 %v251
    %v316 = vunpack.c.l.bf16 %v252
    %v317 = vunpack.c.l.bf16 %v253
    %v318 = vunpack.c.l.bf16 %v254
    %v319 = vunpack.c.l.bf16 %v255
    %v320 = vunpack.c.l.bf16 %v256
    %v321 = vunpack.c.l.bf16 %v257
    %v322 = vunpack.c.l.bf16 %v258
    %v323 = vunpack.c.l.bf16 %v259
    %v324 = vunpack.c.l.bf16 %v260
    %v325 = vunpack.c.l.bf16 %v261
    %v326 = vunpack.c.l.bf16 %v262
    %v327 = vunpack.c.l.bf16 %v263
    %v328 = vunpack.c.l.bf16 %v264
    %v329 = vunpack.c.l.bf16 %v265
    %v330 = vunpack.c.l.bf16 %v266
    %v331 = vunpack.c.l.bf16 %v267
    %v332 = vunpack.c.l.bf16 %v268
    %v333 = vunpack.c.l.bf16 %v269
    %v334 = vunpack.c.l.bf16 %v270
    %v335 = vunpack.c.l.bf16 %v271
    %v336 = vunpack.c.l.bf16 %v272
    %v337 = vunpack.c.l.bf16 %v273
    %v338 = vunpack.c.l.bf16 %v274
    %v339 = vunpack.c.l.bf16 %v275
    %v340 = vunpack.c.l.bf16 %v276
    %v341 = vunpack.c.l.bf16 %v277
    %v342 = vunpack.c.l.bf16 %v278
    %v343 = vunpack.c.l.bf16 %v279
    %v344 = vunpack.c.l.bf16 %v280
    %v345 = vunpack.c.l.bf16 %v281
    %v346 = vunpack.c.l.bf16 %v282
    %v347 = vunpack.c.l.bf16 %v283
    %v348 = vunpack.c.l.bf16 %v284
    %v349 = vunpack.c.l.bf16 %v285
    %v350 = vunpack.c.l.bf16 %v286
    %v351 = vunpack.c.l.bf16 %v287
    %v352 = vunpack.c.l.bf16 %v288
    %v353 = vunpack.c.l.bf16 %v289
    %v354 = vunpack.c.l.bf16 %v290
    %v355 = vunpack.c.l.bf16 %v291
    %v356 = vunpack.c.l.bf16 %v292
    %v357 = vunpack.c.l.bf16 %v293
    %v358 = vunpack.c.l.bf16 %v294
    %v359 = vunpack.c.l.bf16 %v295
    %v360 = vunpack.c.l.bf16 %v296
    %v361 = vunpack.c.l.bf16 %v297
    %v362 = vunpack.c.l.bf16 %v298
    %v363 = vunpack.c.l.bf16 %v299
    %v364 = vunpack.c.l.bf16 %v300
    %v365 = vunpack.c.l.bf16 %v301
    %v366 = vunpack.c.l.bf16 %v302
    %v367 = vunpack.c.l.bf16 %v303
    %v368 = vunpack.c.l.bf16 %v304
    %v369 = vunpack.c.l.bf16 %v305
    %v370 = vunpack.c.l.bf16 %v306
    %v371 = vunpack.c.l.bf16 %v307
    %v372 = vunpack.c.l.bf16 %v308
    %v373 = vunpack.c.l.bf16 %v309
    %v374 = vunpack.c.l.bf16 %v310
    %v375 = vunpack.c.l.bf16 %v311
    %v376 = vunpack.c.l.bf16 %v312
    %v377 = vunpack.c.l.bf16 %v313
    %v378 = vld [vmem:[%s3] sm:$0x1]
    %v380 = vlaneseq
    %v381 = vshrl.u32 %v380, 7
    %v382 = vsub.s32 0, %v381
    %v383 = vrot.slane %v378, %v382
    %385 = vmatprep.subr.mxu0 0.0
    %386 = vmatpush1.msra.mxu0 %v314
    %387 = vmatprep.subr.mxu0 0.0
    %388 = vmatpush1.msra.mxu0 %v315
    %389 = vmatprep.subr.mxu0 0.0
    %390 = vmatpush1.msra.mxu0 %v316
    %391 = vmatprep.subr.mxu0 0.0
    %392 = vmatpush1.msra.mxu0 %v317
    %393 = vmatprep.subr.mxu0 0.0
    %394 = vmatpush1.msra.mxu0 %v318
    %395 = vmatprep.subr.mxu0 0.0
    %396 = vmatpush1.msra.mxu0 %v319
    %397 = vmatprep.subr.mxu0 0.0
    %398 = vmatpush1.msra.mxu0 %v320
    %399 = vmatprep.subr.mxu0 0.0
    %400 = vmatpush1.msra.mxu0 %v321
    %401 = vmatprep.subr.mxu0 0.0
    %402 = vmatpush1.msra.mxu0 %v322
    %403 = vmatprep.subr.mxu0 0.0
    %404 = vmatpush1.msra.mxu0 %v323
    %405 = vmatprep.subr.mxu0 0.0
    %406 = vmatpush1.msra.mxu0 %v324
    %407 = vmatprep.subr.mxu0 0.0
    %408 = vmatpush1.msra.mxu0 %v325
    %409 = vmatprep.subr.mxu0 0.0
    %410 = vmatpush1.msra.mxu0 %v326
    %411 = vmatprep.subr.mxu0 0.0
    %412 = vmatpush1.msra.mxu0 %v327
    %413 = vmatprep.subr.mxu0 0.0
    %414 = vmatpush1.msra.mxu0 %v328
    %415 = vmatprep.subr.mxu0 0.0
    %416 = vmatpush1.msra.mxu0 %v329
    %417 = vmatprep.subr.mxu0 0.0
    %418 = vmatpush1.msra.mxu0 %v330
    %419 = vmatprep.subr.mxu0 0.0
    %420 = vmatpush1.msra.mxu0 %v331
    %421 = vmatprep.subr.mxu0 0.0
    %422 = vmatpush1.msra.mxu0 %v332
    %423 = vmatprep.subr.mxu0 0.0
    %424 = vmatpush1.msra.mxu0 %v333
    %425 = vmatprep.subr.mxu0 0.0
    %426 = vmatpush1.msra.mxu0 %v334
    %427 = vmatprep.subr.mxu0 0.0
    %428 = vmatpush1.msra.mxu0 %v335
    %429 = vmatprep.subr.mxu0 0.0
    %430 = vmatpush1.msra.mxu0 %v336
    %431 = vmatprep.subr.mxu0 0.0
    %432 = vmatpush1.msra.mxu0 %v337
    %433 = vmatprep.subr.mxu0 0.0
    %434 = vmatpush1.msra.mxu0 %v338
    %435 = vmatprep.subr.mxu0 0.0
    %436 = vmatpush1.msra.mxu0 %v339
    %437 = vmatprep.subr.mxu0 0.0
    %438 = vmatpush1.msra.mxu0 %v340
    %439 = vmatprep.subr.mxu0 0.0
    %440 = vmatpush1.msra.mxu0 %v341
    %441 = vmatprep.subr.mxu0 0.0
    %442 = vmatpush1.msra.mxu0 %v342
    %443 = vmatprep.subr.mxu0 0.0
    %444 = vmatpush1.msra.mxu0 %v343
    %445 = vmatprep.subr.mxu0 0.0
    %446 = vmatpush1.msra.mxu0 %v344
    %447 = vmatprep.subr.mxu0 0.0
    %448 = vmatpush1.msra.mxu0 %v345
    %449 = vmatprep.mubr.f32.mxu0 %v235
    %450 = vmatmul.mubr.f32.gmra.mrb[0].mxu0 %v234
    %v451 = vpop.f32.mrb[0].mxu0
    %v452 = vadd.f32 %v383, %v451
    %v453 = vpop.f32.mrb[0].mxu0
    %454 = vmatprep.mubr.f32.mxu0 %v239
    %455 = vmatmul.mubr.f32.gmra.mrb[0].mxu0 %v238
    %v456 = vpop.f32.mrb[0].mxu0
    %v457 = vadd.f32 %v383, %v456
    %v458 = vpop.f32.mrb[0].mxu0
    %459 = vmatprep.mubr.f32.mxu0 %v243
    %460 = vmatmul.mubr.f32.gmra.mrb[0].mxu0 %v242
    %v461 = vpop.f32.mrb[0].mxu0
    %v462 = vadd.f32 %v383, %v461
    %v463 = vpop.f32.mrb[0].mxu0
    %464 = vmatprep.mubr.f32.mxu0 %v247
    %465 = vmatmul.mubr.f32.gmra.mrb[0].mxu0 %v246
    %v466 = vpop.f32.mrb[0].mxu0
    %v467 = vadd.f32 %v383, %v466
    %v468 = vpop.f32.mrb[0].mxu0
    %469 = vdwg.mxu0
    %470 = vmatprep.subr.mxu0 0.0
    %471 = vmatpush1.msra.mxu0 %v346
    %472 = vmatprep.subr.mxu0 0.0
    %473 = vmatpush1.msra.mxu0 %v347
    %474 = vmatprep.subr.mxu0 0.0
    %475 = vmatpush1.msra.mxu0 %v348
    %476 = vmatprep.subr.mxu0 0.0
    %477 = vmatpush1.msra.mxu0 %v349
    %478 = vmatprep.subr.mxu0 0.0
    %479 = vmatpush1.msra.mxu0 %v350
    %480 = vmatprep.subr.mxu0 0.0
    %481 = vmatpush1.msra.mxu0 %v351
    %482 = vmatprep.subr.mxu0 0.0
    %483 = vmatpush1.msra.mxu0 %v352
    %484 = vmatprep.subr.mxu0 0.0
    %485 = vmatpush1.msra.mxu0 %v353
    %486 = vmatprep.subr.mxu0 0.0
    %487 = vmatpush1.msra.mxu0 %v354
    %488 = vmatprep.subr.mxu0 0.0
    %489 = vmatpush1.msra.mxu0 %v355
    %490 = vmatprep.subr.mxu0 0.0
    %491 = vmatpush1.msra.mxu0 %v356
    %492 = vmatprep.subr.mxu0 0.0
    %493 = vmatpush1.msra.mxu0 %v357
    %494 = vmatprep.subr.mxu0 0.0
    %495 = vmatpush1.msra.mxu0 %v358
    %496 = vmatprep.subr.mxu0 0.0
    %497 = vmatpush1.msra.mxu0 %v359
    %498 = vmatprep.subr.mxu0 0.0
    %499 = vmatpush1.msra.mxu0 %v360
    %500 = vmatprep.subr.mxu0 0.0
    %501 = vmatpush1.msra.mxu0 %v361
    %502 = vmatprep.subr.mxu0 0.0
    %503 = vmatpush1.msra.mxu0 %v362
    %504 = vmatprep.subr.mxu0 0.0
    %505 = vmatpush1.msra.mxu0 %v363
    %506 = vmatprep.subr.mxu0 0.0
    %507 = vmatpush1.msra.mxu0 %v364
    %508 = vmatprep.subr.mxu0 0.0
    %509 = vmatpush1.msra.mxu0 %v365
    %510 = vmatprep.subr.mxu0 0.0
    %511 = vmatpush1.msra.mxu0 %v366
    %512 = vmatprep.subr.mxu0 0.0
    %513 = vmatpush1.msra.mxu0 %v367
    %514 = vmatprep.subr.mxu0 0.0
    %515 = vmatpush1.msra.mxu0 %v368
    %516 = vmatprep.subr.mxu0 0.0
    %517 = vmatpush1.msra.mxu0 %v369
    %518 = vmatprep.subr.mxu0 0.0
    %519 = vmatpush1.msra.mxu0 %v370
    %520 = vmatprep.subr.mxu0 0.0
    %521 = vmatpush1.msra.mxu0 %v371
    %522 = vmatprep.subr.mxu0 0.0
    %523 = vmatpush1.msra.mxu0 %v372
    %524 = vmatprep.subr.mxu0 0.0
    %525 = vmatpush1.msra.mxu0 %v373
    %526 = vmatprep.subr.mxu0 0.0
    %527 = vmatpush1.msra.mxu0 %v374
    %528 = vmatprep.subr.mxu0 0.0
    %529 = vmatpush1.msra.mxu0 %v375
    %530 = vmatprep.subr.mxu0 0.0
    %531 = vmatpush1.msra.mxu0 %v376
    %532 = vmatprep.subr.mxu0 0.0
    %533 = vmatpush1.msra.mxu0 %v377
    %534 = vmatprep.mubr.f32.mxu0 %v237
    %535 = vmatmul.mubr.f32.gmra.mrb[0].mxu0 %v236
    %v536 = vpop.f32.mrb[0].mxu0
    %v537 = vadd.f32 %v452, %v536
    %v538 = vpop.f32.mrb[0].mxu0
    %539 = vmatprep.mubr.f32.mxu0 %v241
    %540 = vmatmul.mubr.f32.gmra.mrb[0].mxu0 %v240
    %v541 = vpop.f32.mrb[0].mxu0
    %v542 = vadd.f32 %v457, %v541
    %v543 = vpop.f32.mrb[0].mxu0
    %544 = vmatprep.mubr.f32.mxu0 %v245
    %545 = vmatmul.mubr.f32.gmra.mrb[0].mxu0 %v244
    %v546 = vpop.f32.mrb[0].mxu0
    %v547 = vadd.f32 %v462, %v546
    %v548 = vpop.f32.mrb[0].mxu0
    %549 = vmatprep.mubr.f32.mxu0 %v249
    %550 = vmatmul.mubr.f32.gmra.mrb[0].mxu0 %v248
    %v551 = vpop.f32.mrb[0].mxu0
    %v552 = vadd.f32 %v467, %v551
    %v553 = vpop.f32.mrb[0].mxu0
    %554 = vdwg.mxu0
    %v555 = vld [vmem:[#allocation5] sm:$0xff]
    %v556 = vld [vmem:[#allocation5 + $0x8] sm:$0xff]
    %v557 = vld [vmem:[#allocation5 + $0x10] sm:$0xff]
    %v558 = vld [vmem:[#allocation5 + $0x18] sm:$0xff]
    %v559 = vld [vmem:[#allocation5 + $0x20] sm:$0xff]
    %v560 = vld [vmem:[#allocation5 + $0x28] sm:$0xff]
    %v561 = vld [vmem:[#allocation5 + $0x30] sm:$0xff]
    %v562 = vld [vmem:[#allocation5 + $0x38] sm:$0xff]
    %v563 = vld [vmem:[#allocation5 + $0x40] sm:$0xff]
    %v564 = vld [vmem:[#allocation5 + $0x48] sm:$0xff]
    %v565 = vld [vmem:[#allocation5 + $0x50] sm:$0xff]
    %v566 = vld [vmem:[#allocation5 + $0x58] sm:$0xff]
    %v567 = vld [vmem:[#allocation5 + $0x60] sm:$0xff]
    %v568 = vld [vmem:[#allocation5 + $0x68] sm:$0xff]
    %v569 = vld [vmem:[#allocation5 + $0x70] sm:$0xff]
    %v570 = vld [vmem:[#allocation5 + $0x78] sm:$0xff]
    %v571 = vmax.f32 %v555, 0.0
    %v572 = vmax.f32 %v556, 0.0
    %v573 = vmax.f32 %v557, 0.0
    %v574 = vmax.f32 %v558, 0.0
    %v575 = vmax.f32 %v559, 0.0
    %v576 = vmax.f32 %v560, 0.0
    %v577 = vmax.f32 %v561, 0.0
    %v578 = vmax.f32 %v562, 0.0
    %v579 = vmax.f32 %v563, 0.0
    %v580 = vmax.f32 %v564, 0.0
    %v581 = vmax.f32 %v565, 0.0
    %v582 = vmax.f32 %v566, 0.0
    %v583 = vmax.f32 %v567, 0.0
    %v584 = vmax.f32 %v568, 0.0
    %v585 = vmax.f32 %v569, 0.0
    %v586 = vmax.f32 %v570, 0.0
    %v587 = vld [vmem:[#allocation8] sm:$0xf]
    %v588 = vld [vmem:[#allocation8 + $0x4] sm:$0xf]
    %v589 = vld [vmem:[#allocation8 + $0x8] sm:$0xf]
    %v590 = vld [vmem:[#allocation8 + $0xc] sm:$0xf]
    %v591 = vld [vmem:[#allocation8 + $0x10] sm:$0xf]
    %v592 = vld [vmem:[#allocation8 + $0x14] sm:$0xf]
    %v593 = vld [vmem:[#allocation8 + $0x18] sm:$0xf]
    %v594 = vld [vmem:[#allocation8 + $0x1c] sm:$0xf]
    %v595 = vld [vmem:[#allocation8 + $0x20] sm:$0xf]
    %v596 = vld [vmem:[#allocation8 + $0x24] sm:$0xf]
    %v597 = vld [vmem:[#allocation8 + $0x28] sm:$0xf]
    %v598 = vld [vmem:[#allocation8 + $0x2c] sm:$0xf]
    %v599 = vld [vmem:[#allocation8 + $0x30] sm:$0xf]
    %v600 = vld [vmem:[#allocation8 + $0x34] sm:$0xf]
    %v601 = vld [vmem:[#allocation8 + $0x38] sm:$0xf]
    %v602 = vld [vmem:[#allocation8 + $0x3c] sm:$0xf]
    %v603 = vld [vmem:[#allocation8 + $0x40] sm:$0xf]
    %v604 = vld [vmem:[#allocation8 + $0x44] sm:$0xf]
    %v605 = vld [vmem:[#allocation8 + $0x48] sm:$0xf]
    %v606 = vld [vmem:[#allocation8 + $0x4c] sm:$0xf]
    %v607 = vld [vmem:[#allocation8 + $0x50] sm:$0xf]
    %v608 = vld [vmem:[#allocation8 + $0x54] sm:$0xf]
    %v609 = vld [vmem:[#allocation8 + $0x58] sm:$0xf]
    %v610 = vld [vmem:[#allocation8 + $0x5c] sm:$0xf]
    %v611 = vld [vmem:[#allocation8 + $0x60] sm:$0xf]
    %v612 = vld [vmem:[#allocation8 + $0x64] sm:$0xf]
    %v613 = vld [vmem:[#allocation8 + $0x68] sm:$0xf]
    %v614 = vld [vmem:[#allocation8 + $0x6c] sm:$0xf]
    %v615 = vld [vmem:[#allocation8 + $0x70] sm:$0xf]
    %v616 = vld [vmem:[#allocation8 + $0x74] sm:$0xf]
    %v617 = vld [vmem:[#allocation8 + $0x78] sm:$0xf]
    %v618 = vld [vmem:[#allocation8 + $0x7c] sm:$0xf]
    %v619 = vld [vmem:[#allocation8 + $0x80] sm:$0xf]
    %v620 = vld [vmem:[#allocation8 + $0x84] sm:$0xf]
    %v621 = vld [vmem:[#allocation8 + $0x88] sm:$0xf]
    %v622 = vld [vmem:[#allocation8 + $0x8c] sm:$0xf]
    %v623 = vld [vmem:[#allocation8 + $0x90] sm:$0xf]
    %v624 = vld [vmem:[#allocation8 + $0x94] sm:$0xf]
    %v625 = vld [vmem:[#allocation8 + $0x98] sm:$0xf]
    %v626 = vld [vmem:[#allocation8 + $0x9c] sm:$0xf]
    %v627 = vld [vmem:[#allocation8 + $0xa0] sm:$0xf]
    %v628 = vld [vmem:[#allocation8 + $0xa4] sm:$0xf]
    %v629 = vld [vmem:[#allocation8 + $0xa8] sm:$0xf]
    %v630 = vld [vmem:[#allocation8 + $0xac] sm:$0xf]
    %v631 = vld [vmem:[#allocation8 + $0xb0] sm:$0xf]
    %v632 = vld [vmem:[#allocation8 + $0xb4] sm:$0xf]
    %v633 = vld [vmem:[#allocation8 + $0xb8] sm:$0xf]
    %v634 = vld [vmem:[#allocation8 + $0xbc] sm:$0xf]
    %v635 = vld [vmem:[#allocation8 + $0xc0] sm:$0xf]
    %v636 = vld [vmem:[#allocation8 + $0xc4] sm:$0xf]
    %v637 = vld [vmem:[#allocation8 + $0xc8] sm:$0xf]
    %v638 = vld [vmem:[#allocation8 + $0xcc] sm:$0xf]
    %v639 = vld [vmem:[#allocation8 + $0xd0] sm:$0xf]
    %v640 = vld [vmem:[#allocation8 + $0xd4] sm:$0xf]
    %v641 = vld [vmem:[#allocation8 + $0xd8] sm:$0xf]
    %v642 = vld [vmem:[#allocation8 + $0xdc] sm:$0xf]
    %v643 = vld [vmem:[#allocation8 + $0xe0] sm:$0xf]
    %v644 = vld [vmem:[#allocation8 + $0xe4] sm:$0xf]
    %v645 = vld [vmem:[#allocation8 + $0xe8] sm:$0xf]
    %v646 = vld [vmem:[#allocation8 + $0xec] sm:$0xf]
    %v647 = vld [vmem:[#allocation8 + $0xf0] sm:$0xf]
    %v648 = vld [vmem:[#allocation8 + $0xf4] sm:$0xf]
    %v649 = vld [vmem:[#allocation8 + $0xf8] sm:$0xf]
    %v650 = vld [vmem:[#allocation8 + $0xfc] sm:$0xf]
    %v651 = vunpack.c.l.bf16 %v587
    %v652 = vunpack.c.l.bf16 %v588
    %v653 = vunpack.c.l.bf16 %v589
    %v654 = vunpack.c.l.bf16 %v590
    %v655 = vunpack.c.l.bf16 %v591
    %v656 = vunpack.c.l.bf16 %v592
    %v657 = vunpack.c.l.bf16 %v593
    %v658 = vunpack.c.l.bf16 %v594
    %v659 = vunpack.c.l.bf16 %v595
    %v660 = vunpack.c.l.bf16 %v596
    %v661 = vunpack.c.l.bf16 %v597
    %v662 = vunpack.c.l.bf16 %v598
    %v663 = vunpack.c.l.bf16 %v599
    %v664 = vunpack.c.l.bf16 %v600
    %v665 = vunpack.c.l.bf16 %v601
    %v666 = vunpack.c.l.bf16 %v602
    %v667 = vunpack.c.l.bf16 %v603
    %v668 = vunpack.c.l.bf16 %v604
    %v669 = vunpack.c.l.bf16 %v605
    %v670 = vunpack.c.l.bf16 %v606
    %v671 = vunpack.c.l.bf16 %v607
    %v672 = vunpack.c.l.bf16 %v608
    %v673 = vunpack.c.l.bf16 %v609
    %v674 = vunpack.c.l.bf16 %v610
    %v675 = vunpack.c.l.bf16 %v611
    %v676 = vunpack.c.l.bf16 %v612
    %v677 = vunpack.c.l.bf16 %v613
    %v678 = vunpack.c.l.bf16 %v614
    %v679 = vunpack.c.l.bf16 %v615
    %v680 = vunpack.c.l.bf16 %v616
    %v681 = vunpack.c.l.bf16 %v617
    %v682 = vunpack.c.l.bf16 %v618
    %v683 = vunpack.c.l.bf16 %v619
    %v684 = vunpack.c.l.bf16 %v620
    %v685 = vunpack.c.l.bf16 %v621
    %v686 = vunpack.c.l.bf16 %v622
    %v687 = vunpack.c.l.bf16 %v623
    %v688 = vunpack.c.l.bf16 %v624
    %v689 = vunpack.c.l.bf16 %v625
    %v690 = vunpack.c.l.bf16 %v626
    %v691 = vunpack.c.l.bf16 %v627
    %v692 = vunpack.c.l.bf16 %v628
    %v693 = vunpack.c.l.bf16 %v629
    %v694 = vunpack.c.l.bf16 %v630
    %v695 = vunpack.c.l.bf16 %v631
    %v696 = vunpack.c.l.bf16 %v632
    %v697 = vunpack.c.l.bf16 %v633
    %v698 = vunpack.c.l.bf16 %v634
    %v699 = vunpack.c.l.bf16 %v635
    %v700 = vunpack.c.l.bf16 %v636
    %v701 = vunpack.c.l.bf16 %v637
    %v702 = vunpack.c.l.bf16 %v638
    %v703 = vunpack.c.l.bf16 %v639
    %v704 = vunpack.c.l.bf16 %v640
    %v705 = vunpack.c.l.bf16 %v641
    %v706 = vunpack.c.l.bf16 %v642
    %v707 = vunpack.c.l.bf16 %v643
    %v708 = vunpack.c.l.bf16 %v644
    %v709 = vunpack.c.l.bf16 %v645
    %v710 = vunpack.c.l.bf16 %v646
    %v711 = vunpack.c.l.bf16 %v647
    %v712 = vunpack.c.l.bf16 %v648
    %v713 = vunpack.c.l.bf16 %v649
    %v714 = vunpack.c.l.bf16 %v650
    %v715 = vld [vmem:[%s5] sm:$0x1]
    %v717 = vlaneseq
    %v718 = vshrl.u32 %v717, 7
    %v719 = vsub.s32 0, %v718
    %v720 = vrot.slane %v715, %v719
    %722 = vmatprep.subr.mxu0 0.0
    %723 = vmatpush1.msra.mxu0 %v651
    %724 = vmatprep.subr.mxu0 0.0
    %725 = vmatpush1.msra.mxu0 %v652
    %726 = vmatprep.subr.mxu0 0.0
    %727 = vmatpush1.msra.mxu0 %v653
    %728 = vmatprep.subr.mxu0 0.0
    %729 = vmatpush1.msra.mxu0 %v654
    %730 = vmatprep.subr.mxu0 0.0
    %731 = vmatpush1.msra.mxu0 %v655
    %732 = vmatprep.subr.mxu0 0.0
    %733 = vmatpush1.msra.mxu0 %v656
    %734 = vmatprep.subr.mxu0 0.0
    %735 = vmatpush1.msra.mxu0 %v657
    %736 = vmatprep.subr.mxu0 0.0
    %737 = vmatpush1.msra.mxu0 %v658
    %738 = vmatprep.subr.mxu0 0.0
    %739 = vmatpush1.msra.mxu0 %v659
    %740 = vmatprep.subr.mxu0 0.0
    %741 = vmatpush1.msra.mxu0 %v660
    %742 = vmatprep.subr.mxu0 0.0
    %743 = vmatpush1.msra.mxu0 %v661
    %744 = vmatprep.subr.mxu0 0.0
    %745 = vmatpush1.msra.mxu0 %v662
    %746 = vmatprep.subr.mxu0 0.0
    %747 = vmatpush1.msra.mxu0 %v663
    %748 = vmatprep.subr.mxu0 0.0
    %749 = vmatpush1.msra.mxu0 %v664
    %750 = vmatprep.subr.mxu0 0.0
    %751 = vmatpush1.msra.mxu0 %v665
    %752 = vmatprep.subr.mxu0 0.0
    %753 = vmatpush1.msra.mxu0 %v666
    %754 = vmatprep.subr.mxu0 0.0
    %755 = vmatpush1.msra.mxu0 %v667
    %756 = vmatprep.subr.mxu0 0.0
    %757 = vmatpush1.msra.mxu0 %v668
    %758 = vmatprep.subr.mxu0 0.0
    %759 = vmatpush1.msra.mxu0 %v669
    %760 = vmatprep.subr.mxu0 0.0
    %761 = vmatpush1.msra.mxu0 %v670
    %762 = vmatprep.subr.mxu0 0.0
    %763 = vmatpush1.msra.mxu0 %v671
    %764 = vmatprep.subr.mxu0 0.0
    %765 = vmatpush1.msra.mxu0 %v672
    %766 = vmatprep.subr.mxu0 0.0
    %767 = vmatpush1.msra.mxu0 %v673
    %768 = vmatprep.subr.mxu0 0.0
    %769 = vmatpush1.msra.mxu0 %v674
    %770 = vmatprep.subr.mxu0 0.0
    %771 = vmatpush1.msra.mxu0 %v675
    %772 = vmatprep.subr.mxu0 0.0
    %773 = vmatpush1.msra.mxu0 %v676
    %774 = vmatprep.subr.mxu0 0.0
    %775 = vmatpush1.msra.mxu0 %v677
    %776 = vmatprep.subr.mxu0 0.0
    %777 = vmatpush1.msra.mxu0 %v678
    %778 = vmatprep.subr.mxu0 0.0
    %779 = vmatpush1.msra.mxu0 %v679
    %780 = vmatprep.subr.mxu0 0.0
    %781 = vmatpush1.msra.mxu0 %v680
    %782 = vmatprep.subr.mxu0 0.0
    %783 = vmatpush1.msra.mxu0 %v681
    %784 = vmatprep.subr.mxu0 0.0
    %785 = vmatpush1.msra.mxu0 %v682
    %786 = vmatprep.mubr.f32.mxu0 %v572
    %787 = vmatmul.mubr.f32.gmra.mrb[0].mxu0 %v571
    %v788 = vpop.f32.mrb[0].mxu0
    %v789 = vadd.f32 %v720, %v788
    %v790 = vpop.f32.mrb[0].mxu0
    %791 = vmatprep.mubr.f32.mxu0 %v576
    %792 = vmatmul.mubr.f32.gmra.mrb[0].mxu0 %v575
    %v793 = vpop.f32.mrb[0].mxu0
    %v794 = vadd.f32 %v720, %v793
    %v795 = vpop.f32.mrb[0].mxu0
    %796 = vmatprep.mubr.f32.mxu0 %v580
    %797 = vmatmul.mubr.f32.gmra.mrb[0].mxu0 %v579
    %v798 = vpop.f32.mrb[0].mxu0
    %v799 = vadd.f32 %v720, %v798
    %v800 = vpop.f32.mrb[0].mxu0
    %801 = vmatprep.mubr.f32.mxu0 %v584
    %802 = vmatmul.mubr.f32.gmra.mrb[0].mxu0 %v583
    %v803 = vpop.f32.mrb[0].mxu0
    %v804 = vadd.f32 %v720, %v803
    %v805 = vpop.f32.mrb[0].mxu0
    %806 = vdwg.mxu0
    %807 = vmatprep.subr.mxu0 0.0
    %808 = vmatpush1.msra.mxu0 %v683
    %809 = vmatprep.subr.mxu0 0.0
    %810 = vmatpush1.msra.mxu0 %v684
    %811 = vmatprep.subr.mxu0 0.0
    %812 = vmatpush1.msra.mxu0 %v685
    %813 = vmatprep.subr.mxu0 0.0
    %814 = vmatpush1.msra.mxu0 %v686
    %815 = vmatprep.subr.mxu0 0.0
    %816 = vmatpush1.msra.mxu0 %v687
    %817 = vmatprep.subr.mxu0 0.0
    %818 = vmatpush1.msra.mxu0 %v688
    %819 = vmatprep.subr.mxu0 0.0
    %820 = vmatpush1.msra.mxu0 %v689
    %821 = vmatprep.subr.mxu0 0.0
    %822 = vmatpush1.msra.mxu0 %v690
    %823 = vmatprep.subr.mxu0 0.0
    %824 = vmatpush1.msra.mxu0 %v691
    %825 = vmatprep.subr.mxu0 0.0
    %826 = vmatpush1.msra.mxu0 %v692
    %827 = vmatprep.subr.mxu0 0.0
    %828 = vmatpush1.msra.mxu0 %v693
    %829 = vmatprep.subr.mxu0 0.0
    %830 = vmatpush1.msra.mxu0 %v694
    %831 = vmatprep.subr.mxu0 0.0
    %832 = vmatpush1.msra.mxu0 %v695
    %833 = vmatprep.subr.mxu0 0.0
    %834 = vmatpush1.msra.mxu0 %v696
    %835 = vmatprep.subr.mxu0 0.0
    %836 = vmatpush1.msra.mxu0 %v697
    %837 = vmatprep.subr.mxu0 0.0
    %838 = vmatpush1.msra.mxu0 %v698
    %839 = vmatprep.subr.mxu0 0.0
    %840 = vmatpush1.msra.mxu0 %v699
    %841 = vmatprep.subr.mxu0 0.0
    %842 = vmatpush1.msra.mxu0 %v700
    %843 = vmatprep.subr.mxu0 0.0
    %844 = vmatpush1.msra.mxu0 %v701
    %845 = vmatprep.subr.mxu0 0.0
    %846 = vmatpush1.msra.mxu0 %v702
    %847 = vmatprep.subr.mxu0 0.0
    %848 = vmatpush1.msra.mxu0 %v703
    %849 = vmatprep.subr.mxu0 0.0
    %850 = vmatpush1.msra.mxu0 %v704
    %851 = vmatprep.subr.mxu0 0.0
    %852 = vmatpush1.msra.mxu0 %v705
    %853 = vmatprep.subr.mxu0 0.0
    %854 = vmatpush1.msra.mxu0 %v706
    %855 = vmatprep.subr.mxu0 0.0
    %856 = vmatpush1.msra.mxu0 %v707
    %857 = vmatprep.subr.mxu0 0.0
    %858 = vmatpush1.msra.mxu0 %v708
    %859 = vmatprep.subr.mxu0 0.0
    %860 = vmatpush1.msra.mxu0 %v709
    %861 = vmatprep.subr.mxu0 0.0
    %862 = vmatpush1.msra.mxu0 %v710
    %863 = vmatprep.subr.mxu0 0.0
    %864 = vmatpush1.msra.mxu0 %v711
    %865 = vmatprep.subr.mxu0 0.0
    %866 = vmatpush1.msra.mxu0 %v712
    %867 = vmatprep.subr.mxu0 0.0
    %868 = vmatpush1.msra.mxu0 %v713
    %869 = vmatprep.subr.mxu0 0.0
    %870 = vmatpush1.msra.mxu0 %v714
    %871 = vmatprep.mubr.f32.mxu0 %v574
    %872 = vmatmul.mubr.f32.gmra.mrb[0].mxu0 %v573
    %v873 = vpop.f32.mrb[0].mxu0
    %v874 = vadd.f32 %v789, %v873
    %v875 = vpop.f32.mrb[0].mxu0
    %876 = vmatprep.mubr.f32.mxu0 %v578
    %877 = vmatmul.mubr.f32.gmra.mrb[0].mxu0 %v577
    %v878 = vpop.f32.mrb[0].mxu0
    %v879 = vadd.f32 %v794, %v878
    %v880 = vpop.f32.mrb[0].mxu0
    %881 = vmatprep.mubr.f32.mxu0 %v582
    %882 = vmatmul.mubr.f32.gmra.mrb[0].mxu0 %v581
    %v883 = vpop.f32.mrb[0].mxu0
    %v884 = vadd.f32 %v799, %v883
    %v885 = vpop.f32.mrb[0].mxu0
    %886 = vmatprep.mubr.f32.mxu0 %v586
    %887 = vmatmul.mubr.f32.gmra.mrb[0].mxu0 %v585
    %v888 = vpop.f32.mrb[0].mxu0
    %v889 = vadd.f32 %v804, %v888
    %v890 = vpop.f32.mrb[0].mxu0
    %891 = vdwg.mxu0
    %v892 = vmax.f32 %v537, 0.0
    %v893 = vmax.f32 %v542, 0.0
    %v894 = vmax.f32 %v547, 0.0
    %v895 = vmax.f32 %v552, 0.0
    %vm896 = vcmp.gt.f32.partialorder %v208, 0.5
    %vm897 = vcmp.gt.f32.partialorder %v209, 0.5
    %vm898 = vcmp.gt.f32.partialorder %v210, 0.5
    %vm899 = vcmp.gt.f32.partialorder %v211, 0.5
    %v901 = vrot.slane %v895, 7
    %vm906 = vcmask 1040384
    %v907 = vrot.slane %v892, 7
    %v908 = vrot.slane %v893, 7
    %v909 = vsel %vm906, %v907, %v908
    %v910 = vrot.slane %v894, 7
    %v911 = vsel %vm906, %v908, %v910
    %v912 = vsel %vm906, %v910, %v901
    %v917 = vsel %vm906, %v901, %v907
    %v918 = vsel %vm896, 1, 0
    %v919 = vsel %vm897, 1, 0
    %v920 = vsel %vm898, 1, 0
    %v921 = vsel %vm899, 1, 0
    %922 = vset.pattern.permute.xlu0 0
    %923 = vperm.xlu0 %922, %v918
    %v924 = vpop.permute.xlu0 %923
    %925 = vset.pattern.permute.xlu0 0
    %926 = vperm.xlu0 %925, %v919
    %v927 = vpop.permute.xlu0 %926
    %928 = vset.pattern.permute.xlu0 0
    %929 = vperm.xlu0 %928, %v920
    %v930 = vpop.permute.xlu0 %929
    %931 = vset.pattern.permute.xlu0 0
    %932 = vperm.xlu0 %931, %v921
    %v933 = vpop.permute.xlu0 %932
    %vm934 = vcmp.eq.s32.totalorder %v924, 1
    %vm935 = vcmp.eq.s32.totalorder %v927, 1
    %vm936 = vcmp.eq.s32.totalorder %v930, 1
    %vm937 = vcmp.eq.s32.totalorder %v933, 1
    %v938 = vsel %vm934, %v917, 0.0
    %v939 = vsel %vm935, %v909, 0.0
    %v940 = vsel %vm936, %v911, 0.0
    %v941 = vsel %vm937, %v912, 0.0
    %vm942 = vcmp.gt.f32.partialorder %v212, 0.5
    %vm943 = vcmp.gt.f32.partialorder %v213, 0.5
    %vm944 = vcmp.gt.f32.partialorder %v214, 0.5
    %vm945 = vcmp.gt.f32.partialorder %v215, 0.5
    %vm946 = vcmask 1046528
    %v947 = vrot.slane %v892, 1
    %v948 = vrot.slane %v893, 1
    %v949 = vsel %vm946, %v947, %v948
    %v950 = vrot.slane %v894, 1
    %v951 = vsel %vm946, %v948, %v950
    %v952 = vrot.slane %v895, 1
    %v953 = vsel %vm946, %v950, %v952
    %v959 = vsel %vm946, %v952, %v947
    %v960 = vsel %vm942, 1, 0
    %v961 = vsel %vm943, 1, 0
    %v962 = vsel %vm944, 1, 0
    %v963 = vsel %vm945, 1, 0
    %964 = vset.pattern.permute.xlu0 0
    %965 = vperm.xlu0 %964, %v960
    %v966 = vpop.permute.xlu0 %965
    %967 = vset.pattern.permute.xlu0 0
    %968 = vperm.xlu0 %967, %v961
    %v969 = vpop.permute.xlu0 %968
    %970 = vset.pattern.permute.xlu0 0
    %971 = vperm.xlu0 %970, %v962
    %v972 = vpop.permute.xlu0 %971
    %973 = vset.pattern.permute.xlu0 0
    %974 = vperm.xlu0 %973, %v963
    %v975 = vpop.permute.xlu0 %974
    %vm976 = vcmp.eq.s32.totalorder %v966, 1
    %vm977 = vcmp.eq.s32.totalorder %v969, 1
    %vm978 = vcmp.eq.s32.totalorder %v972, 1
    %vm979 = vcmp.eq.s32.totalorder %v975, 1
    %v980 = vsel %vm976, %v949, 0.0
    %v981 = vsel %vm977, %v951, 0.0
    %v982 = vsel %vm978, %v953, 0.0
    %v983 = vsel %vm979, %v959, 0.0
    %v984 = vld [vmem:[#allocation10] sm:$0xf]
    %v985 = vld [vmem:[#allocation10 + $0x4] sm:$0xf]
    %v986 = vld [vmem:[#allocation10 + $0x8] sm:$0xf]
    %v987 = vld [vmem:[#allocation10 + $0xc] sm:$0xf]
    %v988 = vld [vmem:[#allocation10 + $0x10] sm:$0xf]
    %v989 = vld [vmem:[#allocation10 + $0x14] sm:$0xf]
    %v990 = vld [vmem:[#allocation10 + $0x18] sm:$0xf]
    %v991 = vld [vmem:[#allocation10 + $0x1c] sm:$0xf]
    %v992 = vld [vmem:[#allocation10 + $0x20] sm:$0xf]
    %v993 = vld [vmem:[#allocation10 + $0x24] sm:$0xf]
    %v994 = vld [vmem:[#allocation10 + $0x28] sm:$0xf]
    %v995 = vld [vmem:[#allocation10 + $0x2c] sm:$0xf]
    %v996 = vld [vmem:[#allocation10 + $0x30] sm:$0xf]
    %v997 = vld [vmem:[#allocation10 + $0x34] sm:$0xf]
    %v998 = vld [vmem:[#allocation10 + $0x38] sm:$0xf]
    %v999 = vld [vmem:[#allocation10 + $0x3c] sm:$0xf]
    %v1000 = vld [vmem:[#allocation10 + $0x40] sm:$0xf]
    %v1001 = vld [vmem:[#allocation10 + $0x44] sm:$0xf]
    %v1002 = vld [vmem:[#allocation10 + $0x48] sm:$0xf]
    %v1003 = vld [vmem:[#allocation10 + $0x4c] sm:$0xf]
    %v1004 = vld [vmem:[#allocation10 + $0x50] sm:$0xf]
    %v1005 = vld [vmem:[#allocation10 + $0x54] sm:$0xf]
    %v1006 = vld [vmem:[#allocation10 + $0x58] sm:$0xf]
    %v1007 = vld [vmem:[#allocation10 + $0x5c] sm:$0xf]
    %v1008 = vld [vmem:[#allocation10 + $0x60] sm:$0xf]
    %v1009 = vld [vmem:[#allocation10 + $0x64] sm:$0xf]
    %v1010 = vld [vmem:[#allocation10 + $0x68] sm:$0xf]
    %v1011 = vld [vmem:[#allocation10 + $0x6c] sm:$0xf]
    %v1012 = vld [vmem:[#allocation10 + $0x70] sm:$0xf]
    %v1013 = vld [vmem:[#allocation10 + $0x74] sm:$0xf]
    %v1014 = vld [vmem:[#allocation10 + $0x78] sm:$0xf]
    %v1015 = vld [vmem:[#allocation10 + $0x7c] sm:$0xf]
    %v1016 = vld [vmem:[#allocation10 + $0x80] sm:$0xf]
    %v1017 = vld [vmem:[#allocation10 + $0x84] sm:$0xf]
    %v1018 = vld [vmem:[#allocation10 + $0x88] sm:$0xf]
    %v1019 = vld [vmem:[#allocation10 + $0x8c] sm:$0xf]
    %v1020 = vld [vmem:[#allocation10 + $0x90] sm:$0xf]
    %v1021 = vld [vmem:[#allocation10 + $0x94] sm:$0xf]
    %v1022 = vld [vmem:[#allocation10 + $0x98] sm:$0xf]
    %v1023 = vld [vmem:[#allocation10 + $0x9c] sm:$0xf]
    %v1024 = vld [vmem:[#allocation10 + $0xa0] sm:$0xf]
    %v1025 = vld [vmem:[#allocation10 + $0xa4] sm:$0xf]
    %v1026 = vld [vmem:[#allocation10 + $0xa8] sm:$0xf]
    %v1027 = vld [vmem:[#allocation10 + $0xac] sm:$0xf]
    %v1028 = vld [vmem:[#allocation10 + $0xb0] sm:$0xf]
    %v1029 = vld [vmem:[#allocation10 + $0xb4] sm:$0xf]
    %v1030 = vld [vmem:[#allocation10 + $0xb8] sm:$0xf]
    %v1031 = vld [vmem:[#allocation10 + $0xbc] sm:$0xf]
    %v1032 = vunpack.c.l.bf16 %v984
    %v1033 = vunpack.c.l.bf16 %v985
    %v1034 = vunpack.c.l.bf16 %v986
    %v1035 = vunpack.c.l.bf16 %v987
    %v1036 = vunpack.c.l.bf16 %v988
    %v1037 = vunpack.c.l.bf16 %v989
    %v1038 = vunpack.c.l.bf16 %v990
    %v1039 = vunpack.c.l.bf16 %v991
    %v1040 = vunpack.c.l.bf16 %v992
    %v1041 = vunpack.c.l.bf16 %v993
    %v1042 = vunpack.c.l.bf16 %v994
    %v1043 = vunpack.c.l.bf16 %v995
    %v1044 = vunpack.c.l.bf16 %v996
    %v1045 = vunpack.c.l.bf16 %v997
    %v1046 = vunpack.c.l.bf16 %v998
    %v1047 = vunpack.c.l.bf16 %v999
    %v1048 = vunpack.c.l.bf16 %v1000
    %v1049 = vunpack.c.l.bf16 %v1001
    %v1050 = vunpack.c.l.bf16 %v1002
    %v1051 = vunpack.c.l.bf16 %v1003
    %v1052 = vunpack.c.l.bf16 %v1004
    %v1053 = vunpack.c.l.bf16 %v1005
    %v1054 = vunpack.c.l.bf16 %v1006
    %v1055 = vunpack.c.l.bf16 %v1007
    %v1056 = vunpack.c.l.bf16 %v1008
    %v1057 = vunpack.c.l.bf16 %v1009
    %v1058 = vunpack.c.l.bf16 %v1010
    %v1059 = vunpack.c.l.bf16 %v1011
    %v1060 = vunpack.c.l.bf16 %v1012
    %v1061 = vunpack.c.l.bf16 %v1013
    %v1062 = vunpack.c.l.bf16 %v1014
    %v1063 = vunpack.c.l.bf16 %v1015
    %v1064 = vunpack.c.l.bf16 %v1016
    %v1065 = vunpack.c.l.bf16 %v1017
    %v1066 = vunpack.c.l.bf16 %v1018
    %v1067 = vunpack.c.l.bf16 %v1019
    %v1068 = vunpack.c.l.bf16 %v1020
    %v1069 = vunpack.c.l.bf16 %v1021
    %v1070 = vunpack.c.l.bf16 %v1022
    %v1071 = vunpack.c.l.bf16 %v1023
    %v1072 = vunpack.c.l.bf16 %v1024
    %v1073 = vunpack.c.l.bf16 %v1025
    %v1074 = vunpack.c.l.bf16 %v1026
    %v1075 = vunpack.c.l.bf16 %v1027
    %v1076 = vunpack.c.l.bf16 %v1028
    %v1077 = vunpack.c.l.bf16 %v1029
    %v1078 = vunpack.c.l.bf16 %v1030
    %v1079 = vunpack.c.l.bf16 %v1031
    %v1080 = vld [vmem:[%s11] sm:$0x1]
    %v1082 = vlaneseq
    %v1083 = vshrl.u32 %v1082, 7
    %v1084 = vsub.s32 0, %v1083
    %v1085 = vrot.slane %v1080, %v1084
    %1087 = vmatprep.subr.mxu0 0.0
    %1088 = vmatpush1.msra.mxu0 %v1032
    %1089 = vmatprep.subr.mxu0 0.0
    %1090 = vmatpush1.msra.mxu0 %v1033
    %1091 = vmatprep.subr.mxu0 0.0
    %1092 = vmatpush1.msra.mxu0 %v1034
    %1093 = vmatprep.subr.mxu0 0.0
    %1094 = vmatpush1.msra.mxu0 %v1035
    %1095 = vmatprep.subr.mxu0 0.0
    %1096 = vmatpush1.msra.mxu0 %v1036
    %1097 = vmatprep.subr.mxu0 0.0
    %1098 = vmatpush1.msra.mxu0 %v1037
    %1099 = vmatprep.subr.mxu0 0.0
    %1100 = vmatpush1.msra.mxu0 %v1038
    %1101 = vmatprep.subr.mxu0 0.0
    %1102 = vmatpush1.msra.mxu0 %v1039
    %1103 = vmatprep.subr.mxu0 0.0
    %1104 = vmatpush1.msra.mxu0 %v1040
    %1105 = vmatprep.subr.mxu0 0.0
    %1106 = vmatpush1.msra.mxu0 %v1041
    %1107 = vmatprep.subr.mxu0 0.0
    %1108 = vmatpush1.msra.mxu0 %v1042
    %1109 = vmatprep.subr.mxu0 0.0
    %1110 = vmatpush1.msra.mxu0 %v1043
    %1111 = vmatprep.subr.mxu0 0.0
    %1112 = vmatpush1.msra.mxu0 %v1044
    %1113 = vmatprep.subr.mxu0 0.0
    %1114 = vmatpush1.msra.mxu0 %v1045
    %1115 = vmatprep.subr.mxu0 0.0
    %1116 = vmatpush1.msra.mxu0 %v1046
    %1117 = vmatprep.subr.mxu0 0.0
    %1118 = vmatpush1.msra.mxu0 %v1047
    %1119 = vmatprep.subr.mxu0 0.0
    %1120 = vmatpush1.msra.mxu0 %v1048
    %1121 = vmatprep.subr.mxu0 0.0
    %1122 = vmatpush1.msra.mxu0 %v1049
    %1123 = vmatprep.subr.mxu0 0.0
    %1124 = vmatpush1.msra.mxu0 %v1050
    %1125 = vmatprep.subr.mxu0 0.0
    %1126 = vmatpush1.msra.mxu0 %v1051
    %1127 = vmatprep.subr.mxu0 0.0
    %1128 = vmatpush1.msra.mxu0 %v1052
    %1129 = vmatprep.subr.mxu0 0.0
    %1130 = vmatpush1.msra.mxu0 %v1053
    %1131 = vmatprep.subr.mxu0 0.0
    %1132 = vmatpush1.msra.mxu0 %v1054
    %1133 = vmatprep.subr.mxu0 0.0
    %1134 = vmatpush1.msra.mxu0 %v1055
    %1135 = vmatprep.subr.mxu0 0.0
    %1136 = vmatpush1.msra.mxu0 %v1056
    %1137 = vmatprep.subr.mxu0 0.0
    %1138 = vmatpush1.msra.mxu0 %v1057
    %1139 = vmatprep.subr.mxu0 0.0
    %1140 = vmatpush1.msra.mxu0 %v1058
    %1141 = vmatprep.subr.mxu0 0.0
    %1142 = vmatpush1.msra.mxu0 %v1059
    %1143 = vmatprep.subr.mxu0 0.0
    %1144 = vmatpush1.msra.mxu0 %v1060
    %1145 = vmatprep.subr.mxu0 0.0
    %1146 = vmatpush1.msra.mxu0 %v1061
    %1147 = vmatprep.subr.mxu0 0.0
    %1148 = vmatpush1.msra.mxu0 %v1062
    %1149 = vmatprep.subr.mxu0 0.0
    %1150 = vmatpush1.msra.mxu0 %v1063
    %1151 = vmatprep.mubr.f32.mxu0 %v938
    %1152 = vmatmul.mubr.f32.gmra.mrb[0].mxu0 %v892
    %v1153 = vpop.f32.mrb[0].mxu0
    %v1154 = vadd.f32 %v1085, %v1153
    %v1155 = vpop.f32.mrb[0].mxu0
    %1156 = vmatprep.mubr.f32.mxu0 %v939
    %1157 = vmatmul.mubr.f32.gmra.mrb[0].mxu0 %v893
    %v1158 = vpop.f32.mrb[0].mxu0
    %v1159 = vadd.f32 %v1085, %v1158
    %v1160 = vpop.f32.mrb[0].mxu0
    %1161 = vmatprep.mubr.f32.mxu0 %v940
    %1162 = vmatmul.mubr.f32.gmra.mrb[0].mxu0 %v894
    %v1163 = vpop.f32.mrb[0].mxu0
    %v1164 = vadd.f32 %v1085, %v1163
    %v1165 = vpop.f32.mrb[0].mxu0
    %1166 = vmatprep.mubr.f32.mxu0 %v941
    %1167 = vmatmul.mubr.f32.gmra.mrb[0].mxu0 %v895
    %v1168 = vpop.f32.mrb[0].mxu0
    %v1169 = vadd.f32 %v1085, %v1168
    %v1170 = vpop.f32.mrb[0].mxu0
    %1171 = vdwg.mxu0
    %1172 = vmatprep.subr.mxu0 0.0
    %1173 = vmatpush1.msra.mxu0 %v1064
    %1174 = vmatprep.subr.mxu0 0.0
    %1175 = vmatpush1.msra.mxu0 %v1065
    %1176 = vmatprep.subr.mxu0 0.0
    %1177 = vmatpush1.msra.mxu0 %v1066
    %1178 = vmatprep.subr.mxu0 0.0
    %1179 = vmatpush1.msra.mxu0 %v1067
    %1180 = vmatprep.subr.mxu0 0.0
    %1181 = vmatpush1.msra.mxu0 %v1068
    %1182 = vmatprep.subr.mxu0 0.0
    %1183 = vmatpush1.msra.mxu0 %v1069
    %1184 = vmatprep.subr.mxu0 0.0
    %1185 = vmatpush1.msra.mxu0 %v1070
    %1186 = vmatprep.subr.mxu0 0.0
    %1187 = vmatpush1.msra.mxu0 %v1071
    %1188 = vmatprep.subr.mxu0 0.0
    %1189 = vmatpush1.msra.mxu0 %v1072
    %1190 = vmatprep.subr.mxu0 0.0
    %1191 = vmatpush1.msra.mxu0 %v1073
    %1192 = vmatprep.subr.mxu0 0.0
    %1193 = vmatpush1.msra.mxu0 %v1074
    %1194 = vmatprep.subr.mxu0 0.0
    %1195 = vmatpush1.msra.mxu0 %v1075
    %1196 = vmatprep.subr.mxu0 0.0
    %1197 = vmatpush1.msra.mxu0 %v1076
    %1198 = vmatprep.subr.mxu0 0.0
    %1199 = vmatpush1.msra.mxu0 %v1077
    %1200 = vmatprep.subr.mxu0 0.0
    %1201 = vmatpush1.msra.mxu0 %v1078
    %1202 = vmatprep.subr.mxu0 0.0
    %1203 = vmatpush1.msra.mxu0 %v1079
    %1204 = vmatprep.subr.mxu0 0.0
    %1205 = vmatpush1.msra.mxu0 0.0
    %1206 = vmatprep.subr.mxu0 0.0
    %1207 = vmatpush1.msra.mxu0 0.0
    %1208 = vmatprep.subr.mxu0 0.0
    %1209 = vmatpush1.msra.mxu0 0.0
    %1210 = vmatprep.subr.mxu0 0.0
    %1211 = vmatpush1.msra.mxu0 0.0
    %1212 = vmatprep.subr.mxu0 0.0
    %1213 = vmatpush1.msra.mxu0 0.0
    %1214 = vmatprep.subr.mxu0 0.0
    %1215 = vmatpush1.msra.mxu0 0.0
    %1216 = vmatprep.subr.mxu0 0.0
    %1217 = vmatpush1.msra.mxu0 0.0
    %1218 = vmatprep.subr.mxu0 0.0
    %1219 = vmatpush1.msra.mxu0 0.0
    %1220 = vmatprep.subr.mxu0 0.0
    %1221 = vmatpush1.msra.mxu0 0.0
    %1222 = vmatprep.subr.mxu0 0.0
    %1223 = vmatpush1.msra.mxu0 0.0
    %1224 = vmatprep.subr.mxu0 0.0
    %1225 = vmatpush1.msra.mxu0 0.0
    %1226 = vmatprep.subr.mxu0 0.0
    %1227 = vmatpush1.msra.mxu0 0.0
    %1228 = vmatprep.subr.mxu0 0.0
    %1229 = vmatpush1.msra.mxu0 0.0
    %1230 = vmatprep.subr.mxu0 0.0
    %1231 = vmatpush1.msra.mxu0 0.0
    %1232 = vmatprep.subr.mxu0 0.0
    %1233 = vmatpush1.msra.mxu0 0.0
    %1234 = vmatprep.subr.mxu0 0.0
    %1235 = vmatpush1.msra.mxu0 0.0
    %1236 = vmatprep.mubr.f32.mxu0 0.0
    %1237 = vmatmul.mubr.f32.gmra.mrb[0].mxu0 %v980
    %v1238 = vpop.f32.mrb[0].mxu0
    %v1239 = vadd.f32 %v1154, %v1238
    %v1240 = vpop.f32.mrb[0].mxu0
    %1241 = vmatprep.mubr.f32.mxu0 0.0
    %1242 = vmatmul.mubr.f32.gmra.mrb[0].mxu0 %v981
    %v1243 = vpop.f32.mrb[0].mxu0
    %v1244 = vadd.f32 %v1159, %v1243
    %v1245 = vpop.f32.mrb[0].mxu0
    %1246 = vmatprep.mubr.f32.mxu0 0.0
    %1247 = vmatmul.mubr.f32.gmra.mrb[0].mxu0 %v982
    %v1248 = vpop.f32.mrb[0].mxu0
    %v1249 = vadd.f32 %v1164, %v1248
    %v1250 = vpop.f32.mrb[0].mxu0
    %1251 = vmatprep.mubr.f32.mxu0 0.0
    %1252 = vmatmul.mubr.f32.gmra.mrb[0].mxu0 %v983
    %v1253 = vpop.f32.mrb[0].mxu0
    %v1254 = vadd.f32 %v1169, %v1253
    %v1255 = vpop.f32.mrb[0].mxu0
    %1256 = vdwg.mxu0
    %v1257 = vmax.f32 %v1239, 0.0
    %v1258 = vmax.f32 %v1244, 0.0
    %v1259 = vmax.f32 %v1249, 0.0
    %v1260 = vmax.f32 %v1254, 0.0
    %v1262 = vrot.slane %v1260, 7
    %v1267 = vrot.slane %v1257, 7
    %v1268 = vrot.slane %v1258, 7
    %v1269 = vsel %vm906, %v1267, %v1268
    %v1270 = vrot.slane %v1259, 7
    %v1271 = vsel %vm906, %v1268, %v1270
    %v1272 = vsel %vm906, %v1270, %v1262
    %v1277 = vsel %vm906, %v1262, %v1267
    %v1278 = vsel %vm934, %v1277, 0.0
    %v1279 = vsel %vm935, %v1269, 0.0
    %v1280 = vsel %vm936, %v1271, 0.0
    %v1281 = vsel %vm937, %v1272, 0.0
    %v1282 = vrot.slane %v1257, 1
    %v1283 = vrot.slane %v1258, 1
    %v1284 = vsel %vm946, %v1282, %v1283
    %v1285 = vrot.slane %v1259, 1
    %v1286 = vsel %vm946, %v1283, %v1285
    %v1287 = vrot.slane %v1260, 1
    %v1288 = vsel %vm946, %v1285, %v1287
    %v1294 = vsel %vm946, %v1287, %v1282
    %v1295 = vsel %vm976, %v1284, 0.0
    %v1296 = vsel %vm977, %v1286, 0.0
    %v1297 = vsel %vm978, %v1288, 0.0
    %v1298 = vsel %vm979, %v1294, 0.0
    %v1299 = vld [vmem:[#allocation11] sm:$0xf]
    %v1300 = vld [vmem:[#allocation11 + $0x4] sm:$0xf]
    %v1301 = vld [vmem:[#allocation11 + $0x8] sm:$0xf]
    %v1302 = vld [vmem:[#allocation11 + $0xc] sm:$0xf]
    %v1303 = vld [vmem:[#allocation11 + $0x10] sm:$0xf]
    %v1304 = vld [vmem:[#allocation11 + $0x14] sm:$0xf]
    %v1305 = vld [vmem:[#allocation11 + $0x18] sm:$0xf]
    %v1306 = vld [vmem:[#allocation11 + $0x1c] sm:$0xf]
    %v1307 = vld [vmem:[#allocation11 + $0x20] sm:$0xf]
    %v1308 = vld [vmem:[#allocation11 + $0x24] sm:$0xf]
    %v1309 = vld [vmem:[#allocation11 + $0x28] sm:$0xf]
    %v1310 = vld [vmem:[#allocation11 + $0x2c] sm:$0xf]
    %v1311 = vld [vmem:[#allocation11 + $0x30] sm:$0xf]
    %v1312 = vld [vmem:[#allocation11 + $0x34] sm:$0xf]
    %v1313 = vld [vmem:[#allocation11 + $0x38] sm:$0xf]
    %v1314 = vld [vmem:[#allocation11 + $0x3c] sm:$0xf]
    %v1315 = vld [vmem:[#allocation11 + $0x40] sm:$0xf]
    %v1316 = vld [vmem:[#allocation11 + $0x44] sm:$0xf]
    %v1317 = vld [vmem:[#allocation11 + $0x48] sm:$0xf]
    %v1318 = vld [vmem:[#allocation11 + $0x4c] sm:$0xf]
    %v1319 = vld [vmem:[#allocation11 + $0x50] sm:$0xf]
    %v1320 = vld [vmem:[#allocation11 + $0x54] sm:$0xf]
    %v1321 = vld [vmem:[#allocation11 + $0x58] sm:$0xf]
    %v1322 = vld [vmem:[#allocation11 + $0x5c] sm:$0xf]
    %v1323 = vld [vmem:[#allocation11 + $0x60] sm:$0xf]
    %v1324 = vld [vmem:[#allocation11 + $0x64] sm:$0xf]
    %v1325 = vld [vmem:[#allocation11 + $0x68] sm:$0xf]
    %v1326 = vld [vmem:[#allocation11 + $0x6c] sm:$0xf]
    %v1327 = vld [vmem:[#allocation11 + $0x70] sm:$0xf]
    %v1328 = vld [vmem:[#allocation11 + $0x74] sm:$0xf]
    %v1329 = vld [vmem:[#allocation11 + $0x78] sm:$0xf]
    %v1330 = vld [vmem:[#allocation11 + $0x7c] sm:$0xf]
    %v1331 = vld [vmem:[#allocation11 + $0x80] sm:$0xf]
    %v1332 = vld [vmem:[#allocation11 + $0x84] sm:$0xf]
    %v1333 = vld [vmem:[#allocation11 + $0x88] sm:$0xf]
    %v1334 = vld [vmem:[#allocation11 + $0x8c] sm:$0xf]
    %v1335 = vld [vmem:[#allocation11 + $0x90] sm:$0xf]
    %v1336 = vld [vmem:[#allocation11 + $0x94] sm:$0xf]
    %v1337 = vld [vmem:[#allocation11 + $0x98] sm:$0xf]
    %v1338 = vld [vmem:[#allocation11 + $0x9c] sm:$0xf]
    %v1339 = vld [vmem:[#allocation11 + $0xa0] sm:$0xf]
    %v1340 = vld [vmem:[#allocation11 + $0xa4] sm:$0xf]
    %v1341 = vld [vmem:[#allocation11 + $0xa8] sm:$0xf]
    %v1342 = vld [vmem:[#allocation11 + $0xac] sm:$0xf]
    %v1343 = vld [vmem:[#allocation11 + $0xb0] sm:$0xf]
    %v1344 = vld [vmem:[#allocation11 + $0xb4] sm:$0xf]
    %v1345 = vld [vmem:[#allocation11 + $0xb8] sm:$0xf]
    %v1346 = vld [vmem:[#allocation11 + $0xbc] sm:$0xf]
    %v1347 = vunpack.c.l.bf16 %v1299
    %v1348 = vunpack.c.l.bf16 %v1300
    %v1349 = vunpack.c.l.bf16 %v1301
    %v1350 = vunpack.c.l.bf16 %v1302
    %v1351 = vunpack.c.l.bf16 %v1303
    %v1352 = vunpack.c.l.bf16 %v1304
    %v1353 = vunpack.c.l.bf16 %v1305
    %v1354 = vunpack.c.l.bf16 %v1306
    %v1355 = vunpack.c.l.bf16 %v1307
    %v1356 = vunpack.c.l.bf16 %v1308
    %v1357 = vunpack.c.l.bf16 %v1309
    %v1358 = vunpack.c.l.bf16 %v1310
    %v1359 = vunpack.c.l.bf16 %v1311
    %v1360 = vunpack.c.l.bf16 %v1312
    %v1361 = vunpack.c.l.bf16 %v1313
    %v1362 = vunpack.c.l.bf16 %v1314
    %v1363 = vunpack.c.l.bf16 %v1315
    %v1364 = vunpack.c.l.bf16 %v1316
    %v1365 = vunpack.c.l.bf16 %v1317
    %v1366 = vunpack.c.l.bf16 %v1318
    %v1367 = vunpack.c.l.bf16 %v1319
    %v1368 = vunpack.c.l.bf16 %v1320
    %v1369 = vunpack.c.l.bf16 %v1321
    %v1370 = vunpack.c.l.bf16 %v1322
    %v1371 = vunpack.c.l.bf16 %v1323
    %v1372 = vunpack.c.l.bf16 %v1324
    %v1373 = vunpack.c.l.bf16 %v1325
    %v1374 = vunpack.c.l.bf16 %v1326
    %v1375 = vunpack.c.l.bf16 %v1327
    %v1376 = vunpack.c.l.bf16 %v1328
    %v1377 = vunpack.c.l.bf16 %v1329
    %v1378 = vunpack.c.l.bf16 %v1330
    %v1379 = vunpack.c.l.bf16 %v1331
    %v1380 = vunpack.c.l.bf16 %v1332
    %v1381 = vunpack.c.l.bf16 %v1333
    %v1382 = vunpack.c.l.bf16 %v1334
    %v1383 = vunpack.c.l.bf16 %v1335
    %v1384 = vunpack.c.l.bf16 %v1336
    %v1385 = vunpack.c.l.bf16 %v1337
    %v1386 = vunpack.c.l.bf16 %v1338
    %v1387 = vunpack.c.l.bf16 %v1339
    %v1388 = vunpack.c.l.bf16 %v1340
    %v1389 = vunpack.c.l.bf16 %v1341
    %v1390 = vunpack.c.l.bf16 %v1342
    %v1391 = vunpack.c.l.bf16 %v1343
    %v1392 = vunpack.c.l.bf16 %v1344
    %v1393 = vunpack.c.l.bf16 %v1345
    %v1394 = vunpack.c.l.bf16 %v1346
    %v1395 = vld [vmem:[%s13] sm:$0x1]
    %v1397 = vlaneseq
    %v1398 = vshrl.u32 %v1397, 7
    %v1399 = vsub.s32 0, %v1398
    %v1400 = vrot.slane %v1395, %v1399
    %1402 = vmatprep.subr.mxu0 0.0
    %1403 = vmatpush1.msra.mxu0 %v1347
    %1404 = vmatprep.subr.mxu0 0.0
    %1405 = vmatpush1.msra.mxu0 %v1348
    %1406 = vmatprep.subr.mxu0 0.0
    %1407 = vmatpush1.msra.mxu0 %v1349
    %1408 = vmatprep.subr.mxu0 0.0
    %1409 = vmatpush1.msra.mxu0 %v1350
    %1410 = vmatprep.subr.mxu0 0.0
    %1411 = vmatpush1.msra.mxu0 %v1351
    %1412 = vmatprep.subr.mxu0 0.0
    %1413 = vmatpush1.msra.mxu0 %v1352
    %1414 = vmatprep.subr.mxu0 0.0
    %1415 = vmatpush1.msra.mxu0 %v1353
    %1416 = vmatprep.subr.mxu0 0.0
    %1417 = vmatpush1.msra.mxu0 %v1354
    %1418 = vmatprep.subr.mxu0 0.0
    %1419 = vmatpush1.msra.mxu0 %v1355
    %1420 = vmatprep.subr.mxu0 0.0
    %1421 = vmatpush1.msra.mxu0 %v1356
    %1422 = vmatprep.subr.mxu0 0.0
    %1423 = vmatpush1.msra.mxu0 %v1357
    %1424 = vmatprep.subr.mxu0 0.0
    %1425 = vmatpush1.msra.mxu0 %v1358
    %1426 = vmatprep.subr.mxu0 0.0
    %1427 = vmatpush1.msra.mxu0 %v1359
    %1428 = vmatprep.subr.mxu0 0.0
    %1429 = vmatpush1.msra.mxu0 %v1360
    %1430 = vmatprep.subr.mxu0 0.0
    %1431 = vmatpush1.msra.mxu0 %v1361
    %1432 = vmatprep.subr.mxu0 0.0
    %1433 = vmatpush1.msra.mxu0 %v1362
    %1434 = vmatprep.subr.mxu0 0.0
    %1435 = vmatpush1.msra.mxu0 %v1363
    %1436 = vmatprep.subr.mxu0 0.0
    %1437 = vmatpush1.msra.mxu0 %v1364
    %1438 = vmatprep.subr.mxu0 0.0
    %1439 = vmatpush1.msra.mxu0 %v1365
    %1440 = vmatprep.subr.mxu0 0.0
    %1441 = vmatpush1.msra.mxu0 %v1366
    %1442 = vmatprep.subr.mxu0 0.0
    %1443 = vmatpush1.msra.mxu0 %v1367
    %1444 = vmatprep.subr.mxu0 0.0
    %1445 = vmatpush1.msra.mxu0 %v1368
    %1446 = vmatprep.subr.mxu0 0.0
    %1447 = vmatpush1.msra.mxu0 %v1369
    %1448 = vmatprep.subr.mxu0 0.0
    %1449 = vmatpush1.msra.mxu0 %v1370
    %1450 = vmatprep.subr.mxu0 0.0
    %1451 = vmatpush1.msra.mxu0 %v1371
    %1452 = vmatprep.subr.mxu0 0.0
    %1453 = vmatpush1.msra.mxu0 %v1372
    %1454 = vmatprep.subr.mxu0 0.0
    %1455 = vmatpush1.msra.mxu0 %v1373
    %1456 = vmatprep.subr.mxu0 0.0
    %1457 = vmatpush1.msra.mxu0 %v1374
    %1458 = vmatprep.subr.mxu0 0.0
    %1459 = vmatpush1.msra.mxu0 %v1375
    %1460 = vmatprep.subr.mxu0 0.0
    %1461 = vmatpush1.msra.mxu0 %v1376
    %1462 = vmatprep.subr.mxu0 0.0
    %1463 = vmatpush1.msra.mxu0 %v1377
    %1464 = vmatprep.subr.mxu0 0.0
    %1465 = vmatpush1.msra.mxu0 %v1378
    %1466 = vmatprep.mubr.f32.mxu0 %v1278
    %1467 = vmatmul.mubr.f32.gmra.mrb[0].mxu0 %v1257
    %v1468 = vpop.f32.mrb[0].mxu0
    %v1469 = vadd.f32 %v1400, %v1468
    %v1470 = vpop.f32.mrb[0].mxu0
    %1471 = vmatprep.mubr.f32.mxu0 %v1279
    %1472 = vmatmul.mubr.f32.gmra.mrb[0].mxu0 %v1258
    %v1473 = vpop.f32.mrb[0].mxu0
    %v1474 = vadd.f32 %v1400, %v1473
    %v1475 = vpop.f32.mrb[0].mxu0
    %1476 = vmatprep.mubr.f32.mxu0 %v1280
    %1477 = vmatmul.mubr.f32.gmra.mrb[0].mxu0 %v1259
    %v1478 = vpop.f32.mrb[0].mxu0
    %v1479 = vadd.f32 %v1400, %v1478
    %v1480 = vpop.f32.mrb[0].mxu0
    %1481 = vmatprep.mubr.f32.mxu0 %v1281
    %1482 = vmatmul.mubr.f32.gmra.mrb[0].mxu0 %v1260
    %v1483 = vpop.f32.mrb[0].mxu0
    %v1484 = vadd.f32 %v1400, %v1483
    %v1485 = vpop.f32.mrb[0].mxu0
    %1486 = vdwg.mxu0
    %1487 = vmatprep.subr.mxu0 0.0
    %1488 = vmatpush1.msra.mxu0 %v1379
    %1489 = vmatprep.subr.mxu0 0.0
    %1490 = vmatpush1.msra.mxu0 %v1380
    %1491 = vmatprep.subr.mxu0 0.0
    %1492 = vmatpush1.msra.mxu0 %v1381
    %1493 = vmatprep.subr.mxu0 0.0
    %1494 = vmatpush1.msra.mxu0 %v1382
    %1495 = vmatprep.subr.mxu0 0.0
    %1496 = vmatpush1.msra.mxu0 %v1383
    %1497 = vmatprep.subr.mxu0 0.0
    %1498 = vmatpush1.msra.mxu0 %v1384
    %1499 = vmatprep.subr.mxu0 0.0
    %1500 = vmatpush1.msra.mxu0 %v1385
    %1501 = vmatprep.subr.mxu0 0.0
    %1502 = vmatpush1.msra.mxu0 %v1386
    %1503 = vmatprep.subr.mxu0 0.0
    %1504 = vmatpush1.msra.mxu0 %v1387
    %1505 = vmatprep.subr.mxu0 0.0
    %1506 = vmatpush1.msra.mxu0 %v1388
    %1507 = vmatprep.subr.mxu0 0.0
    %1508 = vmatpush1.msra.mxu0 %v1389
    %1509 = vmatprep.subr.mxu0 0.0
    %1510 = vmatpush1.msra.mxu0 %v1390
    %1511 = vmatprep.subr.mxu0 0.0
    %1512 = vmatpush1.msra.mxu0 %v1391
    %1513 = vmatprep.subr.mxu0 0.0
    %1514 = vmatpush1.msra.mxu0 %v1392
    %1515 = vmatprep.subr.mxu0 0.0
    %1516 = vmatpush1.msra.mxu0 %v1393
    %1517 = vmatprep.subr.mxu0 0.0
    %1518 = vmatpush1.msra.mxu0 %v1394
    %1519 = vmatprep.subr.mxu0 0.0
    %1520 = vmatpush1.msra.mxu0 0.0
    %1521 = vmatprep.subr.mxu0 0.0
    %1522 = vmatpush1.msra.mxu0 0.0
    %1523 = vmatprep.subr.mxu0 0.0
    %1524 = vmatpush1.msra.mxu0 0.0
    %1525 = vmatprep.subr.mxu0 0.0
    %1526 = vmatpush1.msra.mxu0 0.0
    %1527 = vmatprep.subr.mxu0 0.0
    %1528 = vmatpush1.msra.mxu0 0.0
    %1529 = vmatprep.subr.mxu0 0.0
    %1530 = vmatpush1.msra.mxu0 0.0
    %1531 = vmatprep.subr.mxu0 0.0
    %1532 = vmatpush1.msra.mxu0 0.0
    %1533 = vmatprep.subr.mxu0 0.0
    %1534 = vmatpush1.msra.mxu0 0.0
    %1535 = vmatprep.subr.mxu0 0.0
    %1536 = vmatpush1.msra.mxu0 0.0
    %1537 = vmatprep.subr.mxu0 0.0
    %1538 = vmatpush1.msra.mxu0 0.0
    %1539 = vmatprep.subr.mxu0 0.0
    %1540 = vmatpush1.msra.mxu0 0.0
    %1541 = vmatprep.subr.mxu0 0.0
    %1542 = vmatpush1.msra.mxu0 0.0
    %1543 = vmatprep.subr.mxu0 0.0
    %1544 = vmatpush1.msra.mxu0 0.0
    %1545 = vmatprep.subr.mxu0 0.0
    %1546 = vmatpush1.msra.mxu0 0.0
    %1547 = vmatprep.subr.mxu0 0.0
    %1548 = vmatpush1.msra.mxu0 0.0
    %1549 = vmatprep.subr.mxu0 0.0
    %1550 = vmatpush1.msra.mxu0 0.0
    %1551 = vmatprep.mubr.f32.mxu0 0.0
    %1552 = vmatmul.mubr.f32.gmra.mrb[0].mxu0 %v1295
    %v1553 = vpop.f32.mrb[0].mxu0
    %v1554 = vadd.f32 %v1469, %v1553
    %v1555 = vpop.f32.mrb[0].mxu0
    %1556 = vmatprep.mubr.f32.mxu0 0.0
    %1557 = vmatmul.mubr.f32.gmra.mrb[0].mxu0 %v1296
    %v1558 = vpop.f32.mrb[0].mxu0
    %v1559 = vadd.f32 %v1474, %v1558
    %v1560 = vpop.f32.mrb[0].mxu0
    %1561 = vmatprep.mubr.f32.mxu0 0.0
    %1562 = vmatmul.mubr.f32.gmra.mrb[0].mxu0 %v1297
    %v1563 = vpop.f32.mrb[0].mxu0
    %v1564 = vadd.f32 %v1479, %v1563
    %v1565 = vpop.f32.mrb[0].mxu0
    %1566 = vmatprep.mubr.f32.mxu0 0.0
    %1567 = vmatmul.mubr.f32.gmra.mrb[0].mxu0 %v1298
    %v1568 = vpop.f32.mrb[0].mxu0
    %v1569 = vadd.f32 %v1484, %v1568
    %v1570 = vpop.f32.mrb[0].mxu0
    %1571 = vdwg.mxu0
    %vm1572 = vcmp.gt.f32.partialorder %v216, 0.5
    %1577 = vrot.lane.b32.xlu0 %v874, 8
    %v1578 = vpop.permute.xlu0 %1577
    %1579 = vrot.lane.b32.xlu0 %v879, 8
    %v1580 = vpop.permute.xlu0 %1579
    %1581 = vrot.lane.b32.xlu0 %v884, 8
    %v1582 = vpop.permute.xlu0 %1581
    %1583 = vrot.lane.b32.xlu0 %v889, 8
    %v1584 = vpop.permute.xlu0 %1583
    %v1589 = vsel %vm1572, 1, 0
    %v1590 = vlaneseq
    %v1591 = vshrl.u32 %v1590, 7
    %v1592 = vsub.s32 0, %v1591
    %v1593 = vrot.slane %v1589, %v1592
    %vm1594 = vcmp.eq.s32.totalorder %v1593, 1
    %v1595 = vsel %vm1594, %v1578, -1e+30
    %v1596 = vsel %vm1594, %v1580, -1e+30
    %v1597 = vsel %vm1594, %v1582, -1e+30
    %v1598 = vsel %vm1594, %v1584, -1e+30
    %vm1599 = vcmp.gt.f32.partialorder %v217, 0.5
    %1600 = vrot.lane.b32.xlu0 %v874, 120
    %v1601 = vpop.permute.xlu0 %1600
    %1602 = vrot.lane.b32.xlu0 %v879, 120
    %v1603 = vpop.permute.xlu0 %1602
    %1604 = vrot.lane.b32.xlu0 %v884, 120
    %v1605 = vpop.permute.xlu0 %1604
    %1606 = vrot.lane.b32.xlu0 %v889, 120
    %v1607 = vpop.permute.xlu0 %1606
    %v1612 = vsel %vm1599, 1, 0
    %v1613 = vlaneseq
    %v1614 = vshrl.u32 %v1613, 7
    %v1615 = vsub.s32 0, %v1614
    %v1616 = vrot.slane %v1612, %v1615
    %vm1617 = vcmp.eq.s32.totalorder %v1616, 1
    %v1618 = vsel %vm1617, %v1601, -1e+30
    %v1619 = vsel %vm1617, %v1603, -1e+30
    %v1620 = vsel %vm1617, %v1605, -1e+30
    %v1621 = vsel %vm1617, %v1607, -1e+30
    %v1622 = vmax.f32 %v1595, %v1618
    %v1623 = vmax.f32 %v1596, %v1619
    %v1624 = vmax.f32 %v1597, %v1620
    %v1625 = vmax.f32 %v1598, %v1621
    %v1626 = vmax.f32 %v874, %v1622
    %v1627 = vmax.f32 %v879, %v1623
    %v1628 = vmax.f32 %v884, %v1624
    %v1629 = vmax.f32 %v889, %v1625
    %v1631 = vrot.slane %v1629, 7
    %v1636 = vrot.slane %v1626, 7
    %v1637 = vrot.slane %v1627, 7
    %v1638 = vsel %vm906, %v1636, %v1637
    %v1639 = vrot.slane %v1628, 7
    %v1640 = vsel %vm906, %v1637, %v1639
    %v1641 = vsel %vm906, %v1639, %v1631
    %v1646 = vsel %vm906, %v1631, %v1636
    %v1647 = vsel %vm934, %v1646, -1e+30
    %v1648 = vsel %vm935, %v1638, -1e+30
    %v1649 = vsel %vm936, %v1640, -1e+30
    %v1650 = vsel %vm937, %v1641, -1e+30
    %v1651 = vrot.slane %v1626, 1
    %v1652 = vrot.slane %v1627, 1
    %v1653 = vsel %vm946, %v1651, %v1652
    %v1654 = vrot.slane %v1628, 1
    %v1655 = vsel %vm946, %v1652, %v1654
    %v1656 = vrot.slane %v1629, 1
    %v1657 = vsel %vm946, %v1654, %v1656
    %v1663 = vsel %vm946, %v1656, %v1651
    %v1664 = vsel %vm976, %v1653, -1e+30
    %v1665 = vsel %vm977, %v1655, -1e+30
    %v1666 = vsel %vm978, %v1657, -1e+30
    %v1667 = vsel %vm979, %v1663, -1e+30
    %v1668 = vmax.f32 %v1647, %v1664
    %v1669 = vmax.f32 %v1648, %v1665
    %v1670 = vmax.f32 %v1649, %v1666
    %v1671 = vmax.f32 %v1650, %v1667
    %v1672 = vmax.f32 %v1626, %v1668
    %v1673 = vmax.f32 %v1627, %v1669
    %v1674 = vmax.f32 %v1628, %v1670
    %v1675 = vmax.f32 %v1629, %v1671
    %v1676 = vadd.f32 %v1554, %v1672
    %v1677 = vadd.f32 %v1559, %v1673
    %v1678 = vadd.f32 %v1564, %v1674
    %v1679 = vadd.f32 %v1569, %v1675
    %v1680 = vld [vmem:[#allocation13] sm:$0xf]
    %v1681 = vld [vmem:[#allocation13 + $0x4] sm:$0xf]
    %v1682 = vld [vmem:[#allocation13 + $0x8] sm:$0xf]
    %v1683 = vld [vmem:[#allocation13 + $0xc] sm:$0xf]
    %v1684 = vld [vmem:[#allocation13 + $0x10] sm:$0xf]
    %v1685 = vld [vmem:[#allocation13 + $0x14] sm:$0xf]
    %v1686 = vld [vmem:[#allocation13 + $0x18] sm:$0xf]
    %v1687 = vld [vmem:[#allocation13 + $0x1c] sm:$0xf]
    %v1688 = vld [vmem:[#allocation13 + $0x20] sm:$0xf]
    %v1689 = vld [vmem:[#allocation13 + $0x24] sm:$0xf]
    %v1690 = vld [vmem:[#allocation13 + $0x28] sm:$0xf]
    %v1691 = vld [vmem:[#allocation13 + $0x2c] sm:$0xf]
    %v1692 = vld [vmem:[#allocation13 + $0x30] sm:$0xf]
    %v1693 = vld [vmem:[#allocation13 + $0x34] sm:$0xf]
    %v1694 = vld [vmem:[#allocation13 + $0x38] sm:$0xf]
    %v1695 = vld [vmem:[#allocation13 + $0x3c] sm:$0xf]
    %v1696 = vld [vmem:[#allocation13 + $0x40] sm:$0xf]
    %v1697 = vld [vmem:[#allocation13 + $0x44] sm:$0xf]
    %v1698 = vld [vmem:[#allocation13 + $0x48] sm:$0xf]
    %v1699 = vld [vmem:[#allocation13 + $0x4c] sm:$0xf]
    %v1700 = vld [vmem:[#allocation13 + $0x50] sm:$0xf]
    %v1701 = vld [vmem:[#allocation13 + $0x54] sm:$0xf]
    %v1702 = vld [vmem:[#allocation13 + $0x58] sm:$0xf]
    %v1703 = vld [vmem:[#allocation13 + $0x5c] sm:$0xf]
    %v1704 = vld [vmem:[#allocation13 + $0x60] sm:$0xf]
    %v1705 = vld [vmem:[#allocation13 + $0x64] sm:$0xf]
    %v1706 = vld [vmem:[#allocation13 + $0x68] sm:$0xf]
    %v1707 = vld [vmem:[#allocation13 + $0x6c] sm:$0xf]
    %v1708 = vld [vmem:[#allocation13 + $0x70] sm:$0xf]
    %v1709 = vld [vmem:[#allocation13 + $0x74] sm:$0xf]
    %v1710 = vld [vmem:[#allocation13 + $0x78] sm:$0xf]
    %v1711 = vld [vmem:[#allocation13 + $0x7c] sm:$0xf]
    %v1712 = vld [vmem:[#allocation13 + $0x80] sm:$0xf]
    %v1713 = vld [vmem:[#allocation13 + $0x84] sm:$0xf]
    %v1714 = vld [vmem:[#allocation13 + $0x88] sm:$0xf]
    %v1715 = vld [vmem:[#allocation13 + $0x8c] sm:$0xf]
    %v1716 = vld [vmem:[#allocation13 + $0x90] sm:$0xf]
    %v1717 = vld [vmem:[#allocation13 + $0x94] sm:$0xf]
    %v1718 = vld [vmem:[#allocation13 + $0x98] sm:$0xf]
    %v1719 = vld [vmem:[#allocation13 + $0x9c] sm:$0xf]
    %v1720 = vld [vmem:[#allocation13 + $0xa0] sm:$0xf]
    %v1721 = vld [vmem:[#allocation13 + $0xa4] sm:$0xf]
    %v1722 = vld [vmem:[#allocation13 + $0xa8] sm:$0xf]
    %v1723 = vld [vmem:[#allocation13 + $0xac] sm:$0xf]
    %v1724 = vld [vmem:[#allocation13 + $0xb0] sm:$0xf]
    %v1725 = vld [vmem:[#allocation13 + $0xb4] sm:$0xf]
    %v1726 = vld [vmem:[#allocation13 + $0xb8] sm:$0xf]
    %v1727 = vld [vmem:[#allocation13 + $0xbc] sm:$0xf]
    %v1728 = vunpack.c.l.bf16 %v1680
    %v1729 = vunpack.c.l.bf16 %v1681
    %v1730 = vunpack.c.l.bf16 %v1682
    %v1731 = vunpack.c.l.bf16 %v1683
    %v1732 = vunpack.c.l.bf16 %v1684
    %v1733 = vunpack.c.l.bf16 %v1685
    %v1734 = vunpack.c.l.bf16 %v1686
    %v1735 = vunpack.c.l.bf16 %v1687
    %v1736 = vunpack.c.l.bf16 %v1688
    %v1737 = vunpack.c.l.bf16 %v1689
    %v1738 = vunpack.c.l.bf16 %v1690
    %v1739 = vunpack.c.l.bf16 %v1691
    %v1740 = vunpack.c.l.bf16 %v1692
    %v1741 = vunpack.c.l.bf16 %v1693
    %v1742 = vunpack.c.l.bf16 %v1694
    %v1743 = vunpack.c.l.bf16 %v1695
    %v1744 = vunpack.c.l.bf16 %v1696
    %v1745 = vunpack.c.l.bf16 %v1697
    %v1746 = vunpack.c.l.bf16 %v1698
    %v1747 = vunpack.c.l.bf16 %v1699
    %v1748 = vunpack.c.l.bf16 %v1700
    %v1749 = vunpack.c.l.bf16 %v1701
    %v1750 = vunpack.c.l.bf16 %v1702
    %v1751 = vunpack.c.l.bf16 %v1703
    %v1752 = vunpack.c.l.bf16 %v1704
    %v1753 = vunpack.c.l.bf16 %v1705
    %v1754 = vunpack.c.l.bf16 %v1706
    %v1755 = vunpack.c.l.bf16 %v1707
    %v1756 = vunpack.c.l.bf16 %v1708
    %v1757 = vunpack.c.l.bf16 %v1709
    %v1758 = vunpack.c.l.bf16 %v1710
    %v1759 = vunpack.c.l.bf16 %v1711
    %v1760 = vunpack.c.l.bf16 %v1712
    %v1761 = vunpack.c.l.bf16 %v1713
    %v1762 = vunpack.c.l.bf16 %v1714
    %v1763 = vunpack.c.l.bf16 %v1715
    %v1764 = vunpack.c.l.bf16 %v1716
    %v1765 = vunpack.c.l.bf16 %v1717
    %v1766 = vunpack.c.l.bf16 %v1718
    %v1767 = vunpack.c.l.bf16 %v1719
    %v1768 = vunpack.c.l.bf16 %v1720
    %v1769 = vunpack.c.l.bf16 %v1721
    %v1770 = vunpack.c.l.bf16 %v1722
    %v1771 = vunpack.c.l.bf16 %v1723
    %v1772 = vunpack.c.l.bf16 %v1724
    %v1773 = vunpack.c.l.bf16 %v1725
    %v1774 = vunpack.c.l.bf16 %v1726
    %v1775 = vunpack.c.l.bf16 %v1727
    %v1776 = vld [vmem:[%s15] sm:$0x1]
    %v1778 = vlaneseq
    %v1779 = vshrl.u32 %v1778, 7
    %v1780 = vsub.s32 0, %v1779
    %v1781 = vrot.slane %v1776, %v1780
    %1783 = vmatprep.subr.mxu0 0.0
    %1784 = vmatpush1.msra.mxu0 %v1728
    %1785 = vmatprep.subr.mxu0 0.0
    %1786 = vmatpush1.msra.mxu0 %v1729
    %1787 = vmatprep.subr.mxu0 0.0
    %1788 = vmatpush1.msra.mxu0 %v1730
    %1789 = vmatprep.subr.mxu0 0.0
    %1790 = vmatpush1.msra.mxu0 %v1731
    %1791 = vmatprep.subr.mxu0 0.0
    %1792 = vmatpush1.msra.mxu0 %v1732
    %1793 = vmatprep.subr.mxu0 0.0
    %1794 = vmatpush1.msra.mxu0 %v1733
    %1795 = vmatprep.subr.mxu0 0.0
    %1796 = vmatpush1.msra.mxu0 %v1734
    %1797 = vmatprep.subr.mxu0 0.0
    %1798 = vmatpush1.msra.mxu0 %v1735
    %1799 = vmatprep.subr.mxu0 0.0
    %1800 = vmatpush1.msra.mxu0 %v1736
    %1801 = vmatprep.subr.mxu0 0.0
    %1802 = vmatpush1.msra.mxu0 %v1737
    %1803 = vmatprep.subr.mxu0 0.0
    %1804 = vmatpush1.msra.mxu0 %v1738
    %1805 = vmatprep.subr.mxu0 0.0
    %1806 = vmatpush1.msra.mxu0 %v1739
    %1807 = vmatprep.subr.mxu0 0.0
    %1808 = vmatpush1.msra.mxu0 %v1740
    %1809 = vmatprep.subr.mxu0 0.0
    %1810 = vmatpush1.msra.mxu0 %v1741
    %1811 = vmatprep.subr.mxu0 0.0
    %1812 = vmatpush1.msra.mxu0 %v1742
    %1813 = vmatprep.subr.mxu0 0.0
    %1814 = vmatpush1.msra.mxu0 %v1743
    %1815 = vmatprep.subr.mxu0 0.0
    %1816 = vmatpush1.msra.mxu0 %v1744
    %1817 = vmatprep.subr.mxu0 0.0
    %1818 = vmatpush1.msra.mxu0 %v1745
    %1819 = vmatprep.subr.mxu0 0.0
    %1820 = vmatpush1.msra.mxu0 %v1746
    %1821 = vmatprep.subr.mxu0 0.0
    %1822 = vmatpush1.msra.mxu0 %v1747
    %1823 = vmatprep.subr.mxu0 0.0
    %1824 = vmatpush1.msra.mxu0 %v1748
    %1825 = vmatprep.subr.mxu0 0.0
    %1826 = vmatpush1.msra.mxu0 %v1749
    %1827 = vmatprep.subr.mxu0 0.0
    %1828 = vmatpush1.msra.mxu0 %v1750
    %1829 = vmatprep.subr.mxu0 0.0
    %1830 = vmatpush1.msra.mxu0 %v1751
    %1831 = vmatprep.subr.mxu0 0.0
    %1832 = vmatpush1.msra.mxu0 %v1752
    %1833 = vmatprep.subr.mxu0 0.0
    %1834 = vmatpush1.msra.mxu0 %v1753
    %1835 = vmatprep.subr.mxu0 0.0
    %1836 = vmatpush1.msra.mxu0 %v1754
    %1837 = vmatprep.subr.mxu0 0.0
    %1838 = vmatpush1.msra.mxu0 %v1755
    %1839 = vmatprep.subr.mxu0 0.0
    %1840 = vmatpush1.msra.mxu0 %v1756
    %1841 = vmatprep.subr.mxu0 0.0
    %1842 = vmatpush1.msra.mxu0 %v1757
    %1843 = vmatprep.subr.mxu0 0.0
    %1844 = vmatpush1.msra.mxu0 %v1758
    %1845 = vmatprep.subr.mxu0 0.0
    %1846 = vmatpush1.msra.mxu0 %v1759
    %1847 = vmatprep.mubr.f32.mxu0 %v938
    %1848 = vmatmul.mubr.f32.gmra.mrb[0].mxu0 %v892
    %v1849 = vpop.f32.mrb[0].mxu0
    %v1850 = vadd.f32 %v1781, %v1849
    %v1851 = vpop.f32.mrb[0].mxu0
    %1852 = vmatprep.mubr.f32.mxu0 %v939
    %1853 = vmatmul.mubr.f32.gmra.mrb[0].mxu0 %v893
    %v1854 = vpop.f32.mrb[0].mxu0
    %v1855 = vadd.f32 %v1781, %v1854
    %v1856 = vpop.f32.mrb[0].mxu0
    %1857 = vmatprep.mubr.f32.mxu0 %v940
    %1858 = vmatmul.mubr.f32.gmra.mrb[0].mxu0 %v894
    %v1859 = vpop.f32.mrb[0].mxu0
    %v1860 = vadd.f32 %v1781, %v1859
    %v1861 = vpop.f32.mrb[0].mxu0
    %1862 = vmatprep.mubr.f32.mxu0 %v941
    %1863 = vmatmul.mubr.f32.gmra.mrb[0].mxu0 %v895
    %v1864 = vpop.f32.mrb[0].mxu0
    %v1865 = vadd.f32 %v1781, %v1864
    %v1866 = vpop.f32.mrb[0].mxu0
    %1867 = vdwg.mxu0
    %1868 = vmatprep.subr.mxu0 0.0
    %1869 = vmatpush1.msra.mxu0 %v1760
    %1870 = vmatprep.subr.mxu0 0.0
    %1871 = vmatpush1.msra.mxu0 %v1761
    %1872 = vmatprep.subr.mxu0 0.0
    %1873 = vmatpush1.msra.mxu0 %v1762
    %1874 = vmatprep.subr.mxu0 0.0
    %1875 = vmatpush1.msra.mxu0 %v1763
    %1876 = vmatprep.subr.mxu0 0.0
    %1877 = vmatpush1.msra.mxu0 %v1764
    %1878 = vmatprep.subr.mxu0 0.0
    %1879 = vmatpush1.msra.mxu0 %v1765
    %1880 = vmatprep.subr.mxu0 0.0
    %1881 = vmatpush1.msra.mxu0 %v1766
    %1882 = vmatprep.subr.mxu0 0.0
    %1883 = vmatpush1.msra.mxu0 %v1767
    %1884 = vmatprep.subr.mxu0 0.0
    %1885 = vmatpush1.msra.mxu0 %v1768
    %1886 = vmatprep.subr.mxu0 0.0
    %1887 = vmatpush1.msra.mxu0 %v1769
    %1888 = vmatprep.subr.mxu0 0.0
    %1889 = vmatpush1.msra.mxu0 %v1770
    %1890 = vmatprep.subr.mxu0 0.0
    %1891 = vmatpush1.msra.mxu0 %v1771
    %1892 = vmatprep.subr.mxu0 0.0
    %1893 = vmatpush1.msra.mxu0 %v1772
    %1894 = vmatprep.subr.mxu0 0.0
    %1895 = vmatpush1.msra.mxu0 %v1773
    %1896 = vmatprep.subr.mxu0 0.0
    %1897 = vmatpush1.msra.mxu0 %v1774
    %1898 = vmatprep.subr.mxu0 0.0
    %1899 = vmatpush1.msra.mxu0 %v1775
    %1900 = vmatprep.subr.mxu0 0.0
    %1901 = vmatpush1.msra.mxu0 0.0
    %1902 = vmatprep.subr.mxu0 0.0
    %1903 = vmatpush1.msra.mxu0 0.0
    %1904 = vmatprep.subr.mxu0 0.0
    %1905 = vmatpush1.msra.mxu0 0.0
    %1906 = vmatprep.subr.mxu0 0.0
    %1907 = vmatpush1.msra.mxu0 0.0
    %1908 = vmatprep.subr.mxu0 0.0
    %1909 = vmatpush1.msra.mxu0 0.0
    %1910 = vmatprep.subr.mxu0 0.0
    %1911 = vmatpush1.msra.mxu0 0.0
    %1912 = vmatprep.subr.mxu0 0.0
    %1913 = vmatpush1.msra.mxu0 0.0
    %1914 = vmatprep.subr.mxu0 0.0
    %1915 = vmatpush1.msra.mxu0 0.0
    %1916 = vmatprep.subr.mxu0 0.0
    %1917 = vmatpush1.msra.mxu0 0.0
    %1918 = vmatprep.subr.mxu0 0.0
    %1919 = vmatpush1.msra.mxu0 0.0
    %1920 = vmatprep.subr.mxu0 0.0
    %1921 = vmatpush1.msra.mxu0 0.0
    %1922 = vmatprep.subr.mxu0 0.0
    %1923 = vmatpush1.msra.mxu0 0.0
    %1924 = vmatprep.subr.mxu0 0.0
    %1925 = vmatpush1.msra.mxu0 0.0
    %1926 = vmatprep.subr.mxu0 0.0
    %1927 = vmatpush1.msra.mxu0 0.0
    %1928 = vmatprep.subr.mxu0 0.0
    %1929 = vmatpush1.msra.mxu0 0.0
    %1930 = vmatprep.subr.mxu0 0.0
    %1931 = vmatpush1.msra.mxu0 0.0
    %1932 = vmatprep.mubr.f32.mxu0 0.0
    %1933 = vmatmul.mubr.f32.gmra.mrb[0].mxu0 %v980
    %v1934 = vpop.f32.mrb[0].mxu0
    %v1935 = vadd.f32 %v1850, %v1934
    %v1936 = vpop.f32.mrb[0].mxu0
    %1937 = vmatprep.mubr.f32.mxu0 0.0
    %1938 = vmatmul.mubr.f32.gmra.mrb[0].mxu0 %v981
    %v1939 = vpop.f32.mrb[0].mxu0
    %v1940 = vadd.f32 %v1855, %v1939
    %v1941 = vpop.f32.mrb[0].mxu0
    %1942 = vmatprep.mubr.f32.mxu0 0.0
    %1943 = vmatmul.mubr.f32.gmra.mrb[0].mxu0 %v982
    %v1944 = vpop.f32.mrb[0].mxu0
    %v1945 = vadd.f32 %v1860, %v1944
    %v1946 = vpop.f32.mrb[0].mxu0
    %1947 = vmatprep.mubr.f32.mxu0 0.0
    %1948 = vmatmul.mubr.f32.gmra.mrb[0].mxu0 %v983
    %v1949 = vpop.f32.mrb[0].mxu0
    %v1950 = vadd.f32 %v1865, %v1949
    %v1951 = vpop.f32.mrb[0].mxu0
    %1952 = vdwg.mxu0
    %v1953 = vmax.f32 %v1935, 0.0
    %v1954 = vmax.f32 %v1940, 0.0
    %v1955 = vmax.f32 %v1945, 0.0
    %v1956 = vmax.f32 %v1950, 0.0
    %v1958 = vrot.slane %v1956, 7
    %v1963 = vrot.slane %v1953, 7
    %v1964 = vrot.slane %v1954, 7
    %v1965 = vsel %vm906, %v1963, %v1964
    %v1966 = vrot.slane %v1955, 7
    %v1967 = vsel %vm906, %v1964, %v1966
    %v1968 = vsel %vm906, %v1966, %v1958
    %v1973 = vsel %vm906, %v1958, %v1963
    %v1974 = vsel %vm934, %v1973, 0.0
    %v1975 = vsel %vm935, %v1965, 0.0
    %v1976 = vsel %vm936, %v1967, 0.0
    %v1977 = vsel %vm937, %v1968, 0.0
    %v1978 = vrot.slane %v1953, 1
    %v1979 = vrot.slane %v1954, 1
    %v1980 = vsel %vm946, %v1978, %v1979
    %v1981 = vrot.slane %v1955, 1
    %v1982 = vsel %vm946, %v1979, %v1981
    %v1983 = vrot.slane %v1956, 1
    %v1984 = vsel %vm946, %v1981, %v1983
    %v1990 = vsel %vm946, %v1983, %v1978
    %v1991 = vsel %vm976, %v1980, 0.0
    %v1992 = vsel %vm977, %v1982, 0.0
    %v1993 = vsel %vm978, %v1984, 0.0
    %v1994 = vsel %vm979, %v1990, 0.0
    %v1995 = vld [vmem:[#allocation14] sm:$0xf]
    %v1996 = vld [vmem:[#allocation14 + $0x4] sm:$0xf]
    %v1997 = vld [vmem:[#allocation14 + $0x8] sm:$0xf]
    %v1998 = vld [vmem:[#allocation14 + $0xc] sm:$0xf]
    %v1999 = vld [vmem:[#allocation14 + $0x10] sm:$0xf]
    %v2000 = vld [vmem:[#allocation14 + $0x14] sm:$0xf]
    %v2001 = vld [vmem:[#allocation14 + $0x18] sm:$0xf]
    %v2002 = vld [vmem:[#allocation14 + $0x1c] sm:$0xf]
    %v2003 = vld [vmem:[#allocation14 + $0x20] sm:$0xf]
    %v2004 = vld [vmem:[#allocation14 + $0x24] sm:$0xf]
    %v2005 = vld [vmem:[#allocation14 + $0x28] sm:$0xf]
    %v2006 = vld [vmem:[#allocation14 + $0x2c] sm:$0xf]
    %v2007 = vld [vmem:[#allocation14 + $0x30] sm:$0xf]
    %v2008 = vld [vmem:[#allocation14 + $0x34] sm:$0xf]
    %v2009 = vld [vmem:[#allocation14 + $0x38] sm:$0xf]
    %v2010 = vld [vmem:[#allocation14 + $0x3c] sm:$0xf]
    %v2011 = vld [vmem:[#allocation14 + $0x40] sm:$0xf]
    %v2012 = vld [vmem:[#allocation14 + $0x44] sm:$0xf]
    %v2013 = vld [vmem:[#allocation14 + $0x48] sm:$0xf]
    %v2014 = vld [vmem:[#allocation14 + $0x4c] sm:$0xf]
    %v2015 = vld [vmem:[#allocation14 + $0x50] sm:$0xf]
    %v2016 = vld [vmem:[#allocation14 + $0x54] sm:$0xf]
    %v2017 = vld [vmem:[#allocation14 + $0x58] sm:$0xf]
    %v2018 = vld [vmem:[#allocation14 + $0x5c] sm:$0xf]
    %v2019 = vld [vmem:[#allocation14 + $0x60] sm:$0xf]
    %v2020 = vld [vmem:[#allocation14 + $0x64] sm:$0xf]
    %v2021 = vld [vmem:[#allocation14 + $0x68] sm:$0xf]
    %v2022 = vld [vmem:[#allocation14 + $0x6c] sm:$0xf]
    %v2023 = vld [vmem:[#allocation14 + $0x70] sm:$0xf]
    %v2024 = vld [vmem:[#allocation14 + $0x74] sm:$0xf]
    %v2025 = vld [vmem:[#allocation14 + $0x78] sm:$0xf]
    %v2026 = vld [vmem:[#allocation14 + $0x7c] sm:$0xf]
    %v2027 = vld [vmem:[#allocation14 + $0x80] sm:$0xf]
    %v2028 = vld [vmem:[#allocation14 + $0x84] sm:$0xf]
    %v2029 = vld [vmem:[#allocation14 + $0x88] sm:$0xf]
    %v2030 = vld [vmem:[#allocation14 + $0x8c] sm:$0xf]
    %v2031 = vld [vmem:[#allocation14 + $0x90] sm:$0xf]
    %v2032 = vld [vmem:[#allocation14 + $0x94] sm:$0xf]
    %v2033 = vld [vmem:[#allocation14 + $0x98] sm:$0xf]
    %v2034 = vld [vmem:[#allocation14 + $0x9c] sm:$0xf]
    %v2035 = vld [vmem:[#allocation14 + $0xa0] sm:$0xf]
    %v2036 = vld [vmem:[#allocation14 + $0xa4] sm:$0xf]
    %v2037 = vld [vmem:[#allocation14 + $0xa8] sm:$0xf]
    %v2038 = vld [vmem:[#allocation14 + $0xac] sm:$0xf]
    %v2039 = vld [vmem:[#allocation14 + $0xb0] sm:$0xf]
    %v2040 = vld [vmem:[#allocation14 + $0xb4] sm:$0xf]
    %v2041 = vld [vmem:[#allocation14 + $0xb8] sm:$0xf]
    %v2042 = vld [vmem:[#allocation14 + $0xbc] sm:$0xf]
    %v2043 = vunpack.c.l.bf16 %v1995
    %v2044 = vunpack.c.l.bf16 %v1996
    %v2045 = vunpack.c.l.bf16 %v1997
    %v2046 = vunpack.c.l.bf16 %v1998
    %v2047 = vunpack.c.l.bf16 %v1999
    %v2048 = vunpack.c.l.bf16 %v2000
    %v2049 = vunpack.c.l.bf16 %v2001
    %v2050 = vunpack.c.l.bf16 %v2002
    %v2051 = vunpack.c.l.bf16 %v2003
    %v2052 = vunpack.c.l.bf16 %v2004
    %v2053 = vunpack.c.l.bf16 %v2005
    %v2054 = vunpack.c.l.bf16 %v2006
    %v2055 = vunpack.c.l.bf16 %v2007
    %v2056 = vunpack.c.l.bf16 %v2008
    %v2057 = vunpack.c.l.bf16 %v2009
    %v2058 = vunpack.c.l.bf16 %v2010
    %v2059 = vunpack.c.l.bf16 %v2011
    %v2060 = vunpack.c.l.bf16 %v2012
    %v2061 = vunpack.c.l.bf16 %v2013
    %v2062 = vunpack.c.l.bf16 %v2014
    %v2063 = vunpack.c.l.bf16 %v2015
    %v2064 = vunpack.c.l.bf16 %v2016
    %v2065 = vunpack.c.l.bf16 %v2017
    %v2066 = vunpack.c.l.bf16 %v2018
    %v2067 = vunpack.c.l.bf16 %v2019
    %v2068 = vunpack.c.l.bf16 %v2020
    %v2069 = vunpack.c.l.bf16 %v2021
    %v2070 = vunpack.c.l.bf16 %v2022
    %v2071 = vunpack.c.l.bf16 %v2023
    %v2072 = vunpack.c.l.bf16 %v2024
    %v2073 = vunpack.c.l.bf16 %v2025
    %v2074 = vunpack.c.l.bf16 %v2026
    %v2075 = vunpack.c.l.bf16 %v2027
    %v2076 = vunpack.c.l.bf16 %v2028
    %v2077 = vunpack.c.l.bf16 %v2029
    %v2078 = vunpack.c.l.bf16 %v2030
    %v2079 = vunpack.c.l.bf16 %v2031
    %v2080 = vunpack.c.l.bf16 %v2032
    %v2081 = vunpack.c.l.bf16 %v2033
    %v2082 = vunpack.c.l.bf16 %v2034
    %v2083 = vunpack.c.l.bf16 %v2035
    %v2084 = vunpack.c.l.bf16 %v2036
    %v2085 = vunpack.c.l.bf16 %v2037
    %v2086 = vunpack.c.l.bf16 %v2038
    %v2087 = vunpack.c.l.bf16 %v2039
    %v2088 = vunpack.c.l.bf16 %v2040
    %v2089 = vunpack.c.l.bf16 %v2041
    %v2090 = vunpack.c.l.bf16 %v2042
    %v2091 = vld [vmem:[%s17] sm:$0x1]
    %v2093 = vlaneseq
    %v2094 = vshrl.u32 %v2093, 7
    %v2095 = vsub.s32 0, %v2094
    %v2096 = vrot.slane %v2091, %v2095
    %2098 = vmatprep.subr.mxu0 0.0
    %2099 = vmatpush1.msra.mxu0 %v2043
    %2100 = vmatprep.subr.mxu0 0.0
    %2101 = vmatpush1.msra.mxu0 %v2044
    %2102 = vmatprep.subr.mxu0 0.0
    %2103 = vmatpush1.msra.mxu0 %v2045
    %2104 = vmatprep.subr.mxu0 0.0
    %2105 = vmatpush1.msra.mxu0 %v2046
    %2106 = vmatprep.subr.mxu0 0.0
    %2107 = vmatpush1.msra.mxu0 %v2047
    %2108 = vmatprep.subr.mxu0 0.0
    %2109 = vmatpush1.msra.mxu0 %v2048
    %2110 = vmatprep.subr.mxu0 0.0
    %2111 = vmatpush1.msra.mxu0 %v2049
    %2112 = vmatprep.subr.mxu0 0.0
    %2113 = vmatpush1.msra.mxu0 %v2050
    %2114 = vmatprep.subr.mxu0 0.0
    %2115 = vmatpush1.msra.mxu0 %v2051
    %2116 = vmatprep.subr.mxu0 0.0
    %2117 = vmatpush1.msra.mxu0 %v2052
    %2118 = vmatprep.subr.mxu0 0.0
    %2119 = vmatpush1.msra.mxu0 %v2053
    %2120 = vmatprep.subr.mxu0 0.0
    %2121 = vmatpush1.msra.mxu0 %v2054
    %2122 = vmatprep.subr.mxu0 0.0
    %2123 = vmatpush1.msra.mxu0 %v2055
    %2124 = vmatprep.subr.mxu0 0.0
    %2125 = vmatpush1.msra.mxu0 %v2056
    %2126 = vmatprep.subr.mxu0 0.0
    %2127 = vmatpush1.msra.mxu0 %v2057
    %2128 = vmatprep.subr.mxu0 0.0
    %2129 = vmatpush1.msra.mxu0 %v2058
    %2130 = vmatprep.subr.mxu0 0.0
    %2131 = vmatpush1.msra.mxu0 %v2059
    %2132 = vmatprep.subr.mxu0 0.0
    %2133 = vmatpush1.msra.mxu0 %v2060
    %2134 = vmatprep.subr.mxu0 0.0
    %2135 = vmatpush1.msra.mxu0 %v2061
    %2136 = vmatprep.subr.mxu0 0.0
    %2137 = vmatpush1.msra.mxu0 %v2062
    %2138 = vmatprep.subr.mxu0 0.0
    %2139 = vmatpush1.msra.mxu0 %v2063
    %2140 = vmatprep.subr.mxu0 0.0
    %2141 = vmatpush1.msra.mxu0 %v2064
    %2142 = vmatprep.subr.mxu0 0.0
    %2143 = vmatpush1.msra.mxu0 %v2065
    %2144 = vmatprep.subr.mxu0 0.0
    %2145 = vmatpush1.msra.mxu0 %v2066
    %2146 = vmatprep.subr.mxu0 0.0
    %2147 = vmatpush1.msra.mxu0 %v2067
    %2148 = vmatprep.subr.mxu0 0.0
    %2149 = vmatpush1.msra.mxu0 %v2068
    %2150 = vmatprep.subr.mxu0 0.0
    %2151 = vmatpush1.msra.mxu0 %v2069
    %2152 = vmatprep.subr.mxu0 0.0
    %2153 = vmatpush1.msra.mxu0 %v2070
    %2154 = vmatprep.subr.mxu0 0.0
    %2155 = vmatpush1.msra.mxu0 %v2071
    %2156 = vmatprep.subr.mxu0 0.0
    %2157 = vmatpush1.msra.mxu0 %v2072
    %2158 = vmatprep.subr.mxu0 0.0
    %2159 = vmatpush1.msra.mxu0 %v2073
    %2160 = vmatprep.subr.mxu0 0.0
    %2161 = vmatpush1.msra.mxu0 %v2074
    %2162 = vmatprep.mubr.f32.mxu0 %v1974
    %2163 = vmatmul.mubr.f32.gmra.mrb[0].mxu0 %v1953
    %v2164 = vpop.f32.mrb[0].mxu0
    %v2165 = vadd.f32 %v2096, %v2164
    %v2166 = vpop.f32.mrb[0].mxu0
    %2167 = vmatprep.mubr.f32.mxu0 %v1975
    %2168 = vmatmul.mubr.f32.gmra.mrb[0].mxu0 %v1954
    %v2169 = vpop.f32.mrb[0].mxu0
    %v2170 = vadd.f32 %v2096, %v2169
    %v2171 = vpop.f32.mrb[0].mxu0
    %2172 = vmatprep.mubr.f32.mxu0 %v1976
    %2173 = vmatmul.mubr.f32.gmra.mrb[0].mxu0 %v1955
    %v2174 = vpop.f32.mrb[0].mxu0
    %v2175 = vadd.f32 %v2096, %v2174
    %v2176 = vpop.f32.mrb[0].mxu0
    %2177 = vmatprep.mubr.f32.mxu0 %v1977
    %2178 = vmatmul.mubr.f32.gmra.mrb[0].mxu0 %v1956
    %v2179 = vpop.f32.mrb[0].mxu0
    %v2180 = vadd.f32 %v2096, %v2179
    %v2181 = vpop.f32.mrb[0].mxu0
    %2182 = vdwg.mxu0
    %2183 = vmatprep.subr.mxu0 0.0
    %2184 = vmatpush1.msra.mxu0 %v2075
    %2185 = vmatprep.subr.mxu0 0.0
    %2186 = vmatpush1.msra.mxu0 %v2076
    %2187 = vmatprep.subr.mxu0 0.0
    %2188 = vmatpush1.msra.mxu0 %v2077
    %2189 = vmatprep.subr.mxu0 0.0
    %2190 = vmatpush1.msra.mxu0 %v2078
    %2191 = vmatprep.subr.mxu0 0.0
    %2192 = vmatpush1.msra.mxu0 %v2079
    %2193 = vmatprep.subr.mxu0 0.0
    %2194 = vmatpush1.msra.mxu0 %v2080
    %2195 = vmatprep.subr.mxu0 0.0
    %2196 = vmatpush1.msra.mxu0 %v2081
    %2197 = vmatprep.subr.mxu0 0.0
    %2198 = vmatpush1.msra.mxu0 %v2082
    %2199 = vmatprep.subr.mxu0 0.0
    %2200 = vmatpush1.msra.mxu0 %v2083
    %2201 = vmatprep.subr.mxu0 0.0
    %2202 = vmatpush1.msra.mxu0 %v2084
    %2203 = vmatprep.subr.mxu0 0.0
    %2204 = vmatpush1.msra.mxu0 %v2085
    %2205 = vmatprep.subr.mxu0 0.0
    %2206 = vmatpush1.msra.mxu0 %v2086
    %2207 = vmatprep.subr.mxu0 0.0
    %2208 = vmatpush1.msra.mxu0 %v2087
    %2209 = vmatprep.subr.mxu0 0.0
    %2210 = vmatpush1.msra.mxu0 %v2088
    %2211 = vmatprep.subr.mxu0 0.0
    %2212 = vmatpush1.msra.mxu0 %v2089
    %2213 = vmatprep.subr.mxu0 0.0
    %2214 = vmatpush1.msra.mxu0 %v2090
    %2215 = vmatprep.subr.mxu0 0.0
    %2216 = vmatpush1.msra.mxu0 0.0
    %2217 = vmatprep.subr.mxu0 0.0
    %2218 = vmatpush1.msra.mxu0 0.0
    %2219 = vmatprep.subr.mxu0 0.0
    %2220 = vmatpush1.msra.mxu0 0.0
    %2221 = vmatprep.subr.mxu0 0.0
    %2222 = vmatpush1.msra.mxu0 0.0
    %2223 = vmatprep.subr.mxu0 0.0
    %2224 = vmatpush1.msra.mxu0 0.0
    %2225 = vmatprep.subr.mxu0 0.0
    %2226 = vmatpush1.msra.mxu0 0.0
    %2227 = vmatprep.subr.mxu0 0.0
    %2228 = vmatpush1.msra.mxu0 0.0
    %2229 = vmatprep.subr.mxu0 0.0
    %2230 = vmatpush1.msra.mxu0 0.0
    %2231 = vmatprep.subr.mxu0 0.0
    %2232 = vmatpush1.msra.mxu0 0.0
    %2233 = vmatprep.subr.mxu0 0.0
    %2234 = vmatpush1.msra.mxu0 0.0
    %2235 = vmatprep.subr.mxu0 0.0
    %2236 = vmatpush1.msra.mxu0 0.0
    %2237 = vmatprep.subr.mxu0 0.0
    %2238 = vmatpush1.msra.mxu0 0.0
    %2239 = vmatprep.subr.mxu0 0.0
    %2240 = vmatpush1.msra.mxu0 0.0
    %2241 = vmatprep.subr.mxu0 0.0
    %2242 = vmatpush1.msra.mxu0 0.0
    %2243 = vmatprep.subr.mxu0 0.0
    %2244 = vmatpush1.msra.mxu0 0.0
    %2245 = vmatprep.subr.mxu0 0.0
    %2246 = vmatpush1.msra.mxu0 0.0
    %2247 = vmatprep.mubr.f32.mxu0 0.0
    %2248 = vmatmul.mubr.f32.gmra.mrb[0].mxu0 %v1991
    %v2249 = vpop.f32.mrb[0].mxu0
    %v2250 = vadd.f32 %v2165, %v2249
    %v2251 = vpop.f32.mrb[0].mxu0
    %2252 = vmatprep.mubr.f32.mxu0 0.0
    %2253 = vmatmul.mubr.f32.gmra.mrb[0].mxu0 %v1992
    %v2254 = vpop.f32.mrb[0].mxu0
    %v2255 = vadd.f32 %v2170, %v2254
    %v2256 = vpop.f32.mrb[0].mxu0
    %2257 = vmatprep.mubr.f32.mxu0 0.0
    %2258 = vmatmul.mubr.f32.gmra.mrb[0].mxu0 %v1993
    %v2259 = vpop.f32.mrb[0].mxu0
    %v2260 = vadd.f32 %v2175, %v2259
    %v2261 = vpop.f32.mrb[0].mxu0
    %2262 = vmatprep.mubr.f32.mxu0 0.0
    %2263 = vmatmul.mubr.f32.gmra.mrb[0].mxu0 %v1994
    %v2264 = vpop.f32.mrb[0].mxu0
    %v2265 = vadd.f32 %v2180, %v2264
    %v2266 = vpop.f32.mrb[0].mxu0
    %2267 = vdwg.mxu0
    %v2268 = vadd.f32 %v2250, %v874
    %v2269 = vadd.f32 %v2255, %v879
    %v2270 = vadd.f32 %v2260, %v884
    %v2271 = vadd.f32 %v2265, %v889
    %v2272 = vmax.f32 %v874, 0.0
    %v2273 = vmax.f32 %v879, 0.0
    %v2274 = vmax.f32 %v884, 0.0
    %v2275 = vmax.f32 %v889, 0.0
    %v2277 = vrot.slane %v2275, 7
    %v2282 = vrot.slane %v2272, 7
    %v2283 = vrot.slane %v2273, 7
    %v2284 = vsel %vm906, %v2282, %v2283
    %v2285 = vrot.slane %v2274, 7
    %v2286 = vsel %vm906, %v2283, %v2285
    %v2287 = vsel %vm906, %v2285, %v2277
    %v2292 = vsel %vm906, %v2277, %v2282
    %v2293 = vsel %vm934, %v2292, 0.0
    %v2294 = vsel %vm935, %v2284, 0.0
    %v2295 = vsel %vm936, %v2286, 0.0
    %v2296 = vsel %vm937, %v2287, 0.0
    %v2297 = vrot.slane %v2272, 1
    %v2298 = vrot.slane %v2273, 1
    %v2299 = vsel %vm946, %v2297, %v2298
    %v2300 = vrot.slane %v2274, 1
    %v2301 = vsel %vm946, %v2298, %v2300
    %v2302 = vrot.slane %v2275, 1
    %v2303 = vsel %vm946, %v2300, %v2302
    %v2309 = vsel %vm946, %v2302, %v2297
    %v2310 = vsel %vm976, %v2299, 0.0
    %v2311 = vsel %vm977, %v2301, 0.0
    %v2312 = vsel %vm978, %v2303, 0.0
    %v2313 = vsel %vm979, %v2309, 0.0
    %v2314 = vld [vmem:[#allocation16] sm:$0xf]
    %v2315 = vld [vmem:[#allocation16 + $0x4] sm:$0xf]
    %v2316 = vld [vmem:[#allocation16 + $0x8] sm:$0xf]
    %v2317 = vld [vmem:[#allocation16 + $0xc] sm:$0xf]
    %v2318 = vld [vmem:[#allocation16 + $0x10] sm:$0xf]
    %v2319 = vld [vmem:[#allocation16 + $0x14] sm:$0xf]
    %v2320 = vld [vmem:[#allocation16 + $0x18] sm:$0xf]
    %v2321 = vld [vmem:[#allocation16 + $0x1c] sm:$0xf]
    %v2322 = vld [vmem:[#allocation16 + $0x20] sm:$0xf]
    %v2323 = vld [vmem:[#allocation16 + $0x24] sm:$0xf]
    %v2324 = vld [vmem:[#allocation16 + $0x28] sm:$0xf]
    %v2325 = vld [vmem:[#allocation16 + $0x2c] sm:$0xf]
    %v2326 = vld [vmem:[#allocation16 + $0x30] sm:$0xf]
    %v2327 = vld [vmem:[#allocation16 + $0x34] sm:$0xf]
    %v2328 = vld [vmem:[#allocation16 + $0x38] sm:$0xf]
    %v2329 = vld [vmem:[#allocation16 + $0x3c] sm:$0xf]
    %v2330 = vld [vmem:[#allocation16 + $0x40] sm:$0xf]
    %v2331 = vld [vmem:[#allocation16 + $0x44] sm:$0xf]
    %v2332 = vld [vmem:[#allocation16 + $0x48] sm:$0xf]
    %v2333 = vld [vmem:[#allocation16 + $0x4c] sm:$0xf]
    %v2334 = vld [vmem:[#allocation16 + $0x50] sm:$0xf]
    %v2335 = vld [vmem:[#allocation16 + $0x54] sm:$0xf]
    %v2336 = vld [vmem:[#allocation16 + $0x58] sm:$0xf]
    %v2337 = vld [vmem:[#allocation16 + $0x5c] sm:$0xf]
    %v2338 = vld [vmem:[#allocation16 + $0x60] sm:$0xf]
    %v2339 = vld [vmem:[#allocation16 + $0x64] sm:$0xf]
    %v2340 = vld [vmem:[#allocation16 + $0x68] sm:$0xf]
    %v2341 = vld [vmem:[#allocation16 + $0x6c] sm:$0xf]
    %v2342 = vld [vmem:[#allocation16 + $0x70] sm:$0xf]
    %v2343 = vld [vmem:[#allocation16 + $0x74] sm:$0xf]
    %v2344 = vld [vmem:[#allocation16 + $0x78] sm:$0xf]
    %v2345 = vld [vmem:[#allocation16 + $0x7c] sm:$0xf]
    %v2346 = vld [vmem:[#allocation16 + $0x80] sm:$0xf]
    %v2347 = vld [vmem:[#allocation16 + $0x84] sm:$0xf]
    %v2348 = vld [vmem:[#allocation16 + $0x88] sm:$0xf]
    %v2349 = vld [vmem:[#allocation16 + $0x8c] sm:$0xf]
    %v2350 = vld [vmem:[#allocation16 + $0x90] sm:$0xf]
    %v2351 = vld [vmem:[#allocation16 + $0x94] sm:$0xf]
    %v2352 = vld [vmem:[#allocation16 + $0x98] sm:$0xf]
    %v2353 = vld [vmem:[#allocation16 + $0x9c] sm:$0xf]
    %v2354 = vld [vmem:[#allocation16 + $0xa0] sm:$0xf]
    %v2355 = vld [vmem:[#allocation16 + $0xa4] sm:$0xf]
    %v2356 = vld [vmem:[#allocation16 + $0xa8] sm:$0xf]
    %v2357 = vld [vmem:[#allocation16 + $0xac] sm:$0xf]
    %v2358 = vld [vmem:[#allocation16 + $0xb0] sm:$0xf]
    %v2359 = vld [vmem:[#allocation16 + $0xb4] sm:$0xf]
    %v2360 = vld [vmem:[#allocation16 + $0xb8] sm:$0xf]
    %v2361 = vld [vmem:[#allocation16 + $0xbc] sm:$0xf]
    %v2362 = vunpack.c.l.bf16 %v2314
    %v2363 = vunpack.c.l.bf16 %v2315
    %v2364 = vunpack.c.l.bf16 %v2316
    %v2365 = vunpack.c.l.bf16 %v2317
    %v2366 = vunpack.c.l.bf16 %v2318
    %v2367 = vunpack.c.l.bf16 %v2319
    %v2368 = vunpack.c.l.bf16 %v2320
    %v2369 = vunpack.c.l.bf16 %v2321
    %v2370 = vunpack.c.l.bf16 %v2322
    %v2371 = vunpack.c.l.bf16 %v2323
    %v2372 = vunpack.c.l.bf16 %v2324
    %v2373 = vunpack.c.l.bf16 %v2325
    %v2374 = vunpack.c.l.bf16 %v2326
    %v2375 = vunpack.c.l.bf16 %v2327
    %v2376 = vunpack.c.l.bf16 %v2328
    %v2377 = vunpack.c.l.bf16 %v2329
    %v2378 = vunpack.c.l.bf16 %v2330
    %v2379 = vunpack.c.l.bf16 %v2331
    %v2380 = vunpack.c.l.bf16 %v2332
    %v2381 = vunpack.c.l.bf16 %v2333
    %v2382 = vunpack.c.l.bf16 %v2334
    %v2383 = vunpack.c.l.bf16 %v2335
    %v2384 = vunpack.c.l.bf16 %v2336
    %v2385 = vunpack.c.l.bf16 %v2337
    %v2386 = vunpack.c.l.bf16 %v2338
    %v2387 = vunpack.c.l.bf16 %v2339
    %v2388 = vunpack.c.l.bf16 %v2340
    %v2389 = vunpack.c.l.bf16 %v2341
    %v2390 = vunpack.c.l.bf16 %v2342
    %v2391 = vunpack.c.l.bf16 %v2343
    %v2392 = vunpack.c.l.bf16 %v2344
    %v2393 = vunpack.c.l.bf16 %v2345
    %v2394 = vunpack.c.l.bf16 %v2346
    %v2395 = vunpack.c.l.bf16 %v2347
    %v2396 = vunpack.c.l.bf16 %v2348
    %v2397 = vunpack.c.l.bf16 %v2349
    %v2398 = vunpack.c.l.bf16 %v2350
    %v2399 = vunpack.c.l.bf16 %v2351
    %v2400 = vunpack.c.l.bf16 %v2352
    %v2401 = vunpack.c.l.bf16 %v2353
    %v2402 = vunpack.c.l.bf16 %v2354
    %v2403 = vunpack.c.l.bf16 %v2355
    %v2404 = vunpack.c.l.bf16 %v2356
    %v2405 = vunpack.c.l.bf16 %v2357
    %v2406 = vunpack.c.l.bf16 %v2358
    %v2407 = vunpack.c.l.bf16 %v2359
    %v2408 = vunpack.c.l.bf16 %v2360
    %v2409 = vunpack.c.l.bf16 %v2361
    %v2410 = vld [vmem:[%s19] sm:$0x1]
    %v2412 = vlaneseq
    %v2413 = vshrl.u32 %v2412, 7
    %v2414 = vsub.s32 0, %v2413
    %v2415 = vrot.slane %v2410, %v2414
    %2417 = vmatprep.subr.mxu0 0.0
    %2418 = vmatpush1.msra.mxu0 %v2362
    %2419 = vmatprep.subr.mxu0 0.0
    %2420 = vmatpush1.msra.mxu0 %v2363
    %2421 = vmatprep.subr.mxu0 0.0
    %2422 = vmatpush1.msra.mxu0 %v2364
    %2423 = vmatprep.subr.mxu0 0.0
    %2424 = vmatpush1.msra.mxu0 %v2365
    %2425 = vmatprep.subr.mxu0 0.0
    %2426 = vmatpush1.msra.mxu0 %v2366
    %2427 = vmatprep.subr.mxu0 0.0
    %2428 = vmatpush1.msra.mxu0 %v2367
    %2429 = vmatprep.subr.mxu0 0.0
    %2430 = vmatpush1.msra.mxu0 %v2368
    %2431 = vmatprep.subr.mxu0 0.0
    %2432 = vmatpush1.msra.mxu0 %v2369
    %2433 = vmatprep.subr.mxu0 0.0
    %2434 = vmatpush1.msra.mxu0 %v2370
    %2435 = vmatprep.subr.mxu0 0.0
    %2436 = vmatpush1.msra.mxu0 %v2371
    %2437 = vmatprep.subr.mxu0 0.0
    %2438 = vmatpush1.msra.mxu0 %v2372
    %2439 = vmatprep.subr.mxu0 0.0
    %2440 = vmatpush1.msra.mxu0 %v2373
    %2441 = vmatprep.subr.mxu0 0.0
    %2442 = vmatpush1.msra.mxu0 %v2374
    %2443 = vmatprep.subr.mxu0 0.0
    %2444 = vmatpush1.msra.mxu0 %v2375
    %2445 = vmatprep.subr.mxu0 0.0
    %2446 = vmatpush1.msra.mxu0 %v2376
    %2447 = vmatprep.subr.mxu0 0.0
    %2448 = vmatpush1.msra.mxu0 %v2377
    %2449 = vmatprep.subr.mxu0 0.0
    %2450 = vmatpush1.msra.mxu0 %v2378
    %2451 = vmatprep.subr.mxu0 0.0
    %2452 = vmatpush1.msra.mxu0 %v2379
    %2453 = vmatprep.subr.mxu0 0.0
    %2454 = vmatpush1.msra.mxu0 %v2380
    %2455 = vmatprep.subr.mxu0 0.0
    %2456 = vmatpush1.msra.mxu0 %v2381
    %2457 = vmatprep.subr.mxu0 0.0
    %2458 = vmatpush1.msra.mxu0 %v2382
    %2459 = vmatprep.subr.mxu0 0.0
    %2460 = vmatpush1.msra.mxu0 %v2383
    %2461 = vmatprep.subr.mxu0 0.0
    %2462 = vmatpush1.msra.mxu0 %v2384
    %2463 = vmatprep.subr.mxu0 0.0
    %2464 = vmatpush1.msra.mxu0 %v2385
    %2465 = vmatprep.subr.mxu0 0.0
    %2466 = vmatpush1.msra.mxu0 %v2386
    %2467 = vmatprep.subr.mxu0 0.0
    %2468 = vmatpush1.msra.mxu0 %v2387
    %2469 = vmatprep.subr.mxu0 0.0
    %2470 = vmatpush1.msra.mxu0 %v2388
    %2471 = vmatprep.subr.mxu0 0.0
    %2472 = vmatpush1.msra.mxu0 %v2389
    %2473 = vmatprep.subr.mxu0 0.0
    %2474 = vmatpush1.msra.mxu0 %v2390
    %2475 = vmatprep.subr.mxu0 0.0
    %2476 = vmatpush1.msra.mxu0 %v2391
    %2477 = vmatprep.subr.mxu0 0.0
    %2478 = vmatpush1.msra.mxu0 %v2392
    %2479 = vmatprep.subr.mxu0 0.0
    %2480 = vmatpush1.msra.mxu0 %v2393
    %2481 = vmatprep.mubr.f32.mxu0 %v2293
    %2482 = vmatmul.mubr.f32.gmra.mrb[0].mxu0 %v2272
    %v2483 = vpop.f32.mrb[0].mxu0
    %v2484 = vadd.f32 %v2415, %v2483
    %v2485 = vpop.f32.mrb[0].mxu0
    %2486 = vmatprep.mubr.f32.mxu0 %v2294
    %2487 = vmatmul.mubr.f32.gmra.mrb[0].mxu0 %v2273
    %v2488 = vpop.f32.mrb[0].mxu0
    %v2489 = vadd.f32 %v2415, %v2488
    %v2490 = vpop.f32.mrb[0].mxu0
    %2491 = vmatprep.mubr.f32.mxu0 %v2295
    %2492 = vmatmul.mubr.f32.gmra.mrb[0].mxu0 %v2274
    %v2493 = vpop.f32.mrb[0].mxu0
    %v2494 = vadd.f32 %v2415, %v2493
    %v2495 = vpop.f32.mrb[0].mxu0
    %2496 = vmatprep.mubr.f32.mxu0 %v2296
    %2497 = vmatmul.mubr.f32.gmra.mrb[0].mxu0 %v2275
    %v2498 = vpop.f32.mrb[0].mxu0
    %v2499 = vadd.f32 %v2415, %v2498
    %v2500 = vpop.f32.mrb[0].mxu0
    %2501 = vdwg.mxu0
    %2502 = vmatprep.subr.mxu0 0.0
    %2503 = vmatpush1.msra.mxu0 %v2394
    %2504 = vmatprep.subr.mxu0 0.0
    %2505 = vmatpush1.msra.mxu0 %v2395
    %2506 = vmatprep.subr.mxu0 0.0
    %2507 = vmatpush1.msra.mxu0 %v2396
    %2508 = vmatprep.subr.mxu0 0.0
    %2509 = vmatpush1.msra.mxu0 %v2397
    %2510 = vmatprep.subr.mxu0 0.0
    %2511 = vmatpush1.msra.mxu0 %v2398
    %2512 = vmatprep.subr.mxu0 0.0
    %2513 = vmatpush1.msra.mxu0 %v2399
    %2514 = vmatprep.subr.mxu0 0.0
    %2515 = vmatpush1.msra.mxu0 %v2400
    %2516 = vmatprep.subr.mxu0 0.0
    %2517 = vmatpush1.msra.mxu0 %v2401
    %2518 = vmatprep.subr.mxu0 0.0
    %2519 = vmatpush1.msra.mxu0 %v2402
    %2520 = vmatprep.subr.mxu0 0.0
    %2521 = vmatpush1.msra.mxu0 %v2403
    %2522 = vmatprep.subr.mxu0 0.0
    %2523 = vmatpush1.msra.mxu0 %v2404
    %2524 = vmatprep.subr.mxu0 0.0
    %2525 = vmatpush1.msra.mxu0 %v2405
    %2526 = vmatprep.subr.mxu0 0.0
    %2527 = vmatpush1.msra.mxu0 %v2406
    %2528 = vmatprep.subr.mxu0 0.0
    %2529 = vmatpush1.msra.mxu0 %v2407
    %2530 = vmatprep.subr.mxu0 0.0
    %2531 = vmatpush1.msra.mxu0 %v2408
    %2532 = vmatprep.subr.mxu0 0.0
    %2533 = vmatpush1.msra.mxu0 %v2409
    %2534 = vmatprep.subr.mxu0 0.0
    %2535 = vmatpush1.msra.mxu0 0.0
    %2536 = vmatprep.subr.mxu0 0.0
    %2537 = vmatpush1.msra.mxu0 0.0
    %2538 = vmatprep.subr.mxu0 0.0
    %2539 = vmatpush1.msra.mxu0 0.0
    %2540 = vmatprep.subr.mxu0 0.0
    %2541 = vmatpush1.msra.mxu0 0.0
    %2542 = vmatprep.subr.mxu0 0.0
    %2543 = vmatpush1.msra.mxu0 0.0
    %2544 = vmatprep.subr.mxu0 0.0
    %2545 = vmatpush1.msra.mxu0 0.0
    %2546 = vmatprep.subr.mxu0 0.0
    %2547 = vmatpush1.msra.mxu0 0.0
    %2548 = vmatprep.subr.mxu0 0.0
    %2549 = vmatpush1.msra.mxu0 0.0
    %2550 = vmatprep.subr.mxu0 0.0
    %2551 = vmatpush1.msra.mxu0 0.0
    %2552 = vmatprep.subr.mxu0 0.0
    %2553 = vmatpush1.msra.mxu0 0.0
    %2554 = vmatprep.subr.mxu0 0.0
    %2555 = vmatpush1.msra.mxu0 0.0
    %2556 = vmatprep.subr.mxu0 0.0
    %2557 = vmatpush1.msra.mxu0 0.0
    %2558 = vmatprep.subr.mxu0 0.0
    %2559 = vmatpush1.msra.mxu0 0.0
    %2560 = vmatprep.subr.mxu0 0.0
    %2561 = vmatpush1.msra.mxu0 0.0
    %2562 = vmatprep.subr.mxu0 0.0
    %2563 = vmatpush1.msra.mxu0 0.0
    %2564 = vmatprep.subr.mxu0 0.0
    %2565 = vmatpush1.msra.mxu0 0.0
    %2566 = vmatprep.mubr.f32.mxu0 0.0
    %2567 = vmatmul.mubr.f32.gmra.mrb[0].mxu0 %v2310
    %v2568 = vpop.f32.mrb[0].mxu0
    %v2569 = vadd.f32 %v2484, %v2568
    %v2570 = vpop.f32.mrb[0].mxu0
    %2571 = vmatprep.mubr.f32.mxu0 0.0
    %2572 = vmatmul.mubr.f32.gmra.mrb[0].mxu0 %v2311
    %v2573 = vpop.f32.mrb[0].mxu0
    %v2574 = vadd.f32 %v2489, %v2573
    %v2575 = vpop.f32.mrb[0].mxu0
    %2576 = vmatprep.mubr.f32.mxu0 0.0
    %2577 = vmatmul.mubr.f32.gmra.mrb[0].mxu0 %v2312
    %v2578 = vpop.f32.mrb[0].mxu0
    %v2579 = vadd.f32 %v2494, %v2578
    %v2580 = vpop.f32.mrb[0].mxu0
    %2581 = vmatprep.mubr.f32.mxu0 0.0
    %2582 = vmatmul.mubr.f32.gmra.mrb[0].mxu0 %v2313
    %v2583 = vpop.f32.mrb[0].mxu0
    %v2584 = vadd.f32 %v2499, %v2583
    %v2585 = vpop.f32.mrb[0].mxu0
    %2586 = vdwg.mxu0
    %v2587 = vmax.f32 %v2569, 0.0
    %v2588 = vmax.f32 %v2574, 0.0
    %v2589 = vmax.f32 %v2579, 0.0
    %v2590 = vmax.f32 %v2584, 0.0
    %v2592 = vrot.slane %v2590, 7
    %v2597 = vrot.slane %v2587, 7
    %v2598 = vrot.slane %v2588, 7
    %v2599 = vsel %vm906, %v2597, %v2598
    %v2600 = vrot.slane %v2589, 7
    %v2601 = vsel %vm906, %v2598, %v2600
    %v2602 = vsel %vm906, %v2600, %v2592
    %v2607 = vsel %vm906, %v2592, %v2597
    %v2608 = vsel %vm934, %v2607, 0.0
    %v2609 = vsel %vm935, %v2599, 0.0
    %v2610 = vsel %vm936, %v2601, 0.0
    %v2611 = vsel %vm937, %v2602, 0.0
    %v2612 = vrot.slane %v2587, 1
    %v2613 = vrot.slane %v2588, 1
    %v2614 = vsel %vm946, %v2612, %v2613
    %v2615 = vrot.slane %v2589, 1
    %v2616 = vsel %vm946, %v2613, %v2615
    %v2617 = vrot.slane %v2590, 1
    %v2618 = vsel %vm946, %v2615, %v2617
    %v2624 = vsel %vm946, %v2617, %v2612
    %v2625 = vsel %vm976, %v2614, 0.0
    %v2626 = vsel %vm977, %v2616, 0.0
    %v2627 = vsel %vm978, %v2618, 0.0
    %v2628 = vsel %vm979, %v2624, 0.0
    %v2629 = vld [vmem:[#allocation17] sm:$0xf]
    %v2630 = vld [vmem:[#allocation17 + $0x4] sm:$0xf]
    %v2631 = vld [vmem:[#allocation17 + $0x8] sm:$0xf]
    %v2632 = vld [vmem:[#allocation17 + $0xc] sm:$0xf]
    %v2633 = vld [vmem:[#allocation17 + $0x10] sm:$0xf]
    %v2634 = vld [vmem:[#allocation17 + $0x14] sm:$0xf]
    %v2635 = vld [vmem:[#allocation17 + $0x18] sm:$0xf]
    %v2636 = vld [vmem:[#allocation17 + $0x1c] sm:$0xf]
    %v2637 = vld [vmem:[#allocation17 + $0x20] sm:$0xf]
    %v2638 = vld [vmem:[#allocation17 + $0x24] sm:$0xf]
    %v2639 = vld [vmem:[#allocation17 + $0x28] sm:$0xf]
    %v2640 = vld [vmem:[#allocation17 + $0x2c] sm:$0xf]
    %v2641 = vld [vmem:[#allocation17 + $0x30] sm:$0xf]
    %v2642 = vld [vmem:[#allocation17 + $0x34] sm:$0xf]
    %v2643 = vld [vmem:[#allocation17 + $0x38] sm:$0xf]
    %v2644 = vld [vmem:[#allocation17 + $0x3c] sm:$0xf]
    %v2645 = vld [vmem:[#allocation17 + $0x40] sm:$0xf]
    %v2646 = vld [vmem:[#allocation17 + $0x44] sm:$0xf]
    %v2647 = vld [vmem:[#allocation17 + $0x48] sm:$0xf]
    %v2648 = vld [vmem:[#allocation17 + $0x4c] sm:$0xf]
    %v2649 = vld [vmem:[#allocation17 + $0x50] sm:$0xf]
    %v2650 = vld [vmem:[#allocation17 + $0x54] sm:$0xf]
    %v2651 = vld [vmem:[#allocation17 + $0x58] sm:$0xf]
    %v2652 = vld [vmem:[#allocation17 + $0x5c] sm:$0xf]
    %v2653 = vld [vmem:[#allocation17 + $0x60] sm:$0xf]
    %v2654 = vld [vmem:[#allocation17 + $0x64] sm:$0xf]
    %v2655 = vld [vmem:[#allocation17 + $0x68] sm:$0xf]
    %v2656 = vld [vmem:[#allocation17 + $0x6c] sm:$0xf]
    %v2657 = vld [vmem:[#allocation17 + $0x70] sm:$0xf]
    %v2658 = vld [vmem:[#allocation17 + $0x74] sm:$0xf]
    %v2659 = vld [vmem:[#allocation17 + $0x78] sm:$0xf]
    %v2660 = vld [vmem:[#allocation17 + $0x7c] sm:$0xf]
    %v2661 = vld [vmem:[#allocation17 + $0x80] sm:$0xf]
    %v2662 = vld [vmem:[#allocation17 + $0x84] sm:$0xf]
    %v2663 = vld [vmem:[#allocation17 + $0x88] sm:$0xf]
    %v2664 = vld [vmem:[#allocation17 + $0x8c] sm:$0xf]
    %v2665 = vld [vmem:[#allocation17 + $0x90] sm:$0xf]
    %v2666 = vld [vmem:[#allocation17 + $0x94] sm:$0xf]
    %v2667 = vld [vmem:[#allocation17 + $0x98] sm:$0xf]
    %v2668 = vld [vmem:[#allocation17 + $0x9c] sm:$0xf]
    %v2669 = vld [vmem:[#allocation17 + $0xa0] sm:$0xf]
    %v2670 = vld [vmem:[#allocation17 + $0xa4] sm:$0xf]
    %v2671 = vld [vmem:[#allocation17 + $0xa8] sm:$0xf]
    %v2672 = vld [vmem:[#allocation17 + $0xac] sm:$0xf]
    %v2673 = vld [vmem:[#allocation17 + $0xb0] sm:$0xf]
    %v2674 = vld [vmem:[#allocation17 + $0xb4] sm:$0xf]
    %v2675 = vld [vmem:[#allocation17 + $0xb8] sm:$0xf]
    %v2676 = vld [vmem:[#allocation17 + $0xbc] sm:$0xf]
    %v2677 = vunpack.c.l.bf16 %v2629
    %v2678 = vunpack.c.l.bf16 %v2630
    %v2679 = vunpack.c.l.bf16 %v2631
    %v2680 = vunpack.c.l.bf16 %v2632
    %v2681 = vunpack.c.l.bf16 %v2633
    %v2682 = vunpack.c.l.bf16 %v2634
    %v2683 = vunpack.c.l.bf16 %v2635
    %v2684 = vunpack.c.l.bf16 %v2636
    %v2685 = vunpack.c.l.bf16 %v2637
    %v2686 = vunpack.c.l.bf16 %v2638
    %v2687 = vunpack.c.l.bf16 %v2639
    %v2688 = vunpack.c.l.bf16 %v2640
    %v2689 = vunpack.c.l.bf16 %v2641
    %v2690 = vunpack.c.l.bf16 %v2642
    %v2691 = vunpack.c.l.bf16 %v2643
    %v2692 = vunpack.c.l.bf16 %v2644
    %v2693 = vunpack.c.l.bf16 %v2645
    %v2694 = vunpack.c.l.bf16 %v2646
    %v2695 = vunpack.c.l.bf16 %v2647
    %v2696 = vunpack.c.l.bf16 %v2648
    %v2697 = vunpack.c.l.bf16 %v2649
    %v2698 = vunpack.c.l.bf16 %v2650
    %v2699 = vunpack.c.l.bf16 %v2651
    %v2700 = vunpack.c.l.bf16 %v2652
    %v2701 = vunpack.c.l.bf16 %v2653
    %v2702 = vunpack.c.l.bf16 %v2654
    %v2703 = vunpack.c.l.bf16 %v2655
    %v2704 = vunpack.c.l.bf16 %v2656
    %v2705 = vunpack.c.l.bf16 %v2657
    %v2706 = vunpack.c.l.bf16 %v2658
    %v2707 = vunpack.c.l.bf16 %v2659
    %v2708 = vunpack.c.l.bf16 %v2660
    %v2709 = vunpack.c.l.bf16 %v2661
    %v2710 = vunpack.c.l.bf16 %v2662
    %v2711 = vunpack.c.l.bf16 %v2663
    %v2712 = vunpack.c.l.bf16 %v2664
    %v2713 = vunpack.c.l.bf16 %v2665
    %v2714 = vunpack.c.l.bf16 %v2666
    %v2715 = vunpack.c.l.bf16 %v2667
    %v2716 = vunpack.c.l.bf16 %v2668
    %v2717 = vunpack.c.l.bf16 %v2669
    %v2718 = vunpack.c.l.bf16 %v2670
    %v2719 = vunpack.c.l.bf16 %v2671
    %v2720 = vunpack.c.l.bf16 %v2672
    %v2721 = vunpack.c.l.bf16 %v2673
    %v2722 = vunpack.c.l.bf16 %v2674
    %v2723 = vunpack.c.l.bf16 %v2675
    %v2724 = vunpack.c.l.bf16 %v2676
    %v2725 = vld [vmem:[%s21] sm:$0x1]
    %v2727 = vlaneseq
    %v2728 = vshrl.u32 %v2727, 7
    %v2729 = vsub.s32 0, %v2728
    %v2730 = vrot.slane %v2725, %v2729
    %2732 = vmatprep.subr.mxu0 0.0
    %2733 = vmatpush1.msra.mxu0 %v2677
    %2734 = vmatprep.subr.mxu0 0.0
    %2735 = vmatpush1.msra.mxu0 %v2678
    %2736 = vmatprep.subr.mxu0 0.0
    %2737 = vmatpush1.msra.mxu0 %v2679
    %2738 = vmatprep.subr.mxu0 0.0
    %2739 = vmatpush1.msra.mxu0 %v2680
    %2740 = vmatprep.subr.mxu0 0.0
    %2741 = vmatpush1.msra.mxu0 %v2681
    %2742 = vmatprep.subr.mxu0 0.0
    %2743 = vmatpush1.msra.mxu0 %v2682
    %2744 = vmatprep.subr.mxu0 0.0
    %2745 = vmatpush1.msra.mxu0 %v2683
    %2746 = vmatprep.subr.mxu0 0.0
    %2747 = vmatpush1.msra.mxu0 %v2684
    %2748 = vmatprep.subr.mxu0 0.0
    %2749 = vmatpush1.msra.mxu0 %v2685
    %2750 = vmatprep.subr.mxu0 0.0
    %2751 = vmatpush1.msra.mxu0 %v2686
    %2752 = vmatprep.subr.mxu0 0.0
    %2753 = vmatpush1.msra.mxu0 %v2687
    %2754 = vmatprep.subr.mxu0 0.0
    %2755 = vmatpush1.msra.mxu0 %v2688
    %2756 = vmatprep.subr.mxu0 0.0
    %2757 = vmatpush1.msra.mxu0 %v2689
    %2758 = vmatprep.subr.mxu0 0.0
    %2759 = vmatpush1.msra.mxu0 %v2690
    %2760 = vmatprep.subr.mxu0 0.0
    %2761 = vmatpush1.msra.mxu0 %v2691
    %2762 = vmatprep.subr.mxu0 0.0
    %2763 = vmatpush1.msra.mxu0 %v2692
    %2764 = vmatprep.subr.mxu0 0.0
    %2765 = vmatpush1.msra.mxu0 %v2693
    %2766 = vmatprep.subr.mxu0 0.0
    %2767 = vmatpush1.msra.mxu0 %v2694
    %2768 = vmatprep.subr.mxu0 0.0
    %2769 = vmatpush1.msra.mxu0 %v2695
    %2770 = vmatprep.subr.mxu0 0.0
    %2771 = vmatpush1.msra.mxu0 %v2696
    %2772 = vmatprep.subr.mxu0 0.0
    %2773 = vmatpush1.msra.mxu0 %v2697
    %2774 = vmatprep.subr.mxu0 0.0
    %2775 = vmatpush1.msra.mxu0 %v2698
    %2776 = vmatprep.subr.mxu0 0.0
    %2777 = vmatpush1.msra.mxu0 %v2699
    %2778 = vmatprep.subr.mxu0 0.0
    %2779 = vmatpush1.msra.mxu0 %v2700
    %2780 = vmatprep.subr.mxu0 0.0
    %2781 = vmatpush1.msra.mxu0 %v2701
    %2782 = vmatprep.subr.mxu0 0.0
    %2783 = vmatpush1.msra.mxu0 %v2702
    %2784 = vmatprep.subr.mxu0 0.0
    %2785 = vmatpush1.msra.mxu0 %v2703
    %2786 = vmatprep.subr.mxu0 0.0
    %2787 = vmatpush1.msra.mxu0 %v2704
    %2788 = vmatprep.subr.mxu0 0.0
    %2789 = vmatpush1.msra.mxu0 %v2705
    %2790 = vmatprep.subr.mxu0 0.0
    %2791 = vmatpush1.msra.mxu0 %v2706
    %2792 = vmatprep.subr.mxu0 0.0
    %2793 = vmatpush1.msra.mxu0 %v2707
    %2794 = vmatprep.subr.mxu0 0.0
    %2795 = vmatpush1.msra.mxu0 %v2708
    %2796 = vmatprep.mubr.f32.mxu0 %v2608
    %2797 = vmatmul.mubr.f32.gmra.mrb[0].mxu0 %v2587
    %v2798 = vpop.f32.mrb[0].mxu0
    %v2799 = vadd.f32 %v2730, %v2798
    %v2800 = vpop.f32.mrb[0].mxu0
    %2801 = vmatprep.mubr.f32.mxu0 %v2609
    %2802 = vmatmul.mubr.f32.gmra.mrb[0].mxu0 %v2588
    %v2803 = vpop.f32.mrb[0].mxu0
    %v2804 = vadd.f32 %v2730, %v2803
    %v2805 = vpop.f32.mrb[0].mxu0
    %2806 = vmatprep.mubr.f32.mxu0 %v2610
    %2807 = vmatmul.mubr.f32.gmra.mrb[0].mxu0 %v2589
    %v2808 = vpop.f32.mrb[0].mxu0
    %v2809 = vadd.f32 %v2730, %v2808
    %v2810 = vpop.f32.mrb[0].mxu0
    %2811 = vmatprep.mubr.f32.mxu0 %v2611
    %2812 = vmatmul.mubr.f32.gmra.mrb[0].mxu0 %v2590
    %v2813 = vpop.f32.mrb[0].mxu0
    %v2814 = vadd.f32 %v2730, %v2813
    %v2815 = vpop.f32.mrb[0].mxu0
    %2816 = vdwg.mxu0
    %2817 = vmatprep.subr.mxu0 0.0
    %2818 = vmatpush1.msra.mxu0 %v2709
    %2819 = vmatprep.subr.mxu0 0.0
    %2820 = vmatpush1.msra.mxu0 %v2710
    %2821 = vmatprep.subr.mxu0 0.0
    %2822 = vmatpush1.msra.mxu0 %v2711
    %2823 = vmatprep.subr.mxu0 0.0
    %2824 = vmatpush1.msra.mxu0 %v2712
    %2825 = vmatprep.subr.mxu0 0.0
    %2826 = vmatpush1.msra.mxu0 %v2713
    %2827 = vmatprep.subr.mxu0 0.0
    %2828 = vmatpush1.msra.mxu0 %v2714
    %2829 = vmatprep.subr.mxu0 0.0
    %2830 = vmatpush1.msra.mxu0 %v2715
    %2831 = vmatprep.subr.mxu0 0.0
    %2832 = vmatpush1.msra.mxu0 %v2716
    %2833 = vmatprep.subr.mxu0 0.0
    %2834 = vmatpush1.msra.mxu0 %v2717
    %2835 = vmatprep.subr.mxu0 0.0
    %2836 = vmatpush1.msra.mxu0 %v2718
    %2837 = vmatprep.subr.mxu0 0.0
    %2838 = vmatpush1.msra.mxu0 %v2719
    %2839 = vmatprep.subr.mxu0 0.0
    %2840 = vmatpush1.msra.mxu0 %v2720
    %2841 = vmatprep.subr.mxu0 0.0
    %2842 = vmatpush1.msra.mxu0 %v2721
    %2843 = vmatprep.subr.mxu0 0.0
    %2844 = vmatpush1.msra.mxu0 %v2722
    %2845 = vmatprep.subr.mxu0 0.0
    %2846 = vmatpush1.msra.mxu0 %v2723
    %2847 = vmatprep.subr.mxu0 0.0
    %2848 = vmatpush1.msra.mxu0 %v2724
    %2849 = vmatprep.subr.mxu0 0.0
    %2850 = vmatpush1.msra.mxu0 0.0
    %2851 = vmatprep.subr.mxu0 0.0
    %2852 = vmatpush1.msra.mxu0 0.0
    %2853 = vmatprep.subr.mxu0 0.0
    %2854 = vmatpush1.msra.mxu0 0.0
    %2855 = vmatprep.subr.mxu0 0.0
    %2856 = vmatpush1.msra.mxu0 0.0
    %2857 = vmatprep.subr.mxu0 0.0
    %2858 = vmatpush1.msra.mxu0 0.0
    %2859 = vmatprep.subr.mxu0 0.0
    %2860 = vmatpush1.msra.mxu0 0.0
    %2861 = vmatprep.subr.mxu0 0.0
    %2862 = vmatpush1.msra.mxu0 0.0
    %2863 = vmatprep.subr.mxu0 0.0
    %2864 = vmatpush1.msra.mxu0 0.0
    %2865 = vmatprep.subr.mxu0 0.0
    %2866 = vmatpush1.msra.mxu0 0.0
    %2867 = vmatprep.subr.mxu0 0.0
    %2868 = vmatpush1.msra.mxu0 0.0
    %2869 = vmatprep.subr.mxu0 0.0
    %2870 = vmatpush1.msra.mxu0 0.0
    %2871 = vmatprep.subr.mxu0 0.0
    %2872 = vmatpush1.msra.mxu0 0.0
    %2873 = vmatprep.subr.mxu0 0.0
    %2874 = vmatpush1.msra.mxu0 0.0
    %2875 = vmatprep.subr.mxu0 0.0
    %2876 = vmatpush1.msra.mxu0 0.0
    %2877 = vmatprep.subr.mxu0 0.0
    %2878 = vmatpush1.msra.mxu0 0.0
    %2879 = vmatprep.subr.mxu0 0.0
    %2880 = vmatpush1.msra.mxu0 0.0
    %2881 = vmatprep.mubr.f32.mxu0 0.0
    %2882 = vmatmul.mubr.f32.gmra.mrb[0].mxu0 %v2625
    %v2883 = vpop.f32.mrb[0].mxu0
    %v2884 = vadd.f32 %v2799, %v2883
    %v2885 = vpop.f32.mrb[0].mxu0
    %2886 = vmatprep.mubr.f32.mxu0 0.0
    %2887 = vmatmul.mubr.f32.gmra.mrb[0].mxu0 %v2626
    %v2888 = vpop.f32.mrb[0].mxu0
    %v2889 = vadd.f32 %v2804, %v2888
    %v2890 = vpop.f32.mrb[0].mxu0
    %2891 = vmatprep.mubr.f32.mxu0 0.0
    %2892 = vmatmul.mubr.f32.gmra.mrb[0].mxu0 %v2627
    %v2893 = vpop.f32.mrb[0].mxu0
    %v2894 = vadd.f32 %v2809, %v2893
    %v2895 = vpop.f32.mrb[0].mxu0
    %2896 = vmatprep.mubr.f32.mxu0 0.0
    %2897 = vmatmul.mubr.f32.gmra.mrb[0].mxu0 %v2628
    %v2898 = vpop.f32.mrb[0].mxu0
    %v2899 = vadd.f32 %v2814, %v2898
    %v2900 = vpop.f32.mrb[0].mxu0
    %2901 = vdwg.mxu0
    %v2902 = vadd.f32 %v537, %v2884
    %v2903 = vadd.f32 %v542, %v2889
    %v2904 = vadd.f32 %v547, %v2894
    %v2905 = vadd.f32 %v552, %v2899
    %2910 = vrot.lane.b32.xlu0 %v537, 8
    %v2911 = vpop.permute.xlu0 %2910
    %2912 = vrot.lane.b32.xlu0 %v542, 8
    %v2913 = vpop.permute.xlu0 %2912
    %2914 = vrot.lane.b32.xlu0 %v547, 8
    %v2915 = vpop.permute.xlu0 %2914
    %2916 = vrot.lane.b32.xlu0 %v552, 8
    %v2917 = vpop.permute.xlu0 %2916
    %v2922 = vsel %vm1594, %v2911, -1e+30
    %v2923 = vsel %vm1594, %v2913, -1e+30
    %v2924 = vsel %vm1594, %v2915, -1e+30
    %v2925 = vsel %vm1594, %v2917, -1e+30
    %2926 = vrot.lane.b32.xlu0 %v537, 120
    %v2927 = vpop.permute.xlu0 %2926
    %2928 = vrot.lane.b32.xlu0 %v542, 120
    %v2929 = vpop.permute.xlu0 %2928
    %2930 = vrot.lane.b32.xlu0 %v547, 120
    %v2931 = vpop.permute.xlu0 %2930
    %2932 = vrot.lane.b32.xlu0 %v552, 120
    %v2933 = vpop.permute.xlu0 %2932
    %v2938 = vsel %vm1617, %v2927, -1e+30
    %v2939 = vsel %vm1617, %v2929, -1e+30
    %v2940 = vsel %vm1617, %v2931, -1e+30
    %v2941 = vsel %vm1617, %v2933, -1e+30
    %v2942 = vmax.f32 %v2922, %v2938
    %v2943 = vmax.f32 %v2923, %v2939
    %v2944 = vmax.f32 %v2924, %v2940
    %v2945 = vmax.f32 %v2925, %v2941
    %v2946 = vmax.f32 %v537, %v2942
    %v2947 = vmax.f32 %v542, %v2943
    %v2948 = vmax.f32 %v547, %v2944
    %v2949 = vmax.f32 %v552, %v2945
    %v2951 = vrot.slane %v2949, 7
    %v2956 = vrot.slane %v2946, 7
    %v2957 = vrot.slane %v2947, 7
    %v2958 = vsel %vm906, %v2956, %v2957
    %v2959 = vrot.slane %v2948, 7
    %v2960 = vsel %vm906, %v2957, %v2959
    %v2961 = vsel %vm906, %v2959, %v2951
    %v2966 = vsel %vm906, %v2951, %v2956
    %v2967 = vsel %vm934, %v2966, -1e+30
    %v2968 = vsel %vm935, %v2958, -1e+30
    %v2969 = vsel %vm936, %v2960, -1e+30
    %v2970 = vsel %vm937, %v2961, -1e+30
    %v2971 = vrot.slane %v2946, 1
    %v2972 = vrot.slane %v2947, 1
    %v2973 = vsel %vm946, %v2971, %v2972
    %v2974 = vrot.slane %v2948, 1
    %v2975 = vsel %vm946, %v2972, %v2974
    %v2976 = vrot.slane %v2949, 1
    %v2977 = vsel %vm946, %v2974, %v2976
    %v2983 = vsel %vm946, %v2976, %v2971
    %v2984 = vsel %vm976, %v2973, -1e+30
    %v2985 = vsel %vm977, %v2975, -1e+30
    %v2986 = vsel %vm978, %v2977, -1e+30
    %v2987 = vsel %vm979, %v2983, -1e+30
    %v2988 = vmax.f32 %v2967, %v2984
    %v2989 = vmax.f32 %v2968, %v2985
    %v2990 = vmax.f32 %v2969, %v2986
    %v2991 = vmax.f32 %v2970, %v2987
    %v2992 = vmax.f32 %v2946, %v2988
    %v2993 = vmax.f32 %v2947, %v2989
    %v2994 = vmax.f32 %v2948, %v2990
    %v2995 = vmax.f32 %v2949, %v2991
    %v2996 = vadd.f32 %v2992, %v1676
    %v2997 = vadd.f32 %v2993, %v1677
    %v2998 = vadd.f32 %v2994, %v1678
    %v2999 = vadd.f32 %v2995, %v1679
    %3000 = vst [vmem:[#allocation19] sm:$0xff] %v1676
    %3001 = vst [vmem:[#allocation19 + $0x8] sm:$0xff] %v2268
    %3002 = vst [vmem:[#allocation19 + $0x10] sm:$0xff] %v2902
    %3003 = vst [vmem:[#allocation19 + $0x18] sm:$0xff] %v2996
    %3004 = vst [vmem:[#allocation19 + $0x20] sm:$0xff] %v1677
    %3005 = vst [vmem:[#allocation19 + $0x28] sm:$0xff] %v2269
    %3006 = vst [vmem:[#allocation19 + $0x30] sm:$0xff] %v2903
    %3007 = vst [vmem:[#allocation19 + $0x38] sm:$0xff] %v2997
    %3008 = vst [vmem:[#allocation19 + $0x40] sm:$0xff] %v1678
    %3009 = vst [vmem:[#allocation19 + $0x48] sm:$0xff] %v2270
    %3010 = vst [vmem:[#allocation19 + $0x50] sm:$0xff] %v2904
    %3011 = vst [vmem:[#allocation19 + $0x58] sm:$0xff] %v2998
    %3012 = vst [vmem:[#allocation19 + $0x60] sm:$0xff] %v1679
    %3013 = vst [vmem:[#allocation19 + $0x68] sm:$0xff] %v2271
    %3014 = vst [vmem:[#allocation19 + $0x70] sm:$0xff] %v2905
    %3015 = vst [vmem:[#allocation19 + $0x78] sm:$0xff] %v2999
    // Predicated region
    $region130: #{tpu_custom_call.1} parent=1 // pred_check
      _
    $region131: #{tpu_custom_call.1} parent=1 // pred_check_branch
      %3017 = sbr.rel (0) target = $region133
    $region132: #{tpu_custom_call.1} parent=1 // pred_region
      %s3019 = ssub.s32 2048, 2048
      %3020 = vsyncadd [#allocation4], %s3019
      %s3021 = sshll.u32 [#allocation19], 4
      %s3022 = int_to_ptr.vmem [resolvable:$true] %s3021
      %3027 = dma.vmem_to_hbm [thread:$0]  %s3022, 2048, %s22, [#allocation4], 512, 512, 32
    $region133: #{tpu_custom_call.1} parent=1 // pred_fallthru
      _
    // Predicated region
    $region134: #{tpu_custom_call.1} parent=1 // pred_check
      _
    $region135: #{tpu_custom_call.1} parent=1 // pred_check_branch
      %3029 = sbr.rel (0) target = $region137
    $region136: #{tpu_custom_call.1} parent=1 // pred_region
      %3030 = dma.done [#allocation4], 2048
    $region137: #{tpu_custom_call.1} parent=1 // pred_fallthru
      _
    %3031 = vsyncpa [#allocation3], 1
    %3032 = vsyncpa [#allocation6], 1
    %3033 = vsyncpa [#allocation9], 1
    %3034 = vsyncpa [#allocation12], 1
    %3035 = vsyncpa [#allocation15], 1
    %3036 = vsyncpa [#allocation18], 1
    %3037 = vsyncpa [#allocation4], 1

// kernel: tpu_custom_call.1
$region0: #{tpu_custom_call.1}
  #allocation0 [shape = 'u32[]', space=smem, size = 0x4, offset = 0x4, fixed_abs, tag = 'smem constant byte address 0x4 - core index']
  #allocation1 [shape = 'u32[144,128]{1,0:T(1,128)}', space=vmem, size = 0x12000, scoped, tag = 'internal scratch']
  %s0 = inlined_call_operand.hbm [shape: f32[32,512], index: 0, kind: input, shape index: {}]
  %s1 = inlined_call_operand.hbm [shape: f32[32,512], index: 1, kind: input, shape index: {}]
  %s2 = inlined_call_operand.hbm [shape: bf16[512,128], index: 2, kind: input, shape index: {}]
  %s3 = inlined_call_operand.vmem [shape: f32[1,128], index: 3, kind: input, shape index: {}]
  %s4 = inlined_call_operand.hbm [shape: bf16[512,128], index: 4, kind: input, shape index: {}]
  %s5 = inlined_call_operand.vmem [shape: f32[1,128], index: 5, kind: input, shape index: {}]
  %s6 = inlined_call_operand.vmem [shape: f32[32,1], index: 6, kind: input, shape index: {}]
  %s7 = inlined_call_operand.vmem [shape: f32[32,1], index: 7, kind: input, shape index: {}]
  %s8 = inlined_call_operand.vmem [shape: f32[1,128], index: 8, kind: input, shape index: {}]
  %s9 = inlined_call_operand.vmem [shape: f32[1,128], index: 9, kind: input, shape index: {}]
  %s10 = inlined_call_operand.hbm [shape: bf16[384,128], index: 10, kind: input, shape index: {}]
  %s11 = inlined_call_operand.vmem [shape: f32[1,128], index: 11, kind: input, shape index: {}]
  %s12 = inlined_call_operand.hbm [shape: bf16[384,128], index: 12, kind: input, shape index: {}]
  %s13 = inlined_call_operand.vmem [shape: f32[1,128], index: 13, kind: input, shape index: {}]
  %s14 = inlined_call_operand.hbm [shape: bf16[384,128], index: 14, kind: input, shape index: {}]
  %s15 = inlined_call_operand.vmem [shape: f32[1,128], index: 15, kind: input, shape index: {}]
  %s16 = inlined_call_operand.hbm [shape: bf16[384,128], index: 16, kind: input, shape index: {}]
  %s17 = inlined_call_operand.vmem [shape: f32[1,128], index: 17, kind: input, shape index: {}]
  %s18 = inlined_call_operand.hbm [shape: bf16[384,128], index: 18, kind: input, shape index: {}]
  %s19 = inlined_call_operand.vmem [shape: f32[1,128], index: 19, kind: input, shape index: {}]
  %s20 = inlined_call_operand.hbm [shape: bf16[384,128], index: 20, kind: input, shape index: {}]
  %s21 = inlined_call_operand.vmem [shape: f32[1,128], index: 21, kind: input, shape index: {}]
  %s22 = inlined_call_operand.hbm [shape: f32[32,512], index: 22, kind: output, shape index: {}]
  %s23 = sld [smem:[#allocation0]]
  $region138: #{tpu_custom_call.1} parent=0
    _
  %s25 = ssub.s32 1, %s23
  %s26 = scalar_select 0, %s25, %s23
  $region1: #{tpu_custom_call.1} parent=0
    #allocation2 [shape = 'u8[65536]{0}', space=vmem, size = 0x10000, scoped, tag = 'input window, operand 0, single buffered']
    #allocation3 [shape = 's32[1]{0}', space=sflag, size = 0x4, scoped, tag = 'scoped memory for tpu_custom_call.1']
    #allocation4 [shape = 's32[1]{0}', space=sflag, size = 0x4, scoped, tag = 'scoped memory for tpu_custom_call.1']
    #allocation5 [shape = 'u8[65536]{0}', space=vmem, size = 0x10000, scoped, tag = 'input window, operand 1, single buffered']
    #allocation6 [shape = 's32[1]{0}', space=sflag, size = 0x4, scoped, tag = 'scoped memory for tpu_custom_call.1']
    #allocation7 [shape = 'u8[131072]{0}', space=vmem, size = 0x20000, scoped, tag = 'input window, operand 2, single buffered']
    #allocation8 [shape = 'u8[131072]{0}', space=vmem, size = 0x20000, scoped, tag = 'input window, operand 4, single buffered']
    #allocation9 [shape = 's32[1]{0}', space=sflag, size = 0x4, scoped, tag = 'scoped memory for tpu_custom_call.1']
    #allocation10 [shape = 'u8[98304]{0}', space=vmem, size = 0x18000, scoped, tag = 'input window, operand 10, single buffered']
    #allocation11 [shape = 'u8[98304]{0}', space=vmem, size = 0x18000, scoped, tag = 'input window, operand 12, single buffered']
    #allocation12 [shape = 's32[1]{0}', space=sflag, size = 0x4, scoped, tag = 'scoped memory for tpu_custom_call.1']
    #allocation13 [shape = 'u8[98304]{0}', space=vmem, size = 0x18000, scoped, tag = 'input window, operand 14, single buffered']
    #allocation14 [shape = 'u8[98304]{0}', space=vmem, size = 0x18000, scoped, tag = 'input window, operand 16, single buffered']
    #allocation15 [shape = 's32[1]{0}', space=sflag, size = 0x4, scoped, tag = 'scoped memory for tpu_custom_call.1']
    #allocation16 [shape = 'u8[98304]{0}', space=vmem, size = 0x18000, scoped, tag = 'input window, operand 18, single buffered']
    #allocation17 [shape = 'u8[98304]{0}', space=vmem, size = 0x18000, scoped, tag = 'input window, operand 20, single buffered']
    #allocation18 [shape = 's32[1]{0}', space=sflag, size = 0x4, scoped, tag = 'scoped memory for tpu_custom_call.1']
    #allocation19 [shape = 'u8[65536]{0}', space=vmem, size = 0x10000, scoped, tag = 'output window, operand 0, single buffered']
    %27 = vsyncpa [#allocation3], 0
    %28 = vsyncpa [#allocation6], 0
    %29 = vsyncpa [#allocation9], 0
    %30 = vsyncpa [#allocation12], 0
    %31 = vsyncpa [#allocation15], 0
    %32 = vsyncpa [#allocation18], 0
    %33 = vsyncpa [#allocation4], 0
    // Predicated region
    $region2: #{tpu_custom_call.1} parent=1 // pred_check
      _
    $region3: #{tpu_custom_call.1} parent=1 // pred_check_branch
      %35 = sbr.rel (0) target = $region5
    $region4: #{tpu_custom_call.1} parent=1 // pred_region
      %s37 = ssub.s32 2048, 2048
      %38 = vsyncadd [#allocation3], %s37
      %s39 = sshll.u32 [#allocation2], 4
      %s40 = int_to_ptr.vmem [resolvable:$true] %s39
      %45 = dma.hbm_to_vmem [thread:$0]  %s0, 2048, %s40, [#allocation3], 512, 512, 32
    $region5: #{tpu_custom_call.1} parent=1 // pred_fallthru
      _
    // Predicated region
    $region6: #{tpu_custom_call.1} parent=1 // pred_check
      _
    $region7: #{tpu_custom_call.1} parent=1 // pred_check_branch
      %47 = sbr.rel (0) target = $region9
    $region8: #{tpu_custom_call.1} parent=1 // pred_region
      %s49 = ssub.s32 2048, 2048
      %50 = vsyncadd [#allocation6], %s49
      %s51 = sshll.u32 [#allocation5], 4
      %s52 = int_to_ptr.vmem [resolvable:$true] %s51
      %57 = dma.hbm_to_vmem [thread:$0]  %s1, 2048, %s52, [#allocation6], 512, 512, 32
    $region9: #{tpu_custom_call.1} parent=1 // pred_fallthru
      _
    // Predicated region
    $region10: #{tpu_custom_call.1} parent=1 // pred_check
      _
    $region11: #{tpu_custom_call.1} parent=1 // pred_check_branch
      %59 = sbr.rel (0) target = $region13
    $region12: #{tpu_custom_call.1} parent=1 // pred_region
      %s61 = ssub.s32 4096, 4096
      %62 = vsyncadd [#allocation6], %s61
      %s63 = sshll.u32 [#allocation7], 4
      %s64 = int_to_ptr.vmem [resolvable:$true] %s63
      %69 = dma.hbm_to_vmem [thread:$0]  %s2, 4096, %s64, [#allocation6], 64, 64, 4
    $region13: #{tpu_custom_call.1} parent=1 // pred_fallthru
      _
    // Predicated region
    $region14: #{tpu_custom_call.1} parent=1 // pred_check
      _
    $region15: #{tpu_custom_call.1} parent=1 // pred_check_branch
      %71 = sbr.rel (0) target = $region17
    $region16: #{tpu_custom_call.1} parent=1 // pred_region
      _
    $region17: #{tpu_custom_call.1} parent=1 // pred_fallthru
      _
    // Predicated region
    $region18: #{tpu_custom_call.1} parent=1 // pred_check
      _
    $region19: #{tpu_custom_call.1} parent=1 // pred_check_branch
      %73 = sbr.rel (0) target = $region21
    $region20: #{tpu_custom_call.1} parent=1 // pred_region
      %s75 = ssub.s32 4096, 4096
      %76 = vsyncadd [#allocation9], %s75
      %s77 = sshll.u32 [#allocation8], 4
      %s78 = int_to_ptr.vmem [resolvable:$true] %s77
      %83 = dma.hbm_to_vmem [thread:$0]  %s4, 4096, %s78, [#allocation9], 64, 64, 4
    $region21: #{tpu_custom_call.1} parent=1 // pred_fallthru
      _
    // Predicated region
    $region22: #{tpu_custom_call.1} parent=1 // pred_check
      _
    $region23: #{tpu_custom_call.1} parent=1 // pred_check_branch
      %85 = sbr.rel (0) target = $region25
    $region24: #{tpu_custom_call.1} parent=1 // pred_region
      _
    $region25: #{tpu_custom_call.1} parent=1 // pred_fallthru
      _
    // Predicated region
    $region26: #{tpu_custom_call.1} parent=1 // pred_check
      _
    $region27: #{tpu_custom_call.1} parent=1 // pred_check_branch
      %87 = sbr.rel (0) target = $region29
    $region28: #{tpu_custom_call.1} parent=1 // pred_region
      _
    $region29: #{tpu_custom_call.1} parent=1 // pred_fallthru
      _
    // Predicated region
    $region30: #{tpu_custom_call.1} parent=1 // pred_check
      _
    $region31: #{tpu_custom_call.1} parent=1 // pred_check_branch
      %89 = sbr.rel (0) target = $region33
    $region32: #{tpu_custom_call.1} parent=1 // pred_region
      _
    $region33: #{tpu_custom_call.1} parent=1 // pred_fallthru
      _
    // Predicated region
    $region34: #{tpu_custom_call.1} parent=1 // pred_check
      _
    $region35: #{tpu_custom_call.1} parent=1 // pred_check_branch
      %91 = sbr.rel (0) target = $region37
    $region36: #{tpu_custom_call.1} parent=1 // pred_region
      _
    $region37: #{tpu_custom_call.1} parent=1 // pred_fallthru
      _
    // Predicated region
    $region38: #{tpu_custom_call.1} parent=1 // pred_check
      _
    $region39: #{tpu_custom_call.1} parent=1 // pred_check_branch
      %93 = sbr.rel (0) target = $region41
    $region40: #{tpu_custom_call.1} parent=1 // pred_region
      _
    $region41: #{tpu_custom_call.1} parent=1 // pred_fallthru
      _
    // Predicated region
    $region42: #{tpu_custom_call.1} parent=1 // pred_check
      _
    $region43: #{tpu_custom_call.1} parent=1 // pred_check_branch
      %95 = sbr.rel (0) target = $region45
    $region44: #{tpu_custom_call.1} parent=1 // pred_region
      %s97 = ssub.s32 3072, 3072
      %98 = vsyncadd [#allocation9], %s97
      %s99 = sshll.u32 [#allocation10], 4
      %s100 = int_to_ptr.vmem [resolvable:$true] %s99
      %105 = dma.hbm_to_vmem [thread:$0]  %s10, 3072, %s100, [#allocation9], 64, 64, 4
    $region45: #{tpu_custom_call.1} parent=1 // pred_fallthru
      _
    // Predicated region
    $region46: #{tpu_custom_call.1} parent=1 // pred_check
      _
    $region47: #{tpu_custom_call.1} parent=1 // pred_check_branch
      %107 = sbr.rel (0) target = $region49
    $region48: #{tpu_custom_call.1} parent=1 // pred_region
      _
    $region49: #{tpu_custom_call.1} parent=1 // pred_fallthru
      _
    // Predicated region
    $region50: #{tpu_custom_call.1} parent=1 // pred_check
      _
    $region51: #{tpu_custom_call.1} parent=1 // pred_check_branch
      %109 = sbr.rel (0) target = $region53
    $region52: #{tpu_custom_call.1} parent=1 // pred_region
      %s111 = ssub.s32 3072, 3072
      %112 = vsyncadd [#allocation12], %s111
      %s113 = sshll.u32 [#allocation11], 4
      %s114 = int_to_ptr.vmem [resolvable:$true] %s113
      %119 = dma.hbm_to_vmem [thread:$0]  %s12, 3072, %s114, [#allocation12], 64, 64, 4
    $region53: #{tpu_custom_call.1} parent=1 // pred_fallthru
      _
    // Predicated region
    $region54: #{tpu_custom_call.1} parent=1 // pred_check
      _
    $region55: #{tpu_custom_call.1} parent=1 // pred_check_branch
      %121 = sbr.rel (0) target = $region57
    $region56: #{tpu_custom_call.1} parent=1 // pred_region
      _
    $region57: #{tpu_custom_call.1} parent=1 // pred_fallthru
      _
    // Predicated region
    $region58: #{tpu_custom_call.1} parent=1 // pred_check
      _
    $region59: #{tpu_custom_call.1} parent=1 // pred_check_branch
      %123 = sbr.rel (0) target = $region61
    $region60: #{tpu_custom_call.1} parent=1 // pred_region
      %s125 = ssub.s32 3072, 3072
      %126 = vsyncadd [#allocation12], %s125
      %s127 = sshll.u32 [#allocation13], 4
      %s128 = int_to_ptr.vmem [resolvable:$true] %s127
      %133 = dma.hbm_to_vmem [thread:$0]  %s14, 3072, %s128, [#allocation12], 64, 64, 4
    $region61: #{tpu_custom_call.1} parent=1 // pred_fallthru
      _
    // Predicated region
    $region62: #{tpu_custom_call.1} parent=1 // pred_check
      _
    $region63: #{tpu_custom_call.1} parent=1 // pred_check_branch
      %135 = sbr.rel (0) target = $region65
    $region64: #{tpu_custom_call.1} parent=1 // pred_region
      _
    $region65: #{tpu_custom_call.1} parent=1 // pred_fallthru
      _
    // Predicated region
    $region66: #{tpu_custom_call.1} parent=1 // pred_check
      _
    $region67: #{tpu_custom_call.1} parent=1 // pred_check_branch
      %137 = sbr.rel (0) target = $region69
    $region68: #{tpu_custom_call.1} parent=1 // pred_region
      %s139 = ssub.s32 3072, 3072
      %140 = vsyncadd [#allocation15], %s139
      %s141 = sshll.u32 [#allocation14], 4
      %s142 = int_to_ptr.vmem [resolvable:$true] %s141
      %147 = dma.hbm_to_vmem [thread:$0]  %s16, 3072, %s142, [#allocation15], 64, 64, 4
    $region69: #{tpu_custom_call.1} parent=1 // pred_fallthru
      _
    // Predicated region
    $region70: #{tpu_custom_call.1} parent=1 // pred_check
      _
    $region71: #{tpu_custom_call.1} parent=1 // pred_check_branch
      %149 = sbr.rel (0) target = $region73
    $region72: #{tpu_custom_call.1} parent=1 // pred_region
      _
    $region73: #{tpu_custom_call.1} parent=1 // pred_fallthru
      _
    // Predicated region
    $region74: #{tpu_custom_call.1} parent=1 // pred_check
      _
    $region75: #{tpu_custom_call.1} parent=1 // pred_check_branch
      %151 = sbr.rel (0) target = $region77
    $region76: #{tpu_custom_call.1} parent=1 // pred_region
      %s153 = ssub.s32 3072, 3072
      %154 = vsyncadd [#allocation15], %s153
      %s155 = sshll.u32 [#allocation16], 4
      %s156 = int_to_ptr.vmem [resolvable:$true] %s155
      %161 = dma.hbm_to_vmem [thread:$0]  %s18, 3072, %s156, [#allocation15], 64, 64, 4
    $region77: #{tpu_custom_call.1} parent=1 // pred_fallthru
      _
    // Predicated region
    $region78: #{tpu_custom_call.1} parent=1 // pred_check
      _
    $region79: #{tpu_custom_call.1} parent=1 // pred_check_branch
      %163 = sbr.rel (0) target = $region81
    $region80: #{tpu_custom_call.1} parent=1 // pred_region
      _
    $region81: #{tpu_custom_call.1} parent=1 // pred_fallthru
      _
    // Predicated region
    $region82: #{tpu_custom_call.1} parent=1 // pred_check
      _
    $region83: #{tpu_custom_call.1} parent=1 // pred_check_branch
      %165 = sbr.rel (0) target = $region85
    $region84: #{tpu_custom_call.1} parent=1 // pred_region
      %s167 = ssub.s32 3072, 3072
      %168 = vsyncadd [#allocation18], %s167
      %s169 = sshll.u32 [#allocation17], 4
      %s170 = int_to_ptr.vmem [resolvable:$true] %s169
      %175 = dma.hbm_to_vmem [thread:$0]  %s20, 3072, %s170, [#allocation18], 64, 64, 4
    $region85: #{tpu_custom_call.1} parent=1 // pred_fallthru
      _
    // Predicated region
    $region86: #{tpu_custom_call.1} parent=1 // pred_check
      _
    $region87: #{tpu_custom_call.1} parent=1 // pred_check_branch
      %177 = sbr.rel (0) target = $region89
    $region88: #{tpu_custom_call.1} parent=1 // pred_region
      _
    $region89: #{tpu_custom_call.1} parent=1 // pred_fallthru
      _
    // Predicated region
    $region90: #{tpu_custom_call.1} parent=1 // pred_check
      _
    $region91: #{tpu_custom_call.1} parent=1 // pred_check_branch
      %179 = sbr.rel (0) target = $region93
    $region92: #{tpu_custom_call.1} parent=1 // pred_region
      %180 = dma.done [#allocation3], 2048
    $region93: #{tpu_custom_call.1} parent=1 // pred_fallthru
      _
    // Predicated region
    $region94: #{tpu_custom_call.1} parent=1 // pred_check
      _
    $region95: #{tpu_custom_call.1} parent=1 // pred_check_branch
      %182 = sbr.rel (0) target = $region97
    $region96: #{tpu_custom_call.1} parent=1 // pred_region
      %183 = dma.done [#allocation6], 2048
    $region97: #{tpu_custom_call.1} parent=1 // pred_fallthru
      _
    // Predicated region
    $region98: #{tpu_custom_call.1} parent=1 // pred_check
      _
    $region99: #{tpu_custom_call.1} parent=1 // pred_check_branch
      %185 = sbr.rel (0) target = $region101
    $region100: #{tpu_custom_call.1} parent=1 // pred_region
      %186 = dma.done [#allocation6], 4096
    $region101: #{tpu_custom_call.1} parent=1 // pred_fallthru
      _
    // Predicated region
    $region102: #{tpu_custom_call.1} parent=1 // pred_check
      _
    $region103: #{tpu_custom_call.1} parent=1 // pred_check_branch
      %188 = sbr.rel (0) target = $region105
    $region104: #{tpu_custom_call.1} parent=1 // pred_region
      %189 = dma.done [#allocation9], 4096
    $region105: #{tpu_custom_call.1} parent=1 // pred_fallthru
      _
    // Predicated region
    $region106: #{tpu_custom_call.1} parent=1 // pred_check
      _
    $region107: #{tpu_custom_call.1} parent=1 // pred_check_branch
      %191 = sbr.rel (0) target = $region109
    $region108: #{tpu_custom_call.1} parent=1 // pred_region
      %192 = dma.done [#allocation9], 3072
    $region109: #{tpu_custom_call.1} parent=1 // pred_fallthru
      _
    // Predicated region
    $region110: #{tpu_custom_call.1} parent=1 // pred_check
      _
    $region111: #{tpu_custom_call.1} parent=1 // pred_check_branch
      %194 = sbr.rel (0) target = $region113
    $region112: #{tpu_custom_call.1} parent=1 // pred_region
      %195 = dma.done [#allocation12], 3072
    $region113: #{tpu_custom_call.1} parent=1 // pred_fallthru
      _
    // Predicated region
    $region114: #{tpu_custom_call.1} parent=1 // pred_check
      _
    $region115: #{tpu_custom_call.1} parent=1 // pred_check_branch
      %197 = sbr.rel (0) target = $region117
    $region116: #{tpu_custom_call.1} parent=1 // pred_region
      %198 = dma.done [#allocation12], 3072
    $region117: #{tpu_custom_call.1} parent=1 // pred_fallthru
      _
    // Predicated region
    $region118: #{tpu_custom_call.1} parent=1 // pred_check
      _
    $region119: #{tpu_custom_call.1} parent=1 // pred_check_branch
      %200 = sbr.rel (0) target = $region121
    $region120: #{tpu_custom_call.1} parent=1 // pred_region
      %201 = dma.done [#allocation15], 3072
    $region121: #{tpu_custom_call.1} parent=1 // pred_fallthru
      _
    // Predicated region
    $region122: #{tpu_custom_call.1} parent=1 // pred_check
      _
    $region123: #{tpu_custom_call.1} parent=1 // pred_check_branch
      %203 = sbr.rel (0) target = $region125
    $region124: #{tpu_custom_call.1} parent=1 // pred_region
      %204 = dma.done [#allocation15], 3072
    $region125: #{tpu_custom_call.1} parent=1 // pred_fallthru
      _
    // Predicated region
    $region126: #{tpu_custom_call.1} parent=1 // pred_check
      _
    $region127: #{tpu_custom_call.1} parent=1 // pred_check_branch
      %206 = sbr.rel (0) target = $region129
    $region128: #{tpu_custom_call.1} parent=1 // pred_region
      %207 = dma.done [#allocation18], 3072
    $region129: #{tpu_custom_call.1} parent=1 // pred_fallthru
      _
    %v208 = vld [vmem:[%s6] sm:$0xff]
    %v209 = vld [vmem:[%s6 + $0x8] sm:$0xff]
    %v210 = vld [vmem:[%s6 + $0x10] sm:$0xff]
    %v211 = vld [vmem:[%s6 + $0x18] sm:$0xff]
    %v212 = vld [vmem:[%s7] sm:$0xff]
    %v213 = vld [vmem:[%s7 + $0x8] sm:$0xff]
    %v214 = vld [vmem:[%s7 + $0x10] sm:$0xff]
    %v215 = vld [vmem:[%s7 + $0x18] sm:$0xff]
    %v216 = vld [vmem:[%s8] sm:$0x1]
    %v217 = vld [vmem:[%s9] sm:$0x1]
    %v218 = vld [vmem:[#allocation2] sm:$0xff]
    %v219 = vld [vmem:[#allocation2 + $0x8] sm:$0xff]
    %v220 = vld [vmem:[#allocation2 + $0x10] sm:$0xff]
    %v221 = vld [vmem:[#allocation2 + $0x18] sm:$0xff]
    %v222 = vld [vmem:[#allocation2 + $0x20] sm:$0xff]
    %v223 = vld [vmem:[#allocation2 + $0x28] sm:$0xff]
    %v224 = vld [vmem:[#allocation2 + $0x30] sm:$0xff]
    %v225 = vld [vmem:[#allocation2 + $0x38] sm:$0xff]
    %v226 = vld [vmem:[#allocation2 + $0x40] sm:$0xff]
    %v227 = vld [vmem:[#allocation2 + $0x48] sm:$0xff]
    %v228 = vld [vmem:[#allocation2 + $0x50] sm:$0xff]
    %v229 = vld [vmem:[#allocation2 + $0x58] sm:$0xff]
    %v230 = vld [vmem:[#allocation2 + $0x60] sm:$0xff]
    %v231 = vld [vmem:[#allocation2 + $0x68] sm:$0xff]
    %v232 = vld [vmem:[#allocation2 + $0x70] sm:$0xff]
    %v233 = vld [vmem:[#allocation2 + $0x78] sm:$0xff]
    %v234 = vmax.f32 %v218, 0.0
    %v235 = vmax.f32 %v219, 0.0
    %v236 = vmax.f32 %v220, 0.0
    %v237 = vmax.f32 %v221, 0.0
    %v238 = vmax.f32 %v222, 0.0
    %v239 = vmax.f32 %v223, 0.0
    %v240 = vmax.f32 %v224, 0.0
    %v241 = vmax.f32 %v225, 0.0
    %v242 = vmax.f32 %v226, 0.0
    %v243 = vmax.f32 %v227, 0.0
    %v244 = vmax.f32 %v228, 0.0
    %v245 = vmax.f32 %v229, 0.0
    %v246 = vmax.f32 %v230, 0.0
    %v247 = vmax.f32 %v231, 0.0
    %v248 = vmax.f32 %v232, 0.0
    %v249 = vmax.f32 %v233, 0.0
    %v250 = vld [vmem:[#allocation7] sm:$0xf]
    %v251 = vld [vmem:[#allocation7 + $0x4] sm:$0xf]
    %v252 = vld [vmem:[#allocation7 + $0x8] sm:$0xf]
    %v253 = vld [vmem:[#allocation7 + $0xc] sm:$0xf]
    %v254 = vld [vmem:[#allocation7 + $0x10] sm:$0xf]
    %v255 = vld [vmem:[#allocation7 + $0x14] sm:$0xf]
    %v256 = vld [vmem:[#allocation7 + $0x18] sm:$0xf]
    %v257 = vld [vmem:[#allocation7 + $0x1c] sm:$0xf]
    %v258 = vld [vmem:[#allocation7 + $0x20] sm:$0xf]
    %v259 = vld [vmem:[#allocation7 + $0x24] sm:$0xf]
    %v260 = vld [vmem:[#allocation7 + $0x28] sm:$0xf]
    %v261 = vld [vmem:[#allocation7 + $0x2c] sm:$0xf]
    %v262 = vld [vmem:[#allocation7 + $0x30] sm:$0xf]
    %v263 = vld [vmem:[#allocation7 + $0x34] sm:$0xf]
    %v264 = vld [vmem:[#allocation7 + $0x38] sm:$0xf]
    %v265 = vld [vmem:[#allocation7 + $0x3c] sm:$0xf]
    %v266 = vld [vmem:[#allocation7 + $0x40] sm:$0xf]
    %v267 = vld [vmem:[#allocation7 + $0x44] sm:$0xf]
    %v268 = vld [vmem:[#allocation7 + $0x48] sm:$0xf]
    %v269 = vld [vmem:[#allocation7 + $0x4c] sm:$0xf]
    %v270 = vld [vmem:[#allocation7 + $0x50] sm:$0xf]
    %v271 = vld [vmem:[#allocation7 + $0x54] sm:$0xf]
    %v272 = vld [vmem:[#allocation7 + $0x58] sm:$0xf]
    %v273 = vld [vmem:[#allocation7 + $0x5c] sm:$0xf]
    %v274 = vld [vmem:[#allocation7 + $0x60] sm:$0xf]
    %v275 = vld [vmem:[#allocation7 + $0x64] sm:$0xf]
    %v276 = vld [vmem:[#allocation7 + $0x68] sm:$0xf]
    %v277 = vld [vmem:[#allocation7 + $0x6c] sm:$0xf]
    %v278 = vld [vmem:[#allocation7 + $0x70] sm:$0xf]
    %v279 = vld [vmem:[#allocation7 + $0x74] sm:$0xf]
    %v280 = vld [vmem:[#allocation7 + $0x78] sm:$0xf]
    %v281 = vld [vmem:[#allocation7 + $0x7c] sm:$0xf]
    %v282 = vld [vmem:[#allocation7 + $0x80] sm:$0xf]
    %v283 = vld [vmem:[#allocation7 + $0x84] sm:$0xf]
    %v284 = vld [vmem:[#allocation7 + $0x88] sm:$0xf]
    %v285 = vld [vmem:[#allocation7 + $0x8c] sm:$0xf]
    %v286 = vld [vmem:[#allocation7 + $0x90] sm:$0xf]
    %v287 = vld [vmem:[#allocation7 + $0x94] sm:$0xf]
    %v288 = vld [vmem:[#allocation7 + $0x98] sm:$0xf]
    %v289 = vld [vmem:[#allocation7 + $0x9c] sm:$0xf]
    %v290 = vld [vmem:[#allocation7 + $0xa0] sm:$0xf]
    %v291 = vld [vmem:[#allocation7 + $0xa4] sm:$0xf]
    %v292 = vld [vmem:[#allocation7 + $0xa8] sm:$0xf]
    %v293 = vld [vmem:[#allocation7 + $0xac] sm:$0xf]
    %v294 = vld [vmem:[#allocation7 + $0xb0] sm:$0xf]
    %v295 = vld [vmem:[#allocation7 + $0xb4] sm:$0xf]
    %v296 = vld [vmem:[#allocation7 + $0xb8] sm:$0xf]
    %v297 = vld [vmem:[#allocation7 + $0xbc] sm:$0xf]
    %v298 = vld [vmem:[#allocation7 + $0xc0] sm:$0xf]
    %v299 = vld [vmem:[#allocation7 + $0xc4] sm:$0xf]
    %v300 = vld [vmem:[#allocation7 + $0xc8] sm:$0xf]
    %v301 = vld [vmem:[#allocation7 + $0xcc] sm:$0xf]
    %v302 = vld [vmem:[#allocation7 + $0xd0] sm:$0xf]
    %v303 = vld [vmem:[#allocation7 + $0xd4] sm:$0xf]
    %v304 = vld [vmem:[#allocation7 + $0xd8] sm:$0xf]
    %v305 = vld [vmem:[#allocation7 + $0xdc] sm:$0xf]
    %v306 = vld [vmem:[#allocation7 + $0xe0] sm:$0xf]
    %v307 = vld [vmem:[#allocation7 + $0xe4] sm:$0xf]
    %v308 = vld [vmem:[#allocation7 + $0xe8] sm:$0xf]
    %v309 = vld [vmem:[#allocation7 + $0xec] sm:$0xf]
    %v310 = vld [vmem:[#allocation7 + $0xf0] sm:$0xf]
    %v311 = vld [vmem:[#allocation7 + $0xf4] sm:$0xf]
    %v312 = vld [vmem:[#allocation7 + $0xf8] sm:$0xf]
    %v313 = vld [vmem:[#allocation7 + $0xfc] sm:$0xf]
    %v314 = vunpack.c.l.bf16 %v250
    %v315 = vunpack.c.l.bf16 %v251
    %v316 = vunpack.c.l.bf16 %v252
    %v317 = vunpack.c.l.bf16 %v253
    %v318 = vunpack.c.l.bf16 %v254
    %v319 = vunpack.c.l.bf16 %v255
    %v320 = vunpack.c.l.bf16 %v256
    %v321 = vunpack.c.l.bf16 %v257
    %v322 = vunpack.c.l.bf16 %v258
    %v323 = vunpack.c.l.bf16 %v259
    %v324 = vunpack.c.l.bf16 %v260
    %v325 = vunpack.c.l.bf16 %v261
    %v326 = vunpack.c.l.bf16 %v262
    %v327 = vunpack.c.l.bf16 %v263
    %v328 = vunpack.c.l.bf16 %v264
    %v329 = vunpack.c.l.bf16 %v265
    %v330 = vunpack.c.l.bf16 %v266
    %v331 = vunpack.c.l.bf16 %v267
    %v332 = vunpack.c.l.bf16 %v268
    %v333 = vunpack.c.l.bf16 %v269
    %v334 = vunpack.c.l.bf16 %v270
    %v335 = vunpack.c.l.bf16 %v271
    %v336 = vunpack.c.l.bf16 %v272
    %v337 = vunpack.c.l.bf16 %v273
    %v338 = vunpack.c.l.bf16 %v274
    %v339 = vunpack.c.l.bf16 %v275
    %v340 = vunpack.c.l.bf16 %v276
    %v341 = vunpack.c.l.bf16 %v277
    %v342 = vunpack.c.l.bf16 %v278
    %v343 = vunpack.c.l.bf16 %v279
    %v344 = vunpack.c.l.bf16 %v280
    %v345 = vunpack.c.l.bf16 %v281
    %v346 = vunpack.c.l.bf16 %v282
    %v347 = vunpack.c.l.bf16 %v283
    %v348 = vunpack.c.l.bf16 %v284
    %v349 = vunpack.c.l.bf16 %v285
    %v350 = vunpack.c.l.bf16 %v286
    %v351 = vunpack.c.l.bf16 %v287
    %v352 = vunpack.c.l.bf16 %v288
    %v353 = vunpack.c.l.bf16 %v289
    %v354 = vunpack.c.l.bf16 %v290
    %v355 = vunpack.c.l.bf16 %v291
    %v356 = vunpack.c.l.bf16 %v292
    %v357 = vunpack.c.l.bf16 %v293
    %v358 = vunpack.c.l.bf16 %v294
    %v359 = vunpack.c.l.bf16 %v295
    %v360 = vunpack.c.l.bf16 %v296
    %v361 = vunpack.c.l.bf16 %v297
    %v362 = vunpack.c.l.bf16 %v298
    %v363 = vunpack.c.l.bf16 %v299
    %v364 = vunpack.c.l.bf16 %v300
    %v365 = vunpack.c.l.bf16 %v301
    %v366 = vunpack.c.l.bf16 %v302
    %v367 = vunpack.c.l.bf16 %v303
    %v368 = vunpack.c.l.bf16 %v304
    %v369 = vunpack.c.l.bf16 %v305
    %v370 = vunpack.c.l.bf16 %v306
    %v371 = vunpack.c.l.bf16 %v307
    %v372 = vunpack.c.l.bf16 %v308
    %v373 = vunpack.c.l.bf16 %v309
    %v374 = vunpack.c.l.bf16 %v310
    %v375 = vunpack.c.l.bf16 %v311
    %v376 = vunpack.c.l.bf16 %v312
    %v377 = vunpack.c.l.bf16 %v313
    %v378 = vld [vmem:[%s3] sm:$0x1]
    %v380 = vlaneseq
    %v381 = vshrl.u32 %v380, 7
    %v382 = vsub.s32 0, %v381
    %v383 = vrot.slane %v378, %v382
    %385 = vmatprep.subr.mxu0 0.0
    %386 = vmatpush1.msra.mxu0 %v314
    %387 = vmatprep.subr.mxu0 0.0
    %388 = vmatpush1.msra.mxu0 %v315
    %389 = vmatprep.subr.mxu0 0.0
    %390 = vmatpush1.msra.mxu0 %v316
    %391 = vmatprep.subr.mxu0 0.0
    %392 = vmatpush1.msra.mxu0 %v317
    %393 = vmatprep.subr.mxu0 0.0
    %394 = vmatpush1.msra.mxu0 %v318
    %395 = vmatprep.subr.mxu0 0.0
    %396 = vmatpush1.msra.mxu0 %v319
    %397 = vmatprep.subr.mxu0 0.0
    %398 = vmatpush1.msra.mxu0 %v320
    %399 = vmatprep.subr.mxu0 0.0
    %400 = vmatpush1.msra.mxu0 %v321
    %401 = vmatprep.subr.mxu0 0.0
    %402 = vmatpush1.msra.mxu0 %v322
    %403 = vmatprep.subr.mxu0 0.0
    %404 = vmatpush1.msra.mxu0 %v323
    %405 = vmatprep.subr.mxu0 0.0
    %406 = vmatpush1.msra.mxu0 %v324
    %407 = vmatprep.subr.mxu0 0.0
    %408 = vmatpush1.msra.mxu0 %v325
    %409 = vmatprep.subr.mxu0 0.0
    %410 = vmatpush1.msra.mxu0 %v326
    %411 = vmatprep.subr.mxu0 0.0
    %412 = vmatpush1.msra.mxu0 %v327
    %413 = vmatprep.subr.mxu0 0.0
    %414 = vmatpush1.msra.mxu0 %v328
    %415 = vmatprep.subr.mxu0 0.0
    %416 = vmatpush1.msra.mxu0 %v329
    %417 = vmatprep.subr.mxu0 0.0
    %418 = vmatpush1.msra.mxu0 %v330
    %419 = vmatprep.subr.mxu0 0.0
    %420 = vmatpush1.msra.mxu0 %v331
    %421 = vmatprep.subr.mxu0 0.0
    %422 = vmatpush1.msra.mxu0 %v332
    %423 = vmatprep.subr.mxu0 0.0
    %424 = vmatpush1.msra.mxu0 %v333
    %425 = vmatprep.subr.mxu0 0.0
    %426 = vmatpush1.msra.mxu0 %v334
    %427 = vmatprep.subr.mxu0 0.0
    %428 = vmatpush1.msra.mxu0 %v335
    %429 = vmatprep.subr.mxu0 0.0
    %430 = vmatpush1.msra.mxu0 %v336
    %431 = vmatprep.subr.mxu0 0.0
    %432 = vmatpush1.msra.mxu0 %v337
    %433 = vmatprep.subr.mxu0 0.0
    %434 = vmatpush1.msra.mxu0 %v338
    %435 = vmatprep.subr.mxu0 0.0
    %436 = vmatpush1.msra.mxu0 %v339
    %437 = vmatprep.subr.mxu0 0.0
    %438 = vmatpush1.msra.mxu0 %v340
    %439 = vmatprep.subr.mxu0 0.0
    %440 = vmatpush1.msra.mxu0 %v341
    %441 = vmatprep.subr.mxu0 0.0
    %442 = vmatpush1.msra.mxu0 %v342
    %443 = vmatprep.subr.mxu0 0.0
    %444 = vmatpush1.msra.mxu0 %v343
    %445 = vmatprep.subr.mxu0 0.0
    %446 = vmatpush1.msra.mxu0 %v344
    %447 = vmatprep.subr.mxu0 0.0
    %448 = vmatpush1.msra.mxu0 %v345
    %449 = vmatprep.mubr.f32.mxu0 %v235
    %450 = vmatmul.mubr.f32.gmra.mrb[0].mxu0 %v234
    %v451 = vpop.f32.mrb[0].mxu0
    %v452 = vadd.f32 %v383, %v451
    %v453 = vpop.f32.mrb[0].mxu0
    %454 = vmatprep.mubr.f32.mxu0 %v239
    %455 = vmatmul.mubr.f32.gmra.mrb[0].mxu0 %v238
    %v456 = vpop.f32.mrb[0].mxu0
    %v457 = vadd.f32 %v383, %v456
    %v458 = vpop.f32.mrb[0].mxu0
    %459 = vmatprep.mubr.f32.mxu0 %v243
    %460 = vmatmul.mubr.f32.gmra.mrb[0].mxu0 %v242
    %v461 = vpop.f32.mrb[0].mxu0
    %v462 = vadd.f32 %v383, %v461
    %v463 = vpop.f32.mrb[0].mxu0
    %464 = vmatprep.mubr.f32.mxu0 %v247
    %465 = vmatmul.mubr.f32.gmra.mrb[0].mxu0 %v246
    %v466 = vpop.f32.mrb[0].mxu0
    %v467 = vadd.f32 %v383, %v466
    %v468 = vpop.f32.mrb[0].mxu0
    %469 = vdwg.mxu0
    %470 = vmatprep.subr.mxu0 0.0
    %471 = vmatpush1.msra.mxu0 %v346
    %472 = vmatprep.subr.mxu0 0.0
    %473 = vmatpush1.msra.mxu0 %v347
    %474 = vmatprep.subr.mxu0 0.0
    %475 = vmatpush1.msra.mxu0 %v348
    %476 = vmatprep.subr.mxu0 0.0
    %477 = vmatpush1.msra.mxu0 %v349
    %478 = vmatprep.subr.mxu0 0.0
    %479 = vmatpush1.msra.mxu0 %v350
    %480 = vmatprep.subr.mxu0 0.0
    %481 = vmatpush1.msra.mxu0 %v351
    %482 = vmatprep.subr.mxu0 0.0
    %483 = vmatpush1.msra.mxu0 %v352
    %484 = vmatprep.subr.mxu0 0.0
    %485 = vmatpush1.msra.mxu0 %v353
    %486 = vmatprep.subr.mxu0 0.0
    %487 = vmatpush1.msra.mxu0 %v354
    %488 = vmatprep.subr.mxu0 0.0
    %489 = vmatpush1.msra.mxu0 %v355
    %490 = vmatprep.subr.mxu0 0.0
    %491 = vmatpush1.msra.mxu0 %v356
    %492 = vmatprep.subr.mxu0 0.0
    %493 = vmatpush1.msra.mxu0 %v357
    %494 = vmatprep.subr.mxu0 0.0
    %495 = vmatpush1.msra.mxu0 %v358
    %496 = vmatprep.subr.mxu0 0.0
    %497 = vmatpush1.msra.mxu0 %v359
    %498 = vmatprep.subr.mxu0 0.0
    %499 = vmatpush1.msra.mxu0 %v360
    %500 = vmatprep.subr.mxu0 0.0
    %501 = vmatpush1.msra.mxu0 %v361
    %502 = vmatprep.subr.mxu0 0.0
    %503 = vmatpush1.msra.mxu0 %v362
    %504 = vmatprep.subr.mxu0 0.0
    %505 = vmatpush1.msra.mxu0 %v363
    %506 = vmatprep.subr.mxu0 0.0
    %507 = vmatpush1.msra.mxu0 %v364
    %508 = vmatprep.subr.mxu0 0.0
    %509 = vmatpush1.msra.mxu0 %v365
    %510 = vmatprep.subr.mxu0 0.0
    %511 = vmatpush1.msra.mxu0 %v366
    %512 = vmatprep.subr.mxu0 0.0
    %513 = vmatpush1.msra.mxu0 %v367
    %514 = vmatprep.subr.mxu0 0.0
    %515 = vmatpush1.msra.mxu0 %v368
    %516 = vmatprep.subr.mxu0 0.0
    %517 = vmatpush1.msra.mxu0 %v369
    %518 = vmatprep.subr.mxu0 0.0
    %519 = vmatpush1.msra.mxu0 %v370
    %520 = vmatprep.subr.mxu0 0.0
    %521 = vmatpush1.msra.mxu0 %v371
    %522 = vmatprep.subr.mxu0 0.0
    %523 = vmatpush1.msra.mxu0 %v372
    %524 = vmatprep.subr.mxu0 0.0
    %525 = vmatpush1.msra.mxu0 %v373
    %526 = vmatprep.subr.mxu0 0.0
    %527 = vmatpush1.msra.mxu0 %v374
    %528 = vmatprep.subr.mxu0 0.0
    %529 = vmatpush1.msra.mxu0 %v375
    %530 = vmatprep.subr.mxu0 0.0
    %531 = vmatpush1.msra.mxu0 %v376
    %532 = vmatprep.subr.mxu0 0.0
    %533 = vmatpush1.msra.mxu0 %v377
    %534 = vmatprep.mubr.f32.mxu0 %v237
    %535 = vmatmul.mubr.f32.gmra.mrb[0].mxu0 %v236
    %v536 = vpop.f32.mrb[0].mxu0
    %v537 = vadd.f32 %v452, %v536
    %v538 = vpop.f32.mrb[0].mxu0
    %539 = vmatprep.mubr.f32.mxu0 %v241
    %540 = vmatmul.mubr.f32.gmra.mrb[0].mxu0 %v240
    %v541 = vpop.f32.mrb[0].mxu0
    %v542 = vadd.f32 %v457, %v541
    %v543 = vpop.f32.mrb[0].mxu0
    %544 = vmatprep.mubr.f32.mxu0 %v245
    %545 = vmatmul.mubr.f32.gmra.mrb[0].mxu0 %v244
    %v546 = vpop.f32.mrb[0].mxu0
    %v547 = vadd.f32 %v462, %v546
    %v548 = vpop.f32.mrb[0].mxu0
    %549 = vmatprep.mubr.f32.mxu0 %v249
    %550 = vmatmul.mubr.f32.gmra.mrb[0].mxu0 %v248
    %v551 = vpop.f32.mrb[0].mxu0
    %v552 = vadd.f32 %v467, %v551
    %v553 = vpop.f32.mrb[0].mxu0
    %554 = vdwg.mxu0
    %v555 = vld [vmem:[#allocation5] sm:$0xff]
    %v556 = vld [vmem:[#allocation5 + $0x8] sm:$0xff]
    %v557 = vld [vmem:[#allocation5 + $0x10] sm:$0xff]
    %v558 = vld [vmem:[#allocation5 + $0x18] sm:$0xff]
    %v559 = vld [vmem:[#allocation5 + $0x20] sm:$0xff]
    %v560 = vld [vmem:[#allocation5 + $0x28] sm:$0xff]
    %v561 = vld [vmem:[#allocation5 + $0x30] sm:$0xff]
    %v562 = vld [vmem:[#allocation5 + $0x38] sm:$0xff]
    %v563 = vld [vmem:[#allocation5 + $0x40] sm:$0xff]
    %v564 = vld [vmem:[#allocation5 + $0x48] sm:$0xff]
    %v565 = vld [vmem:[#allocation5 + $0x50] sm:$0xff]
    %v566 = vld [vmem:[#allocation5 + $0x58] sm:$0xff]
    %v567 = vld [vmem:[#allocation5 + $0x60] sm:$0xff]
    %v568 = vld [vmem:[#allocation5 + $0x68] sm:$0xff]
    %v569 = vld [vmem:[#allocation5 + $0x70] sm:$0xff]
    %v570 = vld [vmem:[#allocation5 + $0x78] sm:$0xff]
    %v571 = vmax.f32 %v555, 0.0
    %v572 = vmax.f32 %v556, 0.0
    %v573 = vmax.f32 %v557, 0.0
    %v574 = vmax.f32 %v558, 0.0
    %v575 = vmax.f32 %v559, 0.0
    %v576 = vmax.f32 %v560, 0.0
    %v577 = vmax.f32 %v561, 0.0
    %v578 = vmax.f32 %v562, 0.0
    %v579 = vmax.f32 %v563, 0.0
    %v580 = vmax.f32 %v564, 0.0
    %v581 = vmax.f32 %v565, 0.0
    %v582 = vmax.f32 %v566, 0.0
    %v583 = vmax.f32 %v567, 0.0
    %v584 = vmax.f32 %v568, 0.0
    %v585 = vmax.f32 %v569, 0.0
    %v586 = vmax.f32 %v570, 0.0
    %v587 = vld [vmem:[#allocation8] sm:$0xf]
    %v588 = vld [vmem:[#allocation8 + $0x4] sm:$0xf]
    %v589 = vld [vmem:[#allocation8 + $0x8] sm:$0xf]
    %v590 = vld [vmem:[#allocation8 + $0xc] sm:$0xf]
    %v591 = vld [vmem:[#allocation8 + $0x10] sm:$0xf]
    %v592 = vld [vmem:[#allocation8 + $0x14] sm:$0xf]
    %v593 = vld [vmem:[#allocation8 + $0x18] sm:$0xf]
    %v594 = vld [vmem:[#allocation8 + $0x1c] sm:$0xf]
    %v595 = vld [vmem:[#allocation8 + $0x20] sm:$0xf]
    %v596 = vld [vmem:[#allocation8 + $0x24] sm:$0xf]
    %v597 = vld [vmem:[#allocation8 + $0x28] sm:$0xf]
    %v598 = vld [vmem:[#allocation8 + $0x2c] sm:$0xf]
    %v599 = vld [vmem:[#allocation8 + $0x30] sm:$0xf]
    %v600 = vld [vmem:[#allocation8 + $0x34] sm:$0xf]
    %v601 = vld [vmem:[#allocation8 + $0x38] sm:$0xf]
    %v602 = vld [vmem:[#allocation8 + $0x3c] sm:$0xf]
    %v603 = vld [vmem:[#allocation8 + $0x40] sm:$0xf]
    %v604 = vld [vmem:[#allocation8 + $0x44] sm:$0xf]
    %v605 = vld [vmem:[#allocation8 + $0x48] sm:$0xf]
    %v606 = vld [vmem:[#allocation8 + $0x4c] sm:$0xf]
    %v607 = vld [vmem:[#allocation8 + $0x50] sm:$0xf]
    %v608 = vld [vmem:[#allocation8 + $0x54] sm:$0xf]
    %v609 = vld [vmem:[#allocation8 + $0x58] sm:$0xf]
    %v610 = vld [vmem:[#allocation8 + $0x5c] sm:$0xf]
    %v611 = vld [vmem:[#allocation8 + $0x60] sm:$0xf]
    %v612 = vld [vmem:[#allocation8 + $0x64] sm:$0xf]
    %v613 = vld [vmem:[#allocation8 + $0x68] sm:$0xf]
    %v614 = vld [vmem:[#allocation8 + $0x6c] sm:$0xf]
    %v615 = vld [vmem:[#allocation8 + $0x70] sm:$0xf]
    %v616 = vld [vmem:[#allocation8 + $0x74] sm:$0xf]
    %v617 = vld [vmem:[#allocation8 + $0x78] sm:$0xf]
    %v618 = vld [vmem:[#allocation8 + $0x7c] sm:$0xf]
    %v619 = vld [vmem:[#allocation8 + $0x80] sm:$0xf]
    %v620 = vld [vmem:[#allocation8 + $0x84] sm:$0xf]
    %v621 = vld [vmem:[#allocation8 + $0x88] sm:$0xf]
    %v622 = vld [vmem:[#allocation8 + $0x8c] sm:$0xf]
    %v623 = vld [vmem:[#allocation8 + $0x90] sm:$0xf]
    %v624 = vld [vmem:[#allocation8 + $0x94] sm:$0xf]
    %v625 = vld [vmem:[#allocation8 + $0x98] sm:$0xf]
    %v626 = vld [vmem:[#allocation8 + $0x9c] sm:$0xf]
    %v627 = vld [vmem:[#allocation8 + $0xa0] sm:$0xf]
    %v628 = vld [vmem:[#allocation8 + $0xa4] sm:$0xf]
    %v629 = vld [vmem:[#allocation8 + $0xa8] sm:$0xf]
    %v630 = vld [vmem:[#allocation8 + $0xac] sm:$0xf]
    %v631 = vld [vmem:[#allocation8 + $0xb0] sm:$0xf]
    %v632 = vld [vmem:[#allocation8 + $0xb4] sm:$0xf]
    %v633 = vld [vmem:[#allocation8 + $0xb8] sm:$0xf]
    %v634 = vld [vmem:[#allocation8 + $0xbc] sm:$0xf]
    %v635 = vld [vmem:[#allocation8 + $0xc0] sm:$0xf]
    %v636 = vld [vmem:[#allocation8 + $0xc4] sm:$0xf]
    %v637 = vld [vmem:[#allocation8 + $0xc8] sm:$0xf]
    %v638 = vld [vmem:[#allocation8 + $0xcc] sm:$0xf]
    %v639 = vld [vmem:[#allocation8 + $0xd0] sm:$0xf]
    %v640 = vld [vmem:[#allocation8 + $0xd4] sm:$0xf]
    %v641 = vld [vmem:[#allocation8 + $0xd8] sm:$0xf]
    %v642 = vld [vmem:[#allocation8 + $0xdc] sm:$0xf]
    %v643 = vld [vmem:[#allocation8 + $0xe0] sm:$0xf]
    %v644 = vld [vmem:[#allocation8 + $0xe4] sm:$0xf]
    %v645 = vld [vmem:[#allocation8 + $0xe8] sm:$0xf]
    %v646 = vld [vmem:[#allocation8 + $0xec] sm:$0xf]
    %v647 = vld [vmem:[#allocation8 + $0xf0] sm:$0xf]
    %v648 = vld [vmem:[#allocation8 + $0xf4] sm:$0xf]
    %v649 = vld [vmem:[#allocation8 + $0xf8] sm:$0xf]
    %v650 = vld [vmem:[#allocation8 + $0xfc] sm:$0xf]
    %v651 = vunpack.c.l.bf16 %v587
    %v652 = vunpack.c.l.bf16 %v588
    %v653 = vunpack.c.l.bf16 %v589
    %v654 = vunpack.c.l.bf16 %v590
    %v655 = vunpack.c.l.bf16 %v591
    %v656 = vunpack.c.l.bf16 %v592
    %v657 = vunpack.c.l.bf16 %v593
    %v658 = vunpack.c.l.bf16 %v594
    %v659 = vunpack.c.l.bf16 %v595
    %v660 = vunpack.c.l.bf16 %v596
    %v661 = vunpack.c.l.bf16 %v597
    %v662 = vunpack.c.l.bf16 %v598
    %v663 = vunpack.c.l.bf16 %v599
    %v664 = vunpack.c.l.bf16 %v600
    %v665 = vunpack.c.l.bf16 %v601
    %v666 = vunpack.c.l.bf16 %v602
    %v667 = vunpack.c.l.bf16 %v603
    %v668 = vunpack.c.l.bf16 %v604
    %v669 = vunpack.c.l.bf16 %v605
    %v670 = vunpack.c.l.bf16 %v606
    %v671 = vunpack.c.l.bf16 %v607
    %v672 = vunpack.c.l.bf16 %v608
    %v673 = vunpack.c.l.bf16 %v609
    %v674 = vunpack.c.l.bf16 %v610
    %v675 = vunpack.c.l.bf16 %v611
    %v676 = vunpack.c.l.bf16 %v612
    %v677 = vunpack.c.l.bf16 %v613
    %v678 = vunpack.c.l.bf16 %v614
    %v679 = vunpack.c.l.bf16 %v615
    %v680 = vunpack.c.l.bf16 %v616
    %v681 = vunpack.c.l.bf16 %v617
    %v682 = vunpack.c.l.bf16 %v618
    %v683 = vunpack.c.l.bf16 %v619
    %v684 = vunpack.c.l.bf16 %v620
    %v685 = vunpack.c.l.bf16 %v621
    %v686 = vunpack.c.l.bf16 %v622
    %v687 = vunpack.c.l.bf16 %v623
    %v688 = vunpack.c.l.bf16 %v624
    %v689 = vunpack.c.l.bf16 %v625
    %v690 = vunpack.c.l.bf16 %v626
    %v691 = vunpack.c.l.bf16 %v627
    %v692 = vunpack.c.l.bf16 %v628
    %v693 = vunpack.c.l.bf16 %v629
    %v694 = vunpack.c.l.bf16 %v630
    %v695 = vunpack.c.l.bf16 %v631
    %v696 = vunpack.c.l.bf16 %v632
    %v697 = vunpack.c.l.bf16 %v633
    %v698 = vunpack.c.l.bf16 %v634
    %v699 = vunpack.c.l.bf16 %v635
    %v700 = vunpack.c.l.bf16 %v636
    %v701 = vunpack.c.l.bf16 %v637
    %v702 = vunpack.c.l.bf16 %v638
    %v703 = vunpack.c.l.bf16 %v639
    %v704 = vunpack.c.l.bf16 %v640
    %v705 = vunpack.c.l.bf16 %v641
    %v706 = vunpack.c.l.bf16 %v642
    %v707 = vunpack.c.l.bf16 %v643
    %v708 = vunpack.c.l.bf16 %v644
    %v709 = vunpack.c.l.bf16 %v645
    %v710 = vunpack.c.l.bf16 %v646
    %v711 = vunpack.c.l.bf16 %v647
    %v712 = vunpack.c.l.bf16 %v648
    %v713 = vunpack.c.l.bf16 %v649
    %v714 = vunpack.c.l.bf16 %v650
    %v715 = vld [vmem:[%s5] sm:$0x1]
    %v717 = vlaneseq
    %v718 = vshrl.u32 %v717, 7
    %v719 = vsub.s32 0, %v718
    %v720 = vrot.slane %v715, %v719
    %722 = vmatprep.subr.mxu0 0.0
    %723 = vmatpush1.msra.mxu0 %v651
    %724 = vmatprep.subr.mxu0 0.0
    %725 = vmatpush1.msra.mxu0 %v652
    %726 = vmatprep.subr.mxu0 0.0
    %727 = vmatpush1.msra.mxu0 %v653
    %728 = vmatprep.subr.mxu0 0.0
    %729 = vmatpush1.msra.mxu0 %v654
    %730 = vmatprep.subr.mxu0 0.0
    %731 = vmatpush1.msra.mxu0 %v655
    %732 = vmatprep.subr.mxu0 0.0
    %733 = vmatpush1.msra.mxu0 %v656
    %734 = vmatprep.subr.mxu0 0.0
    %735 = vmatpush1.msra.mxu0 %v657
    %736 = vmatprep.subr.mxu0 0.0
    %737 = vmatpush1.msra.mxu0 %v658
    %738 = vmatprep.subr.mxu0 0.0
    %739 = vmatpush1.msra.mxu0 %v659
    %740 = vmatprep.subr.mxu0 0.0
    %741 = vmatpush1.msra.mxu0 %v660
    %742 = vmatprep.subr.mxu0 0.0
    %743 = vmatpush1.msra.mxu0 %v661
    %744 = vmatprep.subr.mxu0 0.0
    %745 = vmatpush1.msra.mxu0 %v662
    %746 = vmatprep.subr.mxu0 0.0
    %747 = vmatpush1.msra.mxu0 %v663
    %748 = vmatprep.subr.mxu0 0.0
    %749 = vmatpush1.msra.mxu0 %v664
    %750 = vmatprep.subr.mxu0 0.0
    %751 = vmatpush1.msra.mxu0 %v665
    %752 = vmatprep.subr.mxu0 0.0
    %753 = vmatpush1.msra.mxu0 %v666
    %754 = vmatprep.subr.mxu0 0.0
    %755 = vmatpush1.msra.mxu0 %v667
    %756 = vmatprep.subr.mxu0 0.0
    %757 = vmatpush1.msra.mxu0 %v668
    %758 = vmatprep.subr.mxu0 0.0
    %759 = vmatpush1.msra.mxu0 %v669
    %760 = vmatprep.subr.mxu0 0.0
    %761 = vmatpush1.msra.mxu0 %v670
    %762 = vmatprep.subr.mxu0 0.0
    %763 = vmatpush1.msra.mxu0 %v671
    %764 = vmatprep.subr.mxu0 0.0
    %765 = vmatpush1.msra.mxu0 %v672
    %766 = vmatprep.subr.mxu0 0.0
    %767 = vmatpush1.msra.mxu0 %v673
    %768 = vmatprep.subr.mxu0 0.0
    %769 = vmatpush1.msra.mxu0 %v674
    %770 = vmatprep.subr.mxu0 0.0
    %771 = vmatpush1.msra.mxu0 %v675
    %772 = vmatprep.subr.mxu0 0.0
    %773 = vmatpush1.msra.mxu0 %v676
    %774 = vmatprep.subr.mxu0 0.0
    %775 = vmatpush1.msra.mxu0 %v677
    %776 = vmatprep.subr.mxu0 0.0
    %777 = vmatpush1.msra.mxu0 %v678
    %778 = vmatprep.subr.mxu0 0.0
    %779 = vmatpush1.msra.mxu0 %v679
    %780 = vmatprep.subr.mxu0 0.0
    %781 = vmatpush1.msra.mxu0 %v680
    %782 = vmatprep.subr.mxu0 0.0
    %783 = vmatpush1.msra.mxu0 %v681
    %784 = vmatprep.subr.mxu0 0.0
    %785 = vmatpush1.msra.mxu0 %v682
    %786 = vmatprep.mubr.f32.mxu0 %v572
    %787 = vmatmul.mubr.f32.gmra.mrb[0].mxu0 %v571
    %v788 = vpop.f32.mrb[0].mxu0
    %v789 = vadd.f32 %v720, %v788
    %v790 = vpop.f32.mrb[0].mxu0
    %791 = vmatprep.mubr.f32.mxu0 %v576
    %792 = vmatmul.mubr.f32.gmra.mrb[0].mxu0 %v575
    %v793 = vpop.f32.mrb[0].mxu0
    %v794 = vadd.f32 %v720, %v793
    %v795 = vpop.f32.mrb[0].mxu0
    %796 = vmatprep.mubr.f32.mxu0 %v580
    %797 = vmatmul.mubr.f32.gmra.mrb[0].mxu0 %v579
    %v798 = vpop.f32.mrb[0].mxu0
    %v799 = vadd.f32 %v720, %v798
    %v800 = vpop.f32.mrb[0].mxu0
    %801 = vmatprep.mubr.f32.mxu0 %v584
    %802 = vmatmul.mubr.f32.gmra.mrb[0].mxu0 %v583
    %v803 = vpop.f32.mrb[0].mxu0
    %v804 = vadd.f32 %v720, %v803
    %v805 = vpop.f32.mrb[0].mxu0
    %806 = vdwg.mxu0
    %807 = vmatprep.subr.mxu0 0.0
    %808 = vmatpush1.msra.mxu0 %v683
    %809 = vmatprep.subr.mxu0 0.0
    %810 = vmatpush1.msra.mxu0 %v684
    %811 = vmatprep.subr.mxu0 0.0
    %812 = vmatpush1.msra.mxu0 %v685
    %813 = vmatprep.subr.mxu0 0.0
    %814 = vmatpush1.msra.mxu0 %v686
    %815 = vmatprep.subr.mxu0 0.0
    %816 = vmatpush1.msra.mxu0 %v687
    %817 = vmatprep.subr.mxu0 0.0
    %818 = vmatpush1.msra.mxu0 %v688
    %819 = vmatprep.subr.mxu0 0.0
    %820 = vmatpush1.msra.mxu0 %v689
    %821 = vmatprep.subr.mxu0 0.0
    %822 = vmatpush1.msra.mxu0 %v690
    %823 = vmatprep.subr.mxu0 0.0
    %824 = vmatpush1.msra.mxu0 %v691
    %825 = vmatprep.subr.mxu0 0.0
    %826 = vmatpush1.msra.mxu0 %v692
    %827 = vmatprep.subr.mxu0 0.0
    %828 = vmatpush1.msra.mxu0 %v693
    %829 = vmatprep.subr.mxu0 0.0
    %830 = vmatpush1.msra.mxu0 %v694
    %831 = vmatprep.subr.mxu0 0.0
    %832 = vmatpush1.msra.mxu0 %v695
    %833 = vmatprep.subr.mxu0 0.0
    %834 = vmatpush1.msra.mxu0 %v696
    %835 = vmatprep.subr.mxu0 0.0
    %836 = vmatpush1.msra.mxu0 %v697
    %837 = vmatprep.subr.mxu0 0.0
    %838 = vmatpush1.msra.mxu0 %v698
    %839 = vmatprep.subr.mxu0 0.0
    %840 = vmatpush1.msra.mxu0 %v699
    %841 = vmatprep.subr.mxu0 0.0
    %842 = vmatpush1.msra.mxu0 %v700
    %843 = vmatprep.subr.mxu0 0.0
    %844 = vmatpush1.msra.mxu0 %v701
    %845 = vmatprep.subr.mxu0 0.0
    %846 = vmatpush1.msra.mxu0 %v702
    %847 = vmatprep.subr.mxu0 0.0
    %848 = vmatpush1.msra.mxu0 %v703
    %849 = vmatprep.subr.mxu0 0.0
    %850 = vmatpush1.msra.mxu0 %v704
    %851 = vmatprep.subr.mxu0 0.0
    %852 = vmatpush1.msra.mxu0 %v705
    %853 = vmatprep.subr.mxu0 0.0
    %854 = vmatpush1.msra.mxu0 %v706
    %855 = vmatprep.subr.mxu0 0.0
    %856 = vmatpush1.msra.mxu0 %v707
    %857 = vmatprep.subr.mxu0 0.0
    %858 = vmatpush1.msra.mxu0 %v708
    %859 = vmatprep.subr.mxu0 0.0
    %860 = vmatpush1.msra.mxu0 %v709
    %861 = vmatprep.subr.mxu0 0.0
    %862 = vmatpush1.msra.mxu0 %v710
    %863 = vmatprep.subr.mxu0 0.0
    %864 = vmatpush1.msra.mxu0 %v711
    %865 = vmatprep.subr.mxu0 0.0
    %866 = vmatpush1.msra.mxu0 %v712
    %867 = vmatprep.subr.mxu0 0.0
    %868 = vmatpush1.msra.mxu0 %v713
    %869 = vmatprep.subr.mxu0 0.0
    %870 = vmatpush1.msra.mxu0 %v714
    %871 = vmatprep.mubr.f32.mxu0 %v574
    %872 = vmatmul.mubr.f32.gmra.mrb[0].mxu0 %v573
    %v873 = vpop.f32.mrb[0].mxu0
    %v874 = vadd.f32 %v789, %v873
    %v875 = vpop.f32.mrb[0].mxu0
    %876 = vmatprep.mubr.f32.mxu0 %v578
    %877 = vmatmul.mubr.f32.gmra.mrb[0].mxu0 %v577
    %v878 = vpop.f32.mrb[0].mxu0
    %v879 = vadd.f32 %v794, %v878
    %v880 = vpop.f32.mrb[0].mxu0
    %881 = vmatprep.mubr.f32.mxu0 %v582
    %882 = vmatmul.mubr.f32.gmra.mrb[0].mxu0 %v581
    %v883 = vpop.f32.mrb[0].mxu0
    %v884 = vadd.f32 %v799, %v883
    %v885 = vpop.f32.mrb[0].mxu0
    %886 = vmatprep.mubr.f32.mxu0 %v586
    %887 = vmatmul.mubr.f32.gmra.mrb[0].mxu0 %v585
    %v888 = vpop.f32.mrb[0].mxu0
    %v889 = vadd.f32 %v804, %v888
    %v890 = vpop.f32.mrb[0].mxu0
    %891 = vdwg.mxu0
    %v892 = vmax.f32 %v537, 0.0
    %v893 = vmax.f32 %v542, 0.0
    %v894 = vmax.f32 %v547, 0.0
    %v895 = vmax.f32 %v552, 0.0
    %vm896 = vcmp.gt.f32.partialorder %v208, 0.5
    %vm897 = vcmp.gt.f32.partialorder %v209, 0.5
    %vm898 = vcmp.gt.f32.partialorder %v210, 0.5
    %vm899 = vcmp.gt.f32.partialorder %v211, 0.5
    %v901 = vrot.slane %v895, 7
    %vm906 = vcmask 1040384
    %v907 = vrot.slane %v892, 7
    %v908 = vrot.slane %v893, 7
    %v909 = vsel %vm906, %v907, %v908
    %v910 = vrot.slane %v894, 7
    %v911 = vsel %vm906, %v908, %v910
    %v912 = vsel %vm906, %v910, %v901
    %v917 = vsel %vm906, %v901, %v907
    %v918 = vsel %vm896, 1, 0
    %v919 = vsel %vm897, 1, 0
    %v920 = vsel %vm898, 1, 0
    %v921 = vsel %vm899, 1, 0
    %922 = vset.pattern.permute.xlu0 0
    %923 = vperm.xlu0 %922, %v918
    %v924 = vpop.permute.xlu0 %923
    %925 = vset.pattern.permute.xlu0 0
    %926 = vperm.xlu0 %925, %v919
    %v927 = vpop.permute.xlu0 %926
    %928 = vset.pattern.permute.xlu0 0
    %929 = vperm.xlu0 %928, %v920
    %v930 = vpop.permute.xlu0 %929
    %931 = vset.pattern.permute.xlu0 0
    %932 = vperm.xlu0 %931, %v921
    %v933 = vpop.permute.xlu0 %932
    %vm934 = vcmp.eq.s32.totalorder %v924, 1
    %vm935 = vcmp.eq.s32.totalorder %v927, 1
    %vm936 = vcmp.eq.s32.totalorder %v930, 1
    %vm937 = vcmp.eq.s32.totalorder %v933, 1
    %v938 = vsel %vm934, %v917, 0.0
    %v939 = vsel %vm935, %v909, 0.0
    %v940 = vsel %vm936, %v911, 0.0
    %v941 = vsel %vm937, %v912, 0.0
    %vm942 = vcmp.gt.f32.partialorder %v212, 0.5
    %vm943 = vcmp.gt.f32.partialorder %v213, 0.5
    %vm944 = vcmp.gt.f32.partialorder %v214, 0.5
    %vm945 = vcmp.gt.f32.partialorder %v215, 0.5
    %vm946 = vcmask 1046528
    %v947 = vrot.slane %v892, 1
    %v948 = vrot.slane %v893, 1
    %v949 = vsel %vm946, %v947, %v948
    %v950 = vrot.slane %v894, 1
    %v951 = vsel %vm946, %v948, %v950
    %v952 = vrot.slane %v895, 1
    %v953 = vsel %vm946, %v950, %v952
    %v959 = vsel %vm946, %v952, %v947
    %v960 = vsel %vm942, 1, 0
    %v961 = vsel %vm943, 1, 0
    %v962 = vsel %vm944, 1, 0
    %v963 = vsel %vm945, 1, 0
    %964 = vset.pattern.permute.xlu0 0
    %965 = vperm.xlu0 %964, %v960
    %v966 = vpop.permute.xlu0 %965
    %967 = vset.pattern.permute.xlu0 0
    %968 = vperm.xlu0 %967, %v961
    %v969 = vpop.permute.xlu0 %968
    %970 = vset.pattern.permute.xlu0 0
    %971 = vperm.xlu0 %970, %v962
    %v972 = vpop.permute.xlu0 %971
    %973 = vset.pattern.permute.xlu0 0
    %974 = vperm.xlu0 %973, %v963
    %v975 = vpop.permute.xlu0 %974
    %vm976 = vcmp.eq.s32.totalorder %v966, 1
    %vm977 = vcmp.eq.s32.totalorder %v969, 1
    %vm978 = vcmp.eq.s32.totalorder %v972, 1
    %vm979 = vcmp.eq.s32.totalorder %v975, 1
    %v980 = vsel %vm976, %v949, 0.0
    %v981 = vsel %vm977, %v951, 0.0
    %v982 = vsel %vm978, %v953, 0.0
    %v983 = vsel %vm979, %v959, 0.0
    %v984 = vld [vmem:[#allocation10] sm:$0xf]
    %v985 = vld [vmem:[#allocation10 + $0x4] sm:$0xf]
    %v986 = vld [vmem:[#allocation10 + $0x8] sm:$0xf]
    %v987 = vld [vmem:[#allocation10 + $0xc] sm:$0xf]
    %v988 = vld [vmem:[#allocation10 + $0x10] sm:$0xf]
    %v989 = vld [vmem:[#allocation10 + $0x14] sm:$0xf]
    %v990 = vld [vmem:[#allocation10 + $0x18] sm:$0xf]
    %v991 = vld [vmem:[#allocation10 + $0x1c] sm:$0xf]
    %v992 = vld [vmem:[#allocation10 + $0x20] sm:$0xf]
    %v993 = vld [vmem:[#allocation10 + $0x24] sm:$0xf]
    %v994 = vld [vmem:[#allocation10 + $0x28] sm:$0xf]
    %v995 = vld [vmem:[#allocation10 + $0x2c] sm:$0xf]
    %v996 = vld [vmem:[#allocation10 + $0x30] sm:$0xf]
    %v997 = vld [vmem:[#allocation10 + $0x34] sm:$0xf]
    %v998 = vld [vmem:[#allocation10 + $0x38] sm:$0xf]
    %v999 = vld [vmem:[#allocation10 + $0x3c] sm:$0xf]
    %v1000 = vld [vmem:[#allocation10 + $0x40] sm:$0xf]
    %v1001 = vld [vmem:[#allocation10 + $0x44] sm:$0xf]
    %v1002 = vld [vmem:[#allocation10 + $0x48] sm:$0xf]
    %v1003 = vld [vmem:[#allocation10 + $0x4c] sm:$0xf]
    %v1004 = vld [vmem:[#allocation10 + $0x50] sm:$0xf]
    %v1005 = vld [vmem:[#allocation10 + $0x54] sm:$0xf]
    %v1006 = vld [vmem:[#allocation10 + $0x58] sm:$0xf]
    %v1007 = vld [vmem:[#allocation10 + $0x5c] sm:$0xf]
    %v1008 = vld [vmem:[#allocation10 + $0x60] sm:$0xf]
    %v1009 = vld [vmem:[#allocation10 + $0x64] sm:$0xf]
    %v1010 = vld [vmem:[#allocation10 + $0x68] sm:$0xf]
    %v1011 = vld [vmem:[#allocation10 + $0x6c] sm:$0xf]
    %v1012 = vld [vmem:[#allocation10 + $0x70] sm:$0xf]
    %v1013 = vld [vmem:[#allocation10 + $0x74] sm:$0xf]
    %v1014 = vld [vmem:[#allocation10 + $0x78] sm:$0xf]
    %v1015 = vld [vmem:[#allocation10 + $0x7c] sm:$0xf]
    %v1016 = vld [vmem:[#allocation10 + $0x80] sm:$0xf]
    %v1017 = vld [vmem:[#allocation10 + $0x84] sm:$0xf]
    %v1018 = vld [vmem:[#allocation10 + $0x88] sm:$0xf]
    %v1019 = vld [vmem:[#allocation10 + $0x8c] sm:$0xf]
    %v1020 = vld [vmem:[#allocation10 + $0x90] sm:$0xf]
    %v1021 = vld [vmem:[#allocation10 + $0x94] sm:$0xf]
    %v1022 = vld [vmem:[#allocation10 + $0x98] sm:$0xf]
    %v1023 = vld [vmem:[#allocation10 + $0x9c] sm:$0xf]
    %v1024 = vld [vmem:[#allocation10 + $0xa0] sm:$0xf]
    %v1025 = vld [vmem:[#allocation10 + $0xa4] sm:$0xf]
    %v1026 = vld [vmem:[#allocation10 + $0xa8] sm:$0xf]
    %v1027 = vld [vmem:[#allocation10 + $0xac] sm:$0xf]
    %v1028 = vld [vmem:[#allocation10 + $0xb0] sm:$0xf]
    %v1029 = vld [vmem:[#allocation10 + $0xb4] sm:$0xf]
    %v1030 = vld [vmem:[#allocation10 + $0xb8] sm:$0xf]
    %v1031 = vld [vmem:[#allocation10 + $0xbc] sm:$0xf]
    %v1032 = vunpack.c.l.bf16 %v984
    %v1033 = vunpack.c.l.bf16 %v985
    %v1034 = vunpack.c.l.bf16 %v986
    %v1035 = vunpack.c.l.bf16 %v987
    %v1036 = vunpack.c.l.bf16 %v988
    %v1037 = vunpack.c.l.bf16 %v989
    %v1038 = vunpack.c.l.bf16 %v990
    %v1039 = vunpack.c.l.bf16 %v991
    %v1040 = vunpack.c.l.bf16 %v992
    %v1041 = vunpack.c.l.bf16 %v993
    %v1042 = vunpack.c.l.bf16 %v994
    %v1043 = vunpack.c.l.bf16 %v995
    %v1044 = vunpack.c.l.bf16 %v996
    %v1045 = vunpack.c.l.bf16 %v997
    %v1046 = vunpack.c.l.bf16 %v998
    %v1047 = vunpack.c.l.bf16 %v999
    %v1048 = vunpack.c.l.bf16 %v1000
    %v1049 = vunpack.c.l.bf16 %v1001
    %v1050 = vunpack.c.l.bf16 %v1002
    %v1051 = vunpack.c.l.bf16 %v1003
    %v1052 = vunpack.c.l.bf16 %v1004
    %v1053 = vunpack.c.l.bf16 %v1005
    %v1054 = vunpack.c.l.bf16 %v1006
    %v1055 = vunpack.c.l.bf16 %v1007
    %v1056 = vunpack.c.l.bf16 %v1008
    %v1057 = vunpack.c.l.bf16 %v1009
    %v1058 = vunpack.c.l.bf16 %v1010
    %v1059 = vunpack.c.l.bf16 %v1011
    %v1060 = vunpack.c.l.bf16 %v1012
    %v1061 = vunpack.c.l.bf16 %v1013
    %v1062 = vunpack.c.l.bf16 %v1014
    %v1063 = vunpack.c.l.bf16 %v1015
    %v1064 = vunpack.c.l.bf16 %v1016
    %v1065 = vunpack.c.l.bf16 %v1017
    %v1066 = vunpack.c.l.bf16 %v1018
    %v1067 = vunpack.c.l.bf16 %v1019
    %v1068 = vunpack.c.l.bf16 %v1020
    %v1069 = vunpack.c.l.bf16 %v1021
    %v1070 = vunpack.c.l.bf16 %v1022
    %v1071 = vunpack.c.l.bf16 %v1023
    %v1072 = vunpack.c.l.bf16 %v1024
    %v1073 = vunpack.c.l.bf16 %v1025
    %v1074 = vunpack.c.l.bf16 %v1026
    %v1075 = vunpack.c.l.bf16 %v1027
    %v1076 = vunpack.c.l.bf16 %v1028
    %v1077 = vunpack.c.l.bf16 %v1029
    %v1078 = vunpack.c.l.bf16 %v1030
    %v1079 = vunpack.c.l.bf16 %v1031
    %v1080 = vld [vmem:[%s11] sm:$0x1]
    %v1082 = vlaneseq
    %v1083 = vshrl.u32 %v1082, 7
    %v1084 = vsub.s32 0, %v1083
    %v1085 = vrot.slane %v1080, %v1084
    %1087 = vmatprep.subr.mxu0 0.0
    %1088 = vmatpush1.msra.mxu0 %v1032
    %1089 = vmatprep.subr.mxu0 0.0
    %1090 = vmatpush1.msra.mxu0 %v1033
    %1091 = vmatprep.subr.mxu0 0.0
    %1092 = vmatpush1.msra.mxu0 %v1034
    %1093 = vmatprep.subr.mxu0 0.0
    %1094 = vmatpush1.msra.mxu0 %v1035
    %1095 = vmatprep.subr.mxu0 0.0
    %1096 = vmatpush1.msra.mxu0 %v1036
    %1097 = vmatprep.subr.mxu0 0.0
    %1098 = vmatpush1.msra.mxu0 %v1037
    %1099 = vmatprep.subr.mxu0 0.0
    %1100 = vmatpush1.msra.mxu0 %v1038
    %1101 = vmatprep.subr.mxu0 0.0
    %1102 = vmatpush1.msra.mxu0 %v1039
    %1103 = vmatprep.subr.mxu0 0.0
    %1104 = vmatpush1.msra.mxu0 %v1040
    %1105 = vmatprep.subr.mxu0 0.0
    %1106 = vmatpush1.msra.mxu0 %v1041
    %1107 = vmatprep.subr.mxu0 0.0
    %1108 = vmatpush1.msra.mxu0 %v1042
    %1109 = vmatprep.subr.mxu0 0.0
    %1110 = vmatpush1.msra.mxu0 %v1043
    %1111 = vmatprep.subr.mxu0 0.0
    %1112 = vmatpush1.msra.mxu0 %v1044
    %1113 = vmatprep.subr.mxu0 0.0
    %1114 = vmatpush1.msra.mxu0 %v1045
    %1115 = vmatprep.subr.mxu0 0.0
    %1116 = vmatpush1.msra.mxu0 %v1046
    %1117 = vmatprep.subr.mxu0 0.0
    %1118 = vmatpush1.msra.mxu0 %v1047
    %1119 = vmatprep.subr.mxu0 0.0
    %1120 = vmatpush1.msra.mxu0 %v1048
    %1121 = vmatprep.subr.mxu0 0.0
    %1122 = vmatpush1.msra.mxu0 %v1049
    %1123 = vmatprep.subr.mxu0 0.0
    %1124 = vmatpush1.msra.mxu0 %v1050
    %1125 = vmatprep.subr.mxu0 0.0
    %1126 = vmatpush1.msra.mxu0 %v1051
    %1127 = vmatprep.subr.mxu0 0.0
    %1128 = vmatpush1.msra.mxu0 %v1052
    %1129 = vmatprep.subr.mxu0 0.0
    %1130 = vmatpush1.msra.mxu0 %v1053
    %1131 = vmatprep.subr.mxu0 0.0
    %1132 = vmatpush1.msra.mxu0 %v1054
    %1133 = vmatprep.subr.mxu0 0.0
    %1134 = vmatpush1.msra.mxu0 %v1055
    %1135 = vmatprep.subr.mxu0 0.0
    %1136 = vmatpush1.msra.mxu0 %v1056
    %1137 = vmatprep.subr.mxu0 0.0
    %1138 = vmatpush1.msra.mxu0 %v1057
    %1139 = vmatprep.subr.mxu0 0.0
    %1140 = vmatpush1.msra.mxu0 %v1058
    %1141 = vmatprep.subr.mxu0 0.0
    %1142 = vmatpush1.msra.mxu0 %v1059
    %1143 = vmatprep.subr.mxu0 0.0
    %1144 = vmatpush1.msra.mxu0 %v1060
    %1145 = vmatprep.subr.mxu0 0.0
    %1146 = vmatpush1.msra.mxu0 %v1061
    %1147 = vmatprep.subr.mxu0 0.0
    %1148 = vmatpush1.msra.mxu0 %v1062
    %1149 = vmatprep.subr.mxu0 0.0
    %1150 = vmatpush1.msra.mxu0 %v1063
    %1151 = vmatprep.mubr.f32.mxu0 %v938
    %1152 = vmatmul.mubr.f32.gmra.mrb[0].mxu0 %v892
    %v1153 = vpop.f32.mrb[0].mxu0
    %v1154 = vadd.f32 %v1085, %v1153
    %v1155 = vpop.f32.mrb[0].mxu0
    %1156 = vmatprep.mubr.f32.mxu0 %v939
    %1157 = vmatmul.mubr.f32.gmra.mrb[0].mxu0 %v893
    %v1158 = vpop.f32.mrb[0].mxu0
    %v1159 = vadd.f32 %v1085, %v1158
    %v1160 = vpop.f32.mrb[0].mxu0
    %1161 = vmatprep.mubr.f32.mxu0 %v940
    %1162 = vmatmul.mubr.f32.gmra.mrb[0].mxu0 %v894
    %v1163 = vpop.f32.mrb[0].mxu0
    %v1164 = vadd.f32 %v1085, %v1163
    %v1165 = vpop.f32.mrb[0].mxu0
    %1166 = vmatprep.mubr.f32.mxu0 %v941
    %1167 = vmatmul.mubr.f32.gmra.mrb[0].mxu0 %v895
    %v1168 = vpop.f32.mrb[0].mxu0
    %v1169 = vadd.f32 %v1085, %v1168
    %v1170 = vpop.f32.mrb[0].mxu0
    %1171 = vdwg.mxu0
    %1172 = vmatprep.subr.mxu0 0.0
    %1173 = vmatpush1.msra.mxu0 %v1064
    %1174 = vmatprep.subr.mxu0 0.0
    %1175 = vmatpush1.msra.mxu0 %v1065
    %1176 = vmatprep.subr.mxu0 0.0
    %1177 = vmatpush1.msra.mxu0 %v1066
    %1178 = vmatprep.subr.mxu0 0.0
    %1179 = vmatpush1.msra.mxu0 %v1067
    %1180 = vmatprep.subr.mxu0 0.0
    %1181 = vmatpush1.msra.mxu0 %v1068
    %1182 = vmatprep.subr.mxu0 0.0
    %1183 = vmatpush1.msra.mxu0 %v1069
    %1184 = vmatprep.subr.mxu0 0.0
    %1185 = vmatpush1.msra.mxu0 %v1070
    %1186 = vmatprep.subr.mxu0 0.0
    %1187 = vmatpush1.msra.mxu0 %v1071
    %1188 = vmatprep.subr.mxu0 0.0
    %1189 = vmatpush1.msra.mxu0 %v1072
    %1190 = vmatprep.subr.mxu0 0.0
    %1191 = vmatpush1.msra.mxu0 %v1073
    %1192 = vmatprep.subr.mxu0 0.0
    %1193 = vmatpush1.msra.mxu0 %v1074
    %1194 = vmatprep.subr.mxu0 0.0
    %1195 = vmatpush1.msra.mxu0 %v1075
    %1196 = vmatprep.subr.mxu0 0.0
    %1197 = vmatpush1.msra.mxu0 %v1076
    %1198 = vmatprep.subr.mxu0 0.0
    %1199 = vmatpush1.msra.mxu0 %v1077
    %1200 = vmatprep.subr.mxu0 0.0
    %1201 = vmatpush1.msra.mxu0 %v1078
    %1202 = vmatprep.subr.mxu0 0.0
    %1203 = vmatpush1.msra.mxu0 %v1079
    %1204 = vmatprep.subr.mxu0 0.0
    %1205 = vmatpush1.msra.mxu0 0.0
    %1206 = vmatprep.subr.mxu0 0.0
    %1207 = vmatpush1.msra.mxu0 0.0
    %1208 = vmatprep.subr.mxu0 0.0
    %1209 = vmatpush1.msra.mxu0 0.0
    %1210 = vmatprep.subr.mxu0 0.0
    %1211 = vmatpush1.msra.mxu0 0.0
    %1212 = vmatprep.subr.mxu0 0.0
    %1213 = vmatpush1.msra.mxu0 0.0
    %1214 = vmatprep.subr.mxu0 0.0
    %1215 = vmatpush1.msra.mxu0 0.0
    %1216 = vmatprep.subr.mxu0 0.0
    %1217 = vmatpush1.msra.mxu0 0.0
    %1218 = vmatprep.subr.mxu0 0.0
    %1219 = vmatpush1.msra.mxu0 0.0
    %1220 = vmatprep.subr.mxu0 0.0
    %1221 = vmatpush1.msra.mxu0 0.0
    %1222 = vmatprep.subr.mxu0 0.0
    %1223 = vmatpush1.msra.mxu0 0.0
    %1224 = vmatprep.subr.mxu0 0.0
    %1225 = vmatpush1.msra.mxu0 0.0
    %1226 = vmatprep.subr.mxu0 0.0
    %1227 = vmatpush1.msra.mxu0 0.0
    %1228 = vmatprep.subr.mxu0 0.0
    %1229 = vmatpush1.msra.mxu0 0.0
    %1230 = vmatprep.subr.mxu0 0.0
    %1231 = vmatpush1.msra.mxu0 0.0
    %1232 = vmatprep.subr.mxu0 0.0
    %1233 = vmatpush1.msra.mxu0 0.0
    %1234 = vmatprep.subr.mxu0 0.0
    %1235 = vmatpush1.msra.mxu0 0.0
    %1236 = vmatprep.mubr.f32.mxu0 0.0
    %1237 = vmatmul.mubr.f32.gmra.mrb[0].mxu0 %v980
    %v1238 = vpop.f32.mrb[0].mxu0
    %v1239 = vadd.f32 %v1154, %v1238
    %v1240 = vpop.f32.mrb[0].mxu0
    %1241 = vmatprep.mubr.f32.mxu0 0.0
    %1242 = vmatmul.mubr.f32.gmra.mrb[0].mxu0 %v981
    %v1243 = vpop.f32.mrb[0].mxu0
    %v1244 = vadd.f32 %v1159, %v1243
    %v1245 = vpop.f32.mrb[0].mxu0
    %1246 = vmatprep.mubr.f32.mxu0 0.0
    %1247 = vmatmul.mubr.f32.gmra.mrb[0].mxu0 %v982
    %v1248 = vpop.f32.mrb[0].mxu0
    %v1249 = vadd.f32 %v1164, %v1248
    %v1250 = vpop.f32.mrb[0].mxu0
    %1251 = vmatprep.mubr.f32.mxu0 0.0
    %1252 = vmatmul.mubr.f32.gmra.mrb[0].mxu0 %v983
    %v1253 = vpop.f32.mrb[0].mxu0
    %v1254 = vadd.f32 %v1169, %v1253
    %v1255 = vpop.f32.mrb[0].mxu0
    %1256 = vdwg.mxu0
    %v1257 = vmax.f32 %v1239, 0.0
    %v1258 = vmax.f32 %v1244, 0.0
    %v1259 = vmax.f32 %v1249, 0.0
    %v1260 = vmax.f32 %v1254, 0.0
    %v1262 = vrot.slane %v1260, 7
    %v1267 = vrot.slane %v1257, 7
    %v1268 = vrot.slane %v1258, 7
    %v1269 = vsel %vm906, %v1267, %v1268
    %v1270 = vrot.slane %v1259, 7
    %v1271 = vsel %vm906, %v1268, %v1270
    %v1272 = vsel %vm906, %v1270, %v1262
    %v1277 = vsel %vm906, %v1262, %v1267
    %v1278 = vsel %vm934, %v1277, 0.0
    %v1279 = vsel %vm935, %v1269, 0.0
    %v1280 = vsel %vm936, %v1271, 0.0
    %v1281 = vsel %vm937, %v1272, 0.0
    %v1282 = vrot.slane %v1257, 1
    %v1283 = vrot.slane %v1258, 1
    %v1284 = vsel %vm946, %v1282, %v1283
    %v1285 = vrot.slane %v1259, 1
    %v1286 = vsel %vm946, %v1283, %v1285
    %v1287 = vrot.slane %v1260, 1
    %v1288 = vsel %vm946, %v1285, %v1287
    %v1294 = vsel %vm946, %v1287, %v1282
    %v1295 = vsel %vm976, %v1284, 0.0
    %v1296 = vsel %vm977, %v1286, 0.0
    %v1297 = vsel %vm978, %v1288, 0.0
    %v1298 = vsel %vm979, %v1294, 0.0
    %v1299 = vld [vmem:[#allocation11] sm:$0xf]
    %v1300 = vld [vmem:[#allocation11 + $0x4] sm:$0xf]
    %v1301 = vld [vmem:[#allocation11 + $0x8] sm:$0xf]
    %v1302 = vld [vmem:[#allocation11 + $0xc] sm:$0xf]
    %v1303 = vld [vmem:[#allocation11 + $0x10] sm:$0xf]
    %v1304 = vld [vmem:[#allocation11 + $0x14] sm:$0xf]
    %v1305 = vld [vmem:[#allocation11 + $0x18] sm:$0xf]
    %v1306 = vld [vmem:[#allocation11 + $0x1c] sm:$0xf]
    %v1307 = vld [vmem:[#allocation11 + $0x20] sm:$0xf]
    %v1308 = vld [vmem:[#allocation11 + $0x24] sm:$0xf]
    %v1309 = vld [vmem:[#allocation11 + $0x28] sm:$0xf]
    %v1310 = vld [vmem:[#allocation11 + $0x2c] sm:$0xf]
    %v1311 = vld [vmem:[#allocation11 + $0x30] sm:$0xf]
    %v1312 = vld [vmem:[#allocation11 + $0x34] sm:$0xf]
    %v1313 = vld [vmem:[#allocation11 + $0x38] sm:$0xf]
    %v1314 = vld [vmem:[#allocation11 + $0x3c] sm:$0xf]
    %v1315 = vld [vmem:[#allocation11 + $0x40] sm:$0xf]
    %v1316 = vld [vmem:[#allocation11 + $0x44] sm:$0xf]
    %v1317 = vld [vmem:[#allocation11 + $0x48] sm:$0xf]
    %v1318 = vld [vmem:[#allocation11 + $0x4c] sm:$0xf]
    %v1319 = vld [vmem:[#allocation11 + $0x50] sm:$0xf]
    %v1320 = vld [vmem:[#allocation11 + $0x54] sm:$0xf]
    %v1321 = vld [vmem:[#allocation11 + $0x58] sm:$0xf]
    %v1322 = vld [vmem:[#allocation11 + $0x5c] sm:$0xf]
    %v1323 = vld [vmem:[#allocation11 + $0x60] sm:$0xf]
    %v1324 = vld [vmem:[#allocation11 + $0x64] sm:$0xf]
    %v1325 = vld [vmem:[#allocation11 + $0x68] sm:$0xf]
    %v1326 = vld [vmem:[#allocation11 + $0x6c] sm:$0xf]
    %v1327 = vld [vmem:[#allocation11 + $0x70] sm:$0xf]
    %v1328 = vld [vmem:[#allocation11 + $0x74] sm:$0xf]
    %v1329 = vld [vmem:[#allocation11 + $0x78] sm:$0xf]
    %v1330 = vld [vmem:[#allocation11 + $0x7c] sm:$0xf]
    %v1331 = vld [vmem:[#allocation11 + $0x80] sm:$0xf]
    %v1332 = vld [vmem:[#allocation11 + $0x84] sm:$0xf]
    %v1333 = vld [vmem:[#allocation11 + $0x88] sm:$0xf]
    %v1334 = vld [vmem:[#allocation11 + $0x8c] sm:$0xf]
    %v1335 = vld [vmem:[#allocation11 + $0x90] sm:$0xf]
    %v1336 = vld [vmem:[#allocation11 + $0x94] sm:$0xf]
    %v1337 = vld [vmem:[#allocation11 + $0x98] sm:$0xf]
    %v1338 = vld [vmem:[#allocation11 + $0x9c] sm:$0xf]
    %v1339 = vld [vmem:[#allocation11 + $0xa0] sm:$0xf]
    %v1340 = vld [vmem:[#allocation11 + $0xa4] sm:$0xf]
    %v1341 = vld [vmem:[#allocation11 + $0xa8] sm:$0xf]
    %v1342 = vld [vmem:[#allocation11 + $0xac] sm:$0xf]
    %v1343 = vld [vmem:[#allocation11 + $0xb0] sm:$0xf]
    %v1344 = vld [vmem:[#allocation11 + $0xb4] sm:$0xf]
    %v1345 = vld [vmem:[#allocation11 + $0xb8] sm:$0xf]
    %v1346 = vld [vmem:[#allocation11 + $0xbc] sm:$0xf]
    %v1347 = vunpack.c.l.bf16 %v1299
    %v1348 = vunpack.c.l.bf16 %v1300
    %v1349 = vunpack.c.l.bf16 %v1301
    %v1350 = vunpack.c.l.bf16 %v1302
    %v1351 = vunpack.c.l.bf16 %v1303
    %v1352 = vunpack.c.l.bf16 %v1304
    %v1353 = vunpack.c.l.bf16 %v1305
    %v1354 = vunpack.c.l.bf16 %v1306
    %v1355 = vunpack.c.l.bf16 %v1307
    %v1356 = vunpack.c.l.bf16 %v1308
    %v1357 = vunpack.c.l.bf16 %v1309
    %v1358 = vunpack.c.l.bf16 %v1310
    %v1359 = vunpack.c.l.bf16 %v1311
    %v1360 = vunpack.c.l.bf16 %v1312
    %v1361 = vunpack.c.l.bf16 %v1313
    %v1362 = vunpack.c.l.bf16 %v1314
    %v1363 = vunpack.c.l.bf16 %v1315
    %v1364 = vunpack.c.l.bf16 %v1316
    %v1365 = vunpack.c.l.bf16 %v1317
    %v1366 = vunpack.c.l.bf16 %v1318
    %v1367 = vunpack.c.l.bf16 %v1319
    %v1368 = vunpack.c.l.bf16 %v1320
    %v1369 = vunpack.c.l.bf16 %v1321
    %v1370 = vunpack.c.l.bf16 %v1322
    %v1371 = vunpack.c.l.bf16 %v1323
    %v1372 = vunpack.c.l.bf16 %v1324
    %v1373 = vunpack.c.l.bf16 %v1325
    %v1374 = vunpack.c.l.bf16 %v1326
    %v1375 = vunpack.c.l.bf16 %v1327
    %v1376 = vunpack.c.l.bf16 %v1328
    %v1377 = vunpack.c.l.bf16 %v1329
    %v1378 = vunpack.c.l.bf16 %v1330
    %v1379 = vunpack.c.l.bf16 %v1331
    %v1380 = vunpack.c.l.bf16 %v1332
    %v1381 = vunpack.c.l.bf16 %v1333
    %v1382 = vunpack.c.l.bf16 %v1334
    %v1383 = vunpack.c.l.bf16 %v1335
    %v1384 = vunpack.c.l.bf16 %v1336
    %v1385 = vunpack.c.l.bf16 %v1337
    %v1386 = vunpack.c.l.bf16 %v1338
    %v1387 = vunpack.c.l.bf16 %v1339
    %v1388 = vunpack.c.l.bf16 %v1340
    %v1389 = vunpack.c.l.bf16 %v1341
    %v1390 = vunpack.c.l.bf16 %v1342
    %v1391 = vunpack.c.l.bf16 %v1343
    %v1392 = vunpack.c.l.bf16 %v1344
    %v1393 = vunpack.c.l.bf16 %v1345
    %v1394 = vunpack.c.l.bf16 %v1346
    %v1395 = vld [vmem:[%s13] sm:$0x1]
    %v1397 = vlaneseq
    %v1398 = vshrl.u32 %v1397, 7
    %v1399 = vsub.s32 0, %v1398
    %v1400 = vrot.slane %v1395, %v1399
    %1402 = vmatprep.subr.mxu0 0.0
    %1403 = vmatpush1.msra.mxu0 %v1347
    %1404 = vmatprep.subr.mxu0 0.0
    %1405 = vmatpush1.msra.mxu0 %v1348
    %1406 = vmatprep.subr.mxu0 0.0
    %1407 = vmatpush1.msra.mxu0 %v1349
    %1408 = vmatprep.subr.mxu0 0.0
    %1409 = vmatpush1.msra.mxu0 %v1350
    %1410 = vmatprep.subr.mxu0 0.0
    %1411 = vmatpush1.msra.mxu0 %v1351
    %1412 = vmatprep.subr.mxu0 0.0
    %1413 = vmatpush1.msra.mxu0 %v1352
    %1414 = vmatprep.subr.mxu0 0.0
    %1415 = vmatpush1.msra.mxu0 %v1353
    %1416 = vmatprep.subr.mxu0 0.0
    %1417 = vmatpush1.msra.mxu0 %v1354
    %1418 = vmatprep.subr.mxu0 0.0
    %1419 = vmatpush1.msra.mxu0 %v1355
    %1420 = vmatprep.subr.mxu0 0.0
    %1421 = vmatpush1.msra.mxu0 %v1356
    %1422 = vmatprep.subr.mxu0 0.0
    %1423 = vmatpush1.msra.mxu0 %v1357
    %1424 = vmatprep.subr.mxu0 0.0
    %1425 = vmatpush1.msra.mxu0 %v1358
    %1426 = vmatprep.subr.mxu0 0.0
    %1427 = vmatpush1.msra.mxu0 %v1359
    %1428 = vmatprep.subr.mxu0 0.0
    %1429 = vmatpush1.msra.mxu0 %v1360
    %1430 = vmatprep.subr.mxu0 0.0
    %1431 = vmatpush1.msra.mxu0 %v1361
    %1432 = vmatprep.subr.mxu0 0.0
    %1433 = vmatpush1.msra.mxu0 %v1362
    %1434 = vmatprep.subr.mxu0 0.0
    %1435 = vmatpush1.msra.mxu0 %v1363
    %1436 = vmatprep.subr.mxu0 0.0
    %1437 = vmatpush1.msra.mxu0 %v1364
    %1438 = vmatprep.subr.mxu0 0.0
    %1439 = vmatpush1.msra.mxu0 %v1365
    %1440 = vmatprep.subr.mxu0 0.0
    %1441 = vmatpush1.msra.mxu0 %v1366
    %1442 = vmatprep.subr.mxu0 0.0
    %1443 = vmatpush1.msra.mxu0 %v1367
    %1444 = vmatprep.subr.mxu0 0.0
    %1445 = vmatpush1.msra.mxu0 %v1368
    %1446 = vmatprep.subr.mxu0 0.0
    %1447 = vmatpush1.msra.mxu0 %v1369
    %1448 = vmatprep.subr.mxu0 0.0
    %1449 = vmatpush1.msra.mxu0 %v1370
    %1450 = vmatprep.subr.mxu0 0.0
    %1451 = vmatpush1.msra.mxu0 %v1371
    %1452 = vmatprep.subr.mxu0 0.0
    %1453 = vmatpush1.msra.mxu0 %v1372
    %1454 = vmatprep.subr.mxu0 0.0
    %1455 = vmatpush1.msra.mxu0 %v1373
    %1456 = vmatprep.subr.mxu0 0.0
    %1457 = vmatpush1.msra.mxu0 %v1374
    %1458 = vmatprep.subr.mxu0 0.0
    %1459 = vmatpush1.msra.mxu0 %v1375
    %1460 = vmatprep.subr.mxu0 0.0
    %1461 = vmatpush1.msra.mxu0 %v1376
    %1462 = vmatprep.subr.mxu0 0.0
    %1463 = vmatpush1.msra.mxu0 %v1377
    %1464 = vmatprep.subr.mxu0 0.0
    %1465 = vmatpush1.msra.mxu0 %v1378
    %1466 = vmatprep.mubr.f32.mxu0 %v1278
    %1467 = vmatmul.mubr.f32.gmra.mrb[0].mxu0 %v1257
    %v1468 = vpop.f32.mrb[0].mxu0
    %v1469 = vadd.f32 %v1400, %v1468
    %v1470 = vpop.f32.mrb[0].mxu0
    %1471 = vmatprep.mubr.f32.mxu0 %v1279
    %1472 = vmatmul.mubr.f32.gmra.mrb[0].mxu0 %v1258
    %v1473 = vpop.f32.mrb[0].mxu0
    %v1474 = vadd.f32 %v1400, %v1473
    %v1475 = vpop.f32.mrb[0].mxu0
    %1476 = vmatprep.mubr.f32.mxu0 %v1280
    %1477 = vmatmul.mubr.f32.gmra.mrb[0].mxu0 %v1259
    %v1478 = vpop.f32.mrb[0].mxu0
    %v1479 = vadd.f32 %v1400, %v1478
    %v1480 = vpop.f32.mrb[0].mxu0
    %1481 = vmatprep.mubr.f32.mxu0 %v1281
    %1482 = vmatmul.mubr.f32.gmra.mrb[0].mxu0 %v1260
    %v1483 = vpop.f32.mrb[0].mxu0
    %v1484 = vadd.f32 %v1400, %v1483
    %v1485 = vpop.f32.mrb[0].mxu0
    %1486 = vdwg.mxu0
    %1487 = vmatprep.subr.mxu0 0.0
    %1488 = vmatpush1.msra.mxu0 %v1379
    %1489 = vmatprep.subr.mxu0 0.0
    %1490 = vmatpush1.msra.mxu0 %v1380
    %1491 = vmatprep.subr.mxu0 0.0
    %1492 = vmatpush1.msra.mxu0 %v1381
    %1493 = vmatprep.subr.mxu0 0.0
    %1494 = vmatpush1.msra.mxu0 %v1382
    %1495 = vmatprep.subr.mxu0 0.0
    %1496 = vmatpush1.msra.mxu0 %v1383
    %1497 = vmatprep.subr.mxu0 0.0
    %1498 = vmatpush1.msra.mxu0 %v1384
    %1499 = vmatprep.subr.mxu0 0.0
    %1500 = vmatpush1.msra.mxu0 %v1385
    %1501 = vmatprep.subr.mxu0 0.0
    %1502 = vmatpush1.msra.mxu0 %v1386
    %1503 = vmatprep.subr.mxu0 0.0
    %1504 = vmatpush1.msra.mxu0 %v1387
    %1505 = vmatprep.subr.mxu0 0.0
    %1506 = vmatpush1.msra.mxu0 %v1388
    %1507 = vmatprep.subr.mxu0 0.0
    %1508 = vmatpush1.msra.mxu0 %v1389
    %1509 = vmatprep.subr.mxu0 0.0
    %1510 = vmatpush1.msra.mxu0 %v1390
    %1511 = vmatprep.subr.mxu0 0.0
    %1512 = vmatpush1.msra.mxu0 %v1391
    %1513 = vmatprep.subr.mxu0 0.0
    %1514 = vmatpush1.msra.mxu0 %v1392
    %1515 = vmatprep.subr.mxu0 0.0
    %1516 = vmatpush1.msra.mxu0 %v1393
    %1517 = vmatprep.subr.mxu0 0.0
    %1518 = vmatpush1.msra.mxu0 %v1394
    %1519 = vmatprep.subr.mxu0 0.0
    %1520 = vmatpush1.msra.mxu0 0.0
    %1521 = vmatprep.subr.mxu0 0.0
    %1522 = vmatpush1.msra.mxu0 0.0
    %1523 = vmatprep.subr.mxu0 0.0
    %1524 = vmatpush1.msra.mxu0 0.0
    %1525 = vmatprep.subr.mxu0 0.0
    %1526 = vmatpush1.msra.mxu0 0.0
    %1527 = vmatprep.subr.mxu0 0.0
    %1528 = vmatpush1.msra.mxu0 0.0
    %1529 = vmatprep.subr.mxu0 0.0
    %1530 = vmatpush1.msra.mxu0 0.0
    %1531 = vmatprep.subr.mxu0 0.0
    %1532 = vmatpush1.msra.mxu0 0.0
    %1533 = vmatprep.subr.mxu0 0.0
    %1534 = vmatpush1.msra.mxu0 0.0
    %1535 = vmatprep.subr.mxu0 0.0
    %1536 = vmatpush1.msra.mxu0 0.0
    %1537 = vmatprep.subr.mxu0 0.0
    %1538 = vmatpush1.msra.mxu0 0.0
    %1539 = vmatprep.subr.mxu0 0.0
    %1540 = vmatpush1.msra.mxu0 0.0
    %1541 = vmatprep.subr.mxu0 0.0
    %1542 = vmatpush1.msra.mxu0 0.0
    %1543 = vmatprep.subr.mxu0 0.0
    %1544 = vmatpush1.msra.mxu0 0.0
    %1545 = vmatprep.subr.mxu0 0.0
    %1546 = vmatpush1.msra.mxu0 0.0
    %1547 = vmatprep.subr.mxu0 0.0
    %1548 = vmatpush1.msra.mxu0 0.0
    %1549 = vmatprep.subr.mxu0 0.0
    %1550 = vmatpush1.msra.mxu0 0.0
    %1551 = vmatprep.mubr.f32.mxu0 0.0
    %1552 = vmatmul.mubr.f32.gmra.mrb[0].mxu0 %v1295
    %v1553 = vpop.f32.mrb[0].mxu0
    %v1554 = vadd.f32 %v1469, %v1553
    %v1555 = vpop.f32.mrb[0].mxu0
    %1556 = vmatprep.mubr.f32.mxu0 0.0
    %1557 = vmatmul.mubr.f32.gmra.mrb[0].mxu0 %v1296
    %v1558 = vpop.f32.mrb[0].mxu0
    %v1559 = vadd.f32 %v1474, %v1558
    %v1560 = vpop.f32.mrb[0].mxu0
    %1561 = vmatprep.mubr.f32.mxu0 0.0
    %1562 = vmatmul.mubr.f32.gmra.mrb[0].mxu0 %v1297
    %v1563 = vpop.f32.mrb[0].mxu0
    %v1564 = vadd.f32 %v1479, %v1563
    %v1565 = vpop.f32.mrb[0].mxu0
    %1566 = vmatprep.mubr.f32.mxu0 0.0
    %1567 = vmatmul.mubr.f32.gmra.mrb[0].mxu0 %v1298
    %v1568 = vpop.f32.mrb[0].mxu0
    %v1569 = vadd.f32 %v1484, %v1568
    %v1570 = vpop.f32.mrb[0].mxu0
    %1571 = vdwg.mxu0
    %vm1572 = vcmp.gt.f32.partialorder %v216, 0.5
    %1577 = vrot.lane.b32.xlu0 %v874, 8
    %v1578 = vpop.permute.xlu0 %1577
    %1579 = vrot.lane.b32.xlu0 %v879, 8
    %v1580 = vpop.permute.xlu0 %1579
    %1581 = vrot.lane.b32.xlu0 %v884, 8
    %v1582 = vpop.permute.xlu0 %1581
    %1583 = vrot.lane.b32.xlu0 %v889, 8
    %v1584 = vpop.permute.xlu0 %1583
    %v1589 = vsel %vm1572, 1, 0
    %v1590 = vlaneseq
    %v1591 = vshrl.u32 %v1590, 7
    %v1592 = vsub.s32 0, %v1591
    %v1593 = vrot.slane %v1589, %v1592
    %vm1594 = vcmp.eq.s32.totalorder %v1593, 1
    %v1595 = vsel %vm1594, %v1578, -1e+30
    %v1596 = vsel %vm1594, %v1580, -1e+30
    %v1597 = vsel %vm1594, %v1582, -1e+30
    %v1598 = vsel %vm1594, %v1584, -1e+30
    %vm1599 = vcmp.gt.f32.partialorder %v217, 0.5
    %1600 = vrot.lane.b32.xlu0 %v874, 120
    %v1601 = vpop.permute.xlu0 %1600
    %1602 = vrot.lane.b32.xlu0 %v879, 120
    %v1603 = vpop.permute.xlu0 %1602
    %1604 = vrot.lane.b32.xlu0 %v884, 120
    %v1605 = vpop.permute.xlu0 %1604
    %1606 = vrot.lane.b32.xlu0 %v889, 120
    %v1607 = vpop.permute.xlu0 %1606
    %v1612 = vsel %vm1599, 1, 0
    %v1613 = vlaneseq
    %v1614 = vshrl.u32 %v1613, 7
    %v1615 = vsub.s32 0, %v1614
    %v1616 = vrot.slane %v1612, %v1615
    %vm1617 = vcmp.eq.s32.totalorder %v1616, 1
    %v1618 = vsel %vm1617, %v1601, -1e+30
    %v1619 = vsel %vm1617, %v1603, -1e+30
    %v1620 = vsel %vm1617, %v1605, -1e+30
    %v1621 = vsel %vm1617, %v1607, -1e+30
    %v1622 = vmax.f32 %v1595, %v1618
    %v1623 = vmax.f32 %v1596, %v1619
    %v1624 = vmax.f32 %v1597, %v1620
    %v1625 = vmax.f32 %v1598, %v1621
    %v1626 = vmax.f32 %v874, %v1622
    %v1627 = vmax.f32 %v879, %v1623
    %v1628 = vmax.f32 %v884, %v1624
    %v1629 = vmax.f32 %v889, %v1625
    %v1631 = vrot.slane %v1629, 7
    %v1636 = vrot.slane %v1626, 7
    %v1637 = vrot.slane %v1627, 7
    %v1638 = vsel %vm906, %v1636, %v1637
    %v1639 = vrot.slane %v1628, 7
    %v1640 = vsel %vm906, %v1637, %v1639
    %v1641 = vsel %vm906, %v1639, %v1631
    %v1646 = vsel %vm906, %v1631, %v1636
    %v1647 = vsel %vm934, %v1646, -1e+30
    %v1648 = vsel %vm935, %v1638, -1e+30
    %v1649 = vsel %vm936, %v1640, -1e+30
    %v1650 = vsel %vm937, %v1641, -1e+30
    %v1651 = vrot.slane %v1626, 1
    %v1652 = vrot.slane %v1627, 1
    %v1653 = vsel %vm946, %v1651, %v1652
    %v1654 = vrot.slane %v1628, 1
    %v1655 = vsel %vm946, %v1652, %v1654
    %v1656 = vrot.slane %v1629, 1
    %v1657 = vsel %vm946, %v1654, %v1656
    %v1663 = vsel %vm946, %v1656, %v1651
    %v1664 = vsel %vm976, %v1653, -1e+30
    %v1665 = vsel %vm977, %v1655, -1e+30
    %v1666 = vsel %vm978, %v1657, -1e+30
    %v1667 = vsel %vm979, %v1663, -1e+30
    %v1668 = vmax.f32 %v1647, %v1664
    %v1669 = vmax.f32 %v1648, %v1665
    %v1670 = vmax.f32 %v1649, %v1666
    %v1671 = vmax.f32 %v1650, %v1667
    %v1672 = vmax.f32 %v1626, %v1668
    %v1673 = vmax.f32 %v1627, %v1669
    %v1674 = vmax.f32 %v1628, %v1670
    %v1675 = vmax.f32 %v1629, %v1671
    %v1676 = vadd.f32 %v1554, %v1672
    %v1677 = vadd.f32 %v1559, %v1673
    %v1678 = vadd.f32 %v1564, %v1674
    %v1679 = vadd.f32 %v1569, %v1675
    %v1680 = vld [vmem:[#allocation13] sm:$0xf]
    %v1681 = vld [vmem:[#allocation13 + $0x4] sm:$0xf]
    %v1682 = vld [vmem:[#allocation13 + $0x8] sm:$0xf]
    %v1683 = vld [vmem:[#allocation13 + $0xc] sm:$0xf]
    %v1684 = vld [vmem:[#allocation13 + $0x10] sm:$0xf]
    %v1685 = vld [vmem:[#allocation13 + $0x14] sm:$0xf]
    %v1686 = vld [vmem:[#allocation13 + $0x18] sm:$0xf]
    %v1687 = vld [vmem:[#allocation13 + $0x1c] sm:$0xf]
    %v1688 = vld [vmem:[#allocation13 + $0x20] sm:$0xf]
    %v1689 = vld [vmem:[#allocation13 + $0x24] sm:$0xf]
    %v1690 = vld [vmem:[#allocation13 + $0x28] sm:$0xf]
    %v1691 = vld [vmem:[#allocation13 + $0x2c] sm:$0xf]
    %v1692 = vld [vmem:[#allocation13 + $0x30] sm:$0xf]
    %v1693 = vld [vmem:[#allocation13 + $0x34] sm:$0xf]
    %v1694 = vld [vmem:[#allocation13 + $0x38] sm:$0xf]
    %v1695 = vld [vmem:[#allocation13 + $0x3c] sm:$0xf]
    %v1696 = vld [vmem:[#allocation13 + $0x40] sm:$0xf]
    %v1697 = vld [vmem:[#allocation13 + $0x44] sm:$0xf]
    %v1698 = vld [vmem:[#allocation13 + $0x48] sm:$0xf]
    %v1699 = vld [vmem:[#allocation13 + $0x4c] sm:$0xf]
    %v1700 = vld [vmem:[#allocation13 + $0x50] sm:$0xf]
    %v1701 = vld [vmem:[#allocation13 + $0x54] sm:$0xf]
    %v1702 = vld [vmem:[#allocation13 + $0x58] sm:$0xf]
    %v1703 = vld [vmem:[#allocation13 + $0x5c] sm:$0xf]
    %v1704 = vld [vmem:[#allocation13 + $0x60] sm:$0xf]
    %v1705 = vld [vmem:[#allocation13 + $0x64] sm:$0xf]
    %v1706 = vld [vmem:[#allocation13 + $0x68] sm:$0xf]
    %v1707 = vld [vmem:[#allocation13 + $0x6c] sm:$0xf]
    %v1708 = vld [vmem:[#allocation13 + $0x70] sm:$0xf]
    %v1709 = vld [vmem:[#allocation13 + $0x74] sm:$0xf]
    %v1710 = vld [vmem:[#allocation13 + $0x78] sm:$0xf]
    %v1711 = vld [vmem:[#allocation13 + $0x7c] sm:$0xf]
    %v1712 = vld [vmem:[#allocation13 + $0x80] sm:$0xf]
    %v1713 = vld [vmem:[#allocation13 + $0x84] sm:$0xf]
    %v1714 = vld [vmem:[#allocation13 + $0x88] sm:$0xf]
    %v1715 = vld [vmem:[#allocation13 + $0x8c] sm:$0xf]
    %v1716 = vld [vmem:[#allocation13 + $0x90] sm:$0xf]
    %v1717 = vld [vmem:[#allocation13 + $0x94] sm:$0xf]
    %v1718 = vld [vmem:[#allocation13 + $0x98] sm:$0xf]
    %v1719 = vld [vmem:[#allocation13 + $0x9c] sm:$0xf]
    %v1720 = vld [vmem:[#allocation13 + $0xa0] sm:$0xf]
    %v1721 = vld [vmem:[#allocation13 + $0xa4] sm:$0xf]
    %v1722 = vld [vmem:[#allocation13 + $0xa8] sm:$0xf]
    %v1723 = vld [vmem:[#allocation13 + $0xac] sm:$0xf]
    %v1724 = vld [vmem:[#allocation13 + $0xb0] sm:$0xf]
    %v1725 = vld [vmem:[#allocation13 + $0xb4] sm:$0xf]
    %v1726 = vld [vmem:[#allocation13 + $0xb8] sm:$0xf]
    %v1727 = vld [vmem:[#allocation13 + $0xbc] sm:$0xf]
    %v1728 = vunpack.c.l.bf16 %v1680
    %v1729 = vunpack.c.l.bf16 %v1681
    %v1730 = vunpack.c.l.bf16 %v1682
    %v1731 = vunpack.c.l.bf16 %v1683
    %v1732 = vunpack.c.l.bf16 %v1684
    %v1733 = vunpack.c.l.bf16 %v1685
    %v1734 = vunpack.c.l.bf16 %v1686
    %v1735 = vunpack.c.l.bf16 %v1687
    %v1736 = vunpack.c.l.bf16 %v1688
    %v1737 = vunpack.c.l.bf16 %v1689
    %v1738 = vunpack.c.l.bf16 %v1690
    %v1739 = vunpack.c.l.bf16 %v1691
    %v1740 = vunpack.c.l.bf16 %v1692
    %v1741 = vunpack.c.l.bf16 %v1693
    %v1742 = vunpack.c.l.bf16 %v1694
    %v1743 = vunpack.c.l.bf16 %v1695
    %v1744 = vunpack.c.l.bf16 %v1696
    %v1745 = vunpack.c.l.bf16 %v1697
    %v1746 = vunpack.c.l.bf16 %v1698
    %v1747 = vunpack.c.l.bf16 %v1699
    %v1748 = vunpack.c.l.bf16 %v1700
    %v1749 = vunpack.c.l.bf16 %v1701
    %v1750 = vunpack.c.l.bf16 %v1702
    %v1751 = vunpack.c.l.bf16 %v1703
    %v1752 = vunpack.c.l.bf16 %v1704
    %v1753 = vunpack.c.l.bf16 %v1705
    %v1754 = vunpack.c.l.bf16 %v1706
    %v1755 = vunpack.c.l.bf16 %v1707
    %v1756 = vunpack.c.l.bf16 %v1708
    %v1757 = vunpack.c.l.bf16 %v1709
    %v1758 = vunpack.c.l.bf16 %v1710
    %v1759 = vunpack.c.l.bf16 %v1711
    %v1760 = vunpack.c.l.bf16 %v1712
    %v1761 = vunpack.c.l.bf16 %v1713
    %v1762 = vunpack.c.l.bf16 %v1714
    %v1763 = vunpack.c.l.bf16 %v1715
    %v1764 = vunpack.c.l.bf16 %v1716
    %v1765 = vunpack.c.l.bf16 %v1717
    %v1766 = vunpack.c.l.bf16 %v1718
    %v1767 = vunpack.c.l.bf16 %v1719
    %v1768 = vunpack.c.l.bf16 %v1720
    %v1769 = vunpack.c.l.bf16 %v1721
    %v1770 = vunpack.c.l.bf16 %v1722
    %v1771 = vunpack.c.l.bf16 %v1723
    %v1772 = vunpack.c.l.bf16 %v1724
    %v1773 = vunpack.c.l.bf16 %v1725
    %v1774 = vunpack.c.l.bf16 %v1726
    %v1775 = vunpack.c.l.bf16 %v1727
    %v1776 = vld [vmem:[%s15] sm:$0x1]
    %v1778 = vlaneseq
    %v1779 = vshrl.u32 %v1778, 7
    %v1780 = vsub.s32 0, %v1779
    %v1781 = vrot.slane %v1776, %v1780
    %1783 = vmatprep.subr.mxu0 0.0
    %1784 = vmatpush1.msra.mxu0 %v1728
    %1785 = vmatprep.subr.mxu0 0.0
    %1786 = vmatpush1.msra.mxu0 %v1729
    %1787 = vmatprep.subr.mxu0 0.0
    %1788 = vmatpush1.msra.mxu0 %v1730
    %1789 = vmatprep.subr.mxu0 0.0
    %1790 = vmatpush1.msra.mxu0 %v1731
    %1791 = vmatprep.subr.mxu0 0.0
    %1792 = vmatpush1.msra.mxu0 %v1732
    %1793 = vmatprep.subr.mxu0 0.0
    %1794 = vmatpush1.msra.mxu0 %v1733
    %1795 = vmatprep.subr.mxu0 0.0
    %1796 = vmatpush1.msra.mxu0 %v1734
    %1797 = vmatprep.subr.mxu0 0.0
    %1798 = vmatpush1.msra.mxu0 %v1735
    %1799 = vmatprep.subr.mxu0 0.0
    %1800 = vmatpush1.msra.mxu0 %v1736
    %1801 = vmatprep.subr.mxu0 0.0
    %1802 = vmatpush1.msra.mxu0 %v1737
    %1803 = vmatprep.subr.mxu0 0.0
    %1804 = vmatpush1.msra.mxu0 %v1738
    %1805 = vmatprep.subr.mxu0 0.0
    %1806 = vmatpush1.msra.mxu0 %v1739
    %1807 = vmatprep.subr.mxu0 0.0
    %1808 = vmatpush1.msra.mxu0 %v1740
    %1809 = vmatprep.subr.mxu0 0.0
    %1810 = vmatpush1.msra.mxu0 %v1741
    %1811 = vmatprep.subr.mxu0 0.0
    %1812 = vmatpush1.msra.mxu0 %v1742
    %1813 = vmatprep.subr.mxu0 0.0
    %1814 = vmatpush1.msra.mxu0 %v1743
    %1815 = vmatprep.subr.mxu0 0.0
    %1816 = vmatpush1.msra.mxu0 %v1744
    %1817 = vmatprep.subr.mxu0 0.0
    %1818 = vmatpush1.msra.mxu0 %v1745
    %1819 = vmatprep.subr.mxu0 0.0
    %1820 = vmatpush1.msra.mxu0 %v1746
    %1821 = vmatprep.subr.mxu0 0.0
    %1822 = vmatpush1.msra.mxu0 %v1747
    %1823 = vmatprep.subr.mxu0 0.0
    %1824 = vmatpush1.msra.mxu0 %v1748
    %1825 = vmatprep.subr.mxu0 0.0
    %1826 = vmatpush1.msra.mxu0 %v1749
    %1827 = vmatprep.subr.mxu0 0.0
    %1828 = vmatpush1.msra.mxu0 %v1750
    %1829 = vmatprep.subr.mxu0 0.0
    %1830 = vmatpush1.msra.mxu0 %v1751
    %1831 = vmatprep.subr.mxu0 0.0
    %1832 = vmatpush1.msra.mxu0 %v1752
    %1833 = vmatprep.subr.mxu0 0.0
    %1834 = vmatpush1.msra.mxu0 %v1753
    %1835 = vmatprep.subr.mxu0 0.0
    %1836 = vmatpush1.msra.mxu0 %v1754
    %1837 = vmatprep.subr.mxu0 0.0
    %1838 = vmatpush1.msra.mxu0 %v1755
    %1839 = vmatprep.subr.mxu0 0.0
    %1840 = vmatpush1.msra.mxu0 %v1756
    %1841 = vmatprep.subr.mxu0 0.0
    %1842 = vmatpush1.msra.mxu0 %v1757
    %1843 = vmatprep.subr.mxu0 0.0
    %1844 = vmatpush1.msra.mxu0 %v1758
    %1845 = vmatprep.subr.mxu0 0.0
    %1846 = vmatpush1.msra.mxu0 %v1759
    %1847 = vmatprep.mubr.f32.mxu0 %v938
    %1848 = vmatmul.mubr.f32.gmra.mrb[0].mxu0 %v892
    %v1849 = vpop.f32.mrb[0].mxu0
    %v1850 = vadd.f32 %v1781, %v1849
    %v1851 = vpop.f32.mrb[0].mxu0
    %1852 = vmatprep.mubr.f32.mxu0 %v939
    %1853 = vmatmul.mubr.f32.gmra.mrb[0].mxu0 %v893
    %v1854 = vpop.f32.mrb[0].mxu0
    %v1855 = vadd.f32 %v1781, %v1854
    %v1856 = vpop.f32.mrb[0].mxu0
    %1857 = vmatprep.mubr.f32.mxu0 %v940
    %1858 = vmatmul.mubr.f32.gmra.mrb[0].mxu0 %v894
    %v1859 = vpop.f32.mrb[0].mxu0
    %v1860 = vadd.f32 %v1781, %v1859
    %v1861 = vpop.f32.mrb[0].mxu0
    %1862 = vmatprep.mubr.f32.mxu0 %v941
    %1863 = vmatmul.mubr.f32.gmra.mrb[0].mxu0 %v895
    %v1864 = vpop.f32.mrb[0].mxu0
    %v1865 = vadd.f32 %v1781, %v1864
    %v1866 = vpop.f32.mrb[0].mxu0
    %1867 = vdwg.mxu0
    %1868 = vmatprep.subr.mxu0 0.0
    %1869 = vmatpush1.msra.mxu0 %v1760
    %1870 = vmatprep.subr.mxu0 0.0
    %1871 = vmatpush1.msra.mxu0 %v1761
    %1872 = vmatprep.subr.mxu0 0.0
    %1873 = vmatpush1.msra.mxu0 %v1762
    %1874 = vmatprep.subr.mxu0 0.0
    %1875 = vmatpush1.msra.mxu0 %v1763
    %1876 = vmatprep.subr.mxu0 0.0
    %1877 = vmatpush1.msra.mxu0 %v1764
    %1878 = vmatprep.subr.mxu0 0.0
    %1879 = vmatpush1.msra.mxu0 %v1765
    %1880 = vmatprep.subr.mxu0 0.0
    %1881 = vmatpush1.msra.mxu0 %v1766
    %1882 = vmatprep.subr.mxu0 0.0
    %1883 = vmatpush1.msra.mxu0 %v1767
    %1884 = vmatprep.subr.mxu0 0.0
    %1885 = vmatpush1.msra.mxu0 %v1768
    %1886 = vmatprep.subr.mxu0 0.0
    %1887 = vmatpush1.msra.mxu0 %v1769
    %1888 = vmatprep.subr.mxu0 0.0
    %1889 = vmatpush1.msra.mxu0 %v1770
    %1890 = vmatprep.subr.mxu0 0.0
    %1891 = vmatpush1.msra.mxu0 %v1771
    %1892 = vmatprep.subr.mxu0 0.0
    %1893 = vmatpush1.msra.mxu0 %v1772
    %1894 = vmatprep.subr.mxu0 0.0
    %1895 = vmatpush1.msra.mxu0 %v1773
    %1896 = vmatprep.subr.mxu0 0.0
    %1897 = vmatpush1.msra.mxu0 %v1774
    %1898 = vmatprep.subr.mxu0 0.0
    %1899 = vmatpush1.msra.mxu0 %v1775
    %1900 = vmatprep.subr.mxu0 0.0
    %1901 = vmatpush1.msra.mxu0 0.0
    %1902 = vmatprep.subr.mxu0 0.0
    %1903 = vmatpush1.msra.mxu0 0.0
    %1904 = vmatprep.subr.mxu0 0.0
    %1905 = vmatpush1.msra.mxu0 0.0
    %1906 = vmatprep.subr.mxu0 0.0
    %1907 = vmatpush1.msra.mxu0 0.0
    %1908 = vmatprep.subr.mxu0 0.0
    %1909 = vmatpush1.msra.mxu0 0.0
    %1910 = vmatprep.subr.mxu0 0.0
    %1911 = vmatpush1.msra.mxu0 0.0
    %1912 = vmatprep.subr.mxu0 0.0
    %1913 = vmatpush1.msra.mxu0 0.0
    %1914 = vmatprep.subr.mxu0 0.0
    %1915 = vmatpush1.msra.mxu0 0.0
    %1916 = vmatprep.subr.mxu0 0.0
    %1917 = vmatpush1.msra.mxu0 0.0
    %1918 = vmatprep.subr.mxu0 0.0
    %1919 = vmatpush1.msra.mxu0 0.0
    %1920 = vmatprep.subr.mxu0 0.0
    %1921 = vmatpush1.msra.mxu0 0.0
    %1922 = vmatprep.subr.mxu0 0.0
    %1923 = vmatpush1.msra.mxu0 0.0
    %1924 = vmatprep.subr.mxu0 0.0
    %1925 = vmatpush1.msra.mxu0 0.0
    %1926 = vmatprep.subr.mxu0 0.0
    %1927 = vmatpush1.msra.mxu0 0.0
    %1928 = vmatprep.subr.mxu0 0.0
    %1929 = vmatpush1.msra.mxu0 0.0
    %1930 = vmatprep.subr.mxu0 0.0
    %1931 = vmatpush1.msra.mxu0 0.0
    %1932 = vmatprep.mubr.f32.mxu0 0.0
    %1933 = vmatmul.mubr.f32.gmra.mrb[0].mxu0 %v980
    %v1934 = vpop.f32.mrb[0].mxu0
    %v1935 = vadd.f32 %v1850, %v1934
    %v1936 = vpop.f32.mrb[0].mxu0
    %1937 = vmatprep.mubr.f32.mxu0 0.0
    %1938 = vmatmul.mubr.f32.gmra.mrb[0].mxu0 %v981
    %v1939 = vpop.f32.mrb[0].mxu0
    %v1940 = vadd.f32 %v1855, %v1939
    %v1941 = vpop.f32.mrb[0].mxu0
    %1942 = vmatprep.mubr.f32.mxu0 0.0
    %1943 = vmatmul.mubr.f32.gmra.mrb[0].mxu0 %v982
    %v1944 = vpop.f32.mrb[0].mxu0
    %v1945 = vadd.f32 %v1860, %v1944
    %v1946 = vpop.f32.mrb[0].mxu0
    %1947 = vmatprep.mubr.f32.mxu0 0.0
    %1948 = vmatmul.mubr.f32.gmra.mrb[0].mxu0 %v983
    %v1949 = vpop.f32.mrb[0].mxu0
    %v1950 = vadd.f32 %v1865, %v1949
    %v1951 = vpop.f32.mrb[0].mxu0
    %1952 = vdwg.mxu0
    %v1953 = vmax.f32 %v1935, 0.0
    %v1954 = vmax.f32 %v1940, 0.0
    %v1955 = vmax.f32 %v1945, 0.0
    %v1956 = vmax.f32 %v1950, 0.0
    %v1958 = vrot.slane %v1956, 7
    %v1963 = vrot.slane %v1953, 7
    %v1964 = vrot.slane %v1954, 7
    %v1965 = vsel %vm906, %v1963, %v1964
    %v1966 = vrot.slane %v1955, 7
    %v1967 = vsel %vm906, %v1964, %v1966
    %v1968 = vsel %vm906, %v1966, %v1958
    %v1973 = vsel %vm906, %v1958, %v1963
    %v1974 = vsel %vm934, %v1973, 0.0
    %v1975 = vsel %vm935, %v1965, 0.0
    %v1976 = vsel %vm936, %v1967, 0.0
    %v1977 = vsel %vm937, %v1968, 0.0
    %v1978 = vrot.slane %v1953, 1
    %v1979 = vrot.slane %v1954, 1
    %v1980 = vsel %vm946, %v1978, %v1979
    %v1981 = vrot.slane %v1955, 1
    %v1982 = vsel %vm946, %v1979, %v1981
    %v1983 = vrot.slane %v1956, 1
    %v1984 = vsel %vm946, %v1981, %v1983
    %v1990 = vsel %vm946, %v1983, %v1978
    %v1991 = vsel %vm976, %v1980, 0.0
    %v1992 = vsel %vm977, %v1982, 0.0
    %v1993 = vsel %vm978, %v1984, 0.0
    %v1994 = vsel %vm979, %v1990, 0.0
    %v1995 = vld [vmem:[#allocation14] sm:$0xf]
    %v1996 = vld [vmem:[#allocation14 + $0x4] sm:$0xf]
    %v1997 = vld [vmem:[#allocation14 + $0x8] sm:$0xf]
    %v1998 = vld [vmem:[#allocation14 + $0xc] sm:$0xf]
    %v1999 = vld [vmem:[#allocation14 + $0x10] sm:$0xf]
    %v2000 = vld [vmem:[#allocation14 + $0x14] sm:$0xf]
    %v2001 = vld [vmem:[#allocation14 + $0x18] sm:$0xf]
    %v2002 = vld [vmem:[#allocation14 + $0x1c] sm:$0xf]
    %v2003 = vld [vmem:[#allocation14 + $0x20] sm:$0xf]
    %v2004 = vld [vmem:[#allocation14 + $0x24] sm:$0xf]
    %v2005 = vld [vmem:[#allocation14 + $0x28] sm:$0xf]
    %v2006 = vld [vmem:[#allocation14 + $0x2c] sm:$0xf]
    %v2007 = vld [vmem:[#allocation14 + $0x30] sm:$0xf]
    %v2008 = vld [vmem:[#allocation14 + $0x34] sm:$0xf]
    %v2009 = vld [vmem:[#allocation14 + $0x38] sm:$0xf]
    %v2010 = vld [vmem:[#allocation14 + $0x3c] sm:$0xf]
    %v2011 = vld [vmem:[#allocation14 + $0x40] sm:$0xf]
    %v2012 = vld [vmem:[#allocation14 + $0x44] sm:$0xf]
    %v2013 = vld [vmem:[#allocation14 + $0x48] sm:$0xf]
    %v2014 = vld [vmem:[#allocation14 + $0x4c] sm:$0xf]
    %v2015 = vld [vmem:[#allocation14 + $0x50] sm:$0xf]
    %v2016 = vld [vmem:[#allocation14 + $0x54] sm:$0xf]
    %v2017 = vld [vmem:[#allocation14 + $0x58] sm:$0xf]
    %v2018 = vld [vmem:[#allocation14 + $0x5c] sm:$0xf]
    %v2019 = vld [vmem:[#allocation14 + $0x60] sm:$0xf]
    %v2020 = vld [vmem:[#allocation14 + $0x64] sm:$0xf]
    %v2021 = vld [vmem:[#allocation14 + $0x68] sm:$0xf]
    %v2022 = vld [vmem:[#allocation14 + $0x6c] sm:$0xf]
    %v2023 = vld [vmem:[#allocation14 + $0x70] sm:$0xf]
    %v2024 = vld [vmem:[#allocation14 + $0x74] sm:$0xf]
    %v2025 = vld [vmem:[#allocation14 + $0x78] sm:$0xf]
    %v2026 = vld [vmem:[#allocation14 + $0x7c] sm:$0xf]
    %v2027 = vld [vmem:[#allocation14 + $0x80] sm:$0xf]
    %v2028 = vld [vmem:[#allocation14 + $0x84] sm:$0xf]
    %v2029 = vld [vmem:[#allocation14 + $0x88] sm:$0xf]
    %v2030 = vld [vmem:[#allocation14 + $0x8c] sm:$0xf]
    %v2031 = vld [vmem:[#allocation14 + $0x90] sm:$0xf]
    %v2032 = vld [vmem:[#allocation14 + $0x94] sm:$0xf]
    %v2033 = vld [vmem:[#allocation14 + $0x98] sm:$0xf]
    %v2034 = vld [vmem:[#allocation14 + $0x9c] sm:$0xf]
    %v2035 = vld [vmem:[#allocation14 + $0xa0] sm:$0xf]
    %v2036 = vld [vmem:[#allocation14 + $0xa4] sm:$0xf]
    %v2037 = vld [vmem:[#allocation14 + $0xa8] sm:$0xf]
    %v2038 = vld [vmem:[#allocation14 + $0xac] sm:$0xf]
    %v2039 = vld [vmem:[#allocation14 + $0xb0] sm:$0xf]
    %v2040 = vld [vmem:[#allocation14 + $0xb4] sm:$0xf]
    %v2041 = vld [vmem:[#allocation14 + $0xb8] sm:$0xf]
    %v2042 = vld [vmem:[#allocation14 + $0xbc] sm:$0xf]
    %v2043 = vunpack.c.l.bf16 %v1995
    %v2044 = vunpack.c.l.bf16 %v1996
    %v2045 = vunpack.c.l.bf16 %v1997
    %v2046 = vunpack.c.l.bf16 %v1998
    %v2047 = vunpack.c.l.bf16 %v1999
    %v2048 = vunpack.c.l.bf16 %v2000
    %v2049 = vunpack.c.l.bf16 %v2001
    %v2050 = vunpack.c.l.bf16 %v2002
    %v2051 = vunpack.c.l.bf16 %v2003
    %v2052 = vunpack.c.l.bf16 %v2004
    %v2053 = vunpack.c.l.bf16 %v2005
    %v2054 = vunpack.c.l.bf16 %v2006
    %v2055 = vunpack.c.l.bf16 %v2007
    %v2056 = vunpack.c.l.bf16 %v2008
    %v2057 = vunpack.c.l.bf16 %v2009
    %v2058 = vunpack.c.l.bf16 %v2010
    %v2059 = vunpack.c.l.bf16 %v2011
    %v2060 = vunpack.c.l.bf16 %v2012
    %v2061 = vunpack.c.l.bf16 %v2013
    %v2062 = vunpack.c.l.bf16 %v2014
    %v2063 = vunpack.c.l.bf16 %v2015
    %v2064 = vunpack.c.l.bf16 %v2016
    %v2065 = vunpack.c.l.bf16 %v2017
    %v2066 = vunpack.c.l.bf16 %v2018
    %v2067 = vunpack.c.l.bf16 %v2019
    %v2068 = vunpack.c.l.bf16 %v2020
    %v2069 = vunpack.c.l.bf16 %v2021
    %v2070 = vunpack.c.l.bf16 %v2022
    %v2071 = vunpack.c.l.bf16 %v2023
    %v2072 = vunpack.c.l.bf16 %v2024
    %v2073 = vunpack.c.l.bf16 %v2025
    %v2074 = vunpack.c.l.bf16 %v2026
    %v2075 = vunpack.c.l.bf16 %v2027
    %v2076 = vunpack.c.l.bf16 %v2028
    %v2077 = vunpack.c.l.bf16 %v2029
    %v2078 = vunpack.c.l.bf16 %v2030
    %v2079 = vunpack.c.l.bf16 %v2031
    %v2080 = vunpack.c.l.bf16 %v2032
    %v2081 = vunpack.c.l.bf16 %v2033
    %v2082 = vunpack.c.l.bf16 %v2034
    %v2083 = vunpack.c.l.bf16 %v2035
    %v2084 = vunpack.c.l.bf16 %v2036
    %v2085 = vunpack.c.l.bf16 %v2037
    %v2086 = vunpack.c.l.bf16 %v2038
    %v2087 = vunpack.c.l.bf16 %v2039
    %v2088 = vunpack.c.l.bf16 %v2040
    %v2089 = vunpack.c.l.bf16 %v2041
    %v2090 = vunpack.c.l.bf16 %v2042
    %v2091 = vld [vmem:[%s17] sm:$0x1]
    %v2093 = vlaneseq
    %v2094 = vshrl.u32 %v2093, 7
    %v2095 = vsub.s32 0, %v2094
    %v2096 = vrot.slane %v2091, %v2095
    %2098 = vmatprep.subr.mxu0 0.0
    %2099 = vmatpush1.msra.mxu0 %v2043
    %2100 = vmatprep.subr.mxu0 0.0
    %2101 = vmatpush1.msra.mxu0 %v2044
    %2102 = vmatprep.subr.mxu0 0.0
    %2103 = vmatpush1.msra.mxu0 %v2045
    %2104 = vmatprep.subr.mxu0 0.0
    %2105 = vmatpush1.msra.mxu0 %v2046
    %2106 = vmatprep.subr.mxu0 0.0
    %2107 = vmatpush1.msra.mxu0 %v2047
    %2108 = vmatprep.subr.mxu0 0.0
    %2109 = vmatpush1.msra.mxu0 %v2048
    %2110 = vmatprep.subr.mxu0 0.0
    %2111 = vmatpush1.msra.mxu0 %v2049
    %2112 = vmatprep.subr.mxu0 0.0
    %2113 = vmatpush1.msra.mxu0 %v2050
    %2114 = vmatprep.subr.mxu0 0.0
    %2115 = vmatpush1.msra.mxu0 %v2051
    %2116 = vmatprep.subr.mxu0 0.0
    %2117 = vmatpush1.msra.mxu0 %v2052
    %2118 = vmatprep.subr.mxu0 0.0
    %2119 = vmatpush1.msra.mxu0 %v2053
    %2120 = vmatprep.subr.mxu0 0.0
    %2121 = vmatpush1.msra.mxu0 %v2054
    %2122 = vmatprep.subr.mxu0 0.0
    %2123 = vmatpush1.msra.mxu0 %v2055
    %2124 = vmatprep.subr.mxu0 0.0
    %2125 = vmatpush1.msra.mxu0 %v2056
    %2126 = vmatprep.subr.mxu0 0.0
    %2127 = vmatpush1.msra.mxu0 %v2057
    %2128 = vmatprep.subr.mxu0 0.0
    %2129 = vmatpush1.msra.mxu0 %v2058
    %2130 = vmatprep.subr.mxu0 0.0
    %2131 = vmatpush1.msra.mxu0 %v2059
    %2132 = vmatprep.subr.mxu0 0.0
    %2133 = vmatpush1.msra.mxu0 %v2060
    %2134 = vmatprep.subr.mxu0 0.0
    %2135 = vmatpush1.msra.mxu0 %v2061
    %2136 = vmatprep.subr.mxu0 0.0
    %2137 = vmatpush1.msra.mxu0 %v2062
    %2138 = vmatprep.subr.mxu0 0.0
    %2139 = vmatpush1.msra.mxu0 %v2063
    %2140 = vmatprep.subr.mxu0 0.0
    %2141 = vmatpush1.msra.mxu0 %v2064
    %2142 = vmatprep.subr.mxu0 0.0
    %2143 = vmatpush1.msra.mxu0 %v2065
    %2144 = vmatprep.subr.mxu0 0.0
    %2145 = vmatpush1.msra.mxu0 %v2066
    %2146 = vmatprep.subr.mxu0 0.0
    %2147 = vmatpush1.msra.mxu0 %v2067
    %2148 = vmatprep.subr.mxu0 0.0
    %2149 = vmatpush1.msra.mxu0 %v2068
    %2150 = vmatprep.subr.mxu0 0.0
    %2151 = vmatpush1.msra.mxu0 %v2069
    %2152 = vmatprep.subr.mxu0 0.0
    %2153 = vmatpush1.msra.mxu0 %v2070
    %2154 = vmatprep.subr.mxu0 0.0
    %2155 = vmatpush1.msra.mxu0 %v2071
    %2156 = vmatprep.subr.mxu0 0.0
    %2157 = vmatpush1.msra.mxu0 %v2072
    %2158 = vmatprep.subr.mxu0 0.0
    %2159 = vmatpush1.msra.mxu0 %v2073
    %2160 = vmatprep.subr.mxu0 0.0
    %2161 = vmatpush1.msra.mxu0 %v2074
    %2162 = vmatprep.mubr.f32.mxu0 %v1974
    %2163 = vmatmul.mubr.f32.gmra.mrb[0].mxu0 %v1953
    %v2164 = vpop.f32.mrb[0].mxu0
    %v2165 = vadd.f32 %v2096, %v2164
    %v2166 = vpop.f32.mrb[0].mxu0
    %2167 = vmatprep.mubr.f32.mxu0 %v1975
    %2168 = vmatmul.mubr.f32.gmra.mrb[0].mxu0 %v1954
    %v2169 = vpop.f32.mrb[0].mxu0
    %v2170 = vadd.f32 %v2096, %v2169
    %v2171 = vpop.f32.mrb[0].mxu0
    %2172 = vmatprep.mubr.f32.mxu0 %v1976
    %2173 = vmatmul.mubr.f32.gmra.mrb[0].mxu0 %v1955
    %v2174 = vpop.f32.mrb[0].mxu0
    %v2175 = vadd.f32 %v2096, %v2174
    %v2176 = vpop.f32.mrb[0].mxu0
    %2177 = vmatprep.mubr.f32.mxu0 %v1977
    %2178 = vmatmul.mubr.f32.gmra.mrb[0].mxu0 %v1956
    %v2179 = vpop.f32.mrb[0].mxu0
    %v2180 = vadd.f32 %v2096, %v2179
    %v2181 = vpop.f32.mrb[0].mxu0
    %2182 = vdwg.mxu0
    %2183 = vmatprep.subr.mxu0 0.0
    %2184 = vmatpush1.msra.mxu0 %v2075
    %2185 = vmatprep.subr.mxu0 0.0
    %2186 = vmatpush1.msra.mxu0 %v2076
    %2187 = vmatprep.subr.mxu0 0.0
    %2188 = vmatpush1.msra.mxu0 %v2077
    %2189 = vmatprep.subr.mxu0 0.0
    %2190 = vmatpush1.msra.mxu0 %v2078
    %2191 = vmatprep.subr.mxu0 0.0
    %2192 = vmatpush1.msra.mxu0 %v2079
    %2193 = vmatprep.subr.mxu0 0.0
    %2194 = vmatpush1.msra.mxu0 %v2080
    %2195 = vmatprep.subr.mxu0 0.0
    %2196 = vmatpush1.msra.mxu0 %v2081
    %2197 = vmatprep.subr.mxu0 0.0
    %2198 = vmatpush1.msra.mxu0 %v2082
    %2199 = vmatprep.subr.mxu0 0.0
    %2200 = vmatpush1.msra.mxu0 %v2083
    %2201 = vmatprep.subr.mxu0 0.0
    %2202 = vmatpush1.msra.mxu0 %v2084
    %2203 = vmatprep.subr.mxu0 0.0
    %2204 = vmatpush1.msra.mxu0 %v2085
    %2205 = vmatprep.subr.mxu0 0.0
    %2206 = vmatpush1.msra.mxu0 %v2086
    %2207 = vmatprep.subr.mxu0 0.0
    %2208 = vmatpush1.msra.mxu0 %v2087
    %2209 = vmatprep.subr.mxu0 0.0
    %2210 = vmatpush1.msra.mxu0 %v2088
    %2211 = vmatprep.subr.mxu0 0.0
    %2212 = vmatpush1.msra.mxu0 %v2089
    %2213 = vmatprep.subr.mxu0 0.0
    %2214 = vmatpush1.msra.mxu0 %v2090
    %2215 = vmatprep.subr.mxu0 0.0
    %2216 = vmatpush1.msra.mxu0 0.0
    %2217 = vmatprep.subr.mxu0 0.0
    %2218 = vmatpush1.msra.mxu0 0.0
    %2219 = vmatprep.subr.mxu0 0.0
    %2220 = vmatpush1.msra.mxu0 0.0
    %2221 = vmatprep.subr.mxu0 0.0
    %2222 = vmatpush1.msra.mxu0 0.0
    %2223 = vmatprep.subr.mxu0 0.0
    %2224 = vmatpush1.msra.mxu0 0.0
    %2225 = vmatprep.subr.mxu0 0.0
    %2226 = vmatpush1.msra.mxu0 0.0
    %2227 = vmatprep.subr.mxu0 0.0
    %2228 = vmatpush1.msra.mxu0 0.0
    %2229 = vmatprep.subr.mxu0 0.0
    %2230 = vmatpush1.msra.mxu0 0.0
    %2231 = vmatprep.subr.mxu0 0.0
    %2232 = vmatpush1.msra.mxu0 0.0
    %2233 = vmatprep.subr.mxu0 0.0
    %2234 = vmatpush1.msra.mxu0 0.0
    %2235 = vmatprep.subr.mxu0 0.0
    %2236 = vmatpush1.msra.mxu0 0.0
    %2237 = vmatprep.subr.mxu0 0.0
    %2238 = vmatpush1.msra.mxu0 0.0
    %2239 = vmatprep.subr.mxu0 0.0
    %2240 = vmatpush1.msra.mxu0 0.0
    %2241 = vmatprep.subr.mxu0 0.0
    %2242 = vmatpush1.msra.mxu0 0.0
    %2243 = vmatprep.subr.mxu0 0.0
    %2244 = vmatpush1.msra.mxu0 0.0
    %2245 = vmatprep.subr.mxu0 0.0
    %2246 = vmatpush1.msra.mxu0 0.0
    %2247 = vmatprep.mubr.f32.mxu0 0.0
    %2248 = vmatmul.mubr.f32.gmra.mrb[0].mxu0 %v1991
    %v2249 = vpop.f32.mrb[0].mxu0
    %v2250 = vadd.f32 %v2165, %v2249
    %v2251 = vpop.f32.mrb[0].mxu0
    %2252 = vmatprep.mubr.f32.mxu0 0.0
    %2253 = vmatmul.mubr.f32.gmra.mrb[0].mxu0 %v1992
    %v2254 = vpop.f32.mrb[0].mxu0
    %v2255 = vadd.f32 %v2170, %v2254
    %v2256 = vpop.f32.mrb[0].mxu0
    %2257 = vmatprep.mubr.f32.mxu0 0.0
    %2258 = vmatmul.mubr.f32.gmra.mrb[0].mxu0 %v1993
    %v2259 = vpop.f32.mrb[0].mxu0
    %v2260 = vadd.f32 %v2175, %v2259
    %v2261 = vpop.f32.mrb[0].mxu0
    %2262 = vmatprep.mubr.f32.mxu0 0.0
    %2263 = vmatmul.mubr.f32.gmra.mrb[0].mxu0 %v1994
    %v2264 = vpop.f32.mrb[0].mxu0
    %v2265 = vadd.f32 %v2180, %v2264
    %v2266 = vpop.f32.mrb[0].mxu0
    %2267 = vdwg.mxu0
    %v2268 = vadd.f32 %v2250, %v874
    %v2269 = vadd.f32 %v2255, %v879
    %v2270 = vadd.f32 %v2260, %v884
    %v2271 = vadd.f32 %v2265, %v889
    %v2272 = vmax.f32 %v874, 0.0
    %v2273 = vmax.f32 %v879, 0.0
    %v2274 = vmax.f32 %v884, 0.0
    %v2275 = vmax.f32 %v889, 0.0
    %v2277 = vrot.slane %v2275, 7
    %v2282 = vrot.slane %v2272, 7
    %v2283 = vrot.slane %v2273, 7
    %v2284 = vsel %vm906, %v2282, %v2283
    %v2285 = vrot.slane %v2274, 7
    %v2286 = vsel %vm906, %v2283, %v2285
    %v2287 = vsel %vm906, %v2285, %v2277
    %v2292 = vsel %vm906, %v2277, %v2282
    %v2293 = vsel %vm934, %v2292, 0.0
    %v2294 = vsel %vm935, %v2284, 0.0
    %v2295 = vsel %vm936, %v2286, 0.0
    %v2296 = vsel %vm937, %v2287, 0.0
    %v2297 = vrot.slane %v2272, 1
    %v2298 = vrot.slane %v2273, 1
    %v2299 = vsel %vm946, %v2297, %v2298
    %v2300 = vrot.slane %v2274, 1
    %v2301 = vsel %vm946, %v2298, %v2300
    %v2302 = vrot.slane %v2275, 1
    %v2303 = vsel %vm946, %v2300, %v2302
    %v2309 = vsel %vm946, %v2302, %v2297
    %v2310 = vsel %vm976, %v2299, 0.0
    %v2311 = vsel %vm977, %v2301, 0.0
    %v2312 = vsel %vm978, %v2303, 0.0
    %v2313 = vsel %vm979, %v2309, 0.0
    %v2314 = vld [vmem:[#allocation16] sm:$0xf]
    %v2315 = vld [vmem:[#allocation16 + $0x4] sm:$0xf]
    %v2316 = vld [vmem:[#allocation16 + $0x8] sm:$0xf]
    %v2317 = vld [vmem:[#allocation16 + $0xc] sm:$0xf]
    %v2318 = vld [vmem:[#allocation16 + $0x10] sm:$0xf]
    %v2319 = vld [vmem:[#allocation16 + $0x14] sm:$0xf]
    %v2320 = vld [vmem:[#allocation16 + $0x18] sm:$0xf]
    %v2321 = vld [vmem:[#allocation16 + $0x1c] sm:$0xf]
    %v2322 = vld [vmem:[#allocation16 + $0x20] sm:$0xf]
    %v2323 = vld [vmem:[#allocation16 + $0x24] sm:$0xf]
    %v2324 = vld [vmem:[#allocation16 + $0x28] sm:$0xf]
    %v2325 = vld [vmem:[#allocation16 + $0x2c] sm:$0xf]
    %v2326 = vld [vmem:[#allocation16 + $0x30] sm:$0xf]
    %v2327 = vld [vmem:[#allocation16 + $0x34] sm:$0xf]
    %v2328 = vld [vmem:[#allocation16 + $0x38] sm:$0xf]
    %v2329 = vld [vmem:[#allocation16 + $0x3c] sm:$0xf]
    %v2330 = vld [vmem:[#allocation16 + $0x40] sm:$0xf]
    %v2331 = vld [vmem:[#allocation16 + $0x44] sm:$0xf]
    %v2332 = vld [vmem:[#allocation16 + $0x48] sm:$0xf]
    %v2333 = vld [vmem:[#allocation16 + $0x4c] sm:$0xf]
    %v2334 = vld [vmem:[#allocation16 + $0x50] sm:$0xf]
    %v2335 = vld [vmem:[#allocation16 + $0x54] sm:$0xf]
    %v2336 = vld [vmem:[#allocation16 + $0x58] sm:$0xf]
    %v2337 = vld [vmem:[#allocation16 + $0x5c] sm:$0xf]
    %v2338 = vld [vmem:[#allocation16 + $0x60] sm:$0xf]
    %v2339 = vld [vmem:[#allocation16 + $0x64] sm:$0xf]
    %v2340 = vld [vmem:[#allocation16 + $0x68] sm:$0xf]
    %v2341 = vld [vmem:[#allocation16 + $0x6c] sm:$0xf]
    %v2342 = vld [vmem:[#allocation16 + $0x70] sm:$0xf]
    %v2343 = vld [vmem:[#allocation16 + $0x74] sm:$0xf]
    %v2344 = vld [vmem:[#allocation16 + $0x78] sm:$0xf]
    %v2345 = vld [vmem:[#allocation16 + $0x7c] sm:$0xf]
    %v2346 = vld [vmem:[#allocation16 + $0x80] sm:$0xf]
    %v2347 = vld [vmem:[#allocation16 + $0x84] sm:$0xf]
    %v2348 = vld [vmem:[#allocation16 + $0x88] sm:$0xf]
    %v2349 = vld [vmem:[#allocation16 + $0x8c] sm:$0xf]
    %v2350 = vld [vmem:[#allocation16 + $0x90] sm:$0xf]
    %v2351 = vld [vmem:[#allocation16 + $0x94] sm:$0xf]
    %v2352 = vld [vmem:[#allocation16 + $0x98] sm:$0xf]
    %v2353 = vld [vmem:[#allocation16 + $0x9c] sm:$0xf]
    %v2354 = vld [vmem:[#allocation16 + $0xa0] sm:$0xf]
    %v2355 = vld [vmem:[#allocation16 + $0xa4] sm:$0xf]
    %v2356 = vld [vmem:[#allocation16 + $0xa8] sm:$0xf]
    %v2357 = vld [vmem:[#allocation16 + $0xac] sm:$0xf]
    %v2358 = vld [vmem:[#allocation16 + $0xb0] sm:$0xf]
    %v2359 = vld [vmem:[#allocation16 + $0xb4] sm:$0xf]
    %v2360 = vld [vmem:[#allocation16 + $0xb8] sm:$0xf]
    %v2361 = vld [vmem:[#allocation16 + $0xbc] sm:$0xf]
    %v2362 = vunpack.c.l.bf16 %v2314
    %v2363 = vunpack.c.l.bf16 %v2315
    %v2364 = vunpack.c.l.bf16 %v2316
    %v2365 = vunpack.c.l.bf16 %v2317
    %v2366 = vunpack.c.l.bf16 %v2318
    %v2367 = vunpack.c.l.bf16 %v2319
    %v2368 = vunpack.c.l.bf16 %v2320
    %v2369 = vunpack.c.l.bf16 %v2321
    %v2370 = vunpack.c.l.bf16 %v2322
    %v2371 = vunpack.c.l.bf16 %v2323
    %v2372 = vunpack.c.l.bf16 %v2324
    %v2373 = vunpack.c.l.bf16 %v2325
    %v2374 = vunpack.c.l.bf16 %v2326
    %v2375 = vunpack.c.l.bf16 %v2327
    %v2376 = vunpack.c.l.bf16 %v2328
    %v2377 = vunpack.c.l.bf16 %v2329
    %v2378 = vunpack.c.l.bf16 %v2330
    %v2379 = vunpack.c.l.bf16 %v2331
    %v2380 = vunpack.c.l.bf16 %v2332
    %v2381 = vunpack.c.l.bf16 %v2333
    %v2382 = vunpack.c.l.bf16 %v2334
    %v2383 = vunpack.c.l.bf16 %v2335
    %v2384 = vunpack.c.l.bf16 %v2336
    %v2385 = vunpack.c.l.bf16 %v2337
    %v2386 = vunpack.c.l.bf16 %v2338
    %v2387 = vunpack.c.l.bf16 %v2339
    %v2388 = vunpack.c.l.bf16 %v2340
    %v2389 = vunpack.c.l.bf16 %v2341
    %v2390 = vunpack.c.l.bf16 %v2342
    %v2391 = vunpack.c.l.bf16 %v2343
    %v2392 = vunpack.c.l.bf16 %v2344
    %v2393 = vunpack.c.l.bf16 %v2345
    %v2394 = vunpack.c.l.bf16 %v2346
    %v2395 = vunpack.c.l.bf16 %v2347
    %v2396 = vunpack.c.l.bf16 %v2348
    %v2397 = vunpack.c.l.bf16 %v2349
    %v2398 = vunpack.c.l.bf16 %v2350
    %v2399 = vunpack.c.l.bf16 %v2351
    %v2400 = vunpack.c.l.bf16 %v2352
    %v2401 = vunpack.c.l.bf16 %v2353
    %v2402 = vunpack.c.l.bf16 %v2354
    %v2403 = vunpack.c.l.bf16 %v2355
    %v2404 = vunpack.c.l.bf16 %v2356
    %v2405 = vunpack.c.l.bf16 %v2357
    %v2406 = vunpack.c.l.bf16 %v2358
    %v2407 = vunpack.c.l.bf16 %v2359
    %v2408 = vunpack.c.l.bf16 %v2360
    %v2409 = vunpack.c.l.bf16 %v2361
    %v2410 = vld [vmem:[%s19] sm:$0x1]
    %v2412 = vlaneseq
    %v2413 = vshrl.u32 %v2412, 7
    %v2414 = vsub.s32 0, %v2413
    %v2415 = vrot.slane %v2410, %v2414
    %2417 = vmatprep.subr.mxu0 0.0
    %2418 = vmatpush1.msra.mxu0 %v2362
    %2419 = vmatprep.subr.mxu0 0.0
    %2420 = vmatpush1.msra.mxu0 %v2363
    %2421 = vmatprep.subr.mxu0 0.0
    %2422 = vmatpush1.msra.mxu0 %v2364
    %2423 = vmatprep.subr.mxu0 0.0
    %2424 = vmatpush1.msra.mxu0 %v2365
    %2425 = vmatprep.subr.mxu0 0.0
    %2426 = vmatpush1.msra.mxu0 %v2366
    %2427 = vmatprep.subr.mxu0 0.0
    %2428 = vmatpush1.msra.mxu0 %v2367
    %2429 = vmatprep.subr.mxu0 0.0
    %2430 = vmatpush1.msra.mxu0 %v2368
    %2431 = vmatprep.subr.mxu0 0.0
    %2432 = vmatpush1.msra.mxu0 %v2369
    %2433 = vmatprep.subr.mxu0 0.0
    %2434 = vmatpush1.msra.mxu0 %v2370
    %2435 = vmatprep.subr.mxu0 0.0
    %2436 = vmatpush1.msra.mxu0 %v2371
    %2437 = vmatprep.subr.mxu0 0.0
    %2438 = vmatpush1.msra.mxu0 %v2372
    %2439 = vmatprep.subr.mxu0 0.0
    %2440 = vmatpush1.msra.mxu0 %v2373
    %2441 = vmatprep.subr.mxu0 0.0
    %2442 = vmatpush1.msra.mxu0 %v2374
    %2443 = vmatprep.subr.mxu0 0.0
    %2444 = vmatpush1.msra.mxu0 %v2375
    %2445 = vmatprep.subr.mxu0 0.0
    %2446 = vmatpush1.msra.mxu0 %v2376
    %2447 = vmatprep.subr.mxu0 0.0
    %2448 = vmatpush1.msra.mxu0 %v2377
    %2449 = vmatprep.subr.mxu0 0.0
    %2450 = vmatpush1.msra.mxu0 %v2378
    %2451 = vmatprep.subr.mxu0 0.0
    %2452 = vmatpush1.msra.mxu0 %v2379
    %2453 = vmatprep.subr.mxu0 0.0
    %2454 = vmatpush1.msra.mxu0 %v2380
    %2455 = vmatprep.subr.mxu0 0.0
    %2456 = vmatpush1.msra.mxu0 %v2381
    %2457 = vmatprep.subr.mxu0 0.0
    %2458 = vmatpush1.msra.mxu0 %v2382
    %2459 = vmatprep.subr.mxu0 0.0
    %2460 = vmatpush1.msra.mxu0 %v2383
    %2461 = vmatprep.subr.mxu0 0.0
    %2462 = vmatpush1.msra.mxu0 %v2384
    %2463 = vmatprep.subr.mxu0 0.0
    %2464 = vmatpush1.msra.mxu0 %v2385
    %2465 = vmatprep.subr.mxu0 0.0
    %2466 = vmatpush1.msra.mxu0 %v2386
    %2467 = vmatprep.subr.mxu0 0.0
    %2468 = vmatpush1.msra.mxu0 %v2387
    %2469 = vmatprep.subr.mxu0 0.0
    %2470 = vmatpush1.msra.mxu0 %v2388
    %2471 = vmatprep.subr.mxu0 0.0
    %2472 = vmatpush1.msra.mxu0 %v2389
    %2473 = vmatprep.subr.mxu0 0.0
    %2474 = vmatpush1.msra.mxu0 %v2390
    %2475 = vmatprep.subr.mxu0 0.0
    %2476 = vmatpush1.msra.mxu0 %v2391
    %2477 = vmatprep.subr.mxu0 0.0
    %2478 = vmatpush1.msra.mxu0 %v2392
    %2479 = vmatprep.subr.mxu0 0.0
    %2480 = vmatpush1.msra.mxu0 %v2393
    %2481 = vmatprep.mubr.f32.mxu0 %v2293
    %2482 = vmatmul.mubr.f32.gmra.mrb[0].mxu0 %v2272
    %v2483 = vpop.f32.mrb[0].mxu0
    %v2484 = vadd.f32 %v2415, %v2483
    %v2485 = vpop.f32.mrb[0].mxu0
    %2486 = vmatprep.mubr.f32.mxu0 %v2294
    %2487 = vmatmul.mubr.f32.gmra.mrb[0].mxu0 %v2273
    %v2488 = vpop.f32.mrb[0].mxu0
    %v2489 = vadd.f32 %v2415, %v2488
    %v2490 = vpop.f32.mrb[0].mxu0
    %2491 = vmatprep.mubr.f32.mxu0 %v2295
    %2492 = vmatmul.mubr.f32.gmra.mrb[0].mxu0 %v2274
    %v2493 = vpop.f32.mrb[0].mxu0
    %v2494 = vadd.f32 %v2415, %v2493
    %v2495 = vpop.f32.mrb[0].mxu0
    %2496 = vmatprep.mubr.f32.mxu0 %v2296
    %2497 = vmatmul.mubr.f32.gmra.mrb[0].mxu0 %v2275
    %v2498 = vpop.f32.mrb[0].mxu0
    %v2499 = vadd.f32 %v2415, %v2498
    %v2500 = vpop.f32.mrb[0].mxu0
    %2501 = vdwg.mxu0
    %2502 = vmatprep.subr.mxu0 0.0
    %2503 = vmatpush1.msra.mxu0 %v2394
    %2504 = vmatprep.subr.mxu0 0.0
    %2505 = vmatpush1.msra.mxu0 %v2395
    %2506 = vmatprep.subr.mxu0 0.0
    %2507 = vmatpush1.msra.mxu0 %v2396
    %2508 = vmatprep.subr.mxu0 0.0
    %2509 = vmatpush1.msra.mxu0 %v2397
    %2510 = vmatprep.subr.mxu0 0.0
    %2511 = vmatpush1.msra.mxu0 %v2398
    %2512 = vmatprep.subr.mxu0 0.0
    %2513 = vmatpush1.msra.mxu0 %v2399
    %2514 = vmatprep.subr.mxu0 0.0
    %2515 = vmatpush1.msra.mxu0 %v2400
    %2516 = vmatprep.subr.mxu0 0.0
    %2517 = vmatpush1.msra.mxu0 %v2401
    %2518 = vmatprep.subr.mxu0 0.0
    %2519 = vmatpush1.msra.mxu0 %v2402
    %2520 = vmatprep.subr.mxu0 0.0
    %2521 = vmatpush1.msra.mxu0 %v2403
    %2522 = vmatprep.subr.mxu0 0.0
    %2523 = vmatpush1.msra.mxu0 %v2404
    %2524 = vmatprep.subr.mxu0 0.0
    %2525 = vmatpush1.msra.mxu0 %v2405
    %2526 = vmatprep.subr.mxu0 0.0
    %2527 = vmatpush1.msra.mxu0 %v2406
    %2528 = vmatprep.subr.mxu0 0.0
    %2529 = vmatpush1.msra.mxu0 %v2407
    %2530 = vmatprep.subr.mxu0 0.0
    %2531 = vmatpush1.msra.mxu0 %v2408
    %2532 = vmatprep.subr.mxu0 0.0
    %2533 = vmatpush1.msra.mxu0 %v2409
    %2534 = vmatprep.subr.mxu0 0.0
    %2535 = vmatpush1.msra.mxu0 0.0
    %2536 = vmatprep.subr.mxu0 0.0
    %2537 = vmatpush1.msra.mxu0 0.0
    %2538 = vmatprep.subr.mxu0 0.0
    %2539 = vmatpush1.msra.mxu0 0.0
    %2540 = vmatprep.subr.mxu0 0.0
    %2541 = vmatpush1.msra.mxu0 0.0
    %2542 = vmatprep.subr.mxu0 0.0
    %2543 = vmatpush1.msra.mxu0 0.0
    %2544 = vmatprep.subr.mxu0 0.0
    %2545 = vmatpush1.msra.mxu0 0.0
    %2546 = vmatprep.subr.mxu0 0.0
    %2547 = vmatpush1.msra.mxu0 0.0
    %2548 = vmatprep.subr.mxu0 0.0
    %2549 = vmatpush1.msra.mxu0 0.0
    %2550 = vmatprep.subr.mxu0 0.0
    %2551 = vmatpush1.msra.mxu0 0.0
    %2552 = vmatprep.subr.mxu0 0.0
    %2553 = vmatpush1.msra.mxu0 0.0
    %2554 = vmatprep.subr.mxu0 0.0
    %2555 = vmatpush1.msra.mxu0 0.0
    %2556 = vmatprep.subr.mxu0 0.0
    %2557 = vmatpush1.msra.mxu0 0.0
    %2558 = vmatprep.subr.mxu0 0.0
    %2559 = vmatpush1.msra.mxu0 0.0
    %2560 = vmatprep.subr.mxu0 0.0
    %2561 = vmatpush1.msra.mxu0 0.0
    %2562 = vmatprep.subr.mxu0 0.0
    %2563 = vmatpush1.msra.mxu0 0.0
    %2564 = vmatprep.subr.mxu0 0.0
    %2565 = vmatpush1.msra.mxu0 0.0
    %2566 = vmatprep.mubr.f32.mxu0 0.0
    %2567 = vmatmul.mubr.f32.gmra.mrb[0].mxu0 %v2310
    %v2568 = vpop.f32.mrb[0].mxu0
    %v2569 = vadd.f32 %v2484, %v2568
    %v2570 = vpop.f32.mrb[0].mxu0
    %2571 = vmatprep.mubr.f32.mxu0 0.0
    %2572 = vmatmul.mubr.f32.gmra.mrb[0].mxu0 %v2311
    %v2573 = vpop.f32.mrb[0].mxu0
    %v2574 = vadd.f32 %v2489, %v2573
    %v2575 = vpop.f32.mrb[0].mxu0
    %2576 = vmatprep.mubr.f32.mxu0 0.0
    %2577 = vmatmul.mubr.f32.gmra.mrb[0].mxu0 %v2312
    %v2578 = vpop.f32.mrb[0].mxu0
    %v2579 = vadd.f32 %v2494, %v2578
    %v2580 = vpop.f32.mrb[0].mxu0
    %2581 = vmatprep.mubr.f32.mxu0 0.0
    %2582 = vmatmul.mubr.f32.gmra.mrb[0].mxu0 %v2313
    %v2583 = vpop.f32.mrb[0].mxu0
    %v2584 = vadd.f32 %v2499, %v2583
    %v2585 = vpop.f32.mrb[0].mxu0
    %2586 = vdwg.mxu0
    %v2587 = vmax.f32 %v2569, 0.0
    %v2588 = vmax.f32 %v2574, 0.0
    %v2589 = vmax.f32 %v2579, 0.0
    %v2590 = vmax.f32 %v2584, 0.0
    %v2592 = vrot.slane %v2590, 7
    %v2597 = vrot.slane %v2587, 7
    %v2598 = vrot.slane %v2588, 7
    %v2599 = vsel %vm906, %v2597, %v2598
    %v2600 = vrot.slane %v2589, 7
    %v2601 = vsel %vm906, %v2598, %v2600
    %v2602 = vsel %vm906, %v2600, %v2592
    %v2607 = vsel %vm906, %v2592, %v2597
    %v2608 = vsel %vm934, %v2607, 0.0
    %v2609 = vsel %vm935, %v2599, 0.0
    %v2610 = vsel %vm936, %v2601, 0.0
    %v2611 = vsel %vm937, %v2602, 0.0
    %v2612 = vrot.slane %v2587, 1
    %v2613 = vrot.slane %v2588, 1
    %v2614 = vsel %vm946, %v2612, %v2613
    %v2615 = vrot.slane %v2589, 1
    %v2616 = vsel %vm946, %v2613, %v2615
    %v2617 = vrot.slane %v2590, 1
    %v2618 = vsel %vm946, %v2615, %v2617
    %v2624 = vsel %vm946, %v2617, %v2612
    %v2625 = vsel %vm976, %v2614, 0.0
    %v2626 = vsel %vm977, %v2616, 0.0
    %v2627 = vsel %vm978, %v2618, 0.0
    %v2628 = vsel %vm979, %v2624, 0.0
    %v2629 = vld [vmem:[#allocation17] sm:$0xf]
    %v2630 = vld [vmem:[#allocation17 + $0x4] sm:$0xf]
    %v2631 = vld [vmem:[#allocation17 + $0x8] sm:$0xf]
    %v2632 = vld [vmem:[#allocation17 + $0xc] sm:$0xf]
    %v2633 = vld [vmem:[#allocation17 + $0x10] sm:$0xf]
    %v2634 = vld [vmem:[#allocation17 + $0x14] sm:$0xf]
    %v2635 = vld [vmem:[#allocation17 + $0x18] sm:$0xf]
    %v2636 = vld [vmem:[#allocation17 + $0x1c] sm:$0xf]
    %v2637 = vld [vmem:[#allocation17 + $0x20] sm:$0xf]
    %v2638 = vld [vmem:[#allocation17 + $0x24] sm:$0xf]
    %v2639 = vld [vmem:[#allocation17 + $0x28] sm:$0xf]
    %v2640 = vld [vmem:[#allocation17 + $0x2c] sm:$0xf]
    %v2641 = vld [vmem:[#allocation17 + $0x30] sm:$0xf]
    %v2642 = vld [vmem:[#allocation17 + $0x34] sm:$0xf]
    %v2643 = vld [vmem:[#allocation17 + $0x38] sm:$0xf]
    %v2644 = vld [vmem:[#allocation17 + $0x3c] sm:$0xf]
    %v2645 = vld [vmem:[#allocation17 + $0x40] sm:$0xf]
    %v2646 = vld [vmem:[#allocation17 + $0x44] sm:$0xf]
    %v2647 = vld [vmem:[#allocation17 + $0x48] sm:$0xf]
    %v2648 = vld [vmem:[#allocation17 + $0x4c] sm:$0xf]
    %v2649 = vld [vmem:[#allocation17 + $0x50] sm:$0xf]
    %v2650 = vld [vmem:[#allocation17 + $0x54] sm:$0xf]
    %v2651 = vld [vmem:[#allocation17 + $0x58] sm:$0xf]
    %v2652 = vld [vmem:[#allocation17 + $0x5c] sm:$0xf]
    %v2653 = vld [vmem:[#allocation17 + $0x60] sm:$0xf]
    %v2654 = vld [vmem:[#allocation17 + $0x64] sm:$0xf]
    %v2655 = vld [vmem:[#allocation17 + $0x68] sm:$0xf]
    %v2656 = vld [vmem:[#allocation17 + $0x6c] sm:$0xf]
    %v2657 = vld [vmem:[#allocation17 + $0x70] sm:$0xf]
    %v2658 = vld [vmem:[#allocation17 + $0x74] sm:$0xf]
    %v2659 = vld [vmem:[#allocation17 + $0x78] sm:$0xf]
    %v2660 = vld [vmem:[#allocation17 + $0x7c] sm:$0xf]
    %v2661 = vld [vmem:[#allocation17 + $0x80] sm:$0xf]
    %v2662 = vld [vmem:[#allocation17 + $0x84] sm:$0xf]
    %v2663 = vld [vmem:[#allocation17 + $0x88] sm:$0xf]
    %v2664 = vld [vmem:[#allocation17 + $0x8c] sm:$0xf]
    %v2665 = vld [vmem:[#allocation17 + $0x90] sm:$0xf]
    %v2666 = vld [vmem:[#allocation17 + $0x94] sm:$0xf]
    %v2667 = vld [vmem:[#allocation17 + $0x98] sm:$0xf]
    %v2668 = vld [vmem:[#allocation17 + $0x9c] sm:$0xf]
    %v2669 = vld [vmem:[#allocation17 + $0xa0] sm:$0xf]
    %v2670 = vld [vmem:[#allocation17 + $0xa4] sm:$0xf]
    %v2671 = vld [vmem:[#allocation17 + $0xa8] sm:$0xf]
    %v2672 = vld [vmem:[#allocation17 + $0xac] sm:$0xf]
    %v2673 = vld [vmem:[#allocation17 + $0xb0] sm:$0xf]
    %v2674 = vld [vmem:[#allocation17 + $0xb4] sm:$0xf]
    %v2675 = vld [vmem:[#allocation17 + $0xb8] sm:$0xf]
    %v2676 = vld [vmem:[#allocation17 + $0xbc] sm:$0xf]
    %v2677 = vunpack.c.l.bf16 %v2629
    %v2678 = vunpack.c.l.bf16 %v2630
    %v2679 = vunpack.c.l.bf16 %v2631
    %v2680 = vunpack.c.l.bf16 %v2632
    %v2681 = vunpack.c.l.bf16 %v2633
    %v2682 = vunpack.c.l.bf16 %v2634
    %v2683 = vunpack.c.l.bf16 %v2635
    %v2684 = vunpack.c.l.bf16 %v2636
    %v2685 = vunpack.c.l.bf16 %v2637
    %v2686 = vunpack.c.l.bf16 %v2638
    %v2687 = vunpack.c.l.bf16 %v2639
    %v2688 = vunpack.c.l.bf16 %v2640
    %v2689 = vunpack.c.l.bf16 %v2641
    %v2690 = vunpack.c.l.bf16 %v2642
    %v2691 = vunpack.c.l.bf16 %v2643
    %v2692 = vunpack.c.l.bf16 %v2644
    %v2693 = vunpack.c.l.bf16 %v2645
    %v2694 = vunpack.c.l.bf16 %v2646
    %v2695 = vunpack.c.l.bf16 %v2647
    %v2696 = vunpack.c.l.bf16 %v2648
    %v2697 = vunpack.c.l.bf16 %v2649
    %v2698 = vunpack.c.l.bf16 %v2650
    %v2699 = vunpack.c.l.bf16 %v2651
    %v2700 = vunpack.c.l.bf16 %v2652
    %v2701 = vunpack.c.l.bf16 %v2653
    %v2702 = vunpack.c.l.bf16 %v2654
    %v2703 = vunpack.c.l.bf16 %v2655
    %v2704 = vunpack.c.l.bf16 %v2656
    %v2705 = vunpack.c.l.bf16 %v2657
    %v2706 = vunpack.c.l.bf16 %v2658
    %v2707 = vunpack.c.l.bf16 %v2659
    %v2708 = vunpack.c.l.bf16 %v2660
    %v2709 = vunpack.c.l.bf16 %v2661
    %v2710 = vunpack.c.l.bf16 %v2662
    %v2711 = vunpack.c.l.bf16 %v2663
    %v2712 = vunpack.c.l.bf16 %v2664
    %v2713 = vunpack.c.l.bf16 %v2665
    %v2714 = vunpack.c.l.bf16 %v2666
    %v2715 = vunpack.c.l.bf16 %v2667
    %v2716 = vunpack.c.l.bf16 %v2668
    %v2717 = vunpack.c.l.bf16 %v2669
    %v2718 = vunpack.c.l.bf16 %v2670
    %v2719 = vunpack.c.l.bf16 %v2671
    %v2720 = vunpack.c.l.bf16 %v2672
    %v2721 = vunpack.c.l.bf16 %v2673
    %v2722 = vunpack.c.l.bf16 %v2674
    %v2723 = vunpack.c.l.bf16 %v2675
    %v2724 = vunpack.c.l.bf16 %v2676
    %v2725 = vld [vmem:[%s21] sm:$0x1]
    %v2727 = vlaneseq
    %v2728 = vshrl.u32 %v2727, 7
    %v2729 = vsub.s32 0, %v2728
    %v2730 = vrot.slane %v2725, %v2729
    %2732 = vmatprep.subr.mxu0 0.0
    %2733 = vmatpush1.msra.mxu0 %v2677
    %2734 = vmatprep.subr.mxu0 0.0
    %2735 = vmatpush1.msra.mxu0 %v2678
    %2736 = vmatprep.subr.mxu0 0.0
    %2737 = vmatpush1.msra.mxu0 %v2679
    %2738 = vmatprep.subr.mxu0 0.0
    %2739 = vmatpush1.msra.mxu0 %v2680
    %2740 = vmatprep.subr.mxu0 0.0
    %2741 = vmatpush1.msra.mxu0 %v2681
    %2742 = vmatprep.subr.mxu0 0.0
    %2743 = vmatpush1.msra.mxu0 %v2682
    %2744 = vmatprep.subr.mxu0 0.0
    %2745 = vmatpush1.msra.mxu0 %v2683
    %2746 = vmatprep.subr.mxu0 0.0
    %2747 = vmatpush1.msra.mxu0 %v2684
    %2748 = vmatprep.subr.mxu0 0.0
    %2749 = vmatpush1.msra.mxu0 %v2685
    %2750 = vmatprep.subr.mxu0 0.0
    %2751 = vmatpush1.msra.mxu0 %v2686
    %2752 = vmatprep.subr.mxu0 0.0
    %2753 = vmatpush1.msra.mxu0 %v2687
    %2754 = vmatprep.subr.mxu0 0.0
    %2755 = vmatpush1.msra.mxu0 %v2688
    %2756 = vmatprep.subr.mxu0 0.0
    %2757 = vmatpush1.msra.mxu0 %v2689
    %2758 = vmatprep.subr.mxu0 0.0
    %2759 = vmatpush1.msra.mxu0 %v2690
    %2760 = vmatprep.subr.mxu0 0.0
    %2761 = vmatpush1.msra.mxu0 %v2691
    %2762 = vmatprep.subr.mxu0 0.0
    %2763 = vmatpush1.msra.mxu0 %v2692
    %2764 = vmatprep.subr.mxu0 0.0
    %2765 = vmatpush1.msra.mxu0 %v2693
    %2766 = vmatprep.subr.mxu0 0.0
    %2767 = vmatpush1.msra.mxu0 %v2694
    %2768 = vmatprep.subr.mxu0 0.0
    %2769 = vmatpush1.msra.mxu0 %v2695
    %2770 = vmatprep.subr.mxu0 0.0
    %2771 = vmatpush1.msra.mxu0 %v2696
    %2772 = vmatprep.subr.mxu0 0.0
    %2773 = vmatpush1.msra.mxu0 %v2697
    %2774 = vmatprep.subr.mxu0 0.0
    %2775 = vmatpush1.msra.mxu0 %v2698
    %2776 = vmatprep.subr.mxu0 0.0
    %2777 = vmatpush1.msra.mxu0 %v2699
    %2778 = vmatprep.subr.mxu0 0.0
    %2779 = vmatpush1.msra.mxu0 %v2700
    %2780 = vmatprep.subr.mxu0 0.0
    %2781 = vmatpush1.msra.mxu0 %v2701
    %2782 = vmatprep.subr.mxu0 0.0
    %2783 = vmatpush1.msra.mxu0 %v2702
    %2784 = vmatprep.subr.mxu0 0.0
    %2785 = vmatpush1.msra.mxu0 %v2703
    %2786 = vmatprep.subr.mxu0 0.0
    %2787 = vmatpush1.msra.mxu0 %v2704
    %2788 = vmatprep.subr.mxu0 0.0
    %2789 = vmatpush1.msra.mxu0 %v2705
    %2790 = vmatprep.subr.mxu0 0.0
    %2791 = vmatpush1.msra.mxu0 %v2706
    %2792 = vmatprep.subr.mxu0 0.0
    %2793 = vmatpush1.msra.mxu0 %v2707
    %2794 = vmatprep.subr.mxu0 0.0
    %2795 = vmatpush1.msra.mxu0 %v2708
    %2796 = vmatprep.mubr.f32.mxu0 %v2608
    %2797 = vmatmul.mubr.f32.gmra.mrb[0].mxu0 %v2587
    %v2798 = vpop.f32.mrb[0].mxu0
    %v2799 = vadd.f32 %v2730, %v2798
    %v2800 = vpop.f32.mrb[0].mxu0
    %2801 = vmatprep.mubr.f32.mxu0 %v2609
    %2802 = vmatmul.mubr.f32.gmra.mrb[0].mxu0 %v2588
    %v2803 = vpop.f32.mrb[0].mxu0
    %v2804 = vadd.f32 %v2730, %v2803
    %v2805 = vpop.f32.mrb[0].mxu0
    %2806 = vmatprep.mubr.f32.mxu0 %v2610
    %2807 = vmatmul.mubr.f32.gmra.mrb[0].mxu0 %v2589
    %v2808 = vpop.f32.mrb[0].mxu0
    %v2809 = vadd.f32 %v2730, %v2808
    %v2810 = vpop.f32.mrb[0].mxu0
    %2811 = vmatprep.mubr.f32.mxu0 %v2611
    %2812 = vmatmul.mubr.f32.gmra.mrb[0].mxu0 %v2590
    %v2813 = vpop.f32.mrb[0].mxu0
    %v2814 = vadd.f32 %v2730, %v2813
    %v2815 = vpop.f32.mrb[0].mxu0
    %2816 = vdwg.mxu0
    %2817 = vmatprep.subr.mxu0 0.0
    %2818 = vmatpush1.msra.mxu0 %v2709
    %2819 = vmatprep.subr.mxu0 0.0
    %2820 = vmatpush1.msra.mxu0 %v2710
    %2821 = vmatprep.subr.mxu0 0.0
    %2822 = vmatpush1.msra.mxu0 %v2711
    %2823 = vmatprep.subr.mxu0 0.0
    %2824 = vmatpush1.msra.mxu0 %v2712
    %2825 = vmatprep.subr.mxu0 0.0
    %2826 = vmatpush1.msra.mxu0 %v2713
    %2827 = vmatprep.subr.mxu0 0.0
    %2828 = vmatpush1.msra.mxu0 %v2714
    %2829 = vmatprep.subr.mxu0 0.0
    %2830 = vmatpush1.msra.mxu0 %v2715
    %2831 = vmatprep.subr.mxu0 0.0
    %2832 = vmatpush1.msra.mxu0 %v2716
    %2833 = vmatprep.subr.mxu0 0.0
    %2834 = vmatpush1.msra.mxu0 %v2717
    %2835 = vmatprep.subr.mxu0 0.0
    %2836 = vmatpush1.msra.mxu0 %v2718
    %2837 = vmatprep.subr.mxu0 0.0
    %2838 = vmatpush1.msra.mxu0 %v2719
    %2839 = vmatprep.subr.mxu0 0.0
    %2840 = vmatpush1.msra.mxu0 %v2720
    %2841 = vmatprep.subr.mxu0 0.0
    %2842 = vmatpush1.msra.mxu0 %v2721
    %2843 = vmatprep.subr.mxu0 0.0
    %2844 = vmatpush1.msra.mxu0 %v2722
    %2845 = vmatprep.subr.mxu0 0.0
    %2846 = vmatpush1.msra.mxu0 %v2723
    %2847 = vmatprep.subr.mxu0 0.0
    %2848 = vmatpush1.msra.mxu0 %v2724
    %2849 = vmatprep.subr.mxu0 0.0
    %2850 = vmatpush1.msra.mxu0 0.0
    %2851 = vmatprep.subr.mxu0 0.0
    %2852 = vmatpush1.msra.mxu0 0.0
    %2853 = vmatprep.subr.mxu0 0.0
    %2854 = vmatpush1.msra.mxu0 0.0
    %2855 = vmatprep.subr.mxu0 0.0
    %2856 = vmatpush1.msra.mxu0 0.0
    %2857 = vmatprep.subr.mxu0 0.0
    %2858 = vmatpush1.msra.mxu0 0.0
    %2859 = vmatprep.subr.mxu0 0.0
    %2860 = vmatpush1.msra.mxu0 0.0
    %2861 = vmatprep.subr.mxu0 0.0
    %2862 = vmatpush1.msra.mxu0 0.0
    %2863 = vmatprep.subr.mxu0 0.0
    %2864 = vmatpush1.msra.mxu0 0.0
    %2865 = vmatprep.subr.mxu0 0.0
    %2866 = vmatpush1.msra.mxu0 0.0
    %2867 = vmatprep.subr.mxu0 0.0
    %2868 = vmatpush1.msra.mxu0 0.0
    %2869 = vmatprep.subr.mxu0 0.0
    %2870 = vmatpush1.msra.mxu0 0.0
    %2871 = vmatprep.subr.mxu0 0.0
    %2872 = vmatpush1.msra.mxu0 0.0
    %2873 = vmatprep.subr.mxu0 0.0
    %2874 = vmatpush1.msra.mxu0 0.0
    %2875 = vmatprep.subr.mxu0 0.0
    %2876 = vmatpush1.msra.mxu0 0.0
    %2877 = vmatprep.subr.mxu0 0.0
    %2878 = vmatpush1.msra.mxu0 0.0
    %2879 = vmatprep.subr.mxu0 0.0
    %2880 = vmatpush1.msra.mxu0 0.0
    %2881 = vmatprep.mubr.f32.mxu0 0.0
    %2882 = vmatmul.mubr.f32.gmra.mrb[0].mxu0 %v2625
    %v2883 = vpop.f32.mrb[0].mxu0
    %v2884 = vadd.f32 %v2799, %v2883
    %v2885 = vpop.f32.mrb[0].mxu0
    %2886 = vmatprep.mubr.f32.mxu0 0.0
    %2887 = vmatmul.mubr.f32.gmra.mrb[0].mxu0 %v2626
    %v2888 = vpop.f32.mrb[0].mxu0
    %v2889 = vadd.f32 %v2804, %v2888
    %v2890 = vpop.f32.mrb[0].mxu0
    %2891 = vmatprep.mubr.f32.mxu0 0.0
    %2892 = vmatmul.mubr.f32.gmra.mrb[0].mxu0 %v2627
    %v2893 = vpop.f32.mrb[0].mxu0
    %v2894 = vadd.f32 %v2809, %v2893
    %v2895 = vpop.f32.mrb[0].mxu0
    %2896 = vmatprep.mubr.f32.mxu0 0.0
    %2897 = vmatmul.mubr.f32.gmra.mrb[0].mxu0 %v2628
    %v2898 = vpop.f32.mrb[0].mxu0
    %v2899 = vadd.f32 %v2814, %v2898
    %v2900 = vpop.f32.mrb[0].mxu0
    %2901 = vdwg.mxu0
    %v2902 = vadd.f32 %v537, %v2884
    %v2903 = vadd.f32 %v542, %v2889
    %v2904 = vadd.f32 %v547, %v2894
    %v2905 = vadd.f32 %v552, %v2899
    %2910 = vrot.lane.b32.xlu0 %v537, 8
    %v2911 = vpop.permute.xlu0 %2910
    %2912 = vrot.lane.b32.xlu0 %v542, 8
    %v2913 = vpop.permute.xlu0 %2912
    %2914 = vrot.lane.b32.xlu0 %v547, 8
    %v2915 = vpop.permute.xlu0 %2914
    %2916 = vrot.lane.b32.xlu0 %v552, 8
    %v2917 = vpop.permute.xlu0 %2916
    %v2922 = vsel %vm1594, %v2911, -1e+30
    %v2923 = vsel %vm1594, %v2913, -1e+30
    %v2924 = vsel %vm1594, %v2915, -1e+30
    %v2925 = vsel %vm1594, %v2917, -1e+30
    %2926 = vrot.lane.b32.xlu0 %v537, 120
    %v2927 = vpop.permute.xlu0 %2926
    %2928 = vrot.lane.b32.xlu0 %v542, 120
    %v2929 = vpop.permute.xlu0 %2928
    %2930 = vrot.lane.b32.xlu0 %v547, 120
    %v2931 = vpop.permute.xlu0 %2930
    %2932 = vrot.lane.b32.xlu0 %v552, 120
    %v2933 = vpop.permute.xlu0 %2932
    %v2938 = vsel %vm1617, %v2927, -1e+30
    %v2939 = vsel %vm1617, %v2929, -1e+30
    %v2940 = vsel %vm1617, %v2931, -1e+30
    %v2941 = vsel %vm1617, %v2933, -1e+30
    %v2942 = vmax.f32 %v2922, %v2938
    %v2943 = vmax.f32 %v2923, %v2939
    %v2944 = vmax.f32 %v2924, %v2940
    %v2945 = vmax.f32 %v2925, %v2941
    %v2946 = vmax.f32 %v537, %v2942
    %v2947 = vmax.f32 %v542, %v2943
    %v2948 = vmax.f32 %v547, %v2944
    %v2949 = vmax.f32 %v552, %v2945
    %v2951 = vrot.slane %v2949, 7
    %v2956 = vrot.slane %v2946, 7
    %v2957 = vrot.slane %v2947, 7
    %v2958 = vsel %vm906, %v2956, %v2957
    %v2959 = vrot.slane %v2948, 7
    %v2960 = vsel %vm906, %v2957, %v2959
    %v2961 = vsel %vm906, %v2959, %v2951
    %v2966 = vsel %vm906, %v2951, %v2956
    %v2967 = vsel %vm934, %v2966, -1e+30
    %v2968 = vsel %vm935, %v2958, -1e+30
    %v2969 = vsel %vm936, %v2960, -1e+30
    %v2970 = vsel %vm937, %v2961, -1e+30
    %v2971 = vrot.slane %v2946, 1
    %v2972 = vrot.slane %v2947, 1
    %v2973 = vsel %vm946, %v2971, %v2972
    %v2974 = vrot.slane %v2948, 1
    %v2975 = vsel %vm946, %v2972, %v2974
    %v2976 = vrot.slane %v2949, 1
    %v2977 = vsel %vm946, %v2974, %v2976
    %v2983 = vsel %vm946, %v2976, %v2971
    %v2984 = vsel %vm976, %v2973, -1e+30
    %v2985 = vsel %vm977, %v2975, -1e+30
    %v2986 = vsel %vm978, %v2977, -1e+30
    %v2987 = vsel %vm979, %v2983, -1e+30
    %v2988 = vmax.f32 %v2967, %v2984
    %v2989 = vmax.f32 %v2968, %v2985
    %v2990 = vmax.f32 %v2969, %v2986
    %v2991 = vmax.f32 %v2970, %v2987
    %v2992 = vmax.f32 %v2946, %v2988
    %v2993 = vmax.f32 %v2947, %v2989
    %v2994 = vmax.f32 %v2948, %v2990
    %v2995 = vmax.f32 %v2949, %v2991
    %v2996 = vadd.f32 %v2992, %v1676
    %v2997 = vadd.f32 %v2993, %v1677
    %v2998 = vadd.f32 %v2994, %v1678
    %v2999 = vadd.f32 %v2995, %v1679
    %3000 = vst [vmem:[#allocation19] sm:$0xff] %v1676
    %3001 = vst [vmem:[#allocation19 + $0x8] sm:$0xff] %v2268
    %3002 = vst [vmem:[#allocation19 + $0x10] sm:$0xff] %v2902
    %3003 = vst [vmem:[#allocation19 + $0x18] sm:$0xff] %v2996
    %3004 = vst [vmem:[#allocation19 + $0x20] sm:$0xff] %v1677
    %3005 = vst [vmem:[#allocation19 + $0x28] sm:$0xff] %v2269
    %3006 = vst [vmem:[#allocation19 + $0x30] sm:$0xff] %v2903
    %3007 = vst [vmem:[#allocation19 + $0x38] sm:$0xff] %v2997
    %3008 = vst [vmem:[#allocation19 + $0x40] sm:$0xff] %v1678
    %3009 = vst [vmem:[#allocation19 + $0x48] sm:$0xff] %v2270
    %3010 = vst [vmem:[#allocation19 + $0x50] sm:$0xff] %v2904
    %3011 = vst [vmem:[#allocation19 + $0x58] sm:$0xff] %v2998
    %3012 = vst [vmem:[#allocation19 + $0x60] sm:$0xff] %v1679
    %3013 = vst [vmem:[#allocation19 + $0x68] sm:$0xff] %v2271
    %3014 = vst [vmem:[#allocation19 + $0x70] sm:$0xff] %v2905
    %3015 = vst [vmem:[#allocation19 + $0x78] sm:$0xff] %v2999
    // Predicated region
    $region130: #{tpu_custom_call.1} parent=1 // pred_check
      _
    $region131: #{tpu_custom_call.1} parent=1 // pred_check_branch
      %3017 = sbr.rel (0) target = $region133
    $region132: #{tpu_custom_call.1} parent=1 // pred_region
      %s3019 = ssub.s32 2048, 2048
      %3020 = vsyncadd [#allocation4], %s3019
      %s3021 = sshll.u32 [#allocation19], 4
      %s3022 = int_to_ptr.vmem [resolvable:$true] %s3021
      %3027 = dma.vmem_to_hbm [thread:$0]  %s3022, 2048, %s22, [#allocation4], 512, 512, 32
    $region133: #{tpu_custom_call.1} parent=1 // pred_fallthru
      _
    // Predicated region
    $region134: #{tpu_custom_call.1} parent=1 // pred_check
      _
    $region135: #{tpu_custom_call.1} parent=1 // pred_check_branch
      %3029 = sbr.rel (0) target = $region137
    $region136: #{tpu_custom_call.1} parent=1 // pred_region
      %3030 = dma.done [#allocation4], 2048
    $region137: #{tpu_custom_call.1} parent=1 // pred_fallthru
      _
    %3031 = vsyncpa [#allocation3], 1
    %3032 = vsyncpa [#allocation6], 1
    %3033 = vsyncpa [#allocation9], 1
    %3034 = vsyncpa [#allocation12], 1
    %3035 = vsyncpa [#allocation15], 1
    %3036 = vsyncpa [#allocation18], 1
    %3037 = vsyncpa [#allocation4], 1

</llo_original>
